<compile_context>
chip_gen: v7x
topology: tpu7x:2x2x1
jax: 0.10.0
libtpu: 0.0.40
codegen_flags: <defaults>
</compile_context>

<pallas_src>
import functools
import numpy as np
import jax
import jax.numpy as jnp
from jax.experimental import pallas as pl
from jax.experimental.pallas import tpu as pltpu

# ----------------------------- configuration --------------------------------
BATCH_SIZE = 2
C_IN = 16                    # num_input_features
INIT_SIZE = 8                # model_cfg['init_size']
INPUT_SHAPE = (8, 8, 8)      # batch_dict['input_shape']
SPARSE_SHAPE = tuple(np.array(INPUT_SHAPE[::-1]) + np.array([1, 0, 0]))  # (9,8,8)
NUM_VOX_PER_BATCH = 48
VOXEL_SIZE = (0.1, 0.1, 0.2)
PC_RANGE = (0.0, -3.14, -4.0, 50.0, 3.14, 2.0)
BN_EPS = 1e-5
LEAKY_SLOPE = 0.01

# Matmul tiling.
MAX_SINGLE_K = 512           # whole-K-in-one-block limit (all layers fit here)
FALLBACK_TILE_K = 512        # K chunk if a layer ever exceeds MAX_SINGLE_K
TARGET_TILE_M = 640          # aim for ~512-640 row tiles; >=2 tiles for v7x
FAST_PATH_ROWS = 256         # below this a pallas_call is pure overhead
VMEM_LIMIT = 32 * 1024 * 1024  # fits v5e/v6e (128 MiB) and v7x (64 MiB)


def _round_up(x, m):
    return ((x + m - 1) // m) * m


def _pick_m_tiling(n_rows):
    """>=2 M tiles (both v7x TensorCores busy), ~512-640 rows each, 8-aligned."""
    gm = max(2, -(-n_rows // TARGET_TILE_M))
    tm = _round_up(-(-n_rows // gm), 8)
    return gm, tm


# --------------- Pallas kernels: single-K bf16 matmul (+fused epilogue) ------
def _mm_k1_kernel(x_ref, w_ref, o_ref, *, act):
    # Whole K in one block: no accumulator scratch, epilogue written directly.
    y = jnp.dot(x_ref[...], w_ref[...], preferred_element_type=jnp.float32)
    if act == "leaky":
        y = jnp.where(y > 0, y, LEAKY_SLOPE * y)
    o_ref[...] = y.astype(o_ref.dtype)                  # bf16 downcast store


def _mm_k1_stats_kernel(x_ref, w_ref, m_ref, o_ref, s_ref, ss_ref, *, act):
    y = jnp.dot(x_ref[...], w_ref[...], preferred_element_type=jnp.float32)
    if act == "leaky":
        y = jnp.where(y > 0, y, LEAKY_SLOPE * y)
    o_ref[...] = y.astype(o_ref.dtype)
    # fused BatchNorm statistics over ACTIVE voxels of this M-tile:
    # two dedicated outputs -> no iota/where selects in the epilogue.
    ym = y * m_ref[...]                                 # (tm, tn) * (tm, 1)
    s_ref[0] = jnp.sum(ym, axis=0, keepdims=True)       # (1, tn)
    ss_ref[0] = jnp.sum(ym * y, axis=0, keepdims=True)  # (1, tn)


# ------- fallback kernels (K-reduction grid axis; unused at these sizes) -----
def _mm_acc_kernel(x_ref, w_ref, o_ref, acc_ref, *, act):
    k = pl.program_id(2)

    @pl.when(k == 0)
    def _():
        acc_ref[...] = jnp.zeros_like(acc_ref)

    acc_ref[...] += jnp.dot(x_ref[...], w_ref[...],
                            preferred_element_type=jnp.float32)

    @pl.when(k == pl.num_programs(2) - 1)
    def _():
        y = acc_ref[...]
        if act == "leaky":
            y = jnp.where(y > 0, y, LEAKY_SLOPE * y)
        o_ref[...] = y.astype(o_ref.dtype)


def _mm_acc_stats_kernel(x_ref, w_ref, m_ref, o_ref, s_ref, ss_ref, acc_ref,
                         *, act):
    k = pl.program_id(2)

    @pl.when(k == 0)
    def _():
        acc_ref[...] = jnp.zeros_like(acc_ref)

    acc_ref[...] += jnp.dot(x_ref[...], w_ref[...],
                            preferred_element_type=jnp.float32)

    @pl.when(k == pl.num_programs(2) - 1)
    def _():
        y = acc_ref[...]
        if act == "leaky":
            y = jnp.where(y > 0, y, LEAKY_SLOPE * y)
        o_ref[...] = y.astype(o_ref.dtype)
        ym = y * m_ref[...]
        s_ref[0] = jnp.sum(ym, axis=0, keepdims=True)
        ss_ref[0] = jnp.sum(ym * y, axis=0, keepdims=True)


def matmul_fused(x_col, w_col, act="none", mask_col=None):
    """[N,K] @ [K,Cout] with fused LeakyReLU and (optional) masked BN stats.

    Returns y [N, Cout] and, if mask_col is given, per-channel (sum, sumsq)
    over the active (mask==1) rows.
    """
    n, k_dim = x_col.shape
    cout = w_col.shape[1]

    if n < FAST_PATH_ROWS:
        # Deep / downsampled layers only have a handful of voxel rows: keep
        # bf16 operands, fp32 accumulate via preferred_element_type (XLA path).
        y = jnp.dot(x_col.astype(jnp.bfloat16), w_col.astype(jnp.bfloat16),
                    preferred_element_type=jnp.float32)
        if act == "leaky":
            y = jnp.where(y > 0, y, LEAKY_SLOPE * y)
        if mask_col is None:
            return y
        ym = y * mask_col
        return y, jnp.sum(ym, axis=0), jnp.sum(ym * y, axis=0)

    # ------------------------------ tiling -----------------------------------
    k_pad = _round_up(k_dim, 128)
    single_k = k_pad <= MAX_SINGLE_K
    if not single_k:
        k_pad = _round_up(k_dim, FALLBACK_TILE_K)
    n_pad = _round_up(cout, 128)
    tn = 256 if n_pad % 256 == 0 else 128      # 256-wide N when Cout allows
    gn = n_pad // tn
    gm, tm = _pick_m_tiling(n)
    m_pad = gm * tm

    x_p = jnp.pad(x_col.astype(jnp.bfloat16),
                  ((0, m_pad - n), (0, k_pad - k_dim)))
    w_p = jnp.pad(w_col.astype(jnp.bfloat16),
                  ((0, k_pad - k_dim), (0, n_pad - cout)))

    if single_k:
        # gk == 1: 2-D grid, no accumulator, direct epilogue.
        x_spec = pl.BlockSpec((tm, k_pad), lambda i, j: (i, 0))
        w_spec = pl.BlockSpec((k_pad, tn), lambda i, j: (0, j))
        y_spec = pl.BlockSpec((tm, tn), lambda i, j: (i, j))
        cparams = pltpu.CompilerParams(
            dimension_semantics=("parallel", "parallel"),
            vmem_limit_bytes=VMEM_LIMIT)

        if mask_col is None:
            y = pl.pallas_call(
                functools.partial(_mm_k1_kernel, act=act),
                out_shape=jax.ShapeDtypeStruct((m_pad, n_pad), jnp.bfloat16),
                grid_spec=pltpu.PrefetchScalarGridSpec(
                    num_scalar_prefetch=0, grid=(gm, gn),
                    in_specs=[x_spec, w_spec],
                    out_specs=y_spec),
                compiler_params=cparams,
            )(x_p, w_p)
            return y[:n, :cout]

        mask_p = jnp.pad(mask_col.astype(jnp.float32), ((0, m_pad - n), (0, 0)))
        m_spec = pl.BlockSpec((tm, 1), lambda i, j: (i, 0))
        s_spec = pl.BlockSpec((1, 1, tn), lambda i, j: (i, 0, j))
        y, s_out, ss_out = pl.pallas_call(
            functools.partial(_mm_k1_stats_kernel, act=act),
            out_shape=(jax.ShapeDtypeStruct((m_pad, n_pad), jnp.bfloat16),
                       jax.ShapeDtypeStruct((gm, 1, n_pad), jnp.float32),
                       jax.ShapeDtypeStruct((gm, 1, n_pad), jnp.float32)),
            grid_spec=pltpu.PrefetchScalarGridSpec(
                num_scalar_prefetch=0, grid=(gm, gn),
                in_specs=[x_spec, w_spec, m_spec],
                out_specs=(y_spec, s_spec, s_spec)),
            compiler_params=cparams,
        )(x_p, w_p, mask_p)
        s = jnp.sum(s_out, axis=0)[0, :cout]
        ss = jnp.sum(ss_out, axis=0)[0, :cout]
        return y[:n, :cout], s, ss

    # ---------------- fallback: K-reduction axis + fp32 accumulator ----------
    tk = FALLBACK_TILE_K
    gk = k_pad // tk
    x_spec = pl.BlockSpec((tm, tk), lambda i, j, k: (i, k))
    w_spec = pl.BlockSpec((tk, tn), lambda i, j, k: (k, j))
    y_spec = pl.BlockSpec((tm, tn), lambda i, j, k: (i, j))
    cparams = pltpu.CompilerParams(
        dimension_semantics=("parallel", "parallel", "arbitrary"),
        vmem_limit_bytes=VMEM_LIMIT)

    if mask_col is None:
        y = pl.pallas_call(
            functools.partial(_mm_acc_kernel, act=act),
            out_shape=jax.ShapeDtypeStruct((m_pad, n_pad), jnp.bfloat16),
            grid_spec=pltpu.PrefetchScalarGridSpec(
                num_scalar_prefetch=0, grid=(gm, gn, gk),
                in_specs=[x_spec, w_spec], out_specs=y_spec,
                scratch_shapes=[pltpu.VMEM((tm, tn), jnp.float32)]),
            compiler_params=cparams,
        )(x_p, w_p)
        return y[:n, :cout]

    mask_p = jnp.pad(mask_col.astype(jnp.float32), ((0, m_pad - n), (0, 0)))
    m_spec = pl.BlockSpec((tm, 1), lambda i, j, k: (i, 0))
    s_spec = pl.BlockSpec((1, 1, tn), lambda i, j, k: (i, 0, j))
    y, s_out, ss_out = pl.pallas_call(
        functools.partial(_mm_acc_stats_kernel, act=act),
        out_shape=(jax.ShapeDtypeStruct((m_pad, n_pad), jnp.bfloat16),
                   jax.ShapeDtypeStruct((gm, 1, n_pad), jnp.float32),
                   jax.ShapeDtypeStruct((gm, 1, n_pad), jnp.float32)),
        grid_spec=pltpu.PrefetchScalarGridSpec(
            num_scalar_prefetch=0, grid=(gm, gn, gk),
            in_specs=[x_spec, w_spec, m_spec],
            out_specs=(y_spec, s_spec, s_spec),
            scratch_shapes=[pltpu.VMEM((tm, tn), jnp.float32)]),
        compiler_params=cparams,
    )(x_p, w_p, mask_p)
    s = jnp.sum(s_out, axis=0)[0, :cout]
    ss = jnp.sum(ss_out, axis=0)[0, :cout]
    return y[:n, :cout], s, ss


# ---------------------- fused submanifold convolutions -----------------------
def _tap_offsets(kshape, padding):
    k0, k1, k2 = kshape
    p0, p1, p2 = padding
    return [(a - p0, b - p1, c - p2)
            for a in range(k0) for b in range(k1) for c in range(k2)]


def fused_subm_conv(x, mask, branches, act):
    """Fused SubMConv3d branches that share the same input.

    branches: list of (weight [k0,k1,k2,Cin,Cout_b], padding).  Tap sets are
    merged into one union so the activation gather is read once and the matmul
    output is lane-dense over the concatenated Cout.
    Returns (y [B,D0,D1,D2,sum(Cout_b)], sum, sumsq) over active voxels.
    """
    B, D0, D1, D2, cin = x.shape
    offsets, branch_offs = [], []
    for w, pad in branches:
        offs = _tap_offsets(w.shape[:3], pad)
        branch_offs.append(offs)
        for o in offs:
            if o not in offsets:
                offsets.append(o)
    t_union = len(offsets)
    cout_total = int(sum(w.shape[-1] for w, _ in branches))

    # fused weight [T_union*Cin, sum(Cout_b)]; one scatter per branch
    w_parts = []
    for (w, _), offs in zip(branches, branch_offs):
        cb = w.shape[-1]
        wr = w.reshape(len(offs), cin, cb)
        pos = np.array([offsets.index(o) for o in offs], np.int32)
        wb = jnp.zeros((t_union, cin, cb), jnp.float32).at[pos].set(wr)
        w_parts.append(wb)
    w_col = jnp.concatenate(w_parts, axis=-1).reshape(t_union * cin, cout_total)

    # gather union taps once (shared by all fused branches), in bf16
    lo = [max(0, -min(o[d] for o in offsets)) for d in range(3)]
    hi = [max(0, max(o[d] for o in offsets)) for d in range(3)]
    xp = jnp.pad(x.astype(jnp.bfloat16),
                 ((0, 0), (lo[0], hi[0]), (lo[1], hi[1]), (lo[2], hi[2]),
                  (0, 0)))
    patches = []
    for dz, dy, dx in offsets:
        patches.append(jax.lax.slice(
            xp,
            (0, lo[0] + dz, lo[1] + dy, lo[2] + dx, 0),
            (B, lo[0] + dz + D0, lo[1] + dy + D1, lo[2] + dx + D2, cin)))
    # TODO(synk): at production grid sizes stream the tap axis through the
    # Pallas grid (scalar-prefetched offset table -> index_map into the padded
    # activation) instead of materializing the TxCin im2col in HBM.
    x_col = jnp.concatenate(patches, axis=-1).reshape(B * D0 * D1 * D2,
                                                      t_union * cin)
    mask_col = mask.reshape(B * D0 * D1 * D2, 1)
    y, s, ss = matmul_fused(x_col, w_col, act=act, mask_col=mask_col)
    return y.reshape(B, D0, D1, D2, cout_total), s, ss


def subm_block(x, mask, branches, act="leaky", post="mask"):
    """conv(s) -> act -> BatchNorm(active voxels, weight=1 bias=0) -> post."""
    y, s, ss = fused_subm_conv(x, mask, branches, act)
    n_active = jnp.maximum(jnp.sum(mask), 1.0)
    mean = s / n_active
    var = jnp.maximum(ss / n_active - mean * mean, 0.0)
    y = (y.astype(jnp.float32) - mean) * jax.lax.rsqrt(var + BN_EPS)
    if post == "mask":
        y = y * mask                     # SubMConv: keep inactive voxels zero
    elif post == "sigmoid":
        y = jax.nn.sigmoid(y)            # ReconBlock branch (masked later by x)
    couts = [w.shape[-1] for w, _ in branches]
    if len(branches) == 1:
        return [y]
    return jnp.split(y, np.cumsum(couts)[:-1].tolist(), axis=-1)


# ---------------- generic (strided / transposed) dense convs -----------------
def dense_conv3d(x, w, stride=(1, 1, 1), padding=(0, 0, 0), act="none"):
    B, D0, D1, D2, cin = x.shape
    k0, k1, k2, _, cout = w.shape
    s0, s1, s2 = stride
    p0, p1, p2 = padding
    O0 = (D0 + 2 * p0 - k0) // s0 + 1
    O1 = (D1 + 2 * p1 - k1) // s1 + 1
    O2 = (D2 + 2 * p2 - k2) // s2 + 1
    xp = jnp.pad(x.astype(jnp.bfloat16),
                 ((0, 0), (p0, p0), (p1, p1), (p2, p2), (0, 0)))
    patches = []
    for a in range(k0):
        for b in range(k1):
            for c in range(k2):
                patches.append(jax.lax.slice(
                    xp, (0, a, b, c, 0),
                    (B, a + (O0 - 1) * s0 + 1, b + (O1 - 1) * s1 + 1,
                     c + (O2 - 1) * s2 + 1, cin),
                    strides=(1, s0, s1, s2, 1)))
    x_col = jnp.concatenate(patches, axis=-1).reshape(B * O0 * O1 * O2,
                                                      k0 * k1 * k2 * cin)
    y = matmul_fused(x_col, w.reshape(-1, cout), act=act)
    return y.astype(jnp.float32).reshape(B, O0, O1, O2, cout)


def _transpose_axis_taps(k, s, p):
    """Per output-parity r: list of (flipped-kernel index kk, input offset d)."""
    L = k - 1 - p
    per_parity = []
    for r in range(s):
        lst = []
        for kk in range(k):
            t = r + kk - L
            if t % s == 0:
                lst.append((kk, t // s))
        per_parity.append(lst)
    return per_parity


def dense_conv3d_transpose(x, w, stride, padding, target_spatial):
    """SparseInverseConv3d dense equivalent via sub-pixel (parity) decomposition.

    Mathematically identical to zero-stuffing + flipped-kernel dense conv, but
    each output parity class only computes its non-zero taps at input
    resolution (saves ~s0*s1*s2 x MXU FLOPs and im2col traffic).
    """
    B, I0, I1, I2, cin = x.shape
    k0, k1, k2, _, cout = w.shape
    s0, s1, s2 = stride
    p0, p1, p2 = padding
    T0, T1, T2 = target_spatial
    wf = w[::-1, ::-1, ::-1, :, :]                    # flipped taps (conv form)

    taps0 = _transpose_axis_taps(k0, s0, p0)
    taps1 = _transpose_axis_taps(k1, s1, p1)
    taps2 = _transpose_axis_taps(k2, s2, p2)

    def pad_amount(taps, I, T, s):
        lo, hi = 0, 0
        for r in range(s):
            n_r = -(-(T - r) // s)
            if n_r <= 0 or not taps[r]:
                continue
            offs = [d for _, d in taps[r]]
            lo = max(lo, -min(offs))
            hi = max(hi, (n_r - 1) + max(offs) - (I - 1))
        return max(lo, 0), max(hi, 0)

    l0, h0 = pad_amount(taps0, I0, T0, s0)
    l1, h1 = pad_amount(taps1, I1, T1, s1)
    l2, h2 = pad_amount(taps2, I2, T2, s2)
    xp = jnp.pad(x.astype(jnp.bfloat16),
                 ((0, 0), (l0, h0), (l1, h1), (l2, h2), (0, 0)))

    out = jnp.zeros((B, T0, T1, T2, cout), jnp.float32)
    for r0 in range(s0):
        n0 = -(-(T0 - r0) // s0)
        if n0 <= 0:
            continue
        for r1 in range(s1):
            n1 = -(-(T1 - r1) // s1)
            if n1 <= 0:
                continue
            for r2 in range(s2):
                n2 = -(-(T2 - r2) // s2)
                if n2 <= 0:
                    continue
                patches, w_taps = [], []
                for kk0, d0 in taps0[r0]:
                    for kk1, d1 in taps1[r1]:
                        for kk2, d2 in taps2[r2]:
                            patches.append(jax.lax.slice(
                                xp,
                                (0, l0 + d0, l1 + d1, l2 + d2, 0),
                                (B, l0 + d0 + n0, l1 + d1 + n1,
                                 l2 + d2 + n2, cin)))
                            w_taps.append(wf[kk0, kk1, kk2])
                if not patches:
                    continue
                x_col = jnp.concatenate(patches, axis=-1).reshape(
                    B * n0 * n1 * n2, len(patches) * cin)
                w_col = jnp.concatenate(w_taps, axis=0)       # (T*cin, cout)
                y = matmul_fused(x_col, w_col, act="none")
                y = y.astype(jnp.float32).reshape(B, n0, n1, n2, cout)
                out = out.at[:, r0::s0, r1::s1, r2::s2, :].set(y)
    return out


def pool_mask(mask, stride):
    """Binary 3x3x3 dilation with stride — pure VPU, no degenerate matmul."""
    s0, s1, s2 = stride
    m = jax.lax.reduce_window(
        mask, 0.0, jax.lax.max,
        window_dimensions=(1, 3, 3, 3, 1),
        window_strides=(1, s0, s1, s2, 1),
        padding=((0, 0), (1, 1), (1, 1), (1, 1), (0, 0)))
    return (m > 0.5).astype(jnp.float32)


# ------------------------------- blocks -------------------------------------
def res_context_block(x, mask, p, nm):
    # conv1 (1x3x3) and conv2 (3x1x3) share x -> one fused Pallas matmul
    sc, rA = subm_block(x, mask, [(p[f"{nm}.conv1"], (0, 1, 1)),
                                  (p[f"{nm}.conv2"], (1, 0, 1))])
    sc = subm_block(sc, mask, [(p[f"{nm}.conv1_2"], (1, 0, 1))])[0]
    rA = subm_block(rA, mask, [(p[f"{nm}.conv3"], (0, 1, 1))])[0]
    return rA + sc


def res_block(x, mask, p, nm, pool_stride):
    # conv1 (3x1x3) and conv2 (1x3x3) share x -> one fused Pallas matmul
    sc, rA = subm_block(x, mask, [(p[f"{nm}.conv1"], (1, 0, 1)),
                                  (p[f"{nm}.conv2"], (0, 1, 1))])
    sc = subm_block(sc, mask, [(p[f"{nm}.conv1_2"], (0, 1, 1))])[0]
    rA = subm_block(rA, mask, [(p[f"{nm}.conv3"], (1, 0, 1))])[0]
    rA = rA + sc
    new_mask = pool_mask(mask, pool_stride)
    rB = dense_conv3d(rA, p[f"{nm}.pool"], pool_stride, (1, 1, 1)) * new_mask
    return rB, new_mask, rA


def up_block(x, mask_in, skip, mask_out, p, nm, pool_stride):
    upA = subm_block(x, mask_in, [(p[f"{nm}.trans"], (1, 1, 1))])[0]
    upA = dense_conv3d_transpose(upA, p[f"{nm}.up"], pool_stride, (1, 1, 1),
                                 skip.shape[1:4])
    upA = upA * mask_out + skip
    upE = subm_block(upA, mask_out, [(p[f"{nm}.conv1"], (0, 1, 1))])[0]
    upE = subm_block(upE, mask_out, [(p[f"{nm}.conv2"], (1, 0, 1))])[0]
    upE = subm_block(upE, mask_out, [(p[f"{nm}.conv3"], (1, 1, 1))])[0]
    return upE


def recon_block(x, mask, p, nm):
    # all three convs share x -> one fused Pallas matmul (union of 7 taps)
    s1, s2, s3 = subm_block(x, mask,
                            [(p[f"{nm}.conv1"], (1, 0, 0)),
                             (p[f"{nm}.conv1_2"], (0, 1, 0)),
                             (p[f"{nm}.conv1_3"], (0, 0, 1))],
                            act="none", post="sigmoid")
    return (s1 + s2 + s3) * x


# ----------------------------- parameters ------------------------------------
def make_params(key, c_in, s):
    params = {}

    def add(name, kshape, cin, cout):
        nonlocal key
        key, sub = jax.random.split(key)
        fan_in = int(np.prod(kshape)) * cin
        params[name] = jax.random.normal(sub, (*kshape, cin, cout),
                                         jnp.float32) / np.sqrt(fan_in)

    # downCntx: ResContextBlock(c_in -> s)
    add("downCntx.conv1", (1, 3, 3), c_in, s)
    add("downCntx.conv1_2", (3, 1, 3), s, s)
    add("downCntx.conv2", (3, 1, 3), c_in, s)
    add("downCntx.conv3", (1, 3, 3), s, s)

    def resblock(nm, cin, cout):
        add(f"{nm}.conv1", (3, 1, 3), cin, cout)
        add(f"{nm}.conv1_2", (1, 3, 3), cout, cout)
        add(f"{nm}.conv2", (1, 3, 3), cin, cout)
        add(f"{nm}.conv3", (3, 1, 3), cout, cout)
        add(f"{nm}.pool", (3, 3, 3), cout, cout)

    resblock("resBlock2", s, 2 * s)
    resblock("resBlock3", 2 * s, 4 * s)
    resblock("resBlock4", 4 * s, 8 * s)
    resblock("resBlock5", 8 * s, 16 * s)

    def upblock(nm, cin, cout):
        add(f"{nm}.trans", (3, 3, 3), cin, cout)
        add(f"{nm}.conv1", (1, 3, 3), cout, cout)
        add(f"{nm}.conv2", (3, 1, 3), cout, cout)
        add(f"{nm}.conv3", (3, 3, 3), cout, cout)
        add(f"{nm}.up", (3, 3, 3), cout, cout)

    upblock("upBlock0", 16 * s, 16 * s)
    upblock("upBlock1", 16 * s, 8 * s)
    upblock("upBlock2", 8 * s, 4 * s)
    upblock("upBlock3", 4 * s, 2 * s)

    add("ReconNet.conv1", (3, 1, 1), 2 * s, 2 * s)
    add("ReconNet.conv1_2", (1, 3, 1), 2 * s, 2 * s)
    add("ReconNet.conv1_3", (1, 1, 3), 2 * s, 2 * s)
    return params


# ------------------------------- forward -------------------------------------
def unet_forward(params, voxel_features, voxel_coords):
    B = BATCH_SIZE
    D0, D1, D2 = SPARSE_SHAPE
    C = voxel_features.shape[1]
    bi, zi, yi, xi = (voxel_coords[:, 0], voxel_coords[:, 1],
                      voxel_coords[:, 2], voxel_coords[:, 3])

    x = jnp.zeros((B, D0, D1, D2, C), jnp.float32).at[bi, zi, yi, xi].set(
        voxel_features)
    mask0 = jnp.zeros((B, D0, D1, D2, 1), jnp.float32).at[bi, zi, yi, xi].set(1.0)

    ret = res_context_block(x, mask0, params, "downCntx")
    d1c, m1, d1b = res_block(ret, mask0, params, "resBlock2", (2, 2, 2))
    d2c, m2, d2b = res_block(d1c, m1, params, "resBlock3", (2, 2, 2))
    d3c, m3, d3b = res_block(d2c, m2, params, "resBlock4", (2, 2, 1))
    d4c, m4, d4b = res_block(d3c, m3, params, "resBlock5", (2, 2, 1))

    up4e = up_block(d4c, m4, d4b, m3, params, "upBlock0", (2, 2, 1))
    up3e = up_block(up4e, m3, d3b, m2, params, "upBlock1", (2, 2, 1))
    up2e = up_block(up3e, m2, d2b, m1, params, "upBlock2", (2, 2, 2))
    up1e = up_block(up2e, m1, d1b, mask0, params, "upBlock3", (2, 2, 2))

    up0e = recon_block(up1e, mask0, params, "ReconNet")
    feats = jnp.concatenate([up0e, up1e], axis=-1)

    conv_point_features = feats[bi, zi, yi, xi]          # (N, 4*init_size)
    vsz = jnp.asarray(VOXEL_SIZE, jnp.float32)
    pcr = jnp.asarray(PC_RANGE[:3], jnp.float32)
    centers = (voxel_coords[:, [3, 2, 1]].astype(jnp.float32) + 0.5) * vsz + pcr
    conv_point_coords = jnp.concatenate(
        [voxel_coords[:, 0:1].astype(jnp.float32), centers], axis=1)
    return conv_point_features, conv_point_coords


# --------------------------------- main --------------------------------------
if __name__ == "__main__":
    key = jax.random.PRNGKey(0)
    k_coord, k_feat, k_param = jax.random.split(key, 3)

    D0, D1, D2 = SPARSE_SHAPE
    coords_list = []
    for b in range(BATCH_SIZE):
        kb = jax.random.fold_in(k_coord, b)
        flat = jax.random.permutation(kb, D0 * D1 * D2)[:NUM_VOX_PER_BATCH]
        z = flat // (D1 * D2)
        y = (flat // D2) % D1
        xx = flat % D2
        coords_list.append(
            jnp.stack([jnp.full_like(z, b), z, y, xx], axis=1))
    voxel_coords = jnp.concatenate(coords_list, axis=0).astype(jnp.int32)
    voxel_features = jax.random.normal(
        k_feat, (voxel_coords.shape[0], C_IN), jnp.float32)

    params = make_params(k_param, C_IN, INIT_SIZE)

    fwd = jax.jit(unet_forward)
    conv_point_features, conv_point_coords = fwd(params, voxel_features,
                                                 voxel_coords)
    jax.block_until_ready((conv_point_features, conv_point_coords))

    assert conv_point_features.shape == (voxel_coords.shape[0], 4 * INIT_SIZE)
    assert conv_point_coords.shape == (voxel_coords.shape[0], 4)
    assert bool(jnp.all(jnp.isfinite(conv_point_features)))
    print("KERNEL_OK")
</pallas_src>

<mosaic_0001>
module attributes {stable_mosaic.version = 11 : i64} {
  func.func @_mm_k1_stats_kernel(%arg0: i32, %arg1: i32, %arg2: memref<576x256xbf16, #tpu.memory_space<vmem>>, %arg3: memref<256x128xbf16, #tpu.memory_space<vmem>>, %arg4: memref<576x1xf32, #tpu.memory_space<vmem>>, %arg5: memref<576x128xbf16, #tpu.memory_space<vmem>>, %arg6: memref<1x1x128xf32, #tpu.memory_space<vmem>>, %arg7: memref<1x1x128xf32, #tpu.memory_space<vmem>>) attributes {dimension_semantics = [#tpu.dimension_semantics<parallel>, #tpu.dimension_semantics<parallel>], iteration_bounds = array<i64: 2, 1>, scalar_prefetch = 0 : i64, scratch_operands = 0 : i64, tpu.core_type = #tpu.core_type<tc>, window_params = [{transform_indices = @transform_0, window_bounds = array<i64: 576, 256>}, {transform_indices = @transform_1, window_bounds = array<i64: 256, 128>}, {transform_indices = @transform_2, window_bounds = array<i64: 576, 1>}, {transform_indices = @transform_3, window_bounds = array<i64: 576, 128>}, {transform_indices = @transform_4, window_bounds = array<i64: 1, 1, 128>}, {transform_indices = @transform_5, window_bounds = array<i64: 1, 1, 128>}]} {
    %c0 = arith.constant 0 : index
    %c0_0 = arith.constant 0 : index
    %0 = vector.load %arg2[%c0, %c0_0] : memref<576x256xbf16, #tpu.memory_space<vmem>>, vector<576x256xbf16>
    %c0_1 = arith.constant 0 : index
    %c0_2 = arith.constant 0 : index
    %1 = vector.load %arg3[%c0_1, %c0_2] : memref<256x128xbf16, #tpu.memory_space<vmem>>, vector<256x128xbf16>
    %cst = arith.constant dense<0.000000e+00> : vector<576x128xf32>
    %2 = tpu.matmul %0, %1, %cst {dimension_numbers = #tpu.dot_dimension_numbers<[1], [0], [0], [1], [0, 0, 1, 1], [], []>} : vector<576x256xbf16>, vector<256x128xbf16>, vector<576x128xf32> -> vector<576x128xf32>
    %cst_3 = arith.constant 0.000000e+00 : f32
    %3 = vector.broadcast %cst_3 : f32 to vector<576x128xf32>
    %4 = arith.cmpf ogt, %2, %3 : vector<576x128xf32>
    %cst_4 = arith.constant 0.00999999977 : f32
    %5 = vector.broadcast %cst_4 : f32 to vector<576x128xf32>
    %6 = arith.mulf %5, %2 : vector<576x128xf32>
    %7 = arith.select %4, %2, %6 : vector<576x128xi1>, vector<576x128xf32>
    %8 = arith.truncf %7 : vector<576x128xf32> to vector<576x128xbf16>
    %c0_5 = arith.constant 0 : index
    %c0_6 = arith.constant 0 : index
    %9 = vector.load %arg5[%c0_5, %c0_6] : memref<576x128xbf16, #tpu.memory_space<vmem>>, vector<576x128xbf16>
    tpu.vector_store %arg5[%c0_5, %c0_6], %8 {strides = array<i32>} : memref<576x128xbf16, #tpu.memory_space<vmem>>, vector<576x128xbf16>,
    %c0_7 = arith.constant 0 : index
    %c0_8 = arith.constant 0 : index
    %10 = vector.load %arg4[%c0_7, %c0_8] : memref<576x1xf32, #tpu.memory_space<vmem>>, vector<576x1xf32>
    %11 = vector.broadcast %10 : vector<576x1xf32> to vector<576x128xf32>
    %12 = arith.mulf %7, %11 : vector<576x128xf32>
    %cst_9 = arith.constant dense<0.000000e+00> : vector<128xf32>
    %13 = vector.multi_reduction <add>, %12, %cst_9 [0] : vector<576x128xf32> to vector<128xf32>
    %14 = vector.shape_cast %13 : vector<128xf32> to vector<1x128xf32>
    %c0_10 = arith.constant 0 : index
    %c0_11 = arith.constant 0 : index
    %c0_12 = arith.constant 0 : index
    %15 = vector.load %arg6[%c0_10, %c0_11, %c0_12] : memref<1x1x128xf32, #tpu.memory_space<vmem>>, vector<1x1x128xf32>
    %16 = vector.shape_cast %15 : vector<1x1x128xf32> to vector<1x128xf32>
    %17 = vector.shape_cast %14 : vector<1x128xf32> to vector<1x1x128xf32>
    tpu.vector_store %arg6[%c0_10, %c0_11, %c0_12], %17 {strides = array<i32>} : memref<1x1x128xf32, #tpu.memory_space<vmem>>, vector<1x1x128xf32>,
    %18 = arith.mulf %12, %7 : vector<576x128xf32>
    %cst_13 = arith.constant dense<0.000000e+00> : vector<128xf32>
    %19 = vector.multi_reduction <add>, %18, %cst_13 [0] : vector<576x128xf32> to vector<128xf32>
    %20 = vector.shape_cast %19 : vector<128xf32> to vector<1x128xf32>
    %c0_14 = arith.constant 0 : index
    %c0_15 = arith.constant 0 : index
    %c0_16 = arith.constant 0 : index
    %21 = vector.load %arg7[%c0_14, %c0_15, %c0_16] : memref<1x1x128xf32, #tpu.memory_space<vmem>>, vector<1x1x128xf32>
    %22 = vector.shape_cast %21 : vector<1x1x128xf32> to vector<1x128xf32>
    %23 = vector.shape_cast %20 : vector<1x128xf32> to vector<1x1x128xf32>
    tpu.vector_store %arg7[%c0_14, %c0_15, %c0_16], %23 {strides = array<i32>} : memref<1x1x128xf32, #tpu.memory_space<vmem>>, vector<1x1x128xf32>,
    return
  }
  func.func @transform_0(%arg0: i32, %arg1: i32) -> (i32, i32) {
    %c0_i32 = arith.constant 0 : i32
    %c0_i32_0 = arith.constant 0 : i32
    return %arg0, %c0_i32 : i32, i32
  }
  func.func @transform_1(%arg0: i32, %arg1: i32) -> (i32, i32) {
    %c0_i32 = arith.constant 0 : i32
    %c0_i32_0 = arith.constant 0 : i32
    return %c0_i32, %arg1 : i32, i32
  }
  func.func @transform_2(%arg0: i32, %arg1: i32) -> (i32, i32) {
    %c0_i32 = arith.constant 0 : i32
    %c0_i32_0 = arith.constant 0 : i32
    return %arg0, %c0_i32 : i32, i32
  }
  func.func @transform_3(%arg0: i32, %arg1: i32) -> (i32, i32) {
    %c0_i32 = arith.constant 0 : i32
    return %arg0, %arg1 : i32, i32
  }
  func.func @transform_4(%arg0: i32, %arg1: i32) -> (i32, i32, i32) {
    %c0_i32 = arith.constant 0 : i32
    %c0_i32_0 = arith.constant 0 : i32
    return %arg0, %c0_i32, %arg1 : i32, i32, i32
  }
  func.func @transform_5(%arg0: i32, %arg1: i32) -> (i32, i32, i32) {
    %c0_i32 = arith.constant 0 : i32
    %c0_i32_0 = arith.constant 0 : i32
    return %arg0, %c0_i32, %arg1 : i32, i32, i32
  }
}

module attributes {stable_mosaic.version = 11 : i64} {
  func.func @_mm_k1_stats_kernel(%arg0: i32, %arg1: i32, %arg2: memref<576x128xbf16, #tpu.memory_space<vmem>>, %arg3: memref<128x128xbf16, #tpu.memory_space<vmem>>, %arg4: memref<576x1xf32, #tpu.memory_space<vmem>>, %arg5: memref<576x128xbf16, #tpu.memory_space<vmem>>, %arg6: memref<1x1x128xf32, #tpu.memory_space<vmem>>, %arg7: memref<1x1x128xf32, #tpu.memory_space<vmem>>) attributes {dimension_semantics = [#tpu.dimension_semantics<parallel>, #tpu.dimension_semantics<parallel>], iteration_bounds = array<i64: 2, 1>, scalar_prefetch = 0 : i64, scratch_operands = 0 : i64, tpu.core_type = #tpu.core_type<tc>, window_params = [{transform_indices = @transform_0, window_bounds = array<i64: 576, 128>}, {transform_indices = @transform_1, window_bounds = array<i64: 128, 128>}, {transform_indices = @transform_2, window_bounds = array<i64: 576, 1>}, {transform_indices = @transform_3, window_bounds = array<i64: 576, 128>}, {transform_indices = @transform_4, window_bounds = array<i64: 1, 1, 128>}, {transform_indices = @transform_5, window_bounds = array<i64: 1, 1, 128>}]} {
    %c0 = arith.constant 0 : index
    %c0_0 = arith.constant 0 : index
    %0 = vector.load %arg2[%c0, %c0_0] : memref<576x128xbf16, #tpu.memory_space<vmem>>, vector<576x128xbf16>
    %c0_1 = arith.constant 0 : index
    %c0_2 = arith.constant 0 : index
    %1 = vector.load %arg3[%c0_1, %c0_2] : memref<128x128xbf16, #tpu.memory_space<vmem>>, vector<128x128xbf16>
    %cst = arith.constant dense<0.000000e+00> : vector<576x128xf32>
    %2 = tpu.matmul %0, %1, %cst {dimension_numbers = #tpu.dot_dimension_numbers<[1], [0], [0], [1], [0, 0, 1, 1], [], []>} : vector<576x128xbf16>, vector<128x128xbf16>, vector<576x128xf32> -> vector<576x128xf32>
    %cst_3 = arith.constant 0.000000e+00 : f32
    %3 = vector.broadcast %cst_3 : f32 to vector<576x128xf32>
    %4 = arith.cmpf ogt, %2, %3 : vector<576x128xf32>
    %cst_4 = arith.constant 0.00999999977 : f32
    %5 = vector.broadcast %cst_4 : f32 to vector<576x128xf32>
    %6 = arith.mulf %5, %2 : vector<576x128xf32>
    %7 = arith.select %4, %2, %6 : vector<576x128xi1>, vector<576x128xf32>
    %8 = arith.truncf %7 : vector<576x128xf32> to vector<576x128xbf16>
    %c0_5 = arith.constant 0 : index
    %c0_6 = arith.constant 0 : index
    %9 = vector.load %arg5[%c0_5, %c0_6] : memref<576x128xbf16, #tpu.memory_space<vmem>>, vector<576x128xbf16>
    tpu.vector_store %arg5[%c0_5, %c0_6], %8 {strides = array<i32>} : memref<576x128xbf16, #tpu.memory_space<vmem>>, vector<576x128xbf16>,
    %c0_7 = arith.constant 0 : index
    %c0_8 = arith.constant 0 : index
    %10 = vector.load %arg4[%c0_7, %c0_8] : memref<576x1xf32, #tpu.memory_space<vmem>>, vector<576x1xf32>
    %11 = vector.broadcast %10 : vector<576x1xf32> to vector<576x128xf32>
    %12 = arith.mulf %7, %11 : vector<576x128xf32>
    %cst_9 = arith.constant dense<0.000000e+00> : vector<128xf32>
    %13 = vector.multi_reduction <add>, %12, %cst_9 [0] : vector<576x128xf32> to vector<128xf32>
    %14 = vector.shape_cast %13 : vector<128xf32> to vector<1x128xf32>
    %c0_10 = arith.constant 0 : index
    %c0_11 = arith.constant 0 : index
    %c0_12 = arith.constant 0 : index
    %15 = vector.load %arg6[%c0_10, %c0_11, %c0_12] : memref<1x1x128xf32, #tpu.memory_space<vmem>>, vector<1x1x128xf32>
    %16 = vector.shape_cast %15 : vector<1x1x128xf32> to vector<1x128xf32>
    %17 = vector.shape_cast %14 : vector<1x128xf32> to vector<1x1x128xf32>
    tpu.vector_store %arg6[%c0_10, %c0_11, %c0_12], %17 {strides = array<i32>} : memref<1x1x128xf32, #tpu.memory_space<vmem>>, vector<1x1x128xf32>,
    %18 = arith.mulf %12, %7 : vector<576x128xf32>
    %cst_13 = arith.constant dense<0.000000e+00> : vector<128xf32>
    %19 = vector.multi_reduction <add>, %18, %cst_13 [0] : vector<576x128xf32> to vector<128xf32>
    %20 = vector.shape_cast %19 : vector<128xf32> to vector<1x128xf32>
    %c0_14 = arith.constant 0 : index
    %c0_15 = arith.constant 0 : index
    %c0_16 = arith.constant 0 : index
    %21 = vector.load %arg7[%c0_14, %c0_15, %c0_16] : memref<1x1x128xf32, #tpu.memory_space<vmem>>, vector<1x1x128xf32>
    %22 = vector.shape_cast %21 : vector<1x1x128xf32> to vector<1x128xf32>
    %23 = vector.shape_cast %20 : vector<1x128xf32> to vector<1x1x128xf32>
    tpu.vector_store %arg7[%c0_14, %c0_15, %c0_16], %23 {strides = array<i32>} : memref<1x1x128xf32, #tpu.memory_space<vmem>>, vector<1x1x128xf32>,
    return
  }
  func.func @transform_0(%arg0: i32, %arg1: i32) -> (i32, i32) {
    %c0_i32 = arith.constant 0 : i32
    %c0_i32_0 = arith.constant 0 : i32
    return %arg0, %c0_i32 : i32, i32
  }
  func.func @transform_1(%arg0: i32, %arg1: i32) -> (i32, i32) {
    %c0_i32 = arith.constant 0 : i32
    %c0_i32_0 = arith.constant 0 : i32
    return %c0_i32, %arg1 : i32, i32
  }
  func.func @transform_2(%arg0: i32, %arg1: i32) -> (i32, i32) {
    %c0_i32 = arith.constant 0 : i32
    %c0_i32_0 = arith.constant 0 : i32
    return %arg0, %c0_i32 : i32, i32
  }
  func.func @transform_3(%arg0: i32, %arg1: i32) -> (i32, i32) {
    %c0_i32 = arith.constant 0 : i32
    return %arg0, %arg1 : i32, i32
  }
  func.func @transform_4(%arg0: i32, %arg1: i32) -> (i32, i32, i32) {
    %c0_i32 = arith.constant 0 : i32
    %c0_i32_0 = arith.constant 0 : i32
    return %arg0, %c0_i32, %arg1 : i32, i32, i32
  }
  func.func @transform_5(%arg0: i32, %arg1: i32) -> (i32, i32, i32) {
    %c0_i32 = arith.constant 0 : i32
    %c0_i32_0 = arith.constant 0 : i32
    return %arg0, %c0_i32, %arg1 : i32, i32, i32
  }
}

module attributes {stable_mosaic.version = 11 : i64} {
  func.func @_mm_k1_stats_kernel(%arg0: i32, %arg1: i32, %arg2: memref<576x512xbf16, #tpu.memory_space<vmem>>, %arg3: memref<512x128xbf16, #tpu.memory_space<vmem>>, %arg4: memref<576x1xf32, #tpu.memory_space<vmem>>, %arg5: memref<576x128xbf16, #tpu.memory_space<vmem>>, %arg6: memref<1x1x128xf32, #tpu.memory_space<vmem>>, %arg7: memref<1x1x128xf32, #tpu.memory_space<vmem>>) attributes {dimension_semantics = [#tpu.dimension_semantics<parallel>, #tpu.dimension_semantics<parallel>], iteration_bounds = array<i64: 2, 1>, scalar_prefetch = 0 : i64, scratch_operands = 0 : i64, tpu.core_type = #tpu.core_type<tc>, window_params = [{transform_indices = @transform_0, window_bounds = array<i64: 576, 512>}, {transform_indices = @transform_1, window_bounds = array<i64: 512, 128>}, {transform_indices = @transform_2, window_bounds = array<i64: 576, 1>}, {transform_indices = @transform_3, window_bounds = array<i64: 576, 128>}, {transform_indices = @transform_4, window_bounds = array<i64: 1, 1, 128>}, {transform_indices = @transform_5, window_bounds = array<i64: 1, 1, 128>}]} {
    %c0 = arith.constant 0 : index
    %c0_0 = arith.constant 0 : index
    %0 = vector.load %arg2[%c0, %c0_0] : memref<576x512xbf16, #tpu.memory_space<vmem>>, vector<576x512xbf16>
    %c0_1 = arith.constant 0 : index
    %c0_2 = arith.constant 0 : index
    %1 = vector.load %arg3[%c0_1, %c0_2] : memref<512x128xbf16, #tpu.memory_space<vmem>>, vector<512x128xbf16>
    %cst = arith.constant dense<0.000000e+00> : vector<576x128xf32>
    %2 = tpu.matmul %0, %1, %cst {dimension_numbers = #tpu.dot_dimension_numbers<[1], [0], [0], [1], [0, 0, 1, 1], [], []>} : vector<576x512xbf16>, vector<512x128xbf16>, vector<576x128xf32> -> vector<576x128xf32>
    %cst_3 = arith.constant 0.000000e+00 : f32
    %3 = vector.broadcast %cst_3 : f32 to vector<576x128xf32>
    %4 = arith.cmpf ogt, %2, %3 : vector<576x128xf32>
    %cst_4 = arith.constant 0.00999999977 : f32
    %5 = vector.broadcast %cst_4 : f32 to vector<576x128xf32>
    %6 = arith.mulf %5, %2 : vector<576x128xf32>
    %7 = arith.select %4, %2, %6 : vector<576x128xi1>, vector<576x128xf32>
    %8 = arith.truncf %7 : vector<576x128xf32> to vector<576x128xbf16>
    %c0_5 = arith.constant 0 : index
    %c0_6 = arith.constant 0 : index
    %9 = vector.load %arg5[%c0_5, %c0_6] : memref<576x128xbf16, #tpu.memory_space<vmem>>, vector<576x128xbf16>
    tpu.vector_store %arg5[%c0_5, %c0_6], %8 {strides = array<i32>} : memref<576x128xbf16, #tpu.memory_space<vmem>>, vector<576x128xbf16>,
    %c0_7 = arith.constant 0 : index
    %c0_8 = arith.constant 0 : index
    %10 = vector.load %arg4[%c0_7, %c0_8] : memref<576x1xf32, #tpu.memory_space<vmem>>, vector<576x1xf32>
    %11 = vector.broadcast %10 : vector<576x1xf32> to vector<576x128xf32>
    %12 = arith.mulf %7, %11 : vector<576x128xf32>
    %cst_9 = arith.constant dense<0.000000e+00> : vector<128xf32>
    %13 = vector.multi_reduction <add>, %12, %cst_9 [0] : vector<576x128xf32> to vector<128xf32>
    %14 = vector.shape_cast %13 : vector<128xf32> to vector<1x128xf32>
    %c0_10 = arith.constant 0 : index
    %c0_11 = arith.constant 0 : index
    %c0_12 = arith.constant 0 : index
    %15 = vector.load %arg6[%c0_10, %c0_11, %c0_12] : memref<1x1x128xf32, #tpu.memory_space<vmem>>, vector<1x1x128xf32>
    %16 = vector.shape_cast %15 : vector<1x1x128xf32> to vector<1x128xf32>
    %17 = vector.shape_cast %14 : vector<1x128xf32> to vector<1x1x128xf32>
    tpu.vector_store %arg6[%c0_10, %c0_11, %c0_12], %17 {strides = array<i32>} : memref<1x1x128xf32, #tpu.memory_space<vmem>>, vector<1x1x128xf32>,
    %18 = arith.mulf %12, %7 : vector<576x128xf32>
    %cst_13 = arith.constant dense<0.000000e+00> : vector<128xf32>
    %19 = vector.multi_reduction <add>, %18, %cst_13 [0] : vector<576x128xf32> to vector<128xf32>
    %20 = vector.shape_cast %19 : vector<128xf32> to vector<1x128xf32>
    %c0_14 = arith.constant 0 : index
    %c0_15 = arith.constant 0 : index
    %c0_16 = arith.constant 0 : index
    %21 = vector.load %arg7[%c0_14, %c0_15, %c0_16] : memref<1x1x128xf32, #tpu.memory_space<vmem>>, vector<1x1x128xf32>
    %22 = vector.shape_cast %21 : vector<1x1x128xf32> to vector<1x128xf32>
    %23 = vector.shape_cast %20 : vector<1x128xf32> to vector<1x1x128xf32>
    tpu.vector_store %arg7[%c0_14, %c0_15, %c0_16], %23 {strides = array<i32>} : memref<1x1x128xf32, #tpu.memory_space<vmem>>, vector<1x1x128xf32>,
    return
  }
  func.func @transform_0(%arg0: i32, %arg1: i32) -> (i32, i32) {
    %c0_i32 = arith.constant 0 : i32
    %c0_i32_0 = arith.constant 0 : i32
    return %arg0, %c0_i32 : i32, i32
  }
  func.func @transform_1(%arg0: i32, %arg1: i32) -> (i32, i32) {
    %c0_i32 = arith.constant 0 : i32
    %c0_i32_0 = arith.constant 0 : i32
    return %c0_i32, %arg1 : i32, i32
  }
  func.func @transform_2(%arg0: i32, %arg1: i32) -> (i32, i32) {
    %c0_i32 = arith.constant 0 : i32
    %c0_i32_0 = arith.constant 0 : i32
    return %arg0, %c0_i32 : i32, i32
  }
  func.func @transform_3(%arg0: i32, %arg1: i32) -> (i32, i32) {
    %c0_i32 = arith.constant 0 : i32
    return %arg0, %arg1 : i32, i32
  }
  func.func @transform_4(%arg0: i32, %arg1: i32) -> (i32, i32, i32) {
    %c0_i32 = arith.constant 0 : i32
    %c0_i32_0 = arith.constant 0 : i32
    return %arg0, %c0_i32, %arg1 : i32, i32, i32
  }
  func.func @transform_5(%arg0: i32, %arg1: i32) -> (i32, i32, i32) {
    %c0_i32 = arith.constant 0 : i32
    %c0_i32_0 = arith.constant 0 : i32
    return %arg0, %c0_i32, %arg1 : i32, i32, i32
  }
}

module attributes {stable_mosaic.version = 11 : i64} {
  func.func @_mm_k1_stats_kernel(%arg0: i32, %arg1: i32, %arg2: memref<576x128xbf16, #tpu.memory_space<vmem>>, %arg3: memref<128x128xbf16, #tpu.memory_space<vmem>>, %arg4: memref<576x1xf32, #tpu.memory_space<vmem>>, %arg5: memref<576x128xbf16, #tpu.memory_space<vmem>>, %arg6: memref<1x1x128xf32, #tpu.memory_space<vmem>>, %arg7: memref<1x1x128xf32, #tpu.memory_space<vmem>>) attributes {dimension_semantics = [#tpu.dimension_semantics<parallel>, #tpu.dimension_semantics<parallel>], iteration_bounds = array<i64: 2, 1>, scalar_prefetch = 0 : i64, scratch_operands = 0 : i64, tpu.core_type = #tpu.core_type<tc>, window_params = [{transform_indices = @transform_0, window_bounds = array<i64: 576, 128>}, {transform_indices = @transform_1, window_bounds = array<i64: 128, 128>}, {transform_indices = @transform_2, window_bounds = array<i64: 576, 1>}, {transform_indices = @transform_3, window_bounds = array<i64: 576, 128>}, {transform_indices = @transform_4, window_bounds = array<i64: 1, 1, 128>}, {transform_indices = @transform_5, window_bounds = array<i64: 1, 1, 128>}]} {
    %c0 = arith.constant 0 : index
    %c0_0 = arith.constant 0 : index
    %0 = vector.load %arg2[%c0, %c0_0] : memref<576x128xbf16, #tpu.memory_space<vmem>>, vector<576x128xbf16>
    %c0_1 = arith.constant 0 : index
    %c0_2 = arith.constant 0 : index
    %1 = vector.load %arg3[%c0_1, %c0_2] : memref<128x128xbf16, #tpu.memory_space<vmem>>, vector<128x128xbf16>
    %cst = arith.constant dense<0.000000e+00> : vector<576x128xf32>
    %2 = tpu.matmul %0, %1, %cst {dimension_numbers = #tpu.dot_dimension_numbers<[1], [0], [0], [1], [0, 0, 1, 1], [], []>} : vector<576x128xbf16>, vector<128x128xbf16>, vector<576x128xf32> -> vector<576x128xf32>
    %3 = arith.truncf %2 : vector<576x128xf32> to vector<576x128xbf16>
    %c0_3 = arith.constant 0 : index
    %c0_4 = arith.constant 0 : index
    %4 = vector.load %arg5[%c0_3, %c0_4] : memref<576x128xbf16, #tpu.memory_space<vmem>>, vector<576x128xbf16>
    tpu.vector_store %arg5[%c0_3, %c0_4], %3 {strides = array<i32>} : memref<576x128xbf16, #tpu.memory_space<vmem>>, vector<576x128xbf16>,
    %c0_5 = arith.constant 0 : index
    %c0_6 = arith.constant 0 : index
    %5 = vector.load %arg4[%c0_5, %c0_6] : memref<576x1xf32, #tpu.memory_space<vmem>>, vector<576x1xf32>
    %6 = vector.broadcast %5 : vector<576x1xf32> to vector<576x128xf32>
    %7 = arith.mulf %2, %6 : vector<576x128xf32>
    %cst_7 = arith.constant dense<0.000000e+00> : vector<128xf32>
    %8 = vector.multi_reduction <add>, %7, %cst_7 [0] : vector<576x128xf32> to vector<128xf32>
    %9 = vector.shape_cast %8 : vector<128xf32> to vector<1x128xf32>
    %c0_8 = arith.constant 0 : index
    %c0_9 = arith.constant 0 : index
    %c0_10 = arith.constant 0 : index
    %10 = vector.load %arg6[%c0_8, %c0_9, %c0_10] : memref<1x1x128xf32, #tpu.memory_space<vmem>>, vector<1x1x128xf32>
    %11 = vector.shape_cast %10 : vector<1x1x128xf32> to vector<1x128xf32>
    %12 = vector.shape_cast %9 : vector<1x128xf32> to vector<1x1x128xf32>
    tpu.vector_store %arg6[%c0_8, %c0_9, %c0_10], %12 {strides = array<i32>} : memref<1x1x128xf32, #tpu.memory_space<vmem>>, vector<1x1x128xf32>,
    %13 = arith.mulf %7, %2 : vector<576x128xf32>
    %cst_11 = arith.constant dense<0.000000e+00> : vector<128xf32>
    %14 = vector.multi_reduction <add>, %13, %cst_11 [0] : vector<576x128xf32> to vector<128xf32>
    %15 = vector.shape_cast %14 : vector<128xf32> to vector<1x128xf32>
    %c0_12 = arith.constant 0 : index
    %c0_13 = arith.constant 0 : index
    %c0_14 = arith.constant 0 : index
    %16 = vector.load %arg7[%c0_12, %c0_13, %c0_14] : memref<1x1x128xf32, #tpu.memory_space<vmem>>, vector<1x1x128xf32>
    %17 = vector.shape_cast %16 : vector<1x1x128xf32> to vector<1x128xf32>
    %18 = vector.shape_cast %15 : vector<1x128xf32> to vector<1x1x128xf32>
    tpu.vector_store %arg7[%c0_12, %c0_13, %c0_14], %18 {strides = array<i32>} : memref<1x1x128xf32, #tpu.memory_space<vmem>>, vector<1x1x128xf32>,
    return
  }
  func.func @transform_0(%arg0: i32, %arg1: i32) -> (i32, i32) {
    %c0_i32 = arith.constant 0 : i32
    %c0_i32_0 = arith.constant 0 : i32
    return %arg0, %c0_i32 : i32, i32
  }
  func.func @transform_1(%arg0: i32, %arg1: i32) -> (i32, i32) {
    %c0_i32 = arith.constant 0 : i32
    %c0_i32_0 = arith.constant 0 : i32
    return %c0_i32, %arg1 : i32, i32
  }
  func.func @transform_2(%arg0: i32, %arg1: i32) -> (i32, i32) {
    %c0_i32 = arith.constant 0 : i32
    %c0_i32_0 = arith.constant 0 : i32
    return %arg0, %c0_i32 : i32, i32
  }
  func.func @transform_3(%arg0: i32, %arg1: i32) -> (i32, i32) {
    %c0_i32 = arith.constant 0 : i32
    return %arg0, %arg1 : i32, i32
  }
  func.func @transform_4(%arg0: i32, %arg1: i32) -> (i32, i32, i32) {
    %c0_i32 = arith.constant 0 : i32
    %c0_i32_0 = arith.constant 0 : i32
    return %arg0, %c0_i32, %arg1 : i32, i32, i32
  }
  func.func @transform_5(%arg0: i32, %arg1: i32) -> (i32, i32, i32) {
    %c0_i32 = arith.constant 0 : i32
    %c0_i32_0 = arith.constant 0 : i32
    return %arg0, %c0_i32, %arg1 : i32, i32, i32
  }
}

</mosaic_0001>

<llo_original>
// kernel: unet_forward.10
$region0: #{unet_forward.10}
  #allocation0 [shape = 'u32[]', space=smem, size = 0x4, offset = 0x4, fixed_abs, tag = 'smem constant byte address 0x4 - core index']
  #allocation1 [shape = 'u32[144,128]{1,0:T(1,128)}', space=vmem, size = 0x12000, scoped, tag = 'internal scratch']
  %s0 = inlined_call_operand.vmem [shape: bf16[1152,256], index: 0, kind: input, shape index: {}]
  %s1 = inlined_call_operand.vmem [shape: bf16[256,128], index: 1, kind: input, shape index: {}]
  %s2 = inlined_call_operand.vmem [shape: f32[1152,1], index: 2, kind: input, shape index: {}]
  %s3 = inlined_call_operand.vmem [shape: bf16[1152,128], index: 3, kind: output, shape index: {0}]
  %s4 = inlined_call_operand.vmem [shape: f32[2,1,128], index: 4, kind: output, shape index: {1}]
  %s5 = inlined_call_operand.vmem [shape: f32[2,1,128], index: 5, kind: output, shape index: {2}]
  %6 = xla_tuple %s3, %s4, %s5
  %s7 = sld [smem:[#allocation0]]
  $region61: #{unet_forward.10} parent=0
    _
  %s9 = ssub.s32 1, %s7
  %s10 = scalar_select 0, %s9, %s7
  loop: start=0, step=1, limit=4
  $region2: #{unet_forward.10} parent=0 // loop_pre_header
    _
  $region3: #{unet_forward.10} parent=0 // loop_header
    %s12 = sphi 0, %s16
    %p13 = scmp.ge.s32.totalorder %s12, 4
    %s19 = sphi 0, %s31
    %s20 = sphi 0, %s27
    %s21 = sphi 0, %s19
    %s22 = sphi 0, %s20
    %s23 = sphi 0, %s21
    %s24 = sphi 0, %s22
    %s34 = sphi 0, %s36
    %s37 = sphi 0, %s34
    %s38 = sphi 0, %s37
    %s54 = sphi 0, %s38
    %s60 = sphi 0, %s62
    %s63 = sphi 0, %s60
    %s64 = sphi 0, %s63
    %s80 = sphi 0, %s64
    %s86 = sphi 0, %s88
    %s89 = sphi 0, %s86
    %s90 = sphi 0, %s89
    %s106 = sphi 0, %s90
    %s114 = sphi 0, %s116
    %s117 = sphi 0, %s114
    %s118 = sphi 0, %s117
    %s134 = sphi 0, %s118
    %s142 = sphi 0, %s144
    %s145 = sphi 0, %s142
    %s146 = sphi 0, %s145
    %s162 = sphi 0, %s146
    %s170 = sphi 0, %s172
    %s173 = sphi 0, %s170
    %s174 = sphi 0, %s173
    %s190 = sphi 0, %s174
  $region4: #{unet_forward.10} parent=0 // loop_header_branch
    %15 = sbr.rel (%p13) target = $region8
  $region5: #{unet_forward.10} parent=0 // loop_body
    %s17 = ssub.s32 %s12, 1
    %s18 = ssub.s32 %s12, 2
    %s25 = sadd.s32 1, %s20
    %p26 = scmp.ge.s32.totalorder %s25, 1
    %s27 = scalar_select %p26, 0, %s25
    %s28 = sadd.s32 1, %s19
    %s29 = scalar_select %p26, %s28, %s19
    %p30 = scmp.ge.s32.totalorder %s29, 2
    %s31 = scalar_select %p30, 0, %s29
    %s32 = ssub.s32 %s19, %s31
    %p33 = scmp.eq.s32.totalorder %s32, 0
    %s35 = sadd.s32 %s34, 1
    %s36 = scalar_select %p33, %s34, %s35
    %p39 = pneg %p33
    %p40 = scmp.eq.s32.totalorder %s12, 1
    %p41 = por %p39, %p40
    %p42 = scmp.ne.s32.totalorder %s34, %s37
    %p43 = scmp.eq.s32.totalorder %s12, 0
    %p44 = por %p42, %p43
    %p45 = scmp.ne.s32.totalorder %s34, %s37
    %p46 = scmp.eq.s32.totalorder %s17, 1
    %p47 = por %p45, %p46
    %p48 = scmp.ne.s32.totalorder %s37, %s38
    %p49 = scmp.eq.s32.totalorder %s17, 0
    %p50 = por %p48, %p49
    %p51 = scmp.ne.s32.totalorder %s37, %s38
    %p52 = scmp.eq.s32.totalorder %s18, 1
    %p53 = por %p51, %p52
    %p55 = scmp.ne.s32.totalorder %s38, %s54
    %p56 = scmp.eq.s32.totalorder %s18, 0
    %p57 = por %p55, %p56
    %s58 = ssub.s32 %s20, %s27
    %p59 = scmp.eq.s32.totalorder %s58, 0
    %s61 = sadd.s32 %s60, 1
    %s62 = scalar_select %p59, %s60, %s61
    %p65 = pneg %p59
    %p66 = scmp.eq.s32.totalorder %s12, 1
    %p67 = por %p65, %p66
    %p68 = scmp.ne.s32.totalorder %s60, %s63
    %p69 = scmp.eq.s32.totalorder %s12, 0
    %p70 = por %p68, %p69
    %p71 = scmp.ne.s32.totalorder %s60, %s63
    %p72 = scmp.eq.s32.totalorder %s17, 1
    %p73 = por %p71, %p72
    %p74 = scmp.ne.s32.totalorder %s63, %s64
    %p75 = scmp.eq.s32.totalorder %s17, 0
    %p76 = por %p74, %p75
    %p77 = scmp.ne.s32.totalorder %s63, %s64
    %p78 = scmp.eq.s32.totalorder %s18, 1
    %p79 = por %p77, %p78
    %p81 = scmp.ne.s32.totalorder %s64, %s80
    %p82 = scmp.eq.s32.totalorder %s18, 0
    %p83 = por %p81, %p82
    %s84 = ssub.s32 %s19, %s31
    %p85 = scmp.eq.s32.totalorder %s84, 0
    %s87 = sadd.s32 %s86, 1
    %s88 = scalar_select %p85, %s86, %s87
    %p91 = pneg %p85
    %p92 = scmp.eq.s32.totalorder %s12, 1
    %p93 = por %p91, %p92
    %p94 = scmp.ne.s32.totalorder %s86, %s89
    %p95 = scmp.eq.s32.totalorder %s12, 0
    %p96 = por %p94, %p95
    %p97 = scmp.ne.s32.totalorder %s86, %s89
    %p98 = scmp.eq.s32.totalorder %s17, 1
    %p99 = por %p97, %p98
    %p100 = scmp.ne.s32.totalorder %s89, %s90
    %p101 = scmp.eq.s32.totalorder %s17, 0
    %p102 = por %p100, %p101
    %p103 = scmp.ne.s32.totalorder %s89, %s90
    %p104 = scmp.eq.s32.totalorder %s18, 1
    %p105 = por %p103, %p104
    %p107 = scmp.ne.s32.totalorder %s90, %s106
    %p108 = scmp.eq.s32.totalorder %s18, 0
    %p109 = por %p107, %p108
    %s110 = ssub.s32 %s19, %s31
    %s111 = ssub.s32 %s20, %s27
    %s112 = sor.u32 %s110, %s111
    %p113 = scmp.eq.s32.totalorder %s112, 0
    %s115 = sadd.s32 %s114, 1
    %s116 = scalar_select %p113, %s114, %s115
    %p119 = pneg %p113
    %p120 = scmp.eq.s32.totalorder %s12, 1
    %p121 = por %p119, %p120
    %p122 = scmp.ne.s32.totalorder %s114, %s117
    %p123 = scmp.eq.s32.totalorder %s12, 0
    %p124 = por %p122, %p123
    %p125 = scmp.ne.s32.totalorder %s114, %s117
    %p126 = scmp.eq.s32.totalorder %s17, 1
    %p127 = por %p125, %p126
    %p128 = scmp.ne.s32.totalorder %s117, %s118
    %p129 = scmp.eq.s32.totalorder %s17, 0
    %p130 = por %p128, %p129
    %p131 = scmp.ne.s32.totalorder %s117, %s118
    %p132 = scmp.eq.s32.totalorder %s18, 1
    %p133 = por %p131, %p132
    %p135 = scmp.ne.s32.totalorder %s118, %s134
    %p136 = scmp.eq.s32.totalorder %s18, 0
    %p137 = por %p135, %p136
    %s138 = ssub.s32 %s19, %s31
    %s139 = ssub.s32 %s20, %s27
    %s140 = sor.u32 %s138, %s139
    %p141 = scmp.eq.s32.totalorder %s140, 0
    %s143 = sadd.s32 %s142, 1
    %s144 = scalar_select %p141, %s142, %s143
    %p147 = pneg %p141
    %p148 = scmp.eq.s32.totalorder %s12, 1
    %p149 = por %p147, %p148
    %p150 = scmp.ne.s32.totalorder %s142, %s145
    %p151 = scmp.eq.s32.totalorder %s12, 0
    %p152 = por %p150, %p151
    %p153 = scmp.ne.s32.totalorder %s142, %s145
    %p154 = scmp.eq.s32.totalorder %s17, 1
    %p155 = por %p153, %p154
    %p156 = scmp.ne.s32.totalorder %s145, %s146
    %p157 = scmp.eq.s32.totalorder %s17, 0
    %p158 = por %p156, %p157
    %p159 = scmp.ne.s32.totalorder %s145, %s146
    %p160 = scmp.eq.s32.totalorder %s18, 1
    %p161 = por %p159, %p160
    %p163 = scmp.ne.s32.totalorder %s146, %s162
    %p164 = scmp.eq.s32.totalorder %s18, 0
    %p165 = por %p163, %p164
    %s166 = ssub.s32 %s19, %s31
    %s167 = ssub.s32 %s20, %s27
    %s168 = sor.u32 %s166, %s167
    %p169 = scmp.eq.s32.totalorder %s168, 0
    %s171 = sadd.s32 %s170, 1
    %s172 = scalar_select %p169, %s170, %s171
    %p175 = pneg %p169
    %p176 = scmp.eq.s32.totalorder %s12, 1
    %p177 = por %p175, %p176
    %p178 = scmp.ne.s32.totalorder %s170, %s173
    %p179 = scmp.eq.s32.totalorder %s12, 0
    %p180 = por %p178, %p179
    %p181 = scmp.ne.s32.totalorder %s170, %s173
    %p182 = scmp.eq.s32.totalorder %s17, 1
    %p183 = por %p181, %p182
    %p184 = scmp.ne.s32.totalorder %s173, %s174
    %p185 = scmp.eq.s32.totalorder %s17, 0
    %p186 = por %p184, %p185
    %p187 = scmp.ne.s32.totalorder %s173, %s174
    %p188 = scmp.eq.s32.totalorder %s18, 1
    %p189 = por %p187, %p188
    %p191 = scmp.ne.s32.totalorder %s174, %s190
    %p192 = scmp.eq.s32.totalorder %s18, 0
    %p193 = por %p191, %p192
    %p194 = scmp.le.s32.totalorder 1, %s12
    %p195 = scmp.lt.s32.totalorder %s12, 3
    %p196 = pnand %p194, %p195
    %p197 = pneg %p196
    // Predicated region
    $region9: #{unet_forward.10} parent=5 // pred_check
      _
    $region10: #{unet_forward.10} parent=5 // pred_check_branch
      %199 = sbr.rel (%p196) target = $region12
    $region11: #{unet_forward.10} parent=5 // pred_region
      %s200 = ssub.s32 %s12, 1
      // Predicated region
      $region13: #{unet_forward.10} parent=11 // pred_check
        %p201 = pneg %p76
      $region14: #{unet_forward.10} parent=11 // pred_check_branch
        %203 = sbr.rel (%p201) target = $region16
      $region15: #{unet_forward.10} parent=11 // pred_region
        %p204 = scmp.lt.s32.totalorder %s22, 0
        %s205 = scalar_select %p204, %s22, 0
        %s206 = smul.addr %s205, 4
        %s207 = scalar_lea.vmem %s1, %s206
      $region16: #{unet_forward.10} parent=11 // pred_fallthru
        _
    $region12: #{unet_forward.10} parent=5 // pred_fallthru
      _
    %p208 = scmp.lt.s32.totalorder %s12, 2
    // Predicated region
    $region17: #{unet_forward.10} parent=5 // pred_check
      %p209 = pneg %p208
    $region18: #{unet_forward.10} parent=5 // pred_check_branch
      %211 = sbr.rel (%p209) target = $region20
    $region19: #{unet_forward.10} parent=5 // pred_region
      // Predicated region
      $region21: #{unet_forward.10} parent=19 // pred_check
        %p212 = pneg %p44
      $region22: #{unet_forward.10} parent=19 // pred_check_branch
        %214 = sbr.rel (%p212) target = $region24
      $region23: #{unet_forward.10} parent=19 // pred_region
        %s215 = smul.u32 72, %s19
        %p216 = scmp.lt.s32.totalorder %s215, 143
        %s217 = scalar_select %p216, %s215, 143
        %s218 = smul.addr %s217, 2
        %s219 = smul.addr %s218, 4
        %s220 = scalar_lea.vmem %s0, %s219
        %s221 = smul.u32 72, %s19
      $region24: #{unet_forward.10} parent=19 // pred_fallthru
        _
      // Predicated region
      $region25: #{unet_forward.10} parent=19 // pred_check
        %p222 = pneg %p96
      $region26: #{unet_forward.10} parent=19 // pred_check_branch
        %224 = sbr.rel (%p222) target = $region28
      $region27: #{unet_forward.10} parent=19 // pred_region
        %s225 = smul.u32 72, %s19
        %p226 = scmp.lt.s32.totalorder %s225, 143
        %s227 = scalar_select %p226, %s225, 143
        %s228 = smul.addr %s227, 8
        %s229 = scalar_lea.vmem %s2, %s228
        %s230 = smul.u32 72, %s19
      $region28: #{unet_forward.10} parent=19 // pred_fallthru
        _
    $region20: #{unet_forward.10} parent=5 // pred_fallthru
      _
    %p231 = scmp.le.s32.totalorder 1, %s12
    %p232 = scmp.lt.s32.totalorder %s12, 3
    %p233 = pnand %p231, %p232
    %p234 = pneg %p233
    // Predicated region
    $region29: #{unet_forward.10} parent=5 // pred_check
      _
    $region30: #{unet_forward.10} parent=5 // pred_check_branch
      %236 = sbr.rel (%p233) target = $region32
    $region31: #{unet_forward.10} parent=5 // pred_region
      %s237 = ssub.s32 %s12, 1
      %s238 = smul.u32 72, %s21
      %p239 = scmp.lt.s32.totalorder %s238, 143
      %s240 = scalar_select %p239, %s238, 143
      %s241 = smul.addr %s240, 2
      %s242 = smul.addr %s241, 4
      %s243 = scalar_lea.vmem %s0, %s242
      %p244 = pneg %p50
      %p245 = pneg %p47
      %p246 = scmp.lt.s32.totalorder %s22, 0
      %s247 = scalar_select %p246, %s22, 0
      %s248 = smul.addr %s247, 4
      %s249 = scalar_lea.vmem %s1, %s248
      %p250 = pneg %p76
      %p251 = pneg %p73
      %s252 = smul.u32 72, %s21
      %p253 = scmp.lt.s32.totalorder %s252, 143
      %s254 = scalar_select %p253, %s252, 143
      %s255 = smul.addr %s254, 8
      %s256 = scalar_lea.vmem %s2, %s255
      %p257 = pneg %p102
      %p258 = pneg %p99
      %p259 = pneg %p130
      %p260 = pneg %p127
      %s261 = smul.u32 72, %s21
      %p262 = scmp.lt.s32.totalorder %s261, 143
      %s263 = scalar_select %p262, %s261, 143
      %p264 = scmp.lt.s32.totalorder %s22, 0
      %s265 = scalar_select %p264, %s22, 0
      %s266 = sadd.s32 %s265, %s263
      %s267 = smul.addr %s266, 4
      %s268 = scalar_lea.vmem %s3, %s267
      %p269 = pneg %p158
      %p270 = pneg %p155
      %p271 = scmp.lt.s32.totalorder %s21, 1
      %s272 = scalar_select %p271, %s21, 1
      %p273 = scmp.lt.s32.totalorder %s22, 0
      %s274 = scalar_select %p273, %s22, 0
      %s275 = sadd.s32 %s274, %s272
      %s276 = scalar_lea.vmem %s4, %s275
      %p277 = pneg %p186
      %p278 = pneg %p183
      %p279 = scmp.lt.s32.totalorder %s21, 1
      %s280 = scalar_select %p279, %s21, 1
      %p281 = scmp.lt.s32.totalorder %s22, 0
      %s282 = scalar_select %p281, %s22, 0
      %s283 = sadd.s32 %s282, %s280
      %s284 = scalar_lea.vmem %s5, %s283
      %s285 = smul.u32 72, %s21
      %p286 = scmp.lt.s32.totalorder %s285, 143
      %s287 = scalar_select %p286, %s285, 143
      %s288 = smul.addr %s287, 2
      %s289 = smul.addr %s288, 4
      %s290 = scalar_lea.vmem %s0, %s289
      %s291 = smul.u32 72, %s21
      %p292 = scmp.lt.s32.totalorder %s22, 0
      %s293 = scalar_select %p292, %s22, 0
      %s294 = smul.addr %s293, 4
      %s295 = scalar_lea.vmem %s1, %s294
      %s296 = smul.u32 72, %s21
      %p297 = scmp.lt.s32.totalorder %s296, 143
      %s298 = scalar_select %p297, %s296, 143
      %s299 = smul.addr %s298, 8
      %s300 = scalar_lea.vmem %s2, %s299
      %s301 = smul.u32 72, %s21
      %s302 = smul.u32 72, %s21
      %p303 = scmp.lt.s32.totalorder %s302, 143
      %s304 = scalar_select %p303, %s302, 143
      %p305 = scmp.lt.s32.totalorder %s22, 0
      %s306 = scalar_select %p305, %s22, 0
      %s307 = sadd.s32 %s306, %s304
      %s308 = smul.addr %s307, 4
      %s309 = scalar_lea.vmem %s3, %s308
      %s310 = smul.u32 72, %s21
      %p311 = scmp.lt.s32.totalorder %s21, 1
      %s312 = scalar_select %p311, %s21, 1
      %p313 = scmp.lt.s32.totalorder %s22, 0
      %s314 = scalar_select %p313, %s22, 0
      %s315 = sadd.s32 %s314, %s312
      %s316 = scalar_lea.vmem %s4, %s315
      %p317 = scmp.lt.s32.totalorder %s21, 1
      %s318 = scalar_select %p317, %s21, 1
      %p319 = scmp.lt.s32.totalorder %s22, 0
      %s320 = scalar_select %p319, %s22, 0
      %s321 = sadd.s32 %s320, %s318
      %s322 = scalar_lea.vmem %s5, %s321
      %v324 = vld [vmem:[%s290] sm:$0xff]
      %v325 = vld [vmem:[%s290 + $0x8] sm:$0xff]
      %v326 = vld [vmem:[%s290 + $0x10] sm:$0xff]
      %v327 = vld [vmem:[%s290 + $0x18] sm:$0xff]
      %v328 = vld [vmem:[%s290 + $0x20] sm:$0xff]
      %v329 = vld [vmem:[%s290 + $0x28] sm:$0xff]
      %v330 = vld [vmem:[%s290 + $0x30] sm:$0xff]
      %v331 = vld [vmem:[%s290 + $0x38] sm:$0xff]
      %v332 = vld [vmem:[%s290 + $0x40] sm:$0xff]
      %v333 = vld [vmem:[%s290 + $0x48] sm:$0xff]
      %v334 = vld [vmem:[%s290 + $0x50] sm:$0xff]
      %v335 = vld [vmem:[%s290 + $0x58] sm:$0xff]
      %v336 = vld [vmem:[%s290 + $0x60] sm:$0xff]
      %v337 = vld [vmem:[%s290 + $0x68] sm:$0xff]
      %v338 = vld [vmem:[%s290 + $0x70] sm:$0xff]
      %v339 = vld [vmem:[%s290 + $0x78] sm:$0xff]
      %v340 = vld [vmem:[%s290 + $0x80] sm:$0xff]
      %v341 = vld [vmem:[%s290 + $0x88] sm:$0xff]
      %v342 = vld [vmem:[%s290 + $0x90] sm:$0xff]
      %v343 = vld [vmem:[%s290 + $0x98] sm:$0xff]
      %v344 = vld [vmem:[%s290 + $0xa0] sm:$0xff]
      %v345 = vld [vmem:[%s290 + $0xa8] sm:$0xff]
      %v346 = vld [vmem:[%s290 + $0xb0] sm:$0xff]
      %v347 = vld [vmem:[%s290 + $0xb8] sm:$0xff]
      %v348 = vld [vmem:[%s290 + $0xc0] sm:$0xff]
      %v349 = vld [vmem:[%s290 + $0xc8] sm:$0xff]
      %v350 = vld [vmem:[%s290 + $0xd0] sm:$0xff]
      %v351 = vld [vmem:[%s290 + $0xd8] sm:$0xff]
      %v352 = vld [vmem:[%s290 + $0xe0] sm:$0xff]
      %v353 = vld [vmem:[%s290 + $0xe8] sm:$0xff]
      %v354 = vld [vmem:[%s290 + $0xf0] sm:$0xff]
      %v355 = vld [vmem:[%s290 + $0xf8] sm:$0xff]
      %v356 = vld [vmem:[%s290 + $0x100] sm:$0xff]
      %v357 = vld [vmem:[%s290 + $0x108] sm:$0xff]
      %v358 = vld [vmem:[%s290 + $0x110] sm:$0xff]
      %v359 = vld [vmem:[%s290 + $0x118] sm:$0xff]
      %v360 = vld [vmem:[%s290 + $0x120] sm:$0xff]
      %v361 = vld [vmem:[%s290 + $0x128] sm:$0xff]
      %v362 = vld [vmem:[%s290 + $0x130] sm:$0xff]
      %v363 = vld [vmem:[%s290 + $0x138] sm:$0xff]
      %v364 = vld [vmem:[%s290 + $0x140] sm:$0xff]
      %v365 = vld [vmem:[%s290 + $0x148] sm:$0xff]
      %v366 = vld [vmem:[%s290 + $0x150] sm:$0xff]
      %v367 = vld [vmem:[%s290 + $0x158] sm:$0xff]
      %v368 = vld [vmem:[%s290 + $0x160] sm:$0xff]
      %v369 = vld [vmem:[%s290 + $0x168] sm:$0xff]
      %v370 = vld [vmem:[%s290 + $0x170] sm:$0xff]
      %v371 = vld [vmem:[%s290 + $0x178] sm:$0xff]
      %v372 = vld [vmem:[%s290 + $0x180] sm:$0xff]
      %v373 = vld [vmem:[%s290 + $0x188] sm:$0xff]
      %v374 = vld [vmem:[%s290 + $0x190] sm:$0xff]
      %v375 = vld [vmem:[%s290 + $0x198] sm:$0xff]
      %v376 = vld [vmem:[%s290 + $0x1a0] sm:$0xff]
      %v377 = vld [vmem:[%s290 + $0x1a8] sm:$0xff]
      %v378 = vld [vmem:[%s290 + $0x1b0] sm:$0xff]
      %v379 = vld [vmem:[%s290 + $0x1b8] sm:$0xff]
      %v380 = vld [vmem:[%s290 + $0x1c0] sm:$0xff]
      %v381 = vld [vmem:[%s290 + $0x1c8] sm:$0xff]
      %v382 = vld [vmem:[%s290 + $0x1d0] sm:$0xff]
      %v383 = vld [vmem:[%s290 + $0x1d8] sm:$0xff]
      %v384 = vld [vmem:[%s290 + $0x1e0] sm:$0xff]
      %v385 = vld [vmem:[%s290 + $0x1e8] sm:$0xff]
      %v386 = vld [vmem:[%s290 + $0x1f0] sm:$0xff]
      %v387 = vld [vmem:[%s290 + $0x1f8] sm:$0xff]
      %v388 = vld [vmem:[%s290 + $0x200] sm:$0xff]
      %v389 = vld [vmem:[%s290 + $0x208] sm:$0xff]
      %v390 = vld [vmem:[%s290 + $0x210] sm:$0xff]
      %v391 = vld [vmem:[%s290 + $0x218] sm:$0xff]
      %v392 = vld [vmem:[%s290 + $0x220] sm:$0xff]
      %v393 = vld [vmem:[%s290 + $0x228] sm:$0xff]
      %v394 = vld [vmem:[%s290 + $0x230] sm:$0xff]
      %v395 = vld [vmem:[%s290 + $0x238] sm:$0xff]
      %v396 = vld [vmem:[%s295] sm:$0xf]
      %v397 = vld [vmem:[%s295 + $0x4] sm:$0xf]
      %v398 = vld [vmem:[%s295 + $0x8] sm:$0xf]
      %v399 = vld [vmem:[%s295 + $0xc] sm:$0xf]
      %v400 = vld [vmem:[%s295 + $0x10] sm:$0xf]
      %v401 = vld [vmem:[%s295 + $0x14] sm:$0xf]
      %v402 = vld [vmem:[%s295 + $0x18] sm:$0xf]
      %v403 = vld [vmem:[%s295 + $0x1c] sm:$0xf]
      %v404 = vld [vmem:[%s295 + $0x20] sm:$0xf]
      %v405 = vld [vmem:[%s295 + $0x24] sm:$0xf]
      %v406 = vld [vmem:[%s295 + $0x28] sm:$0xf]
      %v407 = vld [vmem:[%s295 + $0x2c] sm:$0xf]
      %v408 = vld [vmem:[%s295 + $0x30] sm:$0xf]
      %v409 = vld [vmem:[%s295 + $0x34] sm:$0xf]
      %v410 = vld [vmem:[%s295 + $0x38] sm:$0xf]
      %v411 = vld [vmem:[%s295 + $0x3c] sm:$0xf]
      %v412 = vld [vmem:[%s295 + $0x40] sm:$0xf]
      %v413 = vld [vmem:[%s295 + $0x44] sm:$0xf]
      %v414 = vld [vmem:[%s295 + $0x48] sm:$0xf]
      %v415 = vld [vmem:[%s295 + $0x4c] sm:$0xf]
      %v416 = vld [vmem:[%s295 + $0x50] sm:$0xf]
      %v417 = vld [vmem:[%s295 + $0x54] sm:$0xf]
      %v418 = vld [vmem:[%s295 + $0x58] sm:$0xf]
      %v419 = vld [vmem:[%s295 + $0x5c] sm:$0xf]
      %v420 = vld [vmem:[%s295 + $0x60] sm:$0xf]
      %v421 = vld [vmem:[%s295 + $0x64] sm:$0xf]
      %v422 = vld [vmem:[%s295 + $0x68] sm:$0xf]
      %v423 = vld [vmem:[%s295 + $0x6c] sm:$0xf]
      %v424 = vld [vmem:[%s295 + $0x70] sm:$0xf]
      %v425 = vld [vmem:[%s295 + $0x74] sm:$0xf]
      %v426 = vld [vmem:[%s295 + $0x78] sm:$0xf]
      %v427 = vld [vmem:[%s295 + $0x7c] sm:$0xf]
      %v500 = vunpack.c.l.b16 %v324
      %v501 = vunpack.c.h.b16 %v324
      %v502 = vunpack.c.l.b16 %v325
      %v503 = vunpack.c.h.b16 %v325
      %v504 = vunpack.c.l.b16 %v326
      %v505 = vunpack.c.h.b16 %v326
      %v506 = vunpack.c.l.b16 %v327
      %v507 = vunpack.c.h.b16 %v327
      %v508 = vunpack.c.l.b16 %v328
      %v509 = vunpack.c.h.b16 %v328
      %v510 = vunpack.c.l.b16 %v329
      %v511 = vunpack.c.h.b16 %v329
      %v512 = vunpack.c.l.b16 %v330
      %v513 = vunpack.c.h.b16 %v330
      %v514 = vunpack.c.l.b16 %v331
      %v515 = vunpack.c.h.b16 %v331
      %v516 = vunpack.c.l.b16 %v332
      %v517 = vunpack.c.h.b16 %v332
      %v518 = vunpack.c.l.b16 %v333
      %v519 = vunpack.c.h.b16 %v333
      %v520 = vunpack.c.l.b16 %v334
      %v521 = vunpack.c.h.b16 %v334
      %v522 = vunpack.c.l.b16 %v335
      %v523 = vunpack.c.h.b16 %v335
      %v524 = vunpack.c.l.b16 %v336
      %v525 = vunpack.c.h.b16 %v336
      %v526 = vunpack.c.l.b16 %v337
      %v527 = vunpack.c.h.b16 %v337
      %v528 = vunpack.c.l.b16 %v338
      %v529 = vunpack.c.h.b16 %v338
      %v530 = vunpack.c.l.b16 %v339
      %v531 = vunpack.c.h.b16 %v339
      %v532 = vunpack.c.l.b16 %v340
      %v533 = vunpack.c.h.b16 %v340
      %v534 = vunpack.c.l.b16 %v341
      %v535 = vunpack.c.h.b16 %v341
      %v536 = vunpack.c.l.b16 %v342
      %v537 = vunpack.c.h.b16 %v342
      %v538 = vunpack.c.l.b16 %v343
      %v539 = vunpack.c.h.b16 %v343
      %v540 = vunpack.c.l.b16 %v344
      %v541 = vunpack.c.h.b16 %v344
      %v542 = vunpack.c.l.b16 %v345
      %v543 = vunpack.c.h.b16 %v345
      %v544 = vunpack.c.l.b16 %v346
      %v545 = vunpack.c.h.b16 %v346
      %v546 = vunpack.c.l.b16 %v347
      %v547 = vunpack.c.h.b16 %v347
      %v548 = vunpack.c.l.b16 %v348
      %v549 = vunpack.c.h.b16 %v348
      %v550 = vunpack.c.l.b16 %v349
      %v551 = vunpack.c.h.b16 %v349
      %v552 = vunpack.c.l.b16 %v350
      %v553 = vunpack.c.h.b16 %v350
      %v554 = vunpack.c.l.b16 %v351
      %v555 = vunpack.c.h.b16 %v351
      %v556 = vunpack.c.l.b16 %v352
      %v557 = vunpack.c.h.b16 %v352
      %v558 = vunpack.c.l.b16 %v353
      %v559 = vunpack.c.h.b16 %v353
      %v560 = vunpack.c.l.b16 %v354
      %v561 = vunpack.c.h.b16 %v354
      %v562 = vunpack.c.l.b16 %v355
      %v563 = vunpack.c.h.b16 %v355
      %v564 = vunpack.c.l.b16 %v356
      %v565 = vunpack.c.h.b16 %v356
      %v566 = vunpack.c.l.b16 %v357
      %v567 = vunpack.c.h.b16 %v357
      %v568 = vunpack.c.l.b16 %v358
      %v569 = vunpack.c.h.b16 %v358
      %v570 = vunpack.c.l.b16 %v359
      %v571 = vunpack.c.h.b16 %v359
      %v572 = vunpack.c.l.b16 %v360
      %v573 = vunpack.c.h.b16 %v360
      %v574 = vunpack.c.l.b16 %v361
      %v575 = vunpack.c.h.b16 %v361
      %v576 = vunpack.c.l.b16 %v362
      %v577 = vunpack.c.h.b16 %v362
      %v578 = vunpack.c.l.b16 %v363
      %v579 = vunpack.c.h.b16 %v363
      %v580 = vunpack.c.l.b16 %v364
      %v581 = vunpack.c.h.b16 %v364
      %v582 = vunpack.c.l.b16 %v365
      %v583 = vunpack.c.h.b16 %v365
      %v584 = vunpack.c.l.b16 %v366
      %v585 = vunpack.c.h.b16 %v366
      %v586 = vunpack.c.l.b16 %v367
      %v587 = vunpack.c.h.b16 %v367
      %v588 = vunpack.c.l.b16 %v368
      %v589 = vunpack.c.h.b16 %v368
      %v590 = vunpack.c.l.b16 %v369
      %v591 = vunpack.c.h.b16 %v369
      %v592 = vunpack.c.l.b16 %v370
      %v593 = vunpack.c.h.b16 %v370
      %v594 = vunpack.c.l.b16 %v371
      %v595 = vunpack.c.h.b16 %v371
      %v596 = vunpack.c.l.b16 %v372
      %v597 = vunpack.c.h.b16 %v372
      %v598 = vunpack.c.l.b16 %v373
      %v599 = vunpack.c.h.b16 %v373
      %v600 = vunpack.c.l.b16 %v374
      %v601 = vunpack.c.h.b16 %v374
      %v602 = vunpack.c.l.b16 %v375
      %v603 = vunpack.c.h.b16 %v375
      %v604 = vunpack.c.l.b16 %v376
      %v605 = vunpack.c.h.b16 %v376
      %v606 = vunpack.c.l.b16 %v377
      %v607 = vunpack.c.h.b16 %v377
      %v608 = vunpack.c.l.b16 %v378
      %v609 = vunpack.c.h.b16 %v378
      %v610 = vunpack.c.l.b16 %v379
      %v611 = vunpack.c.h.b16 %v379
      %v612 = vunpack.c.l.b16 %v380
      %v613 = vunpack.c.h.b16 %v380
      %v614 = vunpack.c.l.b16 %v381
      %v615 = vunpack.c.h.b16 %v381
      %v616 = vunpack.c.l.b16 %v382
      %v617 = vunpack.c.h.b16 %v382
      %v618 = vunpack.c.l.b16 %v383
      %v619 = vunpack.c.h.b16 %v383
      %v620 = vunpack.c.l.b16 %v384
      %v621 = vunpack.c.h.b16 %v384
      %v622 = vunpack.c.l.b16 %v385
      %v623 = vunpack.c.h.b16 %v385
      %v624 = vunpack.c.l.b16 %v386
      %v625 = vunpack.c.h.b16 %v386
      %v626 = vunpack.c.l.b16 %v387
      %v627 = vunpack.c.h.b16 %v387
      %v628 = vunpack.c.l.b16 %v388
      %v629 = vunpack.c.h.b16 %v388
      %v630 = vunpack.c.l.b16 %v389
      %v631 = vunpack.c.h.b16 %v389
      %v632 = vunpack.c.l.b16 %v390
      %v633 = vunpack.c.h.b16 %v390
      %v634 = vunpack.c.l.b16 %v391
      %v635 = vunpack.c.h.b16 %v391
      %v636 = vunpack.c.l.b16 %v392
      %v637 = vunpack.c.h.b16 %v392
      %v638 = vunpack.c.l.b16 %v393
      %v639 = vunpack.c.h.b16 %v393
      %v640 = vunpack.c.l.b16 %v394
      %v641 = vunpack.c.h.b16 %v394
      %v642 = vunpack.c.l.b16 %v395
      %v643 = vunpack.c.h.b16 %v395
      %v644 = vpack.c.b16 %v502, %v500
      %v645 = vpack.c.b16 %v503, %v501
      %v646 = vpack.c.b16 %v506, %v504
      %v647 = vpack.c.b16 %v507, %v505
      %v648 = vpack.c.b16 %v510, %v508
      %v649 = vpack.c.b16 %v511, %v509
      %v650 = vpack.c.b16 %v514, %v512
      %v651 = vpack.c.b16 %v515, %v513
      %v652 = vpack.c.b16 %v518, %v516
      %v653 = vpack.c.b16 %v519, %v517
      %v654 = vpack.c.b16 %v522, %v520
      %v655 = vpack.c.b16 %v523, %v521
      %v656 = vpack.c.b16 %v526, %v524
      %v657 = vpack.c.b16 %v527, %v525
      %v658 = vpack.c.b16 %v530, %v528
      %v659 = vpack.c.b16 %v531, %v529
      %v660 = vpack.c.b16 %v534, %v532
      %v661 = vpack.c.b16 %v535, %v533
      %v662 = vpack.c.b16 %v538, %v536
      %v663 = vpack.c.b16 %v539, %v537
      %v664 = vpack.c.b16 %v542, %v540
      %v665 = vpack.c.b16 %v543, %v541
      %v666 = vpack.c.b16 %v546, %v544
      %v667 = vpack.c.b16 %v547, %v545
      %v668 = vpack.c.b16 %v550, %v548
      %v669 = vpack.c.b16 %v551, %v549
      %v670 = vpack.c.b16 %v554, %v552
      %v671 = vpack.c.b16 %v555, %v553
      %v672 = vpack.c.b16 %v558, %v556
      %v673 = vpack.c.b16 %v559, %v557
      %v674 = vpack.c.b16 %v562, %v560
      %v675 = vpack.c.b16 %v563, %v561
      %v676 = vpack.c.b16 %v566, %v564
      %v677 = vpack.c.b16 %v567, %v565
      %v678 = vpack.c.b16 %v570, %v568
      %v679 = vpack.c.b16 %v571, %v569
      %v680 = vpack.c.b16 %v574, %v572
      %v681 = vpack.c.b16 %v575, %v573
      %v682 = vpack.c.b16 %v578, %v576
      %v683 = vpack.c.b16 %v579, %v577
      %v684 = vpack.c.b16 %v582, %v580
      %v685 = vpack.c.b16 %v583, %v581
      %v686 = vpack.c.b16 %v586, %v584
      %v687 = vpack.c.b16 %v587, %v585
      %v688 = vpack.c.b16 %v590, %v588
      %v689 = vpack.c.b16 %v591, %v589
      %v690 = vpack.c.b16 %v594, %v592
      %v691 = vpack.c.b16 %v595, %v593
      %v692 = vpack.c.b16 %v598, %v596
      %v693 = vpack.c.b16 %v599, %v597
      %v694 = vpack.c.b16 %v602, %v600
      %v695 = vpack.c.b16 %v603, %v601
      %v696 = vpack.c.b16 %v606, %v604
      %v697 = vpack.c.b16 %v607, %v605
      %v698 = vpack.c.b16 %v610, %v608
      %v699 = vpack.c.b16 %v611, %v609
      %v700 = vpack.c.b16 %v614, %v612
      %v701 = vpack.c.b16 %v615, %v613
      %v702 = vpack.c.b16 %v618, %v616
      %v703 = vpack.c.b16 %v619, %v617
      %v704 = vpack.c.b16 %v622, %v620
      %v705 = vpack.c.b16 %v623, %v621
      %v706 = vpack.c.b16 %v626, %v624
      %v707 = vpack.c.b16 %v627, %v625
      %v708 = vpack.c.b16 %v630, %v628
      %v709 = vpack.c.b16 %v631, %v629
      %v710 = vpack.c.b16 %v634, %v632
      %v711 = vpack.c.b16 %v635, %v633
      %v712 = vpack.c.b16 %v638, %v636
      %v713 = vpack.c.b16 %v639, %v637
      %v714 = vpack.c.b16 %v642, %v640
      %v715 = vpack.c.b16 %v643, %v641
      %v820 = vunpack.c.l.b16 %v396
      %v821 = vunpack.c.l.b16 %v397
      %v822 = vunpack.c.l.b16 %v398
      %v823 = vunpack.c.l.b16 %v399
      %v824 = vunpack.c.l.b16 %v400
      %v825 = vunpack.c.l.b16 %v401
      %v826 = vunpack.c.l.b16 %v402
      %v827 = vunpack.c.l.b16 %v403
      %v828 = vunpack.c.l.b16 %v404
      %v829 = vunpack.c.l.b16 %v405
      %v830 = vunpack.c.l.b16 %v406
      %v831 = vunpack.c.l.b16 %v407
      %v832 = vunpack.c.l.b16 %v408
      %v833 = vunpack.c.l.b16 %v409
      %v834 = vunpack.c.l.b16 %v410
      %v835 = vunpack.c.l.b16 %v411
      %v836 = vunpack.c.l.b16 %v412
      %v837 = vunpack.c.l.b16 %v413
      %v838 = vunpack.c.l.b16 %v414
      %v839 = vunpack.c.l.b16 %v415
      %v840 = vunpack.c.l.b16 %v416
      %v841 = vunpack.c.l.b16 %v417
      %v842 = vunpack.c.l.b16 %v418
      %v843 = vunpack.c.l.b16 %v419
      %v844 = vunpack.c.l.b16 %v420
      %v845 = vunpack.c.l.b16 %v421
      %v846 = vunpack.c.l.b16 %v422
      %v847 = vunpack.c.l.b16 %v423
      %v848 = vunpack.c.l.b16 %v424
      %v849 = vunpack.c.l.b16 %v425
      %v850 = vunpack.c.l.b16 %v426
      %v851 = vunpack.c.l.b16 %v427
      %v852 = vpack.c.b16 %v821, %v820
      %v853 = vpack.c.b16 %v823, %v822
      %v854 = vpack.c.b16 %v825, %v824
      %v855 = vpack.c.b16 %v827, %v826
      %v856 = vpack.c.b16 %v829, %v828
      %v857 = vpack.c.b16 %v831, %v830
      %v858 = vpack.c.b16 %v833, %v832
      %v859 = vpack.c.b16 %v835, %v834
      %v860 = vpack.c.b16 %v837, %v836
      %v861 = vpack.c.b16 %v839, %v838
      %v862 = vpack.c.b16 %v841, %v840
      %v863 = vpack.c.b16 %v843, %v842
      %v864 = vpack.c.b16 %v845, %v844
      %v865 = vpack.c.b16 %v847, %v846
      %v866 = vpack.c.b16 %v849, %v848
      %v867 = vpack.c.b16 %v851, %v850
      %884 = vmatprep.subr.bf16.mxu0 0
      %885 = vmatpush1.bf16.msra.mxu0 %v852
      %886 = vmatprep.subr.bf16.mxu0 0
      %887 = vmatpush1.bf16.msra.mxu0 %v853
      %888 = vmatprep.subr.bf16.mxu0 0
      %889 = vmatpush1.bf16.msra.mxu0 %v854
      %890 = vmatprep.subr.bf16.mxu0 0
      %891 = vmatpush1.bf16.msra.mxu0 %v855
      %892 = vmatprep.subr.bf16.mxu0 0
      %893 = vmatpush1.bf16.msra.mxu0 %v856
      %894 = vmatprep.subr.bf16.mxu0 0
      %895 = vmatpush1.bf16.msra.mxu0 %v857
      %896 = vmatprep.subr.bf16.mxu0 0
      %897 = vmatpush1.bf16.msra.mxu0 %v858
      %898 = vmatprep.subr.bf16.mxu0 0
      %899 = vmatpush1.bf16.msra.mxu0 %v859
      %900 = vmatprep.subr.bf16.mxu0 0
      %901 = vmatpush1.bf16.msra.mxu0 %v860
      %902 = vmatprep.subr.bf16.mxu0 0
      %903 = vmatpush1.bf16.msra.mxu0 %v861
      %904 = vmatprep.subr.bf16.mxu0 0
      %905 = vmatpush1.bf16.msra.mxu0 %v862
      %906 = vmatprep.subr.bf16.mxu0 0
      %907 = vmatpush1.bf16.msra.mxu0 %v863
      %908 = vmatprep.subr.bf16.mxu0 0
      %909 = vmatpush1.bf16.msra.mxu0 %v864
      %910 = vmatprep.subr.bf16.mxu0 0
      %911 = vmatpush1.bf16.msra.mxu0 %v865
      %912 = vmatprep.subr.bf16.mxu0 0
      %913 = vmatpush1.bf16.msra.mxu0 %v866
      %914 = vmatprep.subr.bf16.mxu0 0
      %915 = vmatpush1.bf16.msra.mxu0 %v867
      %916 = vmatprep.mubr.bf16.mxu0 %v645
      %917 = vmatmul.mubr.bf16.gmra.mrb[0].mxu0 %v644
      %v918 = vpop.f32.mrb[0].mxu0
      %v919 = vadd.f32 0.0, %v918
      %v920 = vpop.f32.mrb[0].mxu0
      %v921 = vpop.f32.mrb[0].mxu0
      %v922 = vadd.f32 0.0, %v921
      %v923 = vpop.f32.mrb[0].mxu0
      %924 = vmatprep.mubr.bf16.mxu0 %v647
      %925 = vmatmul.mubr.bf16.gmra.mrb[0].mxu0 %v646
      %v926 = vpop.f32.mrb[0].mxu0
      %v927 = vadd.f32 0.0, %v926
      %v928 = vpop.f32.mrb[0].mxu0
      %v929 = vpop.f32.mrb[0].mxu0
      %v930 = vadd.f32 0.0, %v929
      %v931 = vpop.f32.mrb[0].mxu0
      %932 = vmatprep.mubr.bf16.mxu0 %v649
      %933 = vmatmul.mubr.bf16.gmra.mrb[0].mxu0 %v648
      %v934 = vpop.f32.mrb[0].mxu0
      %v935 = vadd.f32 0.0, %v934
      %v936 = vpop.f32.mrb[0].mxu0
      %v937 = vpop.f32.mrb[0].mxu0
      %v938 = vadd.f32 0.0, %v937
      %v939 = vpop.f32.mrb[0].mxu0
      %940 = vmatprep.mubr.bf16.mxu0 %v651
      %941 = vmatmul.mubr.bf16.gmra.mrb[0].mxu0 %v650
      %v942 = vpop.f32.mrb[0].mxu0
      %v943 = vadd.f32 0.0, %v942
      %v944 = vpop.f32.mrb[0].mxu0
      %v945 = vpop.f32.mrb[0].mxu0
      %v946 = vadd.f32 0.0, %v945
      %v947 = vpop.f32.mrb[0].mxu0
      %948 = vmatprep.mubr.bf16.mxu0 %v653
      %949 = vmatmul.mubr.bf16.gmra.mrb[0].mxu0 %v652
      %v950 = vpop.f32.mrb[0].mxu0
      %v951 = vadd.f32 0.0, %v950
      %v952 = vpop.f32.mrb[0].mxu0
      %v953 = vpop.f32.mrb[0].mxu0
      %v954 = vadd.f32 0.0, %v953
      %v955 = vpop.f32.mrb[0].mxu0
      %956 = vmatprep.mubr.bf16.mxu0 %v655
      %957 = vmatmul.mubr.bf16.gmra.mrb[0].mxu0 %v654
      %v958 = vpop.f32.mrb[0].mxu0
      %v959 = vadd.f32 0.0, %v958
      %v960 = vpop.f32.mrb[0].mxu0
      %v961 = vpop.f32.mrb[0].mxu0
      %v962 = vadd.f32 0.0, %v961
      %v963 = vpop.f32.mrb[0].mxu0
      %964 = vmatprep.mubr.bf16.mxu0 %v657
      %965 = vmatmul.mubr.bf16.gmra.mrb[0].mxu0 %v656
      %v966 = vpop.f32.mrb[0].mxu0
      %v967 = vadd.f32 0.0, %v966
      %v968 = vpop.f32.mrb[0].mxu0
      %v969 = vpop.f32.mrb[0].mxu0
      %v970 = vadd.f32 0.0, %v969
      %v971 = vpop.f32.mrb[0].mxu0
      %972 = vmatprep.mubr.bf16.mxu0 %v659
      %973 = vmatmul.mubr.bf16.gmra.mrb[0].mxu0 %v658
      %v974 = vpop.f32.mrb[0].mxu0
      %v975 = vadd.f32 0.0, %v974
      %v976 = vpop.f32.mrb[0].mxu0
      %v977 = vpop.f32.mrb[0].mxu0
      %v978 = vadd.f32 0.0, %v977
      %v979 = vpop.f32.mrb[0].mxu0
      %980 = vmatprep.mubr.bf16.mxu0 %v661
      %981 = vmatmul.mubr.bf16.gmra.mrb[0].mxu0 %v660
      %v982 = vpop.f32.mrb[0].mxu0
      %v983 = vadd.f32 0.0, %v982
      %v984 = vpop.f32.mrb[0].mxu0
      %v985 = vpop.f32.mrb[0].mxu0
      %v986 = vadd.f32 0.0, %v985
      %v987 = vpop.f32.mrb[0].mxu0
      %988 = vmatprep.mubr.bf16.mxu0 %v663
      %989 = vmatmul.mubr.bf16.gmra.mrb[0].mxu0 %v662
      %v990 = vpop.f32.mrb[0].mxu0
      %v991 = vadd.f32 0.0, %v990
      %v992 = vpop.f32.mrb[0].mxu0
      %v993 = vpop.f32.mrb[0].mxu0
      %v994 = vadd.f32 0.0, %v993
      %v995 = vpop.f32.mrb[0].mxu0
      %996 = vmatprep.mubr.bf16.mxu0 %v665
      %997 = vmatmul.mubr.bf16.gmra.mrb[0].mxu0 %v664
      %v998 = vpop.f32.mrb[0].mxu0
      %v999 = vadd.f32 0.0, %v998
      %v1000 = vpop.f32.mrb[0].mxu0
      %v1001 = vpop.f32.mrb[0].mxu0
      %v1002 = vadd.f32 0.0, %v1001
      %v1003 = vpop.f32.mrb[0].mxu0
      %1004 = vmatprep.mubr.bf16.mxu0 %v667
      %1005 = vmatmul.mubr.bf16.gmra.mrb[0].mxu0 %v666
      %v1006 = vpop.f32.mrb[0].mxu0
      %v1007 = vadd.f32 0.0, %v1006
      %v1008 = vpop.f32.mrb[0].mxu0
      %v1009 = vpop.f32.mrb[0].mxu0
      %v1010 = vadd.f32 0.0, %v1009
      %v1011 = vpop.f32.mrb[0].mxu0
      %1012 = vmatprep.mubr.bf16.mxu0 %v669
      %1013 = vmatmul.mubr.bf16.gmra.mrb[0].mxu0 %v668
      %v1014 = vpop.f32.mrb[0].mxu0
      %v1015 = vadd.f32 0.0, %v1014
      %v1016 = vpop.f32.mrb[0].mxu0
      %v1017 = vpop.f32.mrb[0].mxu0
      %v1018 = vadd.f32 0.0, %v1017
      %v1019 = vpop.f32.mrb[0].mxu0
      %1020 = vmatprep.mubr.bf16.mxu0 %v671
      %1021 = vmatmul.mubr.bf16.gmra.mrb[0].mxu0 %v670
      %v1022 = vpop.f32.mrb[0].mxu0
      %v1023 = vadd.f32 0.0, %v1022
      %v1024 = vpop.f32.mrb[0].mxu0
      %v1025 = vpop.f32.mrb[0].mxu0
      %v1026 = vadd.f32 0.0, %v1025
      %v1027 = vpop.f32.mrb[0].mxu0
      %1028 = vmatprep.mubr.bf16.mxu0 %v673
      %1029 = vmatmul.mubr.bf16.gmra.mrb[0].mxu0 %v672
      %v1030 = vpop.f32.mrb[0].mxu0
      %v1031 = vadd.f32 0.0, %v1030
      %v1032 = vpop.f32.mrb[0].mxu0
      %v1033 = vpop.f32.mrb[0].mxu0
      %v1034 = vadd.f32 0.0, %v1033
      %v1035 = vpop.f32.mrb[0].mxu0
      %1036 = vmatprep.mubr.bf16.mxu0 %v675
      %1037 = vmatmul.mubr.bf16.gmra.mrb[0].mxu0 %v674
      %v1038 = vpop.f32.mrb[0].mxu0
      %v1039 = vadd.f32 0.0, %v1038
      %v1040 = vpop.f32.mrb[0].mxu0
      %v1041 = vpop.f32.mrb[0].mxu0
      %v1042 = vadd.f32 0.0, %v1041
      %v1043 = vpop.f32.mrb[0].mxu0
      %1044 = vmatprep.mubr.bf16.mxu0 %v677
      %1045 = vmatmul.mubr.bf16.gmra.mrb[0].mxu0 %v676
      %v1046 = vpop.f32.mrb[0].mxu0
      %v1047 = vadd.f32 0.0, %v1046
      %v1048 = vpop.f32.mrb[0].mxu0
      %v1049 = vpop.f32.mrb[0].mxu0
      %v1050 = vadd.f32 0.0, %v1049
      %v1051 = vpop.f32.mrb[0].mxu0
      %1052 = vmatprep.mubr.bf16.mxu0 %v679
      %1053 = vmatmul.mubr.bf16.gmra.mrb[0].mxu0 %v678
      %v1054 = vpop.f32.mrb[0].mxu0
      %v1055 = vadd.f32 0.0, %v1054
      %v1056 = vpop.f32.mrb[0].mxu0
      %v1057 = vpop.f32.mrb[0].mxu0
      %v1058 = vadd.f32 0.0, %v1057
      %v1059 = vpop.f32.mrb[0].mxu0
      %1060 = vmatprep.mubr.bf16.mxu0 %v681
      %1061 = vmatmul.mubr.bf16.gmra.mrb[0].mxu0 %v680
      %v1062 = vpop.f32.mrb[0].mxu0
      %v1063 = vadd.f32 0.0, %v1062
      %v1064 = vpop.f32.mrb[0].mxu0
      %v1065 = vpop.f32.mrb[0].mxu0
      %v1066 = vadd.f32 0.0, %v1065
      %v1067 = vpop.f32.mrb[0].mxu0
      %1068 = vmatprep.mubr.bf16.mxu0 %v683
      %1069 = vmatmul.mubr.bf16.gmra.mrb[0].mxu0 %v682
      %v1070 = vpop.f32.mrb[0].mxu0
      %v1071 = vadd.f32 0.0, %v1070
      %v1072 = vpop.f32.mrb[0].mxu0
      %v1073 = vpop.f32.mrb[0].mxu0
      %v1074 = vadd.f32 0.0, %v1073
      %v1075 = vpop.f32.mrb[0].mxu0
      %1076 = vmatprep.mubr.bf16.mxu0 %v685
      %1077 = vmatmul.mubr.bf16.gmra.mrb[0].mxu0 %v684
      %v1078 = vpop.f32.mrb[0].mxu0
      %v1079 = vadd.f32 0.0, %v1078
      %v1080 = vpop.f32.mrb[0].mxu0
      %v1081 = vpop.f32.mrb[0].mxu0
      %v1082 = vadd.f32 0.0, %v1081
      %v1083 = vpop.f32.mrb[0].mxu0
      %1084 = vmatprep.mubr.bf16.mxu0 %v687
      %1085 = vmatmul.mubr.bf16.gmra.mrb[0].mxu0 %v686
      %v1086 = vpop.f32.mrb[0].mxu0
      %v1087 = vadd.f32 0.0, %v1086
      %v1088 = vpop.f32.mrb[0].mxu0
      %v1089 = vpop.f32.mrb[0].mxu0
      %v1090 = vadd.f32 0.0, %v1089
      %v1091 = vpop.f32.mrb[0].mxu0
      %1092 = vmatprep.mubr.bf16.mxu0 %v689
      %1093 = vmatmul.mubr.bf16.gmra.mrb[0].mxu0 %v688
      %v1094 = vpop.f32.mrb[0].mxu0
      %v1095 = vadd.f32 0.0, %v1094
      %v1096 = vpop.f32.mrb[0].mxu0
      %v1097 = vpop.f32.mrb[0].mxu0
      %v1098 = vadd.f32 0.0, %v1097
      %v1099 = vpop.f32.mrb[0].mxu0
      %1100 = vmatprep.mubr.bf16.mxu0 %v691
      %1101 = vmatmul.mubr.bf16.gmra.mrb[0].mxu0 %v690
      %v1102 = vpop.f32.mrb[0].mxu0
      %v1103 = vadd.f32 0.0, %v1102
      %v1104 = vpop.f32.mrb[0].mxu0
      %v1105 = vpop.f32.mrb[0].mxu0
      %v1106 = vadd.f32 0.0, %v1105
      %v1107 = vpop.f32.mrb[0].mxu0
      %1108 = vmatprep.mubr.bf16.mxu0 %v693
      %1109 = vmatmul.mubr.bf16.gmra.mrb[0].mxu0 %v692
      %v1110 = vpop.f32.mrb[0].mxu0
      %v1111 = vadd.f32 0.0, %v1110
      %v1112 = vpop.f32.mrb[0].mxu0
      %v1113 = vpop.f32.mrb[0].mxu0
      %v1114 = vadd.f32 0.0, %v1113
      %v1115 = vpop.f32.mrb[0].mxu0
      %1116 = vmatprep.mubr.bf16.mxu0 %v695
      %1117 = vmatmul.mubr.bf16.gmra.mrb[0].mxu0 %v694
      %v1118 = vpop.f32.mrb[0].mxu0
      %v1119 = vadd.f32 0.0, %v1118
      %v1120 = vpop.f32.mrb[0].mxu0
      %v1121 = vpop.f32.mrb[0].mxu0
      %v1122 = vadd.f32 0.0, %v1121
      %v1123 = vpop.f32.mrb[0].mxu0
      %1124 = vmatprep.mubr.bf16.mxu0 %v697
      %1125 = vmatmul.mubr.bf16.gmra.mrb[0].mxu0 %v696
      %v1126 = vpop.f32.mrb[0].mxu0
      %v1127 = vadd.f32 0.0, %v1126
      %v1128 = vpop.f32.mrb[0].mxu0
      %v1129 = vpop.f32.mrb[0].mxu0
      %v1130 = vadd.f32 0.0, %v1129
      %v1131 = vpop.f32.mrb[0].mxu0
      %1132 = vmatprep.mubr.bf16.mxu0 %v699
      %1133 = vmatmul.mubr.bf16.gmra.mrb[0].mxu0 %v698
      %v1134 = vpop.f32.mrb[0].mxu0
      %v1135 = vadd.f32 0.0, %v1134
      %v1136 = vpop.f32.mrb[0].mxu0
      %v1137 = vpop.f32.mrb[0].mxu0
      %v1138 = vadd.f32 0.0, %v1137
      %v1139 = vpop.f32.mrb[0].mxu0
      %1140 = vmatprep.mubr.bf16.mxu0 %v701
      %1141 = vmatmul.mubr.bf16.gmra.mrb[0].mxu0 %v700
      %v1142 = vpop.f32.mrb[0].mxu0
      %v1143 = vadd.f32 0.0, %v1142
      %v1144 = vpop.f32.mrb[0].mxu0
      %v1145 = vpop.f32.mrb[0].mxu0
      %v1146 = vadd.f32 0.0, %v1145
      %v1147 = vpop.f32.mrb[0].mxu0
      %1148 = vmatprep.mubr.bf16.mxu0 %v703
      %1149 = vmatmul.mubr.bf16.gmra.mrb[0].mxu0 %v702
      %v1150 = vpop.f32.mrb[0].mxu0
      %v1151 = vadd.f32 0.0, %v1150
      %v1152 = vpop.f32.mrb[0].mxu0
      %v1153 = vpop.f32.mrb[0].mxu0
      %v1154 = vadd.f32 0.0, %v1153
      %v1155 = vpop.f32.mrb[0].mxu0
      %1156 = vmatprep.mubr.bf16.mxu0 %v705
      %1157 = vmatmul.mubr.bf16.gmra.mrb[0].mxu0 %v704
      %v1158 = vpop.f32.mrb[0].mxu0
      %v1159 = vadd.f32 0.0, %v1158
      %v1160 = vpop.f32.mrb[0].mxu0
      %v1161 = vpop.f32.mrb[0].mxu0
      %v1162 = vadd.f32 0.0, %v1161
      %v1163 = vpop.f32.mrb[0].mxu0
      %1164 = vmatprep.mubr.bf16.mxu0 %v707
      %1165 = vmatmul.mubr.bf16.gmra.mrb[0].mxu0 %v706
      %v1166 = vpop.f32.mrb[0].mxu0
      %v1167 = vadd.f32 0.0, %v1166
      %v1168 = vpop.f32.mrb[0].mxu0
      %v1169 = vpop.f32.mrb[0].mxu0
      %v1170 = vadd.f32 0.0, %v1169
      %v1171 = vpop.f32.mrb[0].mxu0
      %1172 = vmatprep.mubr.bf16.mxu0 %v709
      %1173 = vmatmul.mubr.bf16.gmra.mrb[0].mxu0 %v708
      %v1174 = vpop.f32.mrb[0].mxu0
      %v1175 = vadd.f32 0.0, %v1174
      %v1176 = vpop.f32.mrb[0].mxu0
      %v1177 = vpop.f32.mrb[0].mxu0
      %v1178 = vadd.f32 0.0, %v1177
      %v1179 = vpop.f32.mrb[0].mxu0
      %1180 = vmatprep.mubr.bf16.mxu0 %v711
      %1181 = vmatmul.mubr.bf16.gmra.mrb[0].mxu0 %v710
      %v1182 = vpop.f32.mrb[0].mxu0
      %v1183 = vadd.f32 0.0, %v1182
      %v1184 = vpop.f32.mrb[0].mxu0
      %v1185 = vpop.f32.mrb[0].mxu0
      %v1186 = vadd.f32 0.0, %v1185
      %v1187 = vpop.f32.mrb[0].mxu0
      %1188 = vmatprep.mubr.bf16.mxu0 %v713
      %1189 = vmatmul.mubr.bf16.gmra.mrb[0].mxu0 %v712
      %v1190 = vpop.f32.mrb[0].mxu0
      %v1191 = vadd.f32 0.0, %v1190
      %v1192 = vpop.f32.mrb[0].mxu0
      %v1193 = vpop.f32.mrb[0].mxu0
      %v1194 = vadd.f32 0.0, %v1193
      %v1195 = vpop.f32.mrb[0].mxu0
      %1196 = vmatprep.mubr.bf16.mxu0 %v715
      %1197 = vmatmul.mubr.bf16.gmra.mrb[0].mxu0 %v714
      %v1198 = vpop.f32.mrb[0].mxu0
      %v1199 = vadd.f32 0.0, %v1198
      %v1200 = vpop.f32.mrb[0].mxu0
      %v1201 = vpop.f32.mrb[0].mxu0
      %v1202 = vadd.f32 0.0, %v1201
      %v1203 = vpop.f32.mrb[0].mxu0
      %1204 = vdwg.mxu0
      %vm1205 = vcmp.gt.f32.partialorder %v919, 0.0
      %vm1206 = vcmp.gt.f32.partialorder %v922, 0.0
      %vm1207 = vcmp.gt.f32.partialorder %v927, 0.0
      %vm1208 = vcmp.gt.f32.partialorder %v930, 0.0
      %vm1209 = vcmp.gt.f32.partialorder %v935, 0.0
      %vm1210 = vcmp.gt.f32.partialorder %v938, 0.0
      %vm1211 = vcmp.gt.f32.partialorder %v943, 0.0
      %vm1212 = vcmp.gt.f32.partialorder %v946, 0.0
      %vm1213 = vcmp.gt.f32.partialorder %v951, 0.0
      %vm1214 = vcmp.gt.f32.partialorder %v954, 0.0
      %vm1215 = vcmp.gt.f32.partialorder %v959, 0.0
      %vm1216 = vcmp.gt.f32.partialorder %v962, 0.0
      %vm1217 = vcmp.gt.f32.partialorder %v967, 0.0
      %vm1218 = vcmp.gt.f32.partialorder %v970, 0.0
      %vm1219 = vcmp.gt.f32.partialorder %v975, 0.0
      %vm1220 = vcmp.gt.f32.partialorder %v978, 0.0
      %vm1221 = vcmp.gt.f32.partialorder %v983, 0.0
      %vm1222 = vcmp.gt.f32.partialorder %v986, 0.0
      %vm1223 = vcmp.gt.f32.partialorder %v991, 0.0
      %vm1224 = vcmp.gt.f32.partialorder %v994, 0.0
      %vm1225 = vcmp.gt.f32.partialorder %v999, 0.0
      %vm1226 = vcmp.gt.f32.partialorder %v1002, 0.0
      %vm1227 = vcmp.gt.f32.partialorder %v1007, 0.0
      %vm1228 = vcmp.gt.f32.partialorder %v1010, 0.0
      %vm1229 = vcmp.gt.f32.partialorder %v1015, 0.0
      %vm1230 = vcmp.gt.f32.partialorder %v1018, 0.0
      %vm1231 = vcmp.gt.f32.partialorder %v1023, 0.0
      %vm1232 = vcmp.gt.f32.partialorder %v1026, 0.0
      %vm1233 = vcmp.gt.f32.partialorder %v1031, 0.0
      %vm1234 = vcmp.gt.f32.partialorder %v1034, 0.0
      %vm1235 = vcmp.gt.f32.partialorder %v1039, 0.0
      %vm1236 = vcmp.gt.f32.partialorder %v1042, 0.0
      %vm1237 = vcmp.gt.f32.partialorder %v1047, 0.0
      %vm1238 = vcmp.gt.f32.partialorder %v1050, 0.0
      %vm1239 = vcmp.gt.f32.partialorder %v1055, 0.0
      %vm1240 = vcmp.gt.f32.partialorder %v1058, 0.0
      %vm1241 = vcmp.gt.f32.partialorder %v1063, 0.0
      %vm1242 = vcmp.gt.f32.partialorder %v1066, 0.0
      %vm1243 = vcmp.gt.f32.partialorder %v1071, 0.0
      %vm1244 = vcmp.gt.f32.partialorder %v1074, 0.0
      %vm1245 = vcmp.gt.f32.partialorder %v1079, 0.0
      %vm1246 = vcmp.gt.f32.partialorder %v1082, 0.0
      %vm1247 = vcmp.gt.f32.partialorder %v1087, 0.0
      %vm1248 = vcmp.gt.f32.partialorder %v1090, 0.0
      %vm1249 = vcmp.gt.f32.partialorder %v1095, 0.0
      %vm1250 = vcmp.gt.f32.partialorder %v1098, 0.0
      %vm1251 = vcmp.gt.f32.partialorder %v1103, 0.0
      %vm1252 = vcmp.gt.f32.partialorder %v1106, 0.0
      %vm1253 = vcmp.gt.f32.partialorder %v1111, 0.0
      %vm1254 = vcmp.gt.f32.partialorder %v1114, 0.0
      %vm1255 = vcmp.gt.f32.partialorder %v1119, 0.0
      %vm1256 = vcmp.gt.f32.partialorder %v1122, 0.0
      %vm1257 = vcmp.gt.f32.partialorder %v1127, 0.0
      %vm1258 = vcmp.gt.f32.partialorder %v1130, 0.0
      %vm1259 = vcmp.gt.f32.partialorder %v1135, 0.0
      %vm1260 = vcmp.gt.f32.partialorder %v1138, 0.0
      %vm1261 = vcmp.gt.f32.partialorder %v1143, 0.0
      %vm1262 = vcmp.gt.f32.partialorder %v1146, 0.0
      %vm1263 = vcmp.gt.f32.partialorder %v1151, 0.0
      %vm1264 = vcmp.gt.f32.partialorder %v1154, 0.0
      %vm1265 = vcmp.gt.f32.partialorder %v1159, 0.0
      %vm1266 = vcmp.gt.f32.partialorder %v1162, 0.0
      %vm1267 = vcmp.gt.f32.partialorder %v1167, 0.0
      %vm1268 = vcmp.gt.f32.partialorder %v1170, 0.0
      %vm1269 = vcmp.gt.f32.partialorder %v1175, 0.0
      %vm1270 = vcmp.gt.f32.partialorder %v1178, 0.0
      %vm1271 = vcmp.gt.f32.partialorder %v1183, 0.0
      %vm1272 = vcmp.gt.f32.partialorder %v1186, 0.0
      %vm1273 = vcmp.gt.f32.partialorder %v1191, 0.0
      %vm1274 = vcmp.gt.f32.partialorder %v1194, 0.0
      %vm1275 = vcmp.gt.f32.partialorder %v1199, 0.0
      %vm1276 = vcmp.gt.f32.partialorder %v1202, 0.0
      %v1277 = vmul.f32 %v919, 0.01
      %v1278 = vmul.f32 %v922, 0.01
      %v1279 = vmul.f32 %v927, 0.01
      %v1280 = vmul.f32 %v930, 0.01
      %v1281 = vmul.f32 %v935, 0.01
      %v1282 = vmul.f32 %v938, 0.01
      %v1283 = vmul.f32 %v943, 0.01
      %v1284 = vmul.f32 %v946, 0.01
      %v1285 = vmul.f32 %v951, 0.01
      %v1286 = vmul.f32 %v954, 0.01
      %v1287 = vmul.f32 %v959, 0.01
      %v1288 = vmul.f32 %v962, 0.01
      %v1289 = vmul.f32 %v967, 0.01
      %v1290 = vmul.f32 %v970, 0.01
      %v1291 = vmul.f32 %v975, 0.01
      %v1292 = vmul.f32 %v978, 0.01
      %v1293 = vmul.f32 %v983, 0.01
      %v1294 = vmul.f32 %v986, 0.01
      %v1295 = vmul.f32 %v991, 0.01
      %v1296 = vmul.f32 %v994, 0.01
      %v1297 = vmul.f32 %v999, 0.01
      %v1298 = vmul.f32 %v1002, 0.01
      %v1299 = vmul.f32 %v1007, 0.01
      %v1300 = vmul.f32 %v1010, 0.01
      %v1301 = vmul.f32 %v1015, 0.01
      %v1302 = vmul.f32 %v1018, 0.01
      %v1303 = vmul.f32 %v1023, 0.01
      %v1304 = vmul.f32 %v1026, 0.01
      %v1305 = vmul.f32 %v1031, 0.01
      %v1306 = vmul.f32 %v1034, 0.01
      %v1307 = vmul.f32 %v1039, 0.01
      %v1308 = vmul.f32 %v1042, 0.01
      %v1309 = vmul.f32 %v1047, 0.01
      %v1310 = vmul.f32 %v1050, 0.01
      %v1311 = vmul.f32 %v1055, 0.01
      %v1312 = vmul.f32 %v1058, 0.01
      %v1313 = vmul.f32 %v1063, 0.01
      %v1314 = vmul.f32 %v1066, 0.01
      %v1315 = vmul.f32 %v1071, 0.01
      %v1316 = vmul.f32 %v1074, 0.01
      %v1317 = vmul.f32 %v1079, 0.01
      %v1318 = vmul.f32 %v1082, 0.01
      %v1319 = vmul.f32 %v1087, 0.01
      %v1320 = vmul.f32 %v1090, 0.01
      %v1321 = vmul.f32 %v1095, 0.01
      %v1322 = vmul.f32 %v1098, 0.01
      %v1323 = vmul.f32 %v1103, 0.01
      %v1324 = vmul.f32 %v1106, 0.01
      %v1325 = vmul.f32 %v1111, 0.01
      %v1326 = vmul.f32 %v1114, 0.01
      %v1327 = vmul.f32 %v1119, 0.01
      %v1328 = vmul.f32 %v1122, 0.01
      %v1329 = vmul.f32 %v1127, 0.01
      %v1330 = vmul.f32 %v1130, 0.01
      %v1331 = vmul.f32 %v1135, 0.01
      %v1332 = vmul.f32 %v1138, 0.01
      %v1333 = vmul.f32 %v1143, 0.01
      %v1334 = vmul.f32 %v1146, 0.01
      %v1335 = vmul.f32 %v1151, 0.01
      %v1336 = vmul.f32 %v1154, 0.01
      %v1337 = vmul.f32 %v1159, 0.01
      %v1338 = vmul.f32 %v1162, 0.01
      %v1339 = vmul.f32 %v1167, 0.01
      %v1340 = vmul.f32 %v1170, 0.01
      %v1341 = vmul.f32 %v1175, 0.01
      %v1342 = vmul.f32 %v1178, 0.01
      %v1343 = vmul.f32 %v1183, 0.01
      %v1344 = vmul.f32 %v1186, 0.01
      %v1345 = vmul.f32 %v1191, 0.01
      %v1346 = vmul.f32 %v1194, 0.01
      %v1347 = vmul.f32 %v1199, 0.01
      %v1348 = vmul.f32 %v1202, 0.01
      %v1349 = vsel %vm1205, %v919, %v1277
      %v1350 = vsel %vm1206, %v922, %v1278
      %v1351 = vsel %vm1207, %v927, %v1279
      %v1352 = vsel %vm1208, %v930, %v1280
      %v1353 = vsel %vm1209, %v935, %v1281
      %v1354 = vsel %vm1210, %v938, %v1282
      %v1355 = vsel %vm1211, %v943, %v1283
      %v1356 = vsel %vm1212, %v946, %v1284
      %v1357 = vsel %vm1213, %v951, %v1285
      %v1358 = vsel %vm1214, %v954, %v1286
      %v1359 = vsel %vm1215, %v959, %v1287
      %v1360 = vsel %vm1216, %v962, %v1288
      %v1361 = vsel %vm1217, %v967, %v1289
      %v1362 = vsel %vm1218, %v970, %v1290
      %v1363 = vsel %vm1219, %v975, %v1291
      %v1364 = vsel %vm1220, %v978, %v1292
      %v1365 = vsel %vm1221, %v983, %v1293
      %v1366 = vsel %vm1222, %v986, %v1294
      %v1367 = vsel %vm1223, %v991, %v1295
      %v1368 = vsel %vm1224, %v994, %v1296
      %v1369 = vsel %vm1225, %v999, %v1297
      %v1370 = vsel %vm1226, %v1002, %v1298
      %v1371 = vsel %vm1227, %v1007, %v1299
      %v1372 = vsel %vm1228, %v1010, %v1300
      %v1373 = vsel %vm1229, %v1015, %v1301
      %v1374 = vsel %vm1230, %v1018, %v1302
      %v1375 = vsel %vm1231, %v1023, %v1303
      %v1376 = vsel %vm1232, %v1026, %v1304
      %v1377 = vsel %vm1233, %v1031, %v1305
      %v1378 = vsel %vm1234, %v1034, %v1306
      %v1379 = vsel %vm1235, %v1039, %v1307
      %v1380 = vsel %vm1236, %v1042, %v1308
      %v1381 = vsel %vm1237, %v1047, %v1309
      %v1382 = vsel %vm1238, %v1050, %v1310
      %v1383 = vsel %vm1239, %v1055, %v1311
      %v1384 = vsel %vm1240, %v1058, %v1312
      %v1385 = vsel %vm1241, %v1063, %v1313
      %v1386 = vsel %vm1242, %v1066, %v1314
      %v1387 = vsel %vm1243, %v1071, %v1315
      %v1388 = vsel %vm1244, %v1074, %v1316
      %v1389 = vsel %vm1245, %v1079, %v1317
      %v1390 = vsel %vm1246, %v1082, %v1318
      %v1391 = vsel %vm1247, %v1087, %v1319
      %v1392 = vsel %vm1248, %v1090, %v1320
      %v1393 = vsel %vm1249, %v1095, %v1321
      %v1394 = vsel %vm1250, %v1098, %v1322
      %v1395 = vsel %vm1251, %v1103, %v1323
      %v1396 = vsel %vm1252, %v1106, %v1324
      %v1397 = vsel %vm1253, %v1111, %v1325
      %v1398 = vsel %vm1254, %v1114, %v1326
      %v1399 = vsel %vm1255, %v1119, %v1327
      %v1400 = vsel %vm1256, %v1122, %v1328
      %v1401 = vsel %vm1257, %v1127, %v1329
      %v1402 = vsel %vm1258, %v1130, %v1330
      %v1403 = vsel %vm1259, %v1135, %v1331
      %v1404 = vsel %vm1260, %v1138, %v1332
      %v1405 = vsel %vm1261, %v1143, %v1333
      %v1406 = vsel %vm1262, %v1146, %v1334
      %v1407 = vsel %vm1263, %v1151, %v1335
      %v1408 = vsel %vm1264, %v1154, %v1336
      %v1409 = vsel %vm1265, %v1159, %v1337
      %v1410 = vsel %vm1266, %v1162, %v1338
      %v1411 = vsel %vm1267, %v1167, %v1339
      %v1412 = vsel %vm1268, %v1170, %v1340
      %v1413 = vsel %vm1269, %v1175, %v1341
      %v1414 = vsel %vm1270, %v1178, %v1342
      %v1415 = vsel %vm1271, %v1183, %v1343
      %v1416 = vsel %vm1272, %v1186, %v1344
      %v1417 = vsel %vm1273, %v1191, %v1345
      %v1418 = vsel %vm1274, %v1194, %v1346
      %v1419 = vsel %vm1275, %v1199, %v1347
      %v1420 = vsel %vm1276, %v1202, %v1348
      %v1421 = vpack.c.bf16 %v1350, %v1349
      %v1422 = vpack.c.bf16 %v1352, %v1351
      %v1423 = vpack.c.bf16 %v1354, %v1353
      %v1424 = vpack.c.bf16 %v1356, %v1355
      %v1425 = vpack.c.bf16 %v1358, %v1357
      %v1426 = vpack.c.bf16 %v1360, %v1359
      %v1427 = vpack.c.bf16 %v1362, %v1361
      %v1428 = vpack.c.bf16 %v1364, %v1363
      %v1429 = vpack.c.bf16 %v1366, %v1365
      %v1430 = vpack.c.bf16 %v1368, %v1367
      %v1431 = vpack.c.bf16 %v1370, %v1369
      %v1432 = vpack.c.bf16 %v1372, %v1371
      %v1433 = vpack.c.bf16 %v1374, %v1373
      %v1434 = vpack.c.bf16 %v1376, %v1375
      %v1435 = vpack.c.bf16 %v1378, %v1377
      %v1436 = vpack.c.bf16 %v1380, %v1379
      %v1437 = vpack.c.bf16 %v1382, %v1381
      %v1438 = vpack.c.bf16 %v1384, %v1383
      %v1439 = vpack.c.bf16 %v1386, %v1385
      %v1440 = vpack.c.bf16 %v1388, %v1387
      %v1441 = vpack.c.bf16 %v1390, %v1389
      %v1442 = vpack.c.bf16 %v1392, %v1391
      %v1443 = vpack.c.bf16 %v1394, %v1393
      %v1444 = vpack.c.bf16 %v1396, %v1395
      %v1445 = vpack.c.bf16 %v1398, %v1397
      %v1446 = vpack.c.bf16 %v1400, %v1399
      %v1447 = vpack.c.bf16 %v1402, %v1401
      %v1448 = vpack.c.bf16 %v1404, %v1403
      %v1449 = vpack.c.bf16 %v1406, %v1405
      %v1450 = vpack.c.bf16 %v1408, %v1407
      %v1451 = vpack.c.bf16 %v1410, %v1409
      %v1452 = vpack.c.bf16 %v1412, %v1411
      %v1453 = vpack.c.bf16 %v1414, %v1413
      %v1454 = vpack.c.bf16 %v1416, %v1415
      %v1455 = vpack.c.bf16 %v1418, %v1417
      %v1456 = vpack.c.bf16 %v1420, %v1419
      %v1493 = vunpack.c.l.b16 %v1421
      %v1494 = vunpack.c.h.b16 %v1421
      %v1495 = vunpack.c.l.b16 %v1422
      %v1496 = vunpack.c.h.b16 %v1422
      %v1497 = vunpack.c.l.b16 %v1423
      %v1498 = vunpack.c.h.b16 %v1423
      %v1499 = vunpack.c.l.b16 %v1424
      %v1500 = vunpack.c.h.b16 %v1424
      %v1501 = vunpack.c.l.b16 %v1425
      %v1502 = vunpack.c.h.b16 %v1425
      %v1503 = vunpack.c.l.b16 %v1426
      %v1504 = vunpack.c.h.b16 %v1426
      %v1505 = vunpack.c.l.b16 %v1427
      %v1506 = vunpack.c.h.b16 %v1427
      %v1507 = vunpack.c.l.b16 %v1428
      %v1508 = vunpack.c.h.b16 %v1428
      %v1509 = vunpack.c.l.b16 %v1429
      %v1510 = vunpack.c.h.b16 %v1429
      %v1511 = vunpack.c.l.b16 %v1430
      %v1512 = vunpack.c.h.b16 %v1430
      %v1513 = vunpack.c.l.b16 %v1431
      %v1514 = vunpack.c.h.b16 %v1431
      %v1515 = vunpack.c.l.b16 %v1432
      %v1516 = vunpack.c.h.b16 %v1432
      %v1517 = vunpack.c.l.b16 %v1433
      %v1518 = vunpack.c.h.b16 %v1433
      %v1519 = vunpack.c.l.b16 %v1434
      %v1520 = vunpack.c.h.b16 %v1434
      %v1521 = vunpack.c.l.b16 %v1435
      %v1522 = vunpack.c.h.b16 %v1435
      %v1523 = vunpack.c.l.b16 %v1436
      %v1524 = vunpack.c.h.b16 %v1436
      %v1525 = vunpack.c.l.b16 %v1437
      %v1526 = vunpack.c.h.b16 %v1437
      %v1527 = vunpack.c.l.b16 %v1438
      %v1528 = vunpack.c.h.b16 %v1438
      %v1529 = vunpack.c.l.b16 %v1439
      %v1530 = vunpack.c.h.b16 %v1439
      %v1531 = vunpack.c.l.b16 %v1440
      %v1532 = vunpack.c.h.b16 %v1440
      %v1533 = vunpack.c.l.b16 %v1441
      %v1534 = vunpack.c.h.b16 %v1441
      %v1535 = vunpack.c.l.b16 %v1442
      %v1536 = vunpack.c.h.b16 %v1442
      %v1537 = vunpack.c.l.b16 %v1443
      %v1538 = vunpack.c.h.b16 %v1443
      %v1539 = vunpack.c.l.b16 %v1444
      %v1540 = vunpack.c.h.b16 %v1444
      %v1541 = vunpack.c.l.b16 %v1445
      %v1542 = vunpack.c.h.b16 %v1445
      %v1543 = vunpack.c.l.b16 %v1446
      %v1544 = vunpack.c.h.b16 %v1446
      %v1545 = vunpack.c.l.b16 %v1447
      %v1546 = vunpack.c.h.b16 %v1447
      %v1547 = vunpack.c.l.b16 %v1448
      %v1548 = vunpack.c.h.b16 %v1448
      %v1549 = vunpack.c.l.b16 %v1449
      %v1550 = vunpack.c.h.b16 %v1449
      %v1551 = vunpack.c.l.b16 %v1450
      %v1552 = vunpack.c.h.b16 %v1450
      %v1553 = vunpack.c.l.b16 %v1451
      %v1554 = vunpack.c.h.b16 %v1451
      %v1555 = vunpack.c.l.b16 %v1452
      %v1556 = vunpack.c.h.b16 %v1452
      %v1557 = vunpack.c.l.b16 %v1453
      %v1558 = vunpack.c.h.b16 %v1453
      %v1559 = vunpack.c.l.b16 %v1454
      %v1560 = vunpack.c.h.b16 %v1454
      %v1561 = vunpack.c.l.b16 %v1455
      %v1562 = vunpack.c.h.b16 %v1455
      %v1563 = vunpack.c.l.b16 %v1456
      %v1564 = vunpack.c.h.b16 %v1456
      %v1565 = vpack.c.b16 %v1493, %v1493
      %v1566 = vpack.c.b16 %v1494, %v1494
      %v1567 = vpack.c.b16 %v1495, %v1495
      %v1568 = vpack.c.b16 %v1496, %v1496
      %v1569 = vpack.c.b16 %v1497, %v1497
      %v1570 = vpack.c.b16 %v1498, %v1498
      %v1571 = vpack.c.b16 %v1499, %v1499
      %v1572 = vpack.c.b16 %v1500, %v1500
      %v1573 = vpack.c.b16 %v1501, %v1501
      %v1574 = vpack.c.b16 %v1502, %v1502
      %v1575 = vpack.c.b16 %v1503, %v1503
      %v1576 = vpack.c.b16 %v1504, %v1504
      %v1577 = vpack.c.b16 %v1505, %v1505
      %v1578 = vpack.c.b16 %v1506, %v1506
      %v1579 = vpack.c.b16 %v1507, %v1507
      %v1580 = vpack.c.b16 %v1508, %v1508
      %v1581 = vpack.c.b16 %v1509, %v1509
      %v1582 = vpack.c.b16 %v1510, %v1510
      %v1583 = vpack.c.b16 %v1511, %v1511
      %v1584 = vpack.c.b16 %v1512, %v1512
      %v1585 = vpack.c.b16 %v1513, %v1513
      %v1586 = vpack.c.b16 %v1514, %v1514
      %v1587 = vpack.c.b16 %v1515, %v1515
      %v1588 = vpack.c.b16 %v1516, %v1516
      %v1589 = vpack.c.b16 %v1517, %v1517
      %v1590 = vpack.c.b16 %v1518, %v1518
      %v1591 = vpack.c.b16 %v1519, %v1519
      %v1592 = vpack.c.b16 %v1520, %v1520
      %v1593 = vpack.c.b16 %v1521, %v1521
      %v1594 = vpack.c.b16 %v1522, %v1522
      %v1595 = vpack.c.b16 %v1523, %v1523
      %v1596 = vpack.c.b16 %v1524, %v1524
      %v1597 = vpack.c.b16 %v1525, %v1525
      %v1598 = vpack.c.b16 %v1526, %v1526
      %v1599 = vpack.c.b16 %v1527, %v1527
      %v1600 = vpack.c.b16 %v1528, %v1528
      %v1601 = vpack.c.b16 %v1529, %v1529
      %v1602 = vpack.c.b16 %v1530, %v1530
      %v1603 = vpack.c.b16 %v1531, %v1531
      %v1604 = vpack.c.b16 %v1532, %v1532
      %v1605 = vpack.c.b16 %v1533, %v1533
      %v1606 = vpack.c.b16 %v1534, %v1534
      %v1607 = vpack.c.b16 %v1535, %v1535
      %v1608 = vpack.c.b16 %v1536, %v1536
      %v1609 = vpack.c.b16 %v1537, %v1537
      %v1610 = vpack.c.b16 %v1538, %v1538
      %v1611 = vpack.c.b16 %v1539, %v1539
      %v1612 = vpack.c.b16 %v1540, %v1540
      %v1613 = vpack.c.b16 %v1541, %v1541
      %v1614 = vpack.c.b16 %v1542, %v1542
      %v1615 = vpack.c.b16 %v1543, %v1543
      %v1616 = vpack.c.b16 %v1544, %v1544
      %v1617 = vpack.c.b16 %v1545, %v1545
      %v1618 = vpack.c.b16 %v1546, %v1546
      %v1619 = vpack.c.b16 %v1547, %v1547
      %v1620 = vpack.c.b16 %v1548, %v1548
      %v1621 = vpack.c.b16 %v1549, %v1549
      %v1622 = vpack.c.b16 %v1550, %v1550
      %v1623 = vpack.c.b16 %v1551, %v1551
      %v1624 = vpack.c.b16 %v1552, %v1552
      %v1625 = vpack.c.b16 %v1553, %v1553
      %v1626 = vpack.c.b16 %v1554, %v1554
      %v1627 = vpack.c.b16 %v1555, %v1555
      %v1628 = vpack.c.b16 %v1556, %v1556
      %v1629 = vpack.c.b16 %v1557, %v1557
      %v1630 = vpack.c.b16 %v1558, %v1558
      %v1631 = vpack.c.b16 %v1559, %v1559
      %v1632 = vpack.c.b16 %v1560, %v1560
      %v1633 = vpack.c.b16 %v1561, %v1561
      %v1634 = vpack.c.b16 %v1562, %v1562
      %v1635 = vpack.c.b16 %v1563, %v1563
      %v1636 = vpack.c.b16 %v1564, %v1564
      %1709 = vst [vmem:[%s309] sm:$0xf] %v1565
      %1710 = vst [vmem:[%s309 + $0x4] sm:$0xf] %v1566
      %1711 = vst [vmem:[%s309 + $0x8] sm:$0xf] %v1567
      %1712 = vst [vmem:[%s309 + $0xc] sm:$0xf] %v1568
      %1713 = vst [vmem:[%s309 + $0x10] sm:$0xf] %v1569
      %1714 = vst [vmem:[%s309 + $0x14] sm:$0xf] %v1570
      %1715 = vst [vmem:[%s309 + $0x18] sm:$0xf] %v1571
      %1716 = vst [vmem:[%s309 + $0x1c] sm:$0xf] %v1572
      %1717 = vst [vmem:[%s309 + $0x20] sm:$0xf] %v1573
      %1718 = vst [vmem:[%s309 + $0x24] sm:$0xf] %v1574
      %1719 = vst [vmem:[%s309 + $0x28] sm:$0xf] %v1575
      %1720 = vst [vmem:[%s309 + $0x2c] sm:$0xf] %v1576
      %1721 = vst [vmem:[%s309 + $0x30] sm:$0xf] %v1577
      %1722 = vst [vmem:[%s309 + $0x34] sm:$0xf] %v1578
      %1723 = vst [vmem:[%s309 + $0x38] sm:$0xf] %v1579
      %1724 = vst [vmem:[%s309 + $0x3c] sm:$0xf] %v1580
      %1725 = vst [vmem:[%s309 + $0x40] sm:$0xf] %v1581
      %1726 = vst [vmem:[%s309 + $0x44] sm:$0xf] %v1582
      %1727 = vst [vmem:[%s309 + $0x48] sm:$0xf] %v1583
      %1728 = vst [vmem:[%s309 + $0x4c] sm:$0xf] %v1584
      %1729 = vst [vmem:[%s309 + $0x50] sm:$0xf] %v1585
      %1730 = vst [vmem:[%s309 + $0x54] sm:$0xf] %v1586
      %1731 = vst [vmem:[%s309 + $0x58] sm:$0xf] %v1587
      %1732 = vst [vmem:[%s309 + $0x5c] sm:$0xf] %v1588
      %1733 = vst [vmem:[%s309 + $0x60] sm:$0xf] %v1589
      %1734 = vst [vmem:[%s309 + $0x64] sm:$0xf] %v1590
      %1735 = vst [vmem:[%s309 + $0x68] sm:$0xf] %v1591
      %1736 = vst [vmem:[%s309 + $0x6c] sm:$0xf] %v1592
      %1737 = vst [vmem:[%s309 + $0x70] sm:$0xf] %v1593
      %1738 = vst [vmem:[%s309 + $0x74] sm:$0xf] %v1594
      %1739 = vst [vmem:[%s309 + $0x78] sm:$0xf] %v1595
      %1740 = vst [vmem:[%s309 + $0x7c] sm:$0xf] %v1596
      %1741 = vst [vmem:[%s309 + $0x80] sm:$0xf] %v1597
      %1742 = vst [vmem:[%s309 + $0x84] sm:$0xf] %v1598
      %1743 = vst [vmem:[%s309 + $0x88] sm:$0xf] %v1599
      %1744 = vst [vmem:[%s309 + $0x8c] sm:$0xf] %v1600
      %1745 = vst [vmem:[%s309 + $0x90] sm:$0xf] %v1601
      %1746 = vst [vmem:[%s309 + $0x94] sm:$0xf] %v1602
      %1747 = vst [vmem:[%s309 + $0x98] sm:$0xf] %v1603
      %1748 = vst [vmem:[%s309 + $0x9c] sm:$0xf] %v1604
      %1749 = vst [vmem:[%s309 + $0xa0] sm:$0xf] %v1605
      %1750 = vst [vmem:[%s309 + $0xa4] sm:$0xf] %v1606
      %1751 = vst [vmem:[%s309 + $0xa8] sm:$0xf] %v1607
      %1752 = vst [vmem:[%s309 + $0xac] sm:$0xf] %v1608
      %1753 = vst [vmem:[%s309 + $0xb0] sm:$0xf] %v1609
      %1754 = vst [vmem:[%s309 + $0xb4] sm:$0xf] %v1610
      %1755 = vst [vmem:[%s309 + $0xb8] sm:$0xf] %v1611
      %1756 = vst [vmem:[%s309 + $0xbc] sm:$0xf] %v1612
      %1757 = vst [vmem:[%s309 + $0xc0] sm:$0xf] %v1613
      %1758 = vst [vmem:[%s309 + $0xc4] sm:$0xf] %v1614
      %1759 = vst [vmem:[%s309 + $0xc8] sm:$0xf] %v1615
      %1760 = vst [vmem:[%s309 + $0xcc] sm:$0xf] %v1616
      %1761 = vst [vmem:[%s309 + $0xd0] sm:$0xf] %v1617
      %1762 = vst [vmem:[%s309 + $0xd4] sm:$0xf] %v1618
      %1763 = vst [vmem:[%s309 + $0xd8] sm:$0xf] %v1619
      %1764 = vst [vmem:[%s309 + $0xdc] sm:$0xf] %v1620
      %1765 = vst [vmem:[%s309 + $0xe0] sm:$0xf] %v1621
      %1766 = vst [vmem:[%s309 + $0xe4] sm:$0xf] %v1622
      %1767 = vst [vmem:[%s309 + $0xe8] sm:$0xf] %v1623
      %1768 = vst [vmem:[%s309 + $0xec] sm:$0xf] %v1624
      %1769 = vst [vmem:[%s309 + $0xf0] sm:$0xf] %v1625
      %1770 = vst [vmem:[%s309 + $0xf4] sm:$0xf] %v1626
      %1771 = vst [vmem:[%s309 + $0xf8] sm:$0xf] %v1627
      %1772 = vst [vmem:[%s309 + $0xfc] sm:$0xf] %v1628
      %1773 = vst [vmem:[%s309 + $0x100] sm:$0xf] %v1629
      %1774 = vst [vmem:[%s309 + $0x104] sm:$0xf] %v1630
      %1775 = vst [vmem:[%s309 + $0x108] sm:$0xf] %v1631
      %1776 = vst [vmem:[%s309 + $0x10c] sm:$0xf] %v1632
      %1777 = vst [vmem:[%s309 + $0x110] sm:$0xf] %v1633
      %1778 = vst [vmem:[%s309 + $0x114] sm:$0xf] %v1634
      %1779 = vst [vmem:[%s309 + $0x118] sm:$0xf] %v1635
      %1780 = vst [vmem:[%s309 + $0x11c] sm:$0xf] %v1636
      %v1781 = vld [vmem:[%s300] sm:$0xff]
      %v1782 = vld [vmem:[%s300 + $0x8] sm:$0xff]
      %v1783 = vld [vmem:[%s300 + $0x10] sm:$0xff]
      %v1784 = vld [vmem:[%s300 + $0x18] sm:$0xff]
      %v1785 = vld [vmem:[%s300 + $0x20] sm:$0xff]
      %v1786 = vld [vmem:[%s300 + $0x28] sm:$0xff]
      %v1787 = vld [vmem:[%s300 + $0x30] sm:$0xff]
      %v1788 = vld [vmem:[%s300 + $0x38] sm:$0xff]
      %v1789 = vld [vmem:[%s300 + $0x40] sm:$0xff]
      %v1790 = vld [vmem:[%s300 + $0x48] sm:$0xff]
      %v1791 = vld [vmem:[%s300 + $0x50] sm:$0xff]
      %v1792 = vld [vmem:[%s300 + $0x58] sm:$0xff]
      %v1793 = vld [vmem:[%s300 + $0x60] sm:$0xff]
      %v1794 = vld [vmem:[%s300 + $0x68] sm:$0xff]
      %v1795 = vld [vmem:[%s300 + $0x70] sm:$0xff]
      %v1796 = vld [vmem:[%s300 + $0x78] sm:$0xff]
      %v1797 = vld [vmem:[%s300 + $0x80] sm:$0xff]
      %v1798 = vld [vmem:[%s300 + $0x88] sm:$0xff]
      %v1799 = vld [vmem:[%s300 + $0x90] sm:$0xff]
      %v1800 = vld [vmem:[%s300 + $0x98] sm:$0xff]
      %v1801 = vld [vmem:[%s300 + $0xa0] sm:$0xff]
      %v1802 = vld [vmem:[%s300 + $0xa8] sm:$0xff]
      %v1803 = vld [vmem:[%s300 + $0xb0] sm:$0xff]
      %v1804 = vld [vmem:[%s300 + $0xb8] sm:$0xff]
      %v1805 = vld [vmem:[%s300 + $0xc0] sm:$0xff]
      %v1806 = vld [vmem:[%s300 + $0xc8] sm:$0xff]
      %v1807 = vld [vmem:[%s300 + $0xd0] sm:$0xff]
      %v1808 = vld [vmem:[%s300 + $0xd8] sm:$0xff]
      %v1809 = vld [vmem:[%s300 + $0xe0] sm:$0xff]
      %v1810 = vld [vmem:[%s300 + $0xe8] sm:$0xff]
      %v1811 = vld [vmem:[%s300 + $0xf0] sm:$0xff]
      %v1812 = vld [vmem:[%s300 + $0xf8] sm:$0xff]
      %v1813 = vld [vmem:[%s300 + $0x100] sm:$0xff]
      %v1814 = vld [vmem:[%s300 + $0x108] sm:$0xff]
      %v1815 = vld [vmem:[%s300 + $0x110] sm:$0xff]
      %v1816 = vld [vmem:[%s300 + $0x118] sm:$0xff]
      %v1817 = vld [vmem:[%s300 + $0x120] sm:$0xff]
      %v1818 = vld [vmem:[%s300 + $0x128] sm:$0xff]
      %v1819 = vld [vmem:[%s300 + $0x130] sm:$0xff]
      %v1820 = vld [vmem:[%s300 + $0x138] sm:$0xff]
      %v1821 = vld [vmem:[%s300 + $0x140] sm:$0xff]
      %v1822 = vld [vmem:[%s300 + $0x148] sm:$0xff]
      %v1823 = vld [vmem:[%s300 + $0x150] sm:$0xff]
      %v1824 = vld [vmem:[%s300 + $0x158] sm:$0xff]
      %v1825 = vld [vmem:[%s300 + $0x160] sm:$0xff]
      %v1826 = vld [vmem:[%s300 + $0x168] sm:$0xff]
      %v1827 = vld [vmem:[%s300 + $0x170] sm:$0xff]
      %v1828 = vld [vmem:[%s300 + $0x178] sm:$0xff]
      %v1829 = vld [vmem:[%s300 + $0x180] sm:$0xff]
      %v1830 = vld [vmem:[%s300 + $0x188] sm:$0xff]
      %v1831 = vld [vmem:[%s300 + $0x190] sm:$0xff]
      %v1832 = vld [vmem:[%s300 + $0x198] sm:$0xff]
      %v1833 = vld [vmem:[%s300 + $0x1a0] sm:$0xff]
      %v1834 = vld [vmem:[%s300 + $0x1a8] sm:$0xff]
      %v1835 = vld [vmem:[%s300 + $0x1b0] sm:$0xff]
      %v1836 = vld [vmem:[%s300 + $0x1b8] sm:$0xff]
      %v1837 = vld [vmem:[%s300 + $0x1c0] sm:$0xff]
      %v1838 = vld [vmem:[%s300 + $0x1c8] sm:$0xff]
      %v1839 = vld [vmem:[%s300 + $0x1d0] sm:$0xff]
      %v1840 = vld [vmem:[%s300 + $0x1d8] sm:$0xff]
      %v1841 = vld [vmem:[%s300 + $0x1e0] sm:$0xff]
      %v1842 = vld [vmem:[%s300 + $0x1e8] sm:$0xff]
      %v1843 = vld [vmem:[%s300 + $0x1f0] sm:$0xff]
      %v1844 = vld [vmem:[%s300 + $0x1f8] sm:$0xff]
      %v1845 = vld [vmem:[%s300 + $0x200] sm:$0xff]
      %v1846 = vld [vmem:[%s300 + $0x208] sm:$0xff]
      %v1847 = vld [vmem:[%s300 + $0x210] sm:$0xff]
      %v1848 = vld [vmem:[%s300 + $0x218] sm:$0xff]
      %v1849 = vld [vmem:[%s300 + $0x220] sm:$0xff]
      %v1850 = vld [vmem:[%s300 + $0x228] sm:$0xff]
      %v1851 = vld [vmem:[%s300 + $0x230] sm:$0xff]
      %v1852 = vld [vmem:[%s300 + $0x238] sm:$0xff]
      %1854 = vset.pattern.permute.xlu0 0
      %1855 = vperm.xlu0 %1854, %v1781
      %v1856 = vpop.permute.xlu0 %1855
      %1859 = vset.pattern.permute.xlu0 0
      %1860 = vperm.xlu0 %1859, %v1782
      %v1861 = vpop.permute.xlu0 %1860
      %1864 = vset.pattern.permute.xlu0 0
      %1865 = vperm.xlu0 %1864, %v1783
      %v1866 = vpop.permute.xlu0 %1865
      %1869 = vset.pattern.permute.xlu0 0
      %1870 = vperm.xlu0 %1869, %v1784
      %v1871 = vpop.permute.xlu0 %1870
      %1874 = vset.pattern.permute.xlu0 0
      %1875 = vperm.xlu0 %1874, %v1785
      %v1876 = vpop.permute.xlu0 %1875
      %1879 = vset.pattern.permute.xlu0 0
      %1880 = vperm.xlu0 %1879, %v1786
      %v1881 = vpop.permute.xlu0 %1880
      %1884 = vset.pattern.permute.xlu0 0
      %1885 = vperm.xlu0 %1884, %v1787
      %v1886 = vpop.permute.xlu0 %1885
      %1889 = vset.pattern.permute.xlu0 0
      %1890 = vperm.xlu0 %1889, %v1788
      %v1891 = vpop.permute.xlu0 %1890
      %1894 = vset.pattern.permute.xlu0 0
      %1895 = vperm.xlu0 %1894, %v1789
      %v1896 = vpop.permute.xlu0 %1895
      %1899 = vset.pattern.permute.xlu0 0
      %1900 = vperm.xlu0 %1899, %v1790
      %v1901 = vpop.permute.xlu0 %1900
      %1904 = vset.pattern.permute.xlu0 0
      %1905 = vperm.xlu0 %1904, %v1791
      %v1906 = vpop.permute.xlu0 %1905
      %1909 = vset.pattern.permute.xlu0 0
      %1910 = vperm.xlu0 %1909, %v1792
      %v1911 = vpop.permute.xlu0 %1910
      %1914 = vset.pattern.permute.xlu0 0
      %1915 = vperm.xlu0 %1914, %v1793
      %v1916 = vpop.permute.xlu0 %1915
      %1919 = vset.pattern.permute.xlu0 0
      %1920 = vperm.xlu0 %1919, %v1794
      %v1921 = vpop.permute.xlu0 %1920
      %1924 = vset.pattern.permute.xlu0 0
      %1925 = vperm.xlu0 %1924, %v1795
      %v1926 = vpop.permute.xlu0 %1925
      %1929 = vset.pattern.permute.xlu0 0
      %1930 = vperm.xlu0 %1929, %v1796
      %v1931 = vpop.permute.xlu0 %1930
      %1934 = vset.pattern.permute.xlu0 0
      %1935 = vperm.xlu0 %1934, %v1797
      %v1936 = vpop.permute.xlu0 %1935
      %1939 = vset.pattern.permute.xlu0 0
      %1940 = vperm.xlu0 %1939, %v1798
      %v1941 = vpop.permute.xlu0 %1940
      %1944 = vset.pattern.permute.xlu0 0
      %1945 = vperm.xlu0 %1944, %v1799
      %v1946 = vpop.permute.xlu0 %1945
      %1949 = vset.pattern.permute.xlu0 0
      %1950 = vperm.xlu0 %1949, %v1800
      %v1951 = vpop.permute.xlu0 %1950
      %1954 = vset.pattern.permute.xlu0 0
      %1955 = vperm.xlu0 %1954, %v1801
      %v1956 = vpop.permute.xlu0 %1955
      %1959 = vset.pattern.permute.xlu0 0
      %1960 = vperm.xlu0 %1959, %v1802
      %v1961 = vpop.permute.xlu0 %1960
      %1964 = vset.pattern.permute.xlu0 0
      %1965 = vperm.xlu0 %1964, %v1803
      %v1966 = vpop.permute.xlu0 %1965
      %1969 = vset.pattern.permute.xlu0 0
      %1970 = vperm.xlu0 %1969, %v1804
      %v1971 = vpop.permute.xlu0 %1970
      %1974 = vset.pattern.permute.xlu0 0
      %1975 = vperm.xlu0 %1974, %v1805
      %v1976 = vpop.permute.xlu0 %1975
      %1979 = vset.pattern.permute.xlu0 0
      %1980 = vperm.xlu0 %1979, %v1806
      %v1981 = vpop.permute.xlu0 %1980
      %1984 = vset.pattern.permute.xlu0 0
      %1985 = vperm.xlu0 %1984, %v1807
      %v1986 = vpop.permute.xlu0 %1985
      %1989 = vset.pattern.permute.xlu0 0
      %1990 = vperm.xlu0 %1989, %v1808
      %v1991 = vpop.permute.xlu0 %1990
      %1994 = vset.pattern.permute.xlu0 0
      %1995 = vperm.xlu0 %1994, %v1809
      %v1996 = vpop.permute.xlu0 %1995
      %1999 = vset.pattern.permute.xlu0 0
      %2000 = vperm.xlu0 %1999, %v1810
      %v2001 = vpop.permute.xlu0 %2000
      %2004 = vset.pattern.permute.xlu0 0
      %2005 = vperm.xlu0 %2004, %v1811
      %v2006 = vpop.permute.xlu0 %2005
      %2009 = vset.pattern.permute.xlu0 0
      %2010 = vperm.xlu0 %2009, %v1812
      %v2011 = vpop.permute.xlu0 %2010
      %2014 = vset.pattern.permute.xlu0 0
      %2015 = vperm.xlu0 %2014, %v1813
      %v2016 = vpop.permute.xlu0 %2015
      %2019 = vset.pattern.permute.xlu0 0
      %2020 = vperm.xlu0 %2019, %v1814
      %v2021 = vpop.permute.xlu0 %2020
      %2024 = vset.pattern.permute.xlu0 0
      %2025 = vperm.xlu0 %2024, %v1815
      %v2026 = vpop.permute.xlu0 %2025
      %2029 = vset.pattern.permute.xlu0 0
      %2030 = vperm.xlu0 %2029, %v1816
      %v2031 = vpop.permute.xlu0 %2030
      %2034 = vset.pattern.permute.xlu0 0
      %2035 = vperm.xlu0 %2034, %v1817
      %v2036 = vpop.permute.xlu0 %2035
      %2039 = vset.pattern.permute.xlu0 0
      %2040 = vperm.xlu0 %2039, %v1818
      %v2041 = vpop.permute.xlu0 %2040
      %2044 = vset.pattern.permute.xlu0 0
      %2045 = vperm.xlu0 %2044, %v1819
      %v2046 = vpop.permute.xlu0 %2045
      %2049 = vset.pattern.permute.xlu0 0
      %2050 = vperm.xlu0 %2049, %v1820
      %v2051 = vpop.permute.xlu0 %2050
      %2054 = vset.pattern.permute.xlu0 0
      %2055 = vperm.xlu0 %2054, %v1821
      %v2056 = vpop.permute.xlu0 %2055
      %2059 = vset.pattern.permute.xlu0 0
      %2060 = vperm.xlu0 %2059, %v1822
      %v2061 = vpop.permute.xlu0 %2060
      %2064 = vset.pattern.permute.xlu0 0
      %2065 = vperm.xlu0 %2064, %v1823
      %v2066 = vpop.permute.xlu0 %2065
      %2069 = vset.pattern.permute.xlu0 0
      %2070 = vperm.xlu0 %2069, %v1824
      %v2071 = vpop.permute.xlu0 %2070
      %2074 = vset.pattern.permute.xlu0 0
      %2075 = vperm.xlu0 %2074, %v1825
      %v2076 = vpop.permute.xlu0 %2075
      %2079 = vset.pattern.permute.xlu0 0
      %2080 = vperm.xlu0 %2079, %v1826
      %v2081 = vpop.permute.xlu0 %2080
      %2084 = vset.pattern.permute.xlu0 0
      %2085 = vperm.xlu0 %2084, %v1827
      %v2086 = vpop.permute.xlu0 %2085
      %2089 = vset.pattern.permute.xlu0 0
      %2090 = vperm.xlu0 %2089, %v1828
      %v2091 = vpop.permute.xlu0 %2090
      %2094 = vset.pattern.permute.xlu0 0
      %2095 = vperm.xlu0 %2094, %v1829
      %v2096 = vpop.permute.xlu0 %2095
      %2099 = vset.pattern.permute.xlu0 0
      %2100 = vperm.xlu0 %2099, %v1830
      %v2101 = vpop.permute.xlu0 %2100
      %2104 = vset.pattern.permute.xlu0 0
      %2105 = vperm.xlu0 %2104, %v1831
      %v2106 = vpop.permute.xlu0 %2105
      %2109 = vset.pattern.permute.xlu0 0
      %2110 = vperm.xlu0 %2109, %v1832
      %v2111 = vpop.permute.xlu0 %2110
      %2114 = vset.pattern.permute.xlu0 0
      %2115 = vperm.xlu0 %2114, %v1833
      %v2116 = vpop.permute.xlu0 %2115
      %2119 = vset.pattern.permute.xlu0 0
      %2120 = vperm.xlu0 %2119, %v1834
      %v2121 = vpop.permute.xlu0 %2120
      %2124 = vset.pattern.permute.xlu0 0
      %2125 = vperm.xlu0 %2124, %v1835
      %v2126 = vpop.permute.xlu0 %2125
      %2129 = vset.pattern.permute.xlu0 0
      %2130 = vperm.xlu0 %2129, %v1836
      %v2131 = vpop.permute.xlu0 %2130
      %2134 = vset.pattern.permute.xlu0 0
      %2135 = vperm.xlu0 %2134, %v1837
      %v2136 = vpop.permute.xlu0 %2135
      %2139 = vset.pattern.permute.xlu0 0
      %2140 = vperm.xlu0 %2139, %v1838
      %v2141 = vpop.permute.xlu0 %2140
      %2144 = vset.pattern.permute.xlu0 0
      %2145 = vperm.xlu0 %2144, %v1839
      %v2146 = vpop.permute.xlu0 %2145
      %2149 = vset.pattern.permute.xlu0 0
      %2150 = vperm.xlu0 %2149, %v1840
      %v2151 = vpop.permute.xlu0 %2150
      %2154 = vset.pattern.permute.xlu0 0
      %2155 = vperm.xlu0 %2154, %v1841
      %v2156 = vpop.permute.xlu0 %2155
      %2159 = vset.pattern.permute.xlu0 0
      %2160 = vperm.xlu0 %2159, %v1842
      %v2161 = vpop.permute.xlu0 %2160
      %2164 = vset.pattern.permute.xlu0 0
      %2165 = vperm.xlu0 %2164, %v1843
      %v2166 = vpop.permute.xlu0 %2165
      %2169 = vset.pattern.permute.xlu0 0
      %2170 = vperm.xlu0 %2169, %v1844
      %v2171 = vpop.permute.xlu0 %2170
      %2174 = vset.pattern.permute.xlu0 0
      %2175 = vperm.xlu0 %2174, %v1845
      %v2176 = vpop.permute.xlu0 %2175
      %2179 = vset.pattern.permute.xlu0 0
      %2180 = vperm.xlu0 %2179, %v1846
      %v2181 = vpop.permute.xlu0 %2180
      %2184 = vset.pattern.permute.xlu0 0
      %2185 = vperm.xlu0 %2184, %v1847
      %v2186 = vpop.permute.xlu0 %2185
      %2189 = vset.pattern.permute.xlu0 0
      %2190 = vperm.xlu0 %2189, %v1848
      %v2191 = vpop.permute.xlu0 %2190
      %2194 = vset.pattern.permute.xlu0 0
      %2195 = vperm.xlu0 %2194, %v1849
      %v2196 = vpop.permute.xlu0 %2195
      %2199 = vset.pattern.permute.xlu0 0
      %2200 = vperm.xlu0 %2199, %v1850
      %v2201 = vpop.permute.xlu0 %2200
      %2204 = vset.pattern.permute.xlu0 0
      %2205 = vperm.xlu0 %2204, %v1851
      %v2206 = vpop.permute.xlu0 %2205
      %2209 = vset.pattern.permute.xlu0 0
      %2210 = vperm.xlu0 %2209, %v1852
      %v2211 = vpop.permute.xlu0 %2210
      %v2213 = vmul.f32 %v1349, %v1856
      %v2214 = vmul.f32 %v1350, %v1861
      %v2215 = vmul.f32 %v1351, %v1866
      %v2216 = vmul.f32 %v1352, %v1871
      %v2217 = vmul.f32 %v1353, %v1876
      %v2218 = vmul.f32 %v1354, %v1881
      %v2219 = vmul.f32 %v1355, %v1886
      %v2220 = vmul.f32 %v1356, %v1891
      %v2221 = vmul.f32 %v1357, %v1896
      %v2222 = vmul.f32 %v1358, %v1901
      %v2223 = vmul.f32 %v1359, %v1906
      %v2224 = vmul.f32 %v1360, %v1911
      %v2225 = vmul.f32 %v1361, %v1916
      %v2226 = vmul.f32 %v1362, %v1921
      %v2227 = vmul.f32 %v1363, %v1926
      %v2228 = vmul.f32 %v1364, %v1931
      %v2229 = vmul.f32 %v1365, %v1936
      %v2230 = vmul.f32 %v1366, %v1941
      %v2231 = vmul.f32 %v1367, %v1946
      %v2232 = vmul.f32 %v1368, %v1951
      %v2233 = vmul.f32 %v1369, %v1956
      %v2234 = vmul.f32 %v1370, %v1961
      %v2235 = vmul.f32 %v1371, %v1966
      %v2236 = vmul.f32 %v1372, %v1971
      %v2237 = vmul.f32 %v1373, %v1976
      %v2238 = vmul.f32 %v1374, %v1981
      %v2239 = vmul.f32 %v1375, %v1986
      %v2240 = vmul.f32 %v1376, %v1991
      %v2241 = vmul.f32 %v1377, %v1996
      %v2242 = vmul.f32 %v1378, %v2001
      %v2243 = vmul.f32 %v1379, %v2006
      %v2244 = vmul.f32 %v1380, %v2011
      %v2245 = vmul.f32 %v1381, %v2016
      %v2246 = vmul.f32 %v1382, %v2021
      %v2247 = vmul.f32 %v1383, %v2026
      %v2248 = vmul.f32 %v1384, %v2031
      %v2249 = vmul.f32 %v1385, %v2036
      %v2250 = vmul.f32 %v1386, %v2041
      %v2251 = vmul.f32 %v1387, %v2046
      %v2252 = vmul.f32 %v1388, %v2051
      %v2253 = vmul.f32 %v1389, %v2056
      %v2254 = vmul.f32 %v1390, %v2061
      %v2255 = vmul.f32 %v1391, %v2066
      %v2256 = vmul.f32 %v1392, %v2071
      %v2257 = vmul.f32 %v1393, %v2076
      %v2258 = vmul.f32 %v1394, %v2081
      %v2259 = vmul.f32 %v1395, %v2086
      %v2260 = vmul.f32 %v1396, %v2091
      %v2261 = vmul.f32 %v1397, %v2096
      %v2262 = vmul.f32 %v1398, %v2101
      %v2263 = vmul.f32 %v1399, %v2106
      %v2264 = vmul.f32 %v1400, %v2111
      %v2265 = vmul.f32 %v1401, %v2116
      %v2266 = vmul.f32 %v1402, %v2121
      %v2267 = vmul.f32 %v1403, %v2126
      %v2268 = vmul.f32 %v1404, %v2131
      %v2269 = vmul.f32 %v1405, %v2136
      %v2270 = vmul.f32 %v1406, %v2141
      %v2271 = vmul.f32 %v1407, %v2146
      %v2272 = vmul.f32 %v1408, %v2151
      %v2273 = vmul.f32 %v1409, %v2156
      %v2274 = vmul.f32 %v1410, %v2161
      %v2275 = vmul.f32 %v1411, %v2166
      %v2276 = vmul.f32 %v1412, %v2171
      %v2277 = vmul.f32 %v1413, %v2176
      %v2278 = vmul.f32 %v1414, %v2181
      %v2279 = vmul.f32 %v1415, %v2186
      %v2280 = vmul.f32 %v1416, %v2191
      %v2281 = vmul.f32 %v1417, %v2196
      %v2282 = vmul.f32 %v1418, %v2201
      %v2283 = vmul.f32 %v1419, %v2206
      %v2284 = vmul.f32 %v1420, %v2211
      %v2285 = vadd.f32 %v2213, %v2214
      %v2286 = vadd.f32 %v2285, %v2215
      %v2287 = vadd.f32 %v2286, %v2216
      %v2288 = vadd.f32 %v2287, %v2217
      %v2289 = vadd.f32 %v2288, %v2218
      %v2290 = vadd.f32 %v2289, %v2219
      %v2291 = vadd.f32 %v2290, %v2220
      %v2292 = vadd.f32 %v2291, %v2221
      %v2293 = vadd.f32 %v2292, %v2222
      %v2294 = vadd.f32 %v2293, %v2223
      %v2295 = vadd.f32 %v2294, %v2224
      %v2296 = vadd.f32 %v2295, %v2225
      %v2297 = vadd.f32 %v2296, %v2226
      %v2298 = vadd.f32 %v2297, %v2227
      %v2299 = vadd.f32 %v2298, %v2228
      %v2300 = vadd.f32 %v2299, %v2229
      %v2301 = vadd.f32 %v2300, %v2230
      %v2302 = vadd.f32 %v2301, %v2231
      %v2303 = vadd.f32 %v2302, %v2232
      %v2304 = vadd.f32 %v2303, %v2233
      %v2305 = vadd.f32 %v2304, %v2234
      %v2306 = vadd.f32 %v2305, %v2235
      %v2307 = vadd.f32 %v2306, %v2236
      %v2308 = vadd.f32 %v2307, %v2237
      %v2309 = vadd.f32 %v2308, %v2238
      %v2310 = vadd.f32 %v2309, %v2239
      %v2311 = vadd.f32 %v2310, %v2240
      %v2312 = vadd.f32 %v2311, %v2241
      %v2313 = vadd.f32 %v2312, %v2242
      %v2314 = vadd.f32 %v2313, %v2243
      %v2315 = vadd.f32 %v2314, %v2244
      %v2316 = vadd.f32 %v2315, %v2245
      %v2317 = vadd.f32 %v2316, %v2246
      %v2318 = vadd.f32 %v2317, %v2247
      %v2319 = vadd.f32 %v2318, %v2248
      %v2320 = vadd.f32 %v2319, %v2249
      %v2321 = vadd.f32 %v2320, %v2250
      %v2322 = vadd.f32 %v2321, %v2251
      %v2323 = vadd.f32 %v2322, %v2252
      %v2324 = vadd.f32 %v2323, %v2253
      %v2325 = vadd.f32 %v2324, %v2254
      %v2326 = vadd.f32 %v2325, %v2255
      %v2327 = vadd.f32 %v2326, %v2256
      %v2328 = vadd.f32 %v2327, %v2257
      %v2329 = vadd.f32 %v2328, %v2258
      %v2330 = vadd.f32 %v2329, %v2259
      %v2331 = vadd.f32 %v2330, %v2260
      %v2332 = vadd.f32 %v2331, %v2261
      %v2333 = vadd.f32 %v2332, %v2262
      %v2334 = vadd.f32 %v2333, %v2263
      %v2335 = vadd.f32 %v2334, %v2264
      %v2336 = vadd.f32 %v2335, %v2265
      %v2337 = vadd.f32 %v2336, %v2266
      %v2338 = vadd.f32 %v2337, %v2267
      %v2339 = vadd.f32 %v2338, %v2268
      %v2340 = vadd.f32 %v2339, %v2269
      %v2341 = vadd.f32 %v2340, %v2270
      %v2342 = vadd.f32 %v2341, %v2271
      %v2343 = vadd.f32 %v2342, %v2272
      %v2344 = vadd.f32 %v2343, %v2273
      %v2345 = vadd.f32 %v2344, %v2274
      %v2346 = vadd.f32 %v2345, %v2275
      %v2347 = vadd.f32 %v2346, %v2276
      %v2348 = vadd.f32 %v2347, %v2277
      %v2349 = vadd.f32 %v2348, %v2278
      %v2350 = vadd.f32 %v2349, %v2279
      %v2351 = vadd.f32 %v2350, %v2280
      %v2352 = vadd.f32 %v2351, %v2281
      %v2353 = vadd.f32 %v2352, %v2282
      %v2354 = vadd.f32 %v2353, %v2283
      %v2355 = vadd.f32 %v2354, %v2284
      %v2356 = vrot.slane %v2355, 4
      %v2357 = vadd.f32 %v2355, %v2356
      %v2358 = vrot.slane %v2357, 2
      %v2359 = vadd.f32 %v2357, %v2358
      %v2360 = vrot.slane %v2359, 1
      %v2361 = vadd.f32 %v2359, %v2360
      %2362 = vst [vmem:[%s316] sm:$0x1] %v2361
      %v2363 = vmul.f32 %v2213, %v1349
      %v2364 = vmul.f32 %v2214, %v1350
      %v2365 = vmul.f32 %v2215, %v1351
      %v2366 = vmul.f32 %v2216, %v1352
      %v2367 = vmul.f32 %v2217, %v1353
      %v2368 = vmul.f32 %v2218, %v1354
      %v2369 = vmul.f32 %v2219, %v1355
      %v2370 = vmul.f32 %v2220, %v1356
      %v2371 = vmul.f32 %v2221, %v1357
      %v2372 = vmul.f32 %v2222, %v1358
      %v2373 = vmul.f32 %v2223, %v1359
      %v2374 = vmul.f32 %v2224, %v1360
      %v2375 = vmul.f32 %v2225, %v1361
      %v2376 = vmul.f32 %v2226, %v1362
      %v2377 = vmul.f32 %v2227, %v1363
      %v2378 = vmul.f32 %v2228, %v1364
      %v2379 = vmul.f32 %v2229, %v1365
      %v2380 = vmul.f32 %v2230, %v1366
      %v2381 = vmul.f32 %v2231, %v1367
      %v2382 = vmul.f32 %v2232, %v1368
      %v2383 = vmul.f32 %v2233, %v1369
      %v2384 = vmul.f32 %v2234, %v1370
      %v2385 = vmul.f32 %v2235, %v1371
      %v2386 = vmul.f32 %v2236, %v1372
      %v2387 = vmul.f32 %v2237, %v1373
      %v2388 = vmul.f32 %v2238, %v1374
      %v2389 = vmul.f32 %v2239, %v1375
      %v2390 = vmul.f32 %v2240, %v1376
      %v2391 = vmul.f32 %v2241, %v1377
      %v2392 = vmul.f32 %v2242, %v1378
      %v2393 = vmul.f32 %v2243, %v1379
      %v2394 = vmul.f32 %v2244, %v1380
      %v2395 = vmul.f32 %v2245, %v1381
      %v2396 = vmul.f32 %v2246, %v1382
      %v2397 = vmul.f32 %v2247, %v1383
      %v2398 = vmul.f32 %v2248, %v1384
      %v2399 = vmul.f32 %v2249, %v1385
      %v2400 = vmul.f32 %v2250, %v1386
      %v2401 = vmul.f32 %v2251, %v1387
      %v2402 = vmul.f32 %v2252, %v1388
      %v2403 = vmul.f32 %v2253, %v1389
      %v2404 = vmul.f32 %v2254, %v1390
      %v2405 = vmul.f32 %v2255, %v1391
      %v2406 = vmul.f32 %v2256, %v1392
      %v2407 = vmul.f32 %v2257, %v1393
      %v2408 = vmul.f32 %v2258, %v1394
      %v2409 = vmul.f32 %v2259, %v1395
      %v2410 = vmul.f32 %v2260, %v1396
      %v2411 = vmul.f32 %v2261, %v1397
      %v2412 = vmul.f32 %v2262, %v1398
      %v2413 = vmul.f32 %v2263, %v1399
      %v2414 = vmul.f32 %v2264, %v1400
      %v2415 = vmul.f32 %v2265, %v1401
      %v2416 = vmul.f32 %v2266, %v1402
      %v2417 = vmul.f32 %v2267, %v1403
      %v2418 = vmul.f32 %v2268, %v1404
      %v2419 = vmul.f32 %v2269, %v1405
      %v2420 = vmul.f32 %v2270, %v1406
      %v2421 = vmul.f32 %v2271, %v1407
      %v2422 = vmul.f32 %v2272, %v1408
      %v2423 = vmul.f32 %v2273, %v1409
      %v2424 = vmul.f32 %v2274, %v1410
      %v2425 = vmul.f32 %v2275, %v1411
      %v2426 = vmul.f32 %v2276, %v1412
      %v2427 = vmul.f32 %v2277, %v1413
      %v2428 = vmul.f32 %v2278, %v1414
      %v2429 = vmul.f32 %v2279, %v1415
      %v2430 = vmul.f32 %v2280, %v1416
      %v2431 = vmul.f32 %v2281, %v1417
      %v2432 = vmul.f32 %v2282, %v1418
      %v2433 = vmul.f32 %v2283, %v1419
      %v2434 = vmul.f32 %v2284, %v1420
      %v2435 = vadd.f32 %v2363, %v2364
      %v2436 = vadd.f32 %v2435, %v2365
      %v2437 = vadd.f32 %v2436, %v2366
      %v2438 = vadd.f32 %v2437, %v2367
      %v2439 = vadd.f32 %v2438, %v2368
      %v2440 = vadd.f32 %v2439, %v2369
      %v2441 = vadd.f32 %v2440, %v2370
      %v2442 = vadd.f32 %v2441, %v2371
      %v2443 = vadd.f32 %v2442, %v2372
      %v2444 = vadd.f32 %v2443, %v2373
      %v2445 = vadd.f32 %v2444, %v2374
      %v2446 = vadd.f32 %v2445, %v2375
      %v2447 = vadd.f32 %v2446, %v2376
      %v2448 = vadd.f32 %v2447, %v2377
      %v2449 = vadd.f32 %v2448, %v2378
      %v2450 = vadd.f32 %v2449, %v2379
      %v2451 = vadd.f32 %v2450, %v2380
      %v2452 = vadd.f32 %v2451, %v2381
      %v2453 = vadd.f32 %v2452, %v2382
      %v2454 = vadd.f32 %v2453, %v2383
      %v2455 = vadd.f32 %v2454, %v2384
      %v2456 = vadd.f32 %v2455, %v2385
      %v2457 = vadd.f32 %v2456, %v2386
      %v2458 = vadd.f32 %v2457, %v2387
      %v2459 = vadd.f32 %v2458, %v2388
      %v2460 = vadd.f32 %v2459, %v2389
      %v2461 = vadd.f32 %v2460, %v2390
      %v2462 = vadd.f32 %v2461, %v2391
      %v2463 = vadd.f32 %v2462, %v2392
      %v2464 = vadd.f32 %v2463, %v2393
      %v2465 = vadd.f32 %v2464, %v2394
      %v2466 = vadd.f32 %v2465, %v2395
      %v2467 = vadd.f32 %v2466, %v2396
      %v2468 = vadd.f32 %v2467, %v2397
      %v2469 = vadd.f32 %v2468, %v2398
      %v2470 = vadd.f32 %v2469, %v2399
      %v2471 = vadd.f32 %v2470, %v2400
      %v2472 = vadd.f32 %v2471, %v2401
      %v2473 = vadd.f32 %v2472, %v2402
      %v2474 = vadd.f32 %v2473, %v2403
      %v2475 = vadd.f32 %v2474, %v2404
      %v2476 = vadd.f32 %v2475, %v2405
      %v2477 = vadd.f32 %v2476, %v2406
      %v2478 = vadd.f32 %v2477, %v2407
      %v2479 = vadd.f32 %v2478, %v2408
      %v2480 = vadd.f32 %v2479, %v2409
      %v2481 = vadd.f32 %v2480, %v2410
      %v2482 = vadd.f32 %v2481, %v2411
      %v2483 = vadd.f32 %v2482, %v2412
      %v2484 = vadd.f32 %v2483, %v2413
      %v2485 = vadd.f32 %v2484, %v2414
      %v2486 = vadd.f32 %v2485, %v2415
      %v2487 = vadd.f32 %v2486, %v2416
      %v2488 = vadd.f32 %v2487, %v2417
      %v2489 = vadd.f32 %v2488, %v2418
      %v2490 = vadd.f32 %v2489, %v2419
      %v2491 = vadd.f32 %v2490, %v2420
      %v2492 = vadd.f32 %v2491, %v2421
      %v2493 = vadd.f32 %v2492, %v2422
      %v2494 = vadd.f32 %v2493, %v2423
      %v2495 = vadd.f32 %v2494, %v2424
      %v2496 = vadd.f32 %v2495, %v2425
      %v2497 = vadd.f32 %v2496, %v2426
      %v2498 = vadd.f32 %v2497, %v2427
      %v2499 = vadd.f32 %v2498, %v2428
      %v2500 = vadd.f32 %v2499, %v2429
      %v2501 = vadd.f32 %v2500, %v2430
      %v2502 = vadd.f32 %v2501, %v2431
      %v2503 = vadd.f32 %v2502, %v2432
      %v2504 = vadd.f32 %v2503, %v2433
      %v2505 = vadd.f32 %v2504, %v2434
      %v2506 = vrot.slane %v2505, 4
      %v2507 = vadd.f32 %v2505, %v2506
      %v2508 = vrot.slane %v2507, 2
      %v2509 = vadd.f32 %v2507, %v2508
      %v2510 = vrot.slane %v2509, 1
      %v2511 = vadd.f32 %v2509, %v2510
      %2512 = vst [vmem:[%s322] sm:$0x1] %v2511
      %s2513 = smul.u32 72, %s21
      %p2514 = scmp.lt.s32.totalorder %s2513, 143
      %s2515 = scalar_select %p2514, %s2513, 143
      %p2516 = scmp.lt.s32.totalorder %s22, 0
      %s2517 = scalar_select %p2516, %s22, 0
      %s2518 = sadd.s32 %s2517, %s2515
      %s2519 = smul.addr %s2518, 4
      %s2520 = scalar_lea.vmem %s3, %s2519
      %p2521 = scmp.lt.s32.totalorder %s21, 1
      %s2522 = scalar_select %p2521, %s21, 1
      %p2523 = scmp.lt.s32.totalorder %s22, 0
      %s2524 = scalar_select %p2523, %s22, 0
      %s2525 = sadd.s32 %s2524, %s2522
      %s2526 = scalar_lea.vmem %s4, %s2525
      %p2527 = scmp.lt.s32.totalorder %s21, 1
      %s2528 = scalar_select %p2527, %s21, 1
      %p2529 = scmp.lt.s32.totalorder %s22, 0
      %s2530 = scalar_select %p2529, %s22, 0
      %s2531 = sadd.s32 %s2530, %s2528
      %s2532 = scalar_lea.vmem %s5, %s2531
      // Predicated region
      $region33: #{unet_forward.10} parent=31 // pred_check
        %p2533 = pneg %p127
      $region34: #{unet_forward.10} parent=31 // pred_check_branch
        %2535 = sbr.rel (%p2533) target = $region36
      $region35: #{unet_forward.10} parent=31 // pred_region
        %s2536 = smul.u32 72, %s21
      $region36: #{unet_forward.10} parent=31 // pred_fallthru
        _
      // Predicated region
      $region37: #{unet_forward.10} parent=31 // pred_check
        %p2537 = pneg %p155
      $region38: #{unet_forward.10} parent=31 // pred_check_branch
        %2539 = sbr.rel (%p2537) target = $region40
      $region39: #{unet_forward.10} parent=31 // pred_region
        _
      $region40: #{unet_forward.10} parent=31 // pred_fallthru
        _
      // Predicated region
      $region41: #{unet_forward.10} parent=31 // pred_check
        %p2540 = pneg %p183
      $region42: #{unet_forward.10} parent=31 // pred_check_branch
        %2542 = sbr.rel (%p2540) target = $region44
      $region43: #{unet_forward.10} parent=31 // pred_region
        _
      $region44: #{unet_forward.10} parent=31 // pred_fallthru
        _
    $region32: #{unet_forward.10} parent=5 // pred_fallthru
      _
    %p2543 = scmp.le.s32.totalorder 2, %s12
    // Predicated region
    $region45: #{unet_forward.10} parent=5 // pred_check
      %p2544 = pneg %p2543
    $region46: #{unet_forward.10} parent=5 // pred_check_branch
      %2546 = sbr.rel (%p2544) target = $region48
    $region47: #{unet_forward.10} parent=5 // pred_region
      %s2547 = ssub.s32 %s12, 2
      // Predicated region
      $region49: #{unet_forward.10} parent=47 // pred_check
        %p2548 = pneg %p133
      $region50: #{unet_forward.10} parent=47 // pred_check_branch
        %2550 = sbr.rel (%p2548) target = $region52
      $region51: #{unet_forward.10} parent=47 // pred_region
        %s2551 = smul.u32 72, %s23
        %p2552 = scmp.lt.s32.totalorder %s2551, 143
        %s2553 = scalar_select %p2552, %s2551, 143
        %p2554 = scmp.lt.s32.totalorder %s24, 0
        %s2555 = scalar_select %p2554, %s24, 0
        %s2556 = sadd.s32 %s2555, %s2553
        %s2557 = smul.addr %s2556, 4
        %s2558 = scalar_lea.vmem %s3, %s2557
      $region52: #{unet_forward.10} parent=47 // pred_fallthru
        _
      // Predicated region
      $region53: #{unet_forward.10} parent=47 // pred_check
        %p2559 = pneg %p161
      $region54: #{unet_forward.10} parent=47 // pred_check_branch
        %2561 = sbr.rel (%p2559) target = $region56
      $region55: #{unet_forward.10} parent=47 // pred_region
        %p2562 = scmp.lt.s32.totalorder %s23, 1
        %s2563 = scalar_select %p2562, %s23, 1
        %p2564 = scmp.lt.s32.totalorder %s24, 0
        %s2565 = scalar_select %p2564, %s24, 0
        %s2566 = sadd.s32 %s2565, %s2563
        %s2567 = scalar_lea.vmem %s4, %s2566
      $region56: #{unet_forward.10} parent=47 // pred_fallthru
        _
      // Predicated region
      $region57: #{unet_forward.10} parent=47 // pred_check
        %p2568 = pneg %p189
      $region58: #{unet_forward.10} parent=47 // pred_check_branch
        %2570 = sbr.rel (%p2568) target = $region60
      $region59: #{unet_forward.10} parent=47 // pred_region
        %p2571 = scmp.lt.s32.totalorder %s23, 1
        %s2572 = scalar_select %p2571, %s23, 1
        %p2573 = scmp.lt.s32.totalorder %s24, 0
        %s2574 = scalar_select %p2573, %s24, 0
        %s2575 = sadd.s32 %s2574, %s2572
        %s2576 = scalar_lea.vmem %s5, %s2575
      $region60: #{unet_forward.10} parent=47 // pred_fallthru
        _
    $region48: #{unet_forward.10} parent=5 // pred_fallthru
      _
  $region6: #{unet_forward.10} parent=0 // loop_footer
    %s16 = sadd.s32 1, %s12
  $region7: #{unet_forward.10} parent=0 // loop_footer_branch
    %11 = sbr.rel target = $region3
  $region8: #{unet_forward.10} parent=0 // loop_exit
    _

// kernel: unet_forward.11
$region0: #{unet_forward.11}
  #allocation0 [shape = 'u32[]', space=smem, size = 0x4, offset = 0x4, fixed_abs, tag = 'smem constant byte address 0x4 - core index']
  #allocation1 [shape = 'u32[144,128]{1,0:T(1,128)}', space=vmem, size = 0x12000, scoped, tag = 'internal scratch']
  %s0 = inlined_call_operand.vmem [shape: bf16[1152,128], index: 0, kind: input, shape index: {}]
  %s1 = inlined_call_operand.vmem [shape: bf16[128,128], index: 1, kind: input, shape index: {}]
  %s2 = inlined_call_operand.vmem [shape: f32[1152,1], index: 2, kind: input, shape index: {}]
  %s3 = inlined_call_operand.vmem [shape: bf16[1152,128], index: 3, kind: output, shape index: {0}]
  %s4 = inlined_call_operand.vmem [shape: f32[2,1,128], index: 4, kind: output, shape index: {1}]
  %s5 = inlined_call_operand.vmem [shape: f32[2,1,128], index: 5, kind: output, shape index: {2}]
  %6 = xla_tuple %s3, %s4, %s5
  %s7 = sld [smem:[#allocation0]]
  $region61: #{unet_forward.11} parent=0
    _
  %s9 = ssub.s32 1, %s7
  %s10 = scalar_select 0, %s9, %s7
  loop: start=0, step=1, limit=4
  $region2: #{unet_forward.11} parent=0 // loop_pre_header
    _
  $region3: #{unet_forward.11} parent=0 // loop_header
    %s12 = sphi 0, %s16
    %p13 = scmp.ge.s32.totalorder %s12, 4
    %s19 = sphi 0, %s31
    %s20 = sphi 0, %s27
    %s21 = sphi 0, %s19
    %s22 = sphi 0, %s20
    %s23 = sphi 0, %s21
    %s24 = sphi 0, %s22
    %s34 = sphi 0, %s36
    %s37 = sphi 0, %s34
    %s38 = sphi 0, %s37
    %s54 = sphi 0, %s38
    %s60 = sphi 0, %s62
    %s63 = sphi 0, %s60
    %s64 = sphi 0, %s63
    %s80 = sphi 0, %s64
    %s86 = sphi 0, %s88
    %s89 = sphi 0, %s86
    %s90 = sphi 0, %s89
    %s106 = sphi 0, %s90
    %s114 = sphi 0, %s116
    %s117 = sphi 0, %s114
    %s118 = sphi 0, %s117
    %s134 = sphi 0, %s118
    %s142 = sphi 0, %s144
    %s145 = sphi 0, %s142
    %s146 = sphi 0, %s145
    %s162 = sphi 0, %s146
    %s170 = sphi 0, %s172
    %s173 = sphi 0, %s170
    %s174 = sphi 0, %s173
    %s190 = sphi 0, %s174
  $region4: #{unet_forward.11} parent=0 // loop_header_branch
    %15 = sbr.rel (%p13) target = $region8
  $region5: #{unet_forward.11} parent=0 // loop_body
    %s17 = ssub.s32 %s12, 1
    %s18 = ssub.s32 %s12, 2
    %s25 = sadd.s32 1, %s20
    %p26 = scmp.ge.s32.totalorder %s25, 1
    %s27 = scalar_select %p26, 0, %s25
    %s28 = sadd.s32 1, %s19
    %s29 = scalar_select %p26, %s28, %s19
    %p30 = scmp.ge.s32.totalorder %s29, 2
    %s31 = scalar_select %p30, 0, %s29
    %s32 = ssub.s32 %s19, %s31
    %p33 = scmp.eq.s32.totalorder %s32, 0
    %s35 = sadd.s32 %s34, 1
    %s36 = scalar_select %p33, %s34, %s35
    %p39 = pneg %p33
    %p40 = scmp.eq.s32.totalorder %s12, 1
    %p41 = por %p39, %p40
    %p42 = scmp.ne.s32.totalorder %s34, %s37
    %p43 = scmp.eq.s32.totalorder %s12, 0
    %p44 = por %p42, %p43
    %p45 = scmp.ne.s32.totalorder %s34, %s37
    %p46 = scmp.eq.s32.totalorder %s17, 1
    %p47 = por %p45, %p46
    %p48 = scmp.ne.s32.totalorder %s37, %s38
    %p49 = scmp.eq.s32.totalorder %s17, 0
    %p50 = por %p48, %p49
    %p51 = scmp.ne.s32.totalorder %s37, %s38
    %p52 = scmp.eq.s32.totalorder %s18, 1
    %p53 = por %p51, %p52
    %p55 = scmp.ne.s32.totalorder %s38, %s54
    %p56 = scmp.eq.s32.totalorder %s18, 0
    %p57 = por %p55, %p56
    %s58 = ssub.s32 %s20, %s27
    %p59 = scmp.eq.s32.totalorder %s58, 0
    %s61 = sadd.s32 %s60, 1
    %s62 = scalar_select %p59, %s60, %s61
    %p65 = pneg %p59
    %p66 = scmp.eq.s32.totalorder %s12, 1
    %p67 = por %p65, %p66
    %p68 = scmp.ne.s32.totalorder %s60, %s63
    %p69 = scmp.eq.s32.totalorder %s12, 0
    %p70 = por %p68, %p69
    %p71 = scmp.ne.s32.totalorder %s60, %s63
    %p72 = scmp.eq.s32.totalorder %s17, 1
    %p73 = por %p71, %p72
    %p74 = scmp.ne.s32.totalorder %s63, %s64
    %p75 = scmp.eq.s32.totalorder %s17, 0
    %p76 = por %p74, %p75
    %p77 = scmp.ne.s32.totalorder %s63, %s64
    %p78 = scmp.eq.s32.totalorder %s18, 1
    %p79 = por %p77, %p78
    %p81 = scmp.ne.s32.totalorder %s64, %s80
    %p82 = scmp.eq.s32.totalorder %s18, 0
    %p83 = por %p81, %p82
    %s84 = ssub.s32 %s19, %s31
    %p85 = scmp.eq.s32.totalorder %s84, 0
    %s87 = sadd.s32 %s86, 1
    %s88 = scalar_select %p85, %s86, %s87
    %p91 = pneg %p85
    %p92 = scmp.eq.s32.totalorder %s12, 1
    %p93 = por %p91, %p92
    %p94 = scmp.ne.s32.totalorder %s86, %s89
    %p95 = scmp.eq.s32.totalorder %s12, 0
    %p96 = por %p94, %p95
    %p97 = scmp.ne.s32.totalorder %s86, %s89
    %p98 = scmp.eq.s32.totalorder %s17, 1
    %p99 = por %p97, %p98
    %p100 = scmp.ne.s32.totalorder %s89, %s90
    %p101 = scmp.eq.s32.totalorder %s17, 0
    %p102 = por %p100, %p101
    %p103 = scmp.ne.s32.totalorder %s89, %s90
    %p104 = scmp.eq.s32.totalorder %s18, 1
    %p105 = por %p103, %p104
    %p107 = scmp.ne.s32.totalorder %s90, %s106
    %p108 = scmp.eq.s32.totalorder %s18, 0
    %p109 = por %p107, %p108
    %s110 = ssub.s32 %s19, %s31
    %s111 = ssub.s32 %s20, %s27
    %s112 = sor.u32 %s110, %s111
    %p113 = scmp.eq.s32.totalorder %s112, 0
    %s115 = sadd.s32 %s114, 1
    %s116 = scalar_select %p113, %s114, %s115
    %p119 = pneg %p113
    %p120 = scmp.eq.s32.totalorder %s12, 1
    %p121 = por %p119, %p120
    %p122 = scmp.ne.s32.totalorder %s114, %s117
    %p123 = scmp.eq.s32.totalorder %s12, 0
    %p124 = por %p122, %p123
    %p125 = scmp.ne.s32.totalorder %s114, %s117
    %p126 = scmp.eq.s32.totalorder %s17, 1
    %p127 = por %p125, %p126
    %p128 = scmp.ne.s32.totalorder %s117, %s118
    %p129 = scmp.eq.s32.totalorder %s17, 0
    %p130 = por %p128, %p129
    %p131 = scmp.ne.s32.totalorder %s117, %s118
    %p132 = scmp.eq.s32.totalorder %s18, 1
    %p133 = por %p131, %p132
    %p135 = scmp.ne.s32.totalorder %s118, %s134
    %p136 = scmp.eq.s32.totalorder %s18, 0
    %p137 = por %p135, %p136
    %s138 = ssub.s32 %s19, %s31
    %s139 = ssub.s32 %s20, %s27
    %s140 = sor.u32 %s138, %s139
    %p141 = scmp.eq.s32.totalorder %s140, 0
    %s143 = sadd.s32 %s142, 1
    %s144 = scalar_select %p141, %s142, %s143
    %p147 = pneg %p141
    %p148 = scmp.eq.s32.totalorder %s12, 1
    %p149 = por %p147, %p148
    %p150 = scmp.ne.s32.totalorder %s142, %s145
    %p151 = scmp.eq.s32.totalorder %s12, 0
    %p152 = por %p150, %p151
    %p153 = scmp.ne.s32.totalorder %s142, %s145
    %p154 = scmp.eq.s32.totalorder %s17, 1
    %p155 = por %p153, %p154
    %p156 = scmp.ne.s32.totalorder %s145, %s146
    %p157 = scmp.eq.s32.totalorder %s17, 0
    %p158 = por %p156, %p157
    %p159 = scmp.ne.s32.totalorder %s145, %s146
    %p160 = scmp.eq.s32.totalorder %s18, 1
    %p161 = por %p159, %p160
    %p163 = scmp.ne.s32.totalorder %s146, %s162
    %p164 = scmp.eq.s32.totalorder %s18, 0
    %p165 = por %p163, %p164
    %s166 = ssub.s32 %s19, %s31
    %s167 = ssub.s32 %s20, %s27
    %s168 = sor.u32 %s166, %s167
    %p169 = scmp.eq.s32.totalorder %s168, 0
    %s171 = sadd.s32 %s170, 1
    %s172 = scalar_select %p169, %s170, %s171
    %p175 = pneg %p169
    %p176 = scmp.eq.s32.totalorder %s12, 1
    %p177 = por %p175, %p176
    %p178 = scmp.ne.s32.totalorder %s170, %s173
    %p179 = scmp.eq.s32.totalorder %s12, 0
    %p180 = por %p178, %p179
    %p181 = scmp.ne.s32.totalorder %s170, %s173
    %p182 = scmp.eq.s32.totalorder %s17, 1
    %p183 = por %p181, %p182
    %p184 = scmp.ne.s32.totalorder %s173, %s174
    %p185 = scmp.eq.s32.totalorder %s17, 0
    %p186 = por %p184, %p185
    %p187 = scmp.ne.s32.totalorder %s173, %s174
    %p188 = scmp.eq.s32.totalorder %s18, 1
    %p189 = por %p187, %p188
    %p191 = scmp.ne.s32.totalorder %s174, %s190
    %p192 = scmp.eq.s32.totalorder %s18, 0
    %p193 = por %p191, %p192
    %p194 = scmp.le.s32.totalorder 1, %s12
    %p195 = scmp.lt.s32.totalorder %s12, 3
    %p196 = pnand %p194, %p195
    %p197 = pneg %p196
    // Predicated region
    $region9: #{unet_forward.11} parent=5 // pred_check
      _
    $region10: #{unet_forward.11} parent=5 // pred_check_branch
      %199 = sbr.rel (%p196) target = $region12
    $region11: #{unet_forward.11} parent=5 // pred_region
      %s200 = ssub.s32 %s12, 1
      // Predicated region
      $region13: #{unet_forward.11} parent=11 // pred_check
        %p201 = pneg %p76
      $region14: #{unet_forward.11} parent=11 // pred_check_branch
        %203 = sbr.rel (%p201) target = $region16
      $region15: #{unet_forward.11} parent=11 // pred_region
        %p204 = scmp.lt.s32.totalorder %s22, 0
        %s205 = scalar_select %p204, %s22, 0
        %s206 = smul.addr %s205, 4
        %s207 = scalar_lea.vmem %s1, %s206
      $region16: #{unet_forward.11} parent=11 // pred_fallthru
        _
    $region12: #{unet_forward.11} parent=5 // pred_fallthru
      _
    %p208 = scmp.lt.s32.totalorder %s12, 2
    // Predicated region
    $region17: #{unet_forward.11} parent=5 // pred_check
      %p209 = pneg %p208
    $region18: #{unet_forward.11} parent=5 // pred_check_branch
      %211 = sbr.rel (%p209) target = $region20
    $region19: #{unet_forward.11} parent=5 // pred_region
      // Predicated region
      $region21: #{unet_forward.11} parent=19 // pred_check
        %p212 = pneg %p44
      $region22: #{unet_forward.11} parent=19 // pred_check_branch
        %214 = sbr.rel (%p212) target = $region24
      $region23: #{unet_forward.11} parent=19 // pred_region
        %s215 = smul.u32 72, %s19
        %p216 = scmp.lt.s32.totalorder %s215, 143
        %s217 = scalar_select %p216, %s215, 143
        %s218 = smul.addr %s217, 4
        %s219 = scalar_lea.vmem %s0, %s218
        %s220 = smul.u32 72, %s19
      $region24: #{unet_forward.11} parent=19 // pred_fallthru
        _
      // Predicated region
      $region25: #{unet_forward.11} parent=19 // pred_check
        %p221 = pneg %p96
      $region26: #{unet_forward.11} parent=19 // pred_check_branch
        %223 = sbr.rel (%p221) target = $region28
      $region27: #{unet_forward.11} parent=19 // pred_region
        %s224 = smul.u32 72, %s19
        %p225 = scmp.lt.s32.totalorder %s224, 143
        %s226 = scalar_select %p225, %s224, 143
        %s227 = smul.addr %s226, 8
        %s228 = scalar_lea.vmem %s2, %s227
        %s229 = smul.u32 72, %s19
      $region28: #{unet_forward.11} parent=19 // pred_fallthru
        _
    $region20: #{unet_forward.11} parent=5 // pred_fallthru
      _
    %p230 = scmp.le.s32.totalorder 1, %s12
    %p231 = scmp.lt.s32.totalorder %s12, 3
    %p232 = pnand %p230, %p231
    %p233 = pneg %p232
    // Predicated region
    $region29: #{unet_forward.11} parent=5 // pred_check
      _
    $region30: #{unet_forward.11} parent=5 // pred_check_branch
      %235 = sbr.rel (%p232) target = $region32
    $region31: #{unet_forward.11} parent=5 // pred_region
      %s236 = ssub.s32 %s12, 1
      %s237 = smul.u32 72, %s21
      %p238 = scmp.lt.s32.totalorder %s237, 143
      %s239 = scalar_select %p238, %s237, 143
      %s240 = smul.addr %s239, 4
      %s241 = scalar_lea.vmem %s0, %s240
      %p242 = pneg %p50
      %p243 = pneg %p47
      %p244 = scmp.lt.s32.totalorder %s22, 0
      %s245 = scalar_select %p244, %s22, 0
      %s246 = smul.addr %s245, 4
      %s247 = scalar_lea.vmem %s1, %s246
      %p248 = pneg %p76
      %p249 = pneg %p73
      %s250 = smul.u32 72, %s21
      %p251 = scmp.lt.s32.totalorder %s250, 143
      %s252 = scalar_select %p251, %s250, 143
      %s253 = smul.addr %s252, 8
      %s254 = scalar_lea.vmem %s2, %s253
      %p255 = pneg %p102
      %p256 = pneg %p99
      %p257 = pneg %p130
      %p258 = pneg %p127
      %s259 = smul.u32 72, %s21
      %p260 = scmp.lt.s32.totalorder %s259, 143
      %s261 = scalar_select %p260, %s259, 143
      %p262 = scmp.lt.s32.totalorder %s22, 0
      %s263 = scalar_select %p262, %s22, 0
      %s264 = sadd.s32 %s263, %s261
      %s265 = smul.addr %s264, 4
      %s266 = scalar_lea.vmem %s3, %s265
      %p267 = pneg %p158
      %p268 = pneg %p155
      %p269 = scmp.lt.s32.totalorder %s21, 1
      %s270 = scalar_select %p269, %s21, 1
      %p271 = scmp.lt.s32.totalorder %s22, 0
      %s272 = scalar_select %p271, %s22, 0
      %s273 = sadd.s32 %s272, %s270
      %s274 = scalar_lea.vmem %s4, %s273
      %p275 = pneg %p186
      %p276 = pneg %p183
      %p277 = scmp.lt.s32.totalorder %s21, 1
      %s278 = scalar_select %p277, %s21, 1
      %p279 = scmp.lt.s32.totalorder %s22, 0
      %s280 = scalar_select %p279, %s22, 0
      %s281 = sadd.s32 %s280, %s278
      %s282 = scalar_lea.vmem %s5, %s281
      %s283 = smul.u32 72, %s21
      %p284 = scmp.lt.s32.totalorder %s283, 143
      %s285 = scalar_select %p284, %s283, 143
      %s286 = smul.addr %s285, 4
      %s287 = scalar_lea.vmem %s0, %s286
      %s288 = smul.u32 72, %s21
      %p289 = scmp.lt.s32.totalorder %s22, 0
      %s290 = scalar_select %p289, %s22, 0
      %s291 = smul.addr %s290, 4
      %s292 = scalar_lea.vmem %s1, %s291
      %s293 = smul.u32 72, %s21
      %p294 = scmp.lt.s32.totalorder %s293, 143
      %s295 = scalar_select %p294, %s293, 143
      %s296 = smul.addr %s295, 8
      %s297 = scalar_lea.vmem %s2, %s296
      %s298 = smul.u32 72, %s21
      %s299 = smul.u32 72, %s21
      %p300 = scmp.lt.s32.totalorder %s299, 143
      %s301 = scalar_select %p300, %s299, 143
      %p302 = scmp.lt.s32.totalorder %s22, 0
      %s303 = scalar_select %p302, %s22, 0
      %s304 = sadd.s32 %s303, %s301
      %s305 = smul.addr %s304, 4
      %s306 = scalar_lea.vmem %s3, %s305
      %s307 = smul.u32 72, %s21
      %p308 = scmp.lt.s32.totalorder %s21, 1
      %s309 = scalar_select %p308, %s21, 1
      %p310 = scmp.lt.s32.totalorder %s22, 0
      %s311 = scalar_select %p310, %s22, 0
      %s312 = sadd.s32 %s311, %s309
      %s313 = scalar_lea.vmem %s4, %s312
      %p314 = scmp.lt.s32.totalorder %s21, 1
      %s315 = scalar_select %p314, %s21, 1
      %p316 = scmp.lt.s32.totalorder %s22, 0
      %s317 = scalar_select %p316, %s22, 0
      %s318 = sadd.s32 %s317, %s315
      %s319 = scalar_lea.vmem %s5, %s318
      %v321 = vld [vmem:[%s287] sm:$0xf]
      %v322 = vld [vmem:[%s287 + $0x4] sm:$0xf]
      %v323 = vld [vmem:[%s287 + $0x8] sm:$0xf]
      %v324 = vld [vmem:[%s287 + $0xc] sm:$0xf]
      %v325 = vld [vmem:[%s287 + $0x10] sm:$0xf]
      %v326 = vld [vmem:[%s287 + $0x14] sm:$0xf]
      %v327 = vld [vmem:[%s287 + $0x18] sm:$0xf]
      %v328 = vld [vmem:[%s287 + $0x1c] sm:$0xf]
      %v329 = vld [vmem:[%s287 + $0x20] sm:$0xf]
      %v330 = vld [vmem:[%s287 + $0x24] sm:$0xf]
      %v331 = vld [vmem:[%s287 + $0x28] sm:$0xf]
      %v332 = vld [vmem:[%s287 + $0x2c] sm:$0xf]
      %v333 = vld [vmem:[%s287 + $0x30] sm:$0xf]
      %v334 = vld [vmem:[%s287 + $0x34] sm:$0xf]
      %v335 = vld [vmem:[%s287 + $0x38] sm:$0xf]
      %v336 = vld [vmem:[%s287 + $0x3c] sm:$0xf]
      %v337 = vld [vmem:[%s287 + $0x40] sm:$0xf]
      %v338 = vld [vmem:[%s287 + $0x44] sm:$0xf]
      %v339 = vld [vmem:[%s287 + $0x48] sm:$0xf]
      %v340 = vld [vmem:[%s287 + $0x4c] sm:$0xf]
      %v341 = vld [vmem:[%s287 + $0x50] sm:$0xf]
      %v342 = vld [vmem:[%s287 + $0x54] sm:$0xf]
      %v343 = vld [vmem:[%s287 + $0x58] sm:$0xf]
      %v344 = vld [vmem:[%s287 + $0x5c] sm:$0xf]
      %v345 = vld [vmem:[%s287 + $0x60] sm:$0xf]
      %v346 = vld [vmem:[%s287 + $0x64] sm:$0xf]
      %v347 = vld [vmem:[%s287 + $0x68] sm:$0xf]
      %v348 = vld [vmem:[%s287 + $0x6c] sm:$0xf]
      %v349 = vld [vmem:[%s287 + $0x70] sm:$0xf]
      %v350 = vld [vmem:[%s287 + $0x74] sm:$0xf]
      %v351 = vld [vmem:[%s287 + $0x78] sm:$0xf]
      %v352 = vld [vmem:[%s287 + $0x7c] sm:$0xf]
      %v353 = vld [vmem:[%s287 + $0x80] sm:$0xf]
      %v354 = vld [vmem:[%s287 + $0x84] sm:$0xf]
      %v355 = vld [vmem:[%s287 + $0x88] sm:$0xf]
      %v356 = vld [vmem:[%s287 + $0x8c] sm:$0xf]
      %v357 = vld [vmem:[%s287 + $0x90] sm:$0xf]
      %v358 = vld [vmem:[%s287 + $0x94] sm:$0xf]
      %v359 = vld [vmem:[%s287 + $0x98] sm:$0xf]
      %v360 = vld [vmem:[%s287 + $0x9c] sm:$0xf]
      %v361 = vld [vmem:[%s287 + $0xa0] sm:$0xf]
      %v362 = vld [vmem:[%s287 + $0xa4] sm:$0xf]
      %v363 = vld [vmem:[%s287 + $0xa8] sm:$0xf]
      %v364 = vld [vmem:[%s287 + $0xac] sm:$0xf]
      %v365 = vld [vmem:[%s287 + $0xb0] sm:$0xf]
      %v366 = vld [vmem:[%s287 + $0xb4] sm:$0xf]
      %v367 = vld [vmem:[%s287 + $0xb8] sm:$0xf]
      %v368 = vld [vmem:[%s287 + $0xbc] sm:$0xf]
      %v369 = vld [vmem:[%s287 + $0xc0] sm:$0xf]
      %v370 = vld [vmem:[%s287 + $0xc4] sm:$0xf]
      %v371 = vld [vmem:[%s287 + $0xc8] sm:$0xf]
      %v372 = vld [vmem:[%s287 + $0xcc] sm:$0xf]
      %v373 = vld [vmem:[%s287 + $0xd0] sm:$0xf]
      %v374 = vld [vmem:[%s287 + $0xd4] sm:$0xf]
      %v375 = vld [vmem:[%s287 + $0xd8] sm:$0xf]
      %v376 = vld [vmem:[%s287 + $0xdc] sm:$0xf]
      %v377 = vld [vmem:[%s287 + $0xe0] sm:$0xf]
      %v378 = vld [vmem:[%s287 + $0xe4] sm:$0xf]
      %v379 = vld [vmem:[%s287 + $0xe8] sm:$0xf]
      %v380 = vld [vmem:[%s287 + $0xec] sm:$0xf]
      %v381 = vld [vmem:[%s287 + $0xf0] sm:$0xf]
      %v382 = vld [vmem:[%s287 + $0xf4] sm:$0xf]
      %v383 = vld [vmem:[%s287 + $0xf8] sm:$0xf]
      %v384 = vld [vmem:[%s287 + $0xfc] sm:$0xf]
      %v385 = vld [vmem:[%s287 + $0x100] sm:$0xf]
      %v386 = vld [vmem:[%s287 + $0x104] sm:$0xf]
      %v387 = vld [vmem:[%s287 + $0x108] sm:$0xf]
      %v388 = vld [vmem:[%s287 + $0x10c] sm:$0xf]
      %v389 = vld [vmem:[%s287 + $0x110] sm:$0xf]
      %v390 = vld [vmem:[%s287 + $0x114] sm:$0xf]
      %v391 = vld [vmem:[%s287 + $0x118] sm:$0xf]
      %v392 = vld [vmem:[%s287 + $0x11c] sm:$0xf]
      %v393 = vld [vmem:[%s292] sm:$0xf]
      %v394 = vld [vmem:[%s292 + $0x4] sm:$0xf]
      %v395 = vld [vmem:[%s292 + $0x8] sm:$0xf]
      %v396 = vld [vmem:[%s292 + $0xc] sm:$0xf]
      %v397 = vld [vmem:[%s292 + $0x10] sm:$0xf]
      %v398 = vld [vmem:[%s292 + $0x14] sm:$0xf]
      %v399 = vld [vmem:[%s292 + $0x18] sm:$0xf]
      %v400 = vld [vmem:[%s292 + $0x1c] sm:$0xf]
      %v401 = vld [vmem:[%s292 + $0x20] sm:$0xf]
      %v402 = vld [vmem:[%s292 + $0x24] sm:$0xf]
      %v403 = vld [vmem:[%s292 + $0x28] sm:$0xf]
      %v404 = vld [vmem:[%s292 + $0x2c] sm:$0xf]
      %v405 = vld [vmem:[%s292 + $0x30] sm:$0xf]
      %v406 = vld [vmem:[%s292 + $0x34] sm:$0xf]
      %v407 = vld [vmem:[%s292 + $0x38] sm:$0xf]
      %v408 = vld [vmem:[%s292 + $0x3c] sm:$0xf]
      %v481 = vunpack.c.l.b16 %v321
      %v482 = vunpack.c.l.b16 %v322
      %v483 = vunpack.c.l.b16 %v323
      %v484 = vunpack.c.l.b16 %v324
      %v485 = vunpack.c.l.b16 %v325
      %v486 = vunpack.c.l.b16 %v326
      %v487 = vunpack.c.l.b16 %v327
      %v488 = vunpack.c.l.b16 %v328
      %v489 = vunpack.c.l.b16 %v329
      %v490 = vunpack.c.l.b16 %v330
      %v491 = vunpack.c.l.b16 %v331
      %v492 = vunpack.c.l.b16 %v332
      %v493 = vunpack.c.l.b16 %v333
      %v494 = vunpack.c.l.b16 %v334
      %v495 = vunpack.c.l.b16 %v335
      %v496 = vunpack.c.l.b16 %v336
      %v497 = vunpack.c.l.b16 %v337
      %v498 = vunpack.c.l.b16 %v338
      %v499 = vunpack.c.l.b16 %v339
      %v500 = vunpack.c.l.b16 %v340
      %v501 = vunpack.c.l.b16 %v341
      %v502 = vunpack.c.l.b16 %v342
      %v503 = vunpack.c.l.b16 %v343
      %v504 = vunpack.c.l.b16 %v344
      %v505 = vunpack.c.l.b16 %v345
      %v506 = vunpack.c.l.b16 %v346
      %v507 = vunpack.c.l.b16 %v347
      %v508 = vunpack.c.l.b16 %v348
      %v509 = vunpack.c.l.b16 %v349
      %v510 = vunpack.c.l.b16 %v350
      %v511 = vunpack.c.l.b16 %v351
      %v512 = vunpack.c.l.b16 %v352
      %v513 = vunpack.c.l.b16 %v353
      %v514 = vunpack.c.l.b16 %v354
      %v515 = vunpack.c.l.b16 %v355
      %v516 = vunpack.c.l.b16 %v356
      %v517 = vunpack.c.l.b16 %v357
      %v518 = vunpack.c.l.b16 %v358
      %v519 = vunpack.c.l.b16 %v359
      %v520 = vunpack.c.l.b16 %v360
      %v521 = vunpack.c.l.b16 %v361
      %v522 = vunpack.c.l.b16 %v362
      %v523 = vunpack.c.l.b16 %v363
      %v524 = vunpack.c.l.b16 %v364
      %v525 = vunpack.c.l.b16 %v365
      %v526 = vunpack.c.l.b16 %v366
      %v527 = vunpack.c.l.b16 %v367
      %v528 = vunpack.c.l.b16 %v368
      %v529 = vunpack.c.l.b16 %v369
      %v530 = vunpack.c.l.b16 %v370
      %v531 = vunpack.c.l.b16 %v371
      %v532 = vunpack.c.l.b16 %v372
      %v533 = vunpack.c.l.b16 %v373
      %v534 = vunpack.c.l.b16 %v374
      %v535 = vunpack.c.l.b16 %v375
      %v536 = vunpack.c.l.b16 %v376
      %v537 = vunpack.c.l.b16 %v377
      %v538 = vunpack.c.l.b16 %v378
      %v539 = vunpack.c.l.b16 %v379
      %v540 = vunpack.c.l.b16 %v380
      %v541 = vunpack.c.l.b16 %v381
      %v542 = vunpack.c.l.b16 %v382
      %v543 = vunpack.c.l.b16 %v383
      %v544 = vunpack.c.l.b16 %v384
      %v545 = vunpack.c.l.b16 %v385
      %v546 = vunpack.c.l.b16 %v386
      %v547 = vunpack.c.l.b16 %v387
      %v548 = vunpack.c.l.b16 %v388
      %v549 = vunpack.c.l.b16 %v389
      %v550 = vunpack.c.l.b16 %v390
      %v551 = vunpack.c.l.b16 %v391
      %v552 = vunpack.c.l.b16 %v392
      %v553 = vpack.c.b16 %v482, %v481
      %v554 = vpack.c.b16 %v484, %v483
      %v555 = vpack.c.b16 %v486, %v485
      %v556 = vpack.c.b16 %v488, %v487
      %v557 = vpack.c.b16 %v490, %v489
      %v558 = vpack.c.b16 %v492, %v491
      %v559 = vpack.c.b16 %v494, %v493
      %v560 = vpack.c.b16 %v496, %v495
      %v561 = vpack.c.b16 %v498, %v497
      %v562 = vpack.c.b16 %v500, %v499
      %v563 = vpack.c.b16 %v502, %v501
      %v564 = vpack.c.b16 %v504, %v503
      %v565 = vpack.c.b16 %v506, %v505
      %v566 = vpack.c.b16 %v508, %v507
      %v567 = vpack.c.b16 %v510, %v509
      %v568 = vpack.c.b16 %v512, %v511
      %v569 = vpack.c.b16 %v514, %v513
      %v570 = vpack.c.b16 %v516, %v515
      %v571 = vpack.c.b16 %v518, %v517
      %v572 = vpack.c.b16 %v520, %v519
      %v573 = vpack.c.b16 %v522, %v521
      %v574 = vpack.c.b16 %v524, %v523
      %v575 = vpack.c.b16 %v526, %v525
      %v576 = vpack.c.b16 %v528, %v527
      %v577 = vpack.c.b16 %v530, %v529
      %v578 = vpack.c.b16 %v532, %v531
      %v579 = vpack.c.b16 %v534, %v533
      %v580 = vpack.c.b16 %v536, %v535
      %v581 = vpack.c.b16 %v538, %v537
      %v582 = vpack.c.b16 %v540, %v539
      %v583 = vpack.c.b16 %v542, %v541
      %v584 = vpack.c.b16 %v544, %v543
      %v585 = vpack.c.b16 %v546, %v545
      %v586 = vpack.c.b16 %v548, %v547
      %v587 = vpack.c.b16 %v550, %v549
      %v588 = vpack.c.b16 %v552, %v551
      %v641 = vunpack.c.l.b16 %v393
      %v642 = vunpack.c.l.b16 %v394
      %v643 = vunpack.c.l.b16 %v395
      %v644 = vunpack.c.l.b16 %v396
      %v645 = vunpack.c.l.b16 %v397
      %v646 = vunpack.c.l.b16 %v398
      %v647 = vunpack.c.l.b16 %v399
      %v648 = vunpack.c.l.b16 %v400
      %v649 = vunpack.c.l.b16 %v401
      %v650 = vunpack.c.l.b16 %v402
      %v651 = vunpack.c.l.b16 %v403
      %v652 = vunpack.c.l.b16 %v404
      %v653 = vunpack.c.l.b16 %v405
      %v654 = vunpack.c.l.b16 %v406
      %v655 = vunpack.c.l.b16 %v407
      %v656 = vunpack.c.l.b16 %v408
      %v657 = vpack.c.b16 %v642, %v641
      %v658 = vpack.c.b16 %v644, %v643
      %v659 = vpack.c.b16 %v646, %v645
      %v660 = vpack.c.b16 %v648, %v647
      %v661 = vpack.c.b16 %v650, %v649
      %v662 = vpack.c.b16 %v652, %v651
      %v663 = vpack.c.b16 %v654, %v653
      %v664 = vpack.c.b16 %v656, %v655
      %673 = vmatprep.subr.bf16.mxu0 0
      %674 = vmatpush1.bf16.msra.mxu0 %v657
      %675 = vmatprep.subr.bf16.mxu0 0
      %676 = vmatpush1.bf16.msra.mxu0 %v658
      %677 = vmatprep.subr.bf16.mxu0 0
      %678 = vmatpush1.bf16.msra.mxu0 %v659
      %679 = vmatprep.subr.bf16.mxu0 0
      %680 = vmatpush1.bf16.msra.mxu0 %v660
      %681 = vmatprep.subr.bf16.mxu0 0
      %682 = vmatpush1.bf16.msra.mxu0 %v661
      %683 = vmatprep.subr.bf16.mxu0 0
      %684 = vmatpush1.bf16.msra.mxu0 %v662
      %685 = vmatprep.subr.bf16.mxu0 0
      %686 = vmatpush1.bf16.msra.mxu0 %v663
      %687 = vmatprep.subr.bf16.mxu0 0
      %688 = vmatpush1.bf16.msra.mxu0 %v664
      %689 = vmatprep.subr.bf16.mxu0 0
      %690 = vmatpush1.bf16.msra.mxu0 0
      %691 = vmatprep.subr.bf16.mxu0 0
      %692 = vmatpush1.bf16.msra.mxu0 0
      %693 = vmatprep.subr.bf16.mxu0 0
      %694 = vmatpush1.bf16.msra.mxu0 0
      %695 = vmatprep.subr.bf16.mxu0 0
      %696 = vmatpush1.bf16.msra.mxu0 0
      %697 = vmatprep.subr.bf16.mxu0 0
      %698 = vmatpush1.bf16.msra.mxu0 0
      %699 = vmatprep.subr.bf16.mxu0 0
      %700 = vmatpush1.bf16.msra.mxu0 0
      %701 = vmatprep.subr.bf16.mxu0 0
      %702 = vmatpush1.bf16.msra.mxu0 0
      %703 = vmatprep.subr.bf16.mxu0 0
      %704 = vmatpush1.bf16.msra.mxu0 0
      %705 = vmatprep.mubr.bf16.mxu0 0
      %706 = vmatmul.mubr.bf16.gmra.mrb[0].mxu0 %v553
      %v707 = vpop.f32.mrb[0].mxu0
      %v708 = vadd.f32 0.0, %v707
      %v709 = vpop.f32.mrb[0].mxu0
      %v710 = vpop.f32.mrb[0].mxu0
      %v711 = vadd.f32 0.0, %v710
      %v712 = vpop.f32.mrb[0].mxu0
      %713 = vmatprep.mubr.bf16.mxu0 0
      %714 = vmatmul.mubr.bf16.gmra.mrb[0].mxu0 %v554
      %v715 = vpop.f32.mrb[0].mxu0
      %v716 = vadd.f32 0.0, %v715
      %v717 = vpop.f32.mrb[0].mxu0
      %v718 = vpop.f32.mrb[0].mxu0
      %v719 = vadd.f32 0.0, %v718
      %v720 = vpop.f32.mrb[0].mxu0
      %721 = vmatprep.mubr.bf16.mxu0 0
      %722 = vmatmul.mubr.bf16.gmra.mrb[0].mxu0 %v555
      %v723 = vpop.f32.mrb[0].mxu0
      %v724 = vadd.f32 0.0, %v723
      %v725 = vpop.f32.mrb[0].mxu0
      %v726 = vpop.f32.mrb[0].mxu0
      %v727 = vadd.f32 0.0, %v726
      %v728 = vpop.f32.mrb[0].mxu0
      %729 = vmatprep.mubr.bf16.mxu0 0
      %730 = vmatmul.mubr.bf16.gmra.mrb[0].mxu0 %v556
      %v731 = vpop.f32.mrb[0].mxu0
      %v732 = vadd.f32 0.0, %v731
      %v733 = vpop.f32.mrb[0].mxu0
      %v734 = vpop.f32.mrb[0].mxu0
      %v735 = vadd.f32 0.0, %v734
      %v736 = vpop.f32.mrb[0].mxu0
      %737 = vmatprep.mubr.bf16.mxu0 0
      %738 = vmatmul.mubr.bf16.gmra.mrb[0].mxu0 %v557
      %v739 = vpop.f32.mrb[0].mxu0
      %v740 = vadd.f32 0.0, %v739
      %v741 = vpop.f32.mrb[0].mxu0
      %v742 = vpop.f32.mrb[0].mxu0
      %v743 = vadd.f32 0.0, %v742
      %v744 = vpop.f32.mrb[0].mxu0
      %745 = vmatprep.mubr.bf16.mxu0 0
      %746 = vmatmul.mubr.bf16.gmra.mrb[0].mxu0 %v558
      %v747 = vpop.f32.mrb[0].mxu0
      %v748 = vadd.f32 0.0, %v747
      %v749 = vpop.f32.mrb[0].mxu0
      %v750 = vpop.f32.mrb[0].mxu0
      %v751 = vadd.f32 0.0, %v750
      %v752 = vpop.f32.mrb[0].mxu0
      %753 = vmatprep.mubr.bf16.mxu0 0
      %754 = vmatmul.mubr.bf16.gmra.mrb[0].mxu0 %v559
      %v755 = vpop.f32.mrb[0].mxu0
      %v756 = vadd.f32 0.0, %v755
      %v757 = vpop.f32.mrb[0].mxu0
      %v758 = vpop.f32.mrb[0].mxu0
      %v759 = vadd.f32 0.0, %v758
      %v760 = vpop.f32.mrb[0].mxu0
      %761 = vmatprep.mubr.bf16.mxu0 0
      %762 = vmatmul.mubr.bf16.gmra.mrb[0].mxu0 %v560
      %v763 = vpop.f32.mrb[0].mxu0
      %v764 = vadd.f32 0.0, %v763
      %v765 = vpop.f32.mrb[0].mxu0
      %v766 = vpop.f32.mrb[0].mxu0
      %v767 = vadd.f32 0.0, %v766
      %v768 = vpop.f32.mrb[0].mxu0
      %769 = vmatprep.mubr.bf16.mxu0 0
      %770 = vmatmul.mubr.bf16.gmra.mrb[0].mxu0 %v561
      %v771 = vpop.f32.mrb[0].mxu0
      %v772 = vadd.f32 0.0, %v771
      %v773 = vpop.f32.mrb[0].mxu0
      %v774 = vpop.f32.mrb[0].mxu0
      %v775 = vadd.f32 0.0, %v774
      %v776 = vpop.f32.mrb[0].mxu0
      %777 = vmatprep.mubr.bf16.mxu0 0
      %778 = vmatmul.mubr.bf16.gmra.mrb[0].mxu0 %v562
      %v779 = vpop.f32.mrb[0].mxu0
      %v780 = vadd.f32 0.0, %v779
      %v781 = vpop.f32.mrb[0].mxu0
      %v782 = vpop.f32.mrb[0].mxu0
      %v783 = vadd.f32 0.0, %v782
      %v784 = vpop.f32.mrb[0].mxu0
      %785 = vmatprep.mubr.bf16.mxu0 0
      %786 = vmatmul.mubr.bf16.gmra.mrb[0].mxu0 %v563
      %v787 = vpop.f32.mrb[0].mxu0
      %v788 = vadd.f32 0.0, %v787
      %v789 = vpop.f32.mrb[0].mxu0
      %v790 = vpop.f32.mrb[0].mxu0
      %v791 = vadd.f32 0.0, %v790
      %v792 = vpop.f32.mrb[0].mxu0
      %793 = vmatprep.mubr.bf16.mxu0 0
      %794 = vmatmul.mubr.bf16.gmra.mrb[0].mxu0 %v564
      %v795 = vpop.f32.mrb[0].mxu0
      %v796 = vadd.f32 0.0, %v795
      %v797 = vpop.f32.mrb[0].mxu0
      %v798 = vpop.f32.mrb[0].mxu0
      %v799 = vadd.f32 0.0, %v798
      %v800 = vpop.f32.mrb[0].mxu0
      %801 = vmatprep.mubr.bf16.mxu0 0
      %802 = vmatmul.mubr.bf16.gmra.mrb[0].mxu0 %v565
      %v803 = vpop.f32.mrb[0].mxu0
      %v804 = vadd.f32 0.0, %v803
      %v805 = vpop.f32.mrb[0].mxu0
      %v806 = vpop.f32.mrb[0].mxu0
      %v807 = vadd.f32 0.0, %v806
      %v808 = vpop.f32.mrb[0].mxu0
      %809 = vmatprep.mubr.bf16.mxu0 0
      %810 = vmatmul.mubr.bf16.gmra.mrb[0].mxu0 %v566
      %v811 = vpop.f32.mrb[0].mxu0
      %v812 = vadd.f32 0.0, %v811
      %v813 = vpop.f32.mrb[0].mxu0
      %v814 = vpop.f32.mrb[0].mxu0
      %v815 = vadd.f32 0.0, %v814
      %v816 = vpop.f32.mrb[0].mxu0
      %817 = vmatprep.mubr.bf16.mxu0 0
      %818 = vmatmul.mubr.bf16.gmra.mrb[0].mxu0 %v567
      %v819 = vpop.f32.mrb[0].mxu0
      %v820 = vadd.f32 0.0, %v819
      %v821 = vpop.f32.mrb[0].mxu0
      %v822 = vpop.f32.mrb[0].mxu0
      %v823 = vadd.f32 0.0, %v822
      %v824 = vpop.f32.mrb[0].mxu0
      %825 = vmatprep.mubr.bf16.mxu0 0
      %826 = vmatmul.mubr.bf16.gmra.mrb[0].mxu0 %v568
      %v827 = vpop.f32.mrb[0].mxu0
      %v828 = vadd.f32 0.0, %v827
      %v829 = vpop.f32.mrb[0].mxu0
      %v830 = vpop.f32.mrb[0].mxu0
      %v831 = vadd.f32 0.0, %v830
      %v832 = vpop.f32.mrb[0].mxu0
      %833 = vmatprep.mubr.bf16.mxu0 0
      %834 = vmatmul.mubr.bf16.gmra.mrb[0].mxu0 %v569
      %v835 = vpop.f32.mrb[0].mxu0
      %v836 = vadd.f32 0.0, %v835
      %v837 = vpop.f32.mrb[0].mxu0
      %v838 = vpop.f32.mrb[0].mxu0
      %v839 = vadd.f32 0.0, %v838
      %v840 = vpop.f32.mrb[0].mxu0
      %841 = vmatprep.mubr.bf16.mxu0 0
      %842 = vmatmul.mubr.bf16.gmra.mrb[0].mxu0 %v570
      %v843 = vpop.f32.mrb[0].mxu0
      %v844 = vadd.f32 0.0, %v843
      %v845 = vpop.f32.mrb[0].mxu0
      %v846 = vpop.f32.mrb[0].mxu0
      %v847 = vadd.f32 0.0, %v846
      %v848 = vpop.f32.mrb[0].mxu0
      %849 = vmatprep.mubr.bf16.mxu0 0
      %850 = vmatmul.mubr.bf16.gmra.mrb[0].mxu0 %v571
      %v851 = vpop.f32.mrb[0].mxu0
      %v852 = vadd.f32 0.0, %v851
      %v853 = vpop.f32.mrb[0].mxu0
      %v854 = vpop.f32.mrb[0].mxu0
      %v855 = vadd.f32 0.0, %v854
      %v856 = vpop.f32.mrb[0].mxu0
      %857 = vmatprep.mubr.bf16.mxu0 0
      %858 = vmatmul.mubr.bf16.gmra.mrb[0].mxu0 %v572
      %v859 = vpop.f32.mrb[0].mxu0
      %v860 = vadd.f32 0.0, %v859
      %v861 = vpop.f32.mrb[0].mxu0
      %v862 = vpop.f32.mrb[0].mxu0
      %v863 = vadd.f32 0.0, %v862
      %v864 = vpop.f32.mrb[0].mxu0
      %865 = vmatprep.mubr.bf16.mxu0 0
      %866 = vmatmul.mubr.bf16.gmra.mrb[0].mxu0 %v573
      %v867 = vpop.f32.mrb[0].mxu0
      %v868 = vadd.f32 0.0, %v867
      %v869 = vpop.f32.mrb[0].mxu0
      %v870 = vpop.f32.mrb[0].mxu0
      %v871 = vadd.f32 0.0, %v870
      %v872 = vpop.f32.mrb[0].mxu0
      %873 = vmatprep.mubr.bf16.mxu0 0
      %874 = vmatmul.mubr.bf16.gmra.mrb[0].mxu0 %v574
      %v875 = vpop.f32.mrb[0].mxu0
      %v876 = vadd.f32 0.0, %v875
      %v877 = vpop.f32.mrb[0].mxu0
      %v878 = vpop.f32.mrb[0].mxu0
      %v879 = vadd.f32 0.0, %v878
      %v880 = vpop.f32.mrb[0].mxu0
      %881 = vmatprep.mubr.bf16.mxu0 0
      %882 = vmatmul.mubr.bf16.gmra.mrb[0].mxu0 %v575
      %v883 = vpop.f32.mrb[0].mxu0
      %v884 = vadd.f32 0.0, %v883
      %v885 = vpop.f32.mrb[0].mxu0
      %v886 = vpop.f32.mrb[0].mxu0
      %v887 = vadd.f32 0.0, %v886
      %v888 = vpop.f32.mrb[0].mxu0
      %889 = vmatprep.mubr.bf16.mxu0 0
      %890 = vmatmul.mubr.bf16.gmra.mrb[0].mxu0 %v576
      %v891 = vpop.f32.mrb[0].mxu0
      %v892 = vadd.f32 0.0, %v891
      %v893 = vpop.f32.mrb[0].mxu0
      %v894 = vpop.f32.mrb[0].mxu0
      %v895 = vadd.f32 0.0, %v894
      %v896 = vpop.f32.mrb[0].mxu0
      %897 = vmatprep.mubr.bf16.mxu0 0
      %898 = vmatmul.mubr.bf16.gmra.mrb[0].mxu0 %v577
      %v899 = vpop.f32.mrb[0].mxu0
      %v900 = vadd.f32 0.0, %v899
      %v901 = vpop.f32.mrb[0].mxu0
      %v902 = vpop.f32.mrb[0].mxu0
      %v903 = vadd.f32 0.0, %v902
      %v904 = vpop.f32.mrb[0].mxu0
      %905 = vmatprep.mubr.bf16.mxu0 0
      %906 = vmatmul.mubr.bf16.gmra.mrb[0].mxu0 %v578
      %v907 = vpop.f32.mrb[0].mxu0
      %v908 = vadd.f32 0.0, %v907
      %v909 = vpop.f32.mrb[0].mxu0
      %v910 = vpop.f32.mrb[0].mxu0
      %v911 = vadd.f32 0.0, %v910
      %v912 = vpop.f32.mrb[0].mxu0
      %913 = vmatprep.mubr.bf16.mxu0 0
      %914 = vmatmul.mubr.bf16.gmra.mrb[0].mxu0 %v579
      %v915 = vpop.f32.mrb[0].mxu0
      %v916 = vadd.f32 0.0, %v915
      %v917 = vpop.f32.mrb[0].mxu0
      %v918 = vpop.f32.mrb[0].mxu0
      %v919 = vadd.f32 0.0, %v918
      %v920 = vpop.f32.mrb[0].mxu0
      %921 = vmatprep.mubr.bf16.mxu0 0
      %922 = vmatmul.mubr.bf16.gmra.mrb[0].mxu0 %v580
      %v923 = vpop.f32.mrb[0].mxu0
      %v924 = vadd.f32 0.0, %v923
      %v925 = vpop.f32.mrb[0].mxu0
      %v926 = vpop.f32.mrb[0].mxu0
      %v927 = vadd.f32 0.0, %v926
      %v928 = vpop.f32.mrb[0].mxu0
      %929 = vmatprep.mubr.bf16.mxu0 0
      %930 = vmatmul.mubr.bf16.gmra.mrb[0].mxu0 %v581
      %v931 = vpop.f32.mrb[0].mxu0
      %v932 = vadd.f32 0.0, %v931
      %v933 = vpop.f32.mrb[0].mxu0
      %v934 = vpop.f32.mrb[0].mxu0
      %v935 = vadd.f32 0.0, %v934
      %v936 = vpop.f32.mrb[0].mxu0
      %937 = vmatprep.mubr.bf16.mxu0 0
      %938 = vmatmul.mubr.bf16.gmra.mrb[0].mxu0 %v582
      %v939 = vpop.f32.mrb[0].mxu0
      %v940 = vadd.f32 0.0, %v939
      %v941 = vpop.f32.mrb[0].mxu0
      %v942 = vpop.f32.mrb[0].mxu0
      %v943 = vadd.f32 0.0, %v942
      %v944 = vpop.f32.mrb[0].mxu0
      %945 = vmatprep.mubr.bf16.mxu0 0
      %946 = vmatmul.mubr.bf16.gmra.mrb[0].mxu0 %v583
      %v947 = vpop.f32.mrb[0].mxu0
      %v948 = vadd.f32 0.0, %v947
      %v949 = vpop.f32.mrb[0].mxu0
      %v950 = vpop.f32.mrb[0].mxu0
      %v951 = vadd.f32 0.0, %v950
      %v952 = vpop.f32.mrb[0].mxu0
      %953 = vmatprep.mubr.bf16.mxu0 0
      %954 = vmatmul.mubr.bf16.gmra.mrb[0].mxu0 %v584
      %v955 = vpop.f32.mrb[0].mxu0
      %v956 = vadd.f32 0.0, %v955
      %v957 = vpop.f32.mrb[0].mxu0
      %v958 = vpop.f32.mrb[0].mxu0
      %v959 = vadd.f32 0.0, %v958
      %v960 = vpop.f32.mrb[0].mxu0
      %961 = vmatprep.mubr.bf16.mxu0 0
      %962 = vmatmul.mubr.bf16.gmra.mrb[0].mxu0 %v585
      %v963 = vpop.f32.mrb[0].mxu0
      %v964 = vadd.f32 0.0, %v963
      %v965 = vpop.f32.mrb[0].mxu0
      %v966 = vpop.f32.mrb[0].mxu0
      %v967 = vadd.f32 0.0, %v966
      %v968 = vpop.f32.mrb[0].mxu0
      %969 = vmatprep.mubr.bf16.mxu0 0
      %970 = vmatmul.mubr.bf16.gmra.mrb[0].mxu0 %v586
      %v971 = vpop.f32.mrb[0].mxu0
      %v972 = vadd.f32 0.0, %v971
      %v973 = vpop.f32.mrb[0].mxu0
      %v974 = vpop.f32.mrb[0].mxu0
      %v975 = vadd.f32 0.0, %v974
      %v976 = vpop.f32.mrb[0].mxu0
      %977 = vmatprep.mubr.bf16.mxu0 0
      %978 = vmatmul.mubr.bf16.gmra.mrb[0].mxu0 %v587
      %v979 = vpop.f32.mrb[0].mxu0
      %v980 = vadd.f32 0.0, %v979
      %v981 = vpop.f32.mrb[0].mxu0
      %v982 = vpop.f32.mrb[0].mxu0
      %v983 = vadd.f32 0.0, %v982
      %v984 = vpop.f32.mrb[0].mxu0
      %985 = vmatprep.mubr.bf16.mxu0 0
      %986 = vmatmul.mubr.bf16.gmra.mrb[0].mxu0 %v588
      %v987 = vpop.f32.mrb[0].mxu0
      %v988 = vadd.f32 0.0, %v987
      %v989 = vpop.f32.mrb[0].mxu0
      %v990 = vpop.f32.mrb[0].mxu0
      %v991 = vadd.f32 0.0, %v990
      %v992 = vpop.f32.mrb[0].mxu0
      %993 = vdwg.mxu0
      %vm994 = vcmp.gt.f32.partialorder %v708, 0.0
      %vm995 = vcmp.gt.f32.partialorder %v711, 0.0
      %vm996 = vcmp.gt.f32.partialorder %v716, 0.0
      %vm997 = vcmp.gt.f32.partialorder %v719, 0.0
      %vm998 = vcmp.gt.f32.partialorder %v724, 0.0
      %vm999 = vcmp.gt.f32.partialorder %v727, 0.0
      %vm1000 = vcmp.gt.f32.partialorder %v732, 0.0
      %vm1001 = vcmp.gt.f32.partialorder %v735, 0.0
      %vm1002 = vcmp.gt.f32.partialorder %v740, 0.0
      %vm1003 = vcmp.gt.f32.partialorder %v743, 0.0
      %vm1004 = vcmp.gt.f32.partialorder %v748, 0.0
      %vm1005 = vcmp.gt.f32.partialorder %v751, 0.0
      %vm1006 = vcmp.gt.f32.partialorder %v756, 0.0
      %vm1007 = vcmp.gt.f32.partialorder %v759, 0.0
      %vm1008 = vcmp.gt.f32.partialorder %v764, 0.0
      %vm1009 = vcmp.gt.f32.partialorder %v767, 0.0
      %vm1010 = vcmp.gt.f32.partialorder %v772, 0.0
      %vm1011 = vcmp.gt.f32.partialorder %v775, 0.0
      %vm1012 = vcmp.gt.f32.partialorder %v780, 0.0
      %vm1013 = vcmp.gt.f32.partialorder %v783, 0.0
      %vm1014 = vcmp.gt.f32.partialorder %v788, 0.0
      %vm1015 = vcmp.gt.f32.partialorder %v791, 0.0
      %vm1016 = vcmp.gt.f32.partialorder %v796, 0.0
      %vm1017 = vcmp.gt.f32.partialorder %v799, 0.0
      %vm1018 = vcmp.gt.f32.partialorder %v804, 0.0
      %vm1019 = vcmp.gt.f32.partialorder %v807, 0.0
      %vm1020 = vcmp.gt.f32.partialorder %v812, 0.0
      %vm1021 = vcmp.gt.f32.partialorder %v815, 0.0
      %vm1022 = vcmp.gt.f32.partialorder %v820, 0.0
      %vm1023 = vcmp.gt.f32.partialorder %v823, 0.0
      %vm1024 = vcmp.gt.f32.partialorder %v828, 0.0
      %vm1025 = vcmp.gt.f32.partialorder %v831, 0.0
      %vm1026 = vcmp.gt.f32.partialorder %v836, 0.0
      %vm1027 = vcmp.gt.f32.partialorder %v839, 0.0
      %vm1028 = vcmp.gt.f32.partialorder %v844, 0.0
      %vm1029 = vcmp.gt.f32.partialorder %v847, 0.0
      %vm1030 = vcmp.gt.f32.partialorder %v852, 0.0
      %vm1031 = vcmp.gt.f32.partialorder %v855, 0.0
      %vm1032 = vcmp.gt.f32.partialorder %v860, 0.0
      %vm1033 = vcmp.gt.f32.partialorder %v863, 0.0
      %vm1034 = vcmp.gt.f32.partialorder %v868, 0.0
      %vm1035 = vcmp.gt.f32.partialorder %v871, 0.0
      %vm1036 = vcmp.gt.f32.partialorder %v876, 0.0
      %vm1037 = vcmp.gt.f32.partialorder %v879, 0.0
      %vm1038 = vcmp.gt.f32.partialorder %v884, 0.0
      %vm1039 = vcmp.gt.f32.partialorder %v887, 0.0
      %vm1040 = vcmp.gt.f32.partialorder %v892, 0.0
      %vm1041 = vcmp.gt.f32.partialorder %v895, 0.0
      %vm1042 = vcmp.gt.f32.partialorder %v900, 0.0
      %vm1043 = vcmp.gt.f32.partialorder %v903, 0.0
      %vm1044 = vcmp.gt.f32.partialorder %v908, 0.0
      %vm1045 = vcmp.gt.f32.partialorder %v911, 0.0
      %vm1046 = vcmp.gt.f32.partialorder %v916, 0.0
      %vm1047 = vcmp.gt.f32.partialorder %v919, 0.0
      %vm1048 = vcmp.gt.f32.partialorder %v924, 0.0
      %vm1049 = vcmp.gt.f32.partialorder %v927, 0.0
      %vm1050 = vcmp.gt.f32.partialorder %v932, 0.0
      %vm1051 = vcmp.gt.f32.partialorder %v935, 0.0
      %vm1052 = vcmp.gt.f32.partialorder %v940, 0.0
      %vm1053 = vcmp.gt.f32.partialorder %v943, 0.0
      %vm1054 = vcmp.gt.f32.partialorder %v948, 0.0
      %vm1055 = vcmp.gt.f32.partialorder %v951, 0.0
      %vm1056 = vcmp.gt.f32.partialorder %v956, 0.0
      %vm1057 = vcmp.gt.f32.partialorder %v959, 0.0
      %vm1058 = vcmp.gt.f32.partialorder %v964, 0.0
      %vm1059 = vcmp.gt.f32.partialorder %v967, 0.0
      %vm1060 = vcmp.gt.f32.partialorder %v972, 0.0
      %vm1061 = vcmp.gt.f32.partialorder %v975, 0.0
      %vm1062 = vcmp.gt.f32.partialorder %v980, 0.0
      %vm1063 = vcmp.gt.f32.partialorder %v983, 0.0
      %vm1064 = vcmp.gt.f32.partialorder %v988, 0.0
      %vm1065 = vcmp.gt.f32.partialorder %v991, 0.0
      %v1066 = vmul.f32 %v708, 0.01
      %v1067 = vmul.f32 %v711, 0.01
      %v1068 = vmul.f32 %v716, 0.01
      %v1069 = vmul.f32 %v719, 0.01
      %v1070 = vmul.f32 %v724, 0.01
      %v1071 = vmul.f32 %v727, 0.01
      %v1072 = vmul.f32 %v732, 0.01
      %v1073 = vmul.f32 %v735, 0.01
      %v1074 = vmul.f32 %v740, 0.01
      %v1075 = vmul.f32 %v743, 0.01
      %v1076 = vmul.f32 %v748, 0.01
      %v1077 = vmul.f32 %v751, 0.01
      %v1078 = vmul.f32 %v756, 0.01
      %v1079 = vmul.f32 %v759, 0.01
      %v1080 = vmul.f32 %v764, 0.01
      %v1081 = vmul.f32 %v767, 0.01
      %v1082 = vmul.f32 %v772, 0.01
      %v1083 = vmul.f32 %v775, 0.01
      %v1084 = vmul.f32 %v780, 0.01
      %v1085 = vmul.f32 %v783, 0.01
      %v1086 = vmul.f32 %v788, 0.01
      %v1087 = vmul.f32 %v791, 0.01
      %v1088 = vmul.f32 %v796, 0.01
      %v1089 = vmul.f32 %v799, 0.01
      %v1090 = vmul.f32 %v804, 0.01
      %v1091 = vmul.f32 %v807, 0.01
      %v1092 = vmul.f32 %v812, 0.01
      %v1093 = vmul.f32 %v815, 0.01
      %v1094 = vmul.f32 %v820, 0.01
      %v1095 = vmul.f32 %v823, 0.01
      %v1096 = vmul.f32 %v828, 0.01
      %v1097 = vmul.f32 %v831, 0.01
      %v1098 = vmul.f32 %v836, 0.01
      %v1099 = vmul.f32 %v839, 0.01
      %v1100 = vmul.f32 %v844, 0.01
      %v1101 = vmul.f32 %v847, 0.01
      %v1102 = vmul.f32 %v852, 0.01
      %v1103 = vmul.f32 %v855, 0.01
      %v1104 = vmul.f32 %v860, 0.01
      %v1105 = vmul.f32 %v863, 0.01
      %v1106 = vmul.f32 %v868, 0.01
      %v1107 = vmul.f32 %v871, 0.01
      %v1108 = vmul.f32 %v876, 0.01
      %v1109 = vmul.f32 %v879, 0.01
      %v1110 = vmul.f32 %v884, 0.01
      %v1111 = vmul.f32 %v887, 0.01
      %v1112 = vmul.f32 %v892, 0.01
      %v1113 = vmul.f32 %v895, 0.01
      %v1114 = vmul.f32 %v900, 0.01
      %v1115 = vmul.f32 %v903, 0.01
      %v1116 = vmul.f32 %v908, 0.01
      %v1117 = vmul.f32 %v911, 0.01
      %v1118 = vmul.f32 %v916, 0.01
      %v1119 = vmul.f32 %v919, 0.01
      %v1120 = vmul.f32 %v924, 0.01
      %v1121 = vmul.f32 %v927, 0.01
      %v1122 = vmul.f32 %v932, 0.01
      %v1123 = vmul.f32 %v935, 0.01
      %v1124 = vmul.f32 %v940, 0.01
      %v1125 = vmul.f32 %v943, 0.01
      %v1126 = vmul.f32 %v948, 0.01
      %v1127 = vmul.f32 %v951, 0.01
      %v1128 = vmul.f32 %v956, 0.01
      %v1129 = vmul.f32 %v959, 0.01
      %v1130 = vmul.f32 %v964, 0.01
      %v1131 = vmul.f32 %v967, 0.01
      %v1132 = vmul.f32 %v972, 0.01
      %v1133 = vmul.f32 %v975, 0.01
      %v1134 = vmul.f32 %v980, 0.01
      %v1135 = vmul.f32 %v983, 0.01
      %v1136 = vmul.f32 %v988, 0.01
      %v1137 = vmul.f32 %v991, 0.01
      %v1138 = vsel %vm994, %v708, %v1066
      %v1139 = vsel %vm995, %v711, %v1067
      %v1140 = vsel %vm996, %v716, %v1068
      %v1141 = vsel %vm997, %v719, %v1069
      %v1142 = vsel %vm998, %v724, %v1070
      %v1143 = vsel %vm999, %v727, %v1071
      %v1144 = vsel %vm1000, %v732, %v1072
      %v1145 = vsel %vm1001, %v735, %v1073
      %v1146 = vsel %vm1002, %v740, %v1074
      %v1147 = vsel %vm1003, %v743, %v1075
      %v1148 = vsel %vm1004, %v748, %v1076
      %v1149 = vsel %vm1005, %v751, %v1077
      %v1150 = vsel %vm1006, %v756, %v1078
      %v1151 = vsel %vm1007, %v759, %v1079
      %v1152 = vsel %vm1008, %v764, %v1080
      %v1153 = vsel %vm1009, %v767, %v1081
      %v1154 = vsel %vm1010, %v772, %v1082
      %v1155 = vsel %vm1011, %v775, %v1083
      %v1156 = vsel %vm1012, %v780, %v1084
      %v1157 = vsel %vm1013, %v783, %v1085
      %v1158 = vsel %vm1014, %v788, %v1086
      %v1159 = vsel %vm1015, %v791, %v1087
      %v1160 = vsel %vm1016, %v796, %v1088
      %v1161 = vsel %vm1017, %v799, %v1089
      %v1162 = vsel %vm1018, %v804, %v1090
      %v1163 = vsel %vm1019, %v807, %v1091
      %v1164 = vsel %vm1020, %v812, %v1092
      %v1165 = vsel %vm1021, %v815, %v1093
      %v1166 = vsel %vm1022, %v820, %v1094
      %v1167 = vsel %vm1023, %v823, %v1095
      %v1168 = vsel %vm1024, %v828, %v1096
      %v1169 = vsel %vm1025, %v831, %v1097
      %v1170 = vsel %vm1026, %v836, %v1098
      %v1171 = vsel %vm1027, %v839, %v1099
      %v1172 = vsel %vm1028, %v844, %v1100
      %v1173 = vsel %vm1029, %v847, %v1101
      %v1174 = vsel %vm1030, %v852, %v1102
      %v1175 = vsel %vm1031, %v855, %v1103
      %v1176 = vsel %vm1032, %v860, %v1104
      %v1177 = vsel %vm1033, %v863, %v1105
      %v1178 = vsel %vm1034, %v868, %v1106
      %v1179 = vsel %vm1035, %v871, %v1107
      %v1180 = vsel %vm1036, %v876, %v1108
      %v1181 = vsel %vm1037, %v879, %v1109
      %v1182 = vsel %vm1038, %v884, %v1110
      %v1183 = vsel %vm1039, %v887, %v1111
      %v1184 = vsel %vm1040, %v892, %v1112
      %v1185 = vsel %vm1041, %v895, %v1113
      %v1186 = vsel %vm1042, %v900, %v1114
      %v1187 = vsel %vm1043, %v903, %v1115
      %v1188 = vsel %vm1044, %v908, %v1116
      %v1189 = vsel %vm1045, %v911, %v1117
      %v1190 = vsel %vm1046, %v916, %v1118
      %v1191 = vsel %vm1047, %v919, %v1119
      %v1192 = vsel %vm1048, %v924, %v1120
      %v1193 = vsel %vm1049, %v927, %v1121
      %v1194 = vsel %vm1050, %v932, %v1122
      %v1195 = vsel %vm1051, %v935, %v1123
      %v1196 = vsel %vm1052, %v940, %v1124
      %v1197 = vsel %vm1053, %v943, %v1125
      %v1198 = vsel %vm1054, %v948, %v1126
      %v1199 = vsel %vm1055, %v951, %v1127
      %v1200 = vsel %vm1056, %v956, %v1128
      %v1201 = vsel %vm1057, %v959, %v1129
      %v1202 = vsel %vm1058, %v964, %v1130
      %v1203 = vsel %vm1059, %v967, %v1131
      %v1204 = vsel %vm1060, %v972, %v1132
      %v1205 = vsel %vm1061, %v975, %v1133
      %v1206 = vsel %vm1062, %v980, %v1134
      %v1207 = vsel %vm1063, %v983, %v1135
      %v1208 = vsel %vm1064, %v988, %v1136
      %v1209 = vsel %vm1065, %v991, %v1137
      %v1210 = vpack.c.bf16 %v1139, %v1138
      %v1211 = vpack.c.bf16 %v1141, %v1140
      %v1212 = vpack.c.bf16 %v1143, %v1142
      %v1213 = vpack.c.bf16 %v1145, %v1144
      %v1214 = vpack.c.bf16 %v1147, %v1146
      %v1215 = vpack.c.bf16 %v1149, %v1148
      %v1216 = vpack.c.bf16 %v1151, %v1150
      %v1217 = vpack.c.bf16 %v1153, %v1152
      %v1218 = vpack.c.bf16 %v1155, %v1154
      %v1219 = vpack.c.bf16 %v1157, %v1156
      %v1220 = vpack.c.bf16 %v1159, %v1158
      %v1221 = vpack.c.bf16 %v1161, %v1160
      %v1222 = vpack.c.bf16 %v1163, %v1162
      %v1223 = vpack.c.bf16 %v1165, %v1164
      %v1224 = vpack.c.bf16 %v1167, %v1166
      %v1225 = vpack.c.bf16 %v1169, %v1168
      %v1226 = vpack.c.bf16 %v1171, %v1170
      %v1227 = vpack.c.bf16 %v1173, %v1172
      %v1228 = vpack.c.bf16 %v1175, %v1174
      %v1229 = vpack.c.bf16 %v1177, %v1176
      %v1230 = vpack.c.bf16 %v1179, %v1178
      %v1231 = vpack.c.bf16 %v1181, %v1180
      %v1232 = vpack.c.bf16 %v1183, %v1182
      %v1233 = vpack.c.bf16 %v1185, %v1184
      %v1234 = vpack.c.bf16 %v1187, %v1186
      %v1235 = vpack.c.bf16 %v1189, %v1188
      %v1236 = vpack.c.bf16 %v1191, %v1190
      %v1237 = vpack.c.bf16 %v1193, %v1192
      %v1238 = vpack.c.bf16 %v1195, %v1194
      %v1239 = vpack.c.bf16 %v1197, %v1196
      %v1240 = vpack.c.bf16 %v1199, %v1198
      %v1241 = vpack.c.bf16 %v1201, %v1200
      %v1242 = vpack.c.bf16 %v1203, %v1202
      %v1243 = vpack.c.bf16 %v1205, %v1204
      %v1244 = vpack.c.bf16 %v1207, %v1206
      %v1245 = vpack.c.bf16 %v1209, %v1208
      %v1282 = vunpack.c.l.b16 %v1210
      %v1283 = vunpack.c.h.b16 %v1210
      %v1284 = vunpack.c.l.b16 %v1211
      %v1285 = vunpack.c.h.b16 %v1211
      %v1286 = vunpack.c.l.b16 %v1212
      %v1287 = vunpack.c.h.b16 %v1212
      %v1288 = vunpack.c.l.b16 %v1213
      %v1289 = vunpack.c.h.b16 %v1213
      %v1290 = vunpack.c.l.b16 %v1214
      %v1291 = vunpack.c.h.b16 %v1214
      %v1292 = vunpack.c.l.b16 %v1215
      %v1293 = vunpack.c.h.b16 %v1215
      %v1294 = vunpack.c.l.b16 %v1216
      %v1295 = vunpack.c.h.b16 %v1216
      %v1296 = vunpack.c.l.b16 %v1217
      %v1297 = vunpack.c.h.b16 %v1217
      %v1298 = vunpack.c.l.b16 %v1218
      %v1299 = vunpack.c.h.b16 %v1218
      %v1300 = vunpack.c.l.b16 %v1219
      %v1301 = vunpack.c.h.b16 %v1219
      %v1302 = vunpack.c.l.b16 %v1220
      %v1303 = vunpack.c.h.b16 %v1220
      %v1304 = vunpack.c.l.b16 %v1221
      %v1305 = vunpack.c.h.b16 %v1221
      %v1306 = vunpack.c.l.b16 %v1222
      %v1307 = vunpack.c.h.b16 %v1222
      %v1308 = vunpack.c.l.b16 %v1223
      %v1309 = vunpack.c.h.b16 %v1223
      %v1310 = vunpack.c.l.b16 %v1224
      %v1311 = vunpack.c.h.b16 %v1224
      %v1312 = vunpack.c.l.b16 %v1225
      %v1313 = vunpack.c.h.b16 %v1225
      %v1314 = vunpack.c.l.b16 %v1226
      %v1315 = vunpack.c.h.b16 %v1226
      %v1316 = vunpack.c.l.b16 %v1227
      %v1317 = vunpack.c.h.b16 %v1227
      %v1318 = vunpack.c.l.b16 %v1228
      %v1319 = vunpack.c.h.b16 %v1228
      %v1320 = vunpack.c.l.b16 %v1229
      %v1321 = vunpack.c.h.b16 %v1229
      %v1322 = vunpack.c.l.b16 %v1230
      %v1323 = vunpack.c.h.b16 %v1230
      %v1324 = vunpack.c.l.b16 %v1231
      %v1325 = vunpack.c.h.b16 %v1231
      %v1326 = vunpack.c.l.b16 %v1232
      %v1327 = vunpack.c.h.b16 %v1232
      %v1328 = vunpack.c.l.b16 %v1233
      %v1329 = vunpack.c.h.b16 %v1233
      %v1330 = vunpack.c.l.b16 %v1234
      %v1331 = vunpack.c.h.b16 %v1234
      %v1332 = vunpack.c.l.b16 %v1235
      %v1333 = vunpack.c.h.b16 %v1235
      %v1334 = vunpack.c.l.b16 %v1236
      %v1335 = vunpack.c.h.b16 %v1236
      %v1336 = vunpack.c.l.b16 %v1237
      %v1337 = vunpack.c.h.b16 %v1237
      %v1338 = vunpack.c.l.b16 %v1238
      %v1339 = vunpack.c.h.b16 %v1238
      %v1340 = vunpack.c.l.b16 %v1239
      %v1341 = vunpack.c.h.b16 %v1239
      %v1342 = vunpack.c.l.b16 %v1240
      %v1343 = vunpack.c.h.b16 %v1240
      %v1344 = vunpack.c.l.b16 %v1241
      %v1345 = vunpack.c.h.b16 %v1241
      %v1346 = vunpack.c.l.b16 %v1242
      %v1347 = vunpack.c.h.b16 %v1242
      %v1348 = vunpack.c.l.b16 %v1243
      %v1349 = vunpack.c.h.b16 %v1243
      %v1350 = vunpack.c.l.b16 %v1244
      %v1351 = vunpack.c.h.b16 %v1244
      %v1352 = vunpack.c.l.b16 %v1245
      %v1353 = vunpack.c.h.b16 %v1245
      %v1354 = vpack.c.b16 %v1282, %v1282
      %v1355 = vpack.c.b16 %v1283, %v1283
      %v1356 = vpack.c.b16 %v1284, %v1284
      %v1357 = vpack.c.b16 %v1285, %v1285
      %v1358 = vpack.c.b16 %v1286, %v1286
      %v1359 = vpack.c.b16 %v1287, %v1287
      %v1360 = vpack.c.b16 %v1288, %v1288
      %v1361 = vpack.c.b16 %v1289, %v1289
      %v1362 = vpack.c.b16 %v1290, %v1290
      %v1363 = vpack.c.b16 %v1291, %v1291
      %v1364 = vpack.c.b16 %v1292, %v1292
      %v1365 = vpack.c.b16 %v1293, %v1293
      %v1366 = vpack.c.b16 %v1294, %v1294
      %v1367 = vpack.c.b16 %v1295, %v1295
      %v1368 = vpack.c.b16 %v1296, %v1296
      %v1369 = vpack.c.b16 %v1297, %v1297
      %v1370 = vpack.c.b16 %v1298, %v1298
      %v1371 = vpack.c.b16 %v1299, %v1299
      %v1372 = vpack.c.b16 %v1300, %v1300
      %v1373 = vpack.c.b16 %v1301, %v1301
      %v1374 = vpack.c.b16 %v1302, %v1302
      %v1375 = vpack.c.b16 %v1303, %v1303
      %v1376 = vpack.c.b16 %v1304, %v1304
      %v1377 = vpack.c.b16 %v1305, %v1305
      %v1378 = vpack.c.b16 %v1306, %v1306
      %v1379 = vpack.c.b16 %v1307, %v1307
      %v1380 = vpack.c.b16 %v1308, %v1308
      %v1381 = vpack.c.b16 %v1309, %v1309
      %v1382 = vpack.c.b16 %v1310, %v1310
      %v1383 = vpack.c.b16 %v1311, %v1311
      %v1384 = vpack.c.b16 %v1312, %v1312
      %v1385 = vpack.c.b16 %v1313, %v1313
      %v1386 = vpack.c.b16 %v1314, %v1314
      %v1387 = vpack.c.b16 %v1315, %v1315
      %v1388 = vpack.c.b16 %v1316, %v1316
      %v1389 = vpack.c.b16 %v1317, %v1317
      %v1390 = vpack.c.b16 %v1318, %v1318
      %v1391 = vpack.c.b16 %v1319, %v1319
      %v1392 = vpack.c.b16 %v1320, %v1320
      %v1393 = vpack.c.b16 %v1321, %v1321
      %v1394 = vpack.c.b16 %v1322, %v1322
      %v1395 = vpack.c.b16 %v1323, %v1323
      %v1396 = vpack.c.b16 %v1324, %v1324
      %v1397 = vpack.c.b16 %v1325, %v1325
      %v1398 = vpack.c.b16 %v1326, %v1326
      %v1399 = vpack.c.b16 %v1327, %v1327
      %v1400 = vpack.c.b16 %v1328, %v1328
      %v1401 = vpack.c.b16 %v1329, %v1329
      %v1402 = vpack.c.b16 %v1330, %v1330
      %v1403 = vpack.c.b16 %v1331, %v1331
      %v1404 = vpack.c.b16 %v1332, %v1332
      %v1405 = vpack.c.b16 %v1333, %v1333
      %v1406 = vpack.c.b16 %v1334, %v1334
      %v1407 = vpack.c.b16 %v1335, %v1335
      %v1408 = vpack.c.b16 %v1336, %v1336
      %v1409 = vpack.c.b16 %v1337, %v1337
      %v1410 = vpack.c.b16 %v1338, %v1338
      %v1411 = vpack.c.b16 %v1339, %v1339
      %v1412 = vpack.c.b16 %v1340, %v1340
      %v1413 = vpack.c.b16 %v1341, %v1341
      %v1414 = vpack.c.b16 %v1342, %v1342
      %v1415 = vpack.c.b16 %v1343, %v1343
      %v1416 = vpack.c.b16 %v1344, %v1344
      %v1417 = vpack.c.b16 %v1345, %v1345
      %v1418 = vpack.c.b16 %v1346, %v1346
      %v1419 = vpack.c.b16 %v1347, %v1347
      %v1420 = vpack.c.b16 %v1348, %v1348
      %v1421 = vpack.c.b16 %v1349, %v1349
      %v1422 = vpack.c.b16 %v1350, %v1350
      %v1423 = vpack.c.b16 %v1351, %v1351
      %v1424 = vpack.c.b16 %v1352, %v1352
      %v1425 = vpack.c.b16 %v1353, %v1353
      %1498 = vst [vmem:[%s306] sm:$0xf] %v1354
      %1499 = vst [vmem:[%s306 + $0x4] sm:$0xf] %v1355
      %1500 = vst [vmem:[%s306 + $0x8] sm:$0xf] %v1356
      %1501 = vst [vmem:[%s306 + $0xc] sm:$0xf] %v1357
      %1502 = vst [vmem:[%s306 + $0x10] sm:$0xf] %v1358
      %1503 = vst [vmem:[%s306 + $0x14] sm:$0xf] %v1359
      %1504 = vst [vmem:[%s306 + $0x18] sm:$0xf] %v1360
      %1505 = vst [vmem:[%s306 + $0x1c] sm:$0xf] %v1361
      %1506 = vst [vmem:[%s306 + $0x20] sm:$0xf] %v1362
      %1507 = vst [vmem:[%s306 + $0x24] sm:$0xf] %v1363
      %1508 = vst [vmem:[%s306 + $0x28] sm:$0xf] %v1364
      %1509 = vst [vmem:[%s306 + $0x2c] sm:$0xf] %v1365
      %1510 = vst [vmem:[%s306 + $0x30] sm:$0xf] %v1366
      %1511 = vst [vmem:[%s306 + $0x34] sm:$0xf] %v1367
      %1512 = vst [vmem:[%s306 + $0x38] sm:$0xf] %v1368
      %1513 = vst [vmem:[%s306 + $0x3c] sm:$0xf] %v1369
      %1514 = vst [vmem:[%s306 + $0x40] sm:$0xf] %v1370
      %1515 = vst [vmem:[%s306 + $0x44] sm:$0xf] %v1371
      %1516 = vst [vmem:[%s306 + $0x48] sm:$0xf] %v1372
      %1517 = vst [vmem:[%s306 + $0x4c] sm:$0xf] %v1373
      %1518 = vst [vmem:[%s306 + $0x50] sm:$0xf] %v1374
      %1519 = vst [vmem:[%s306 + $0x54] sm:$0xf] %v1375
      %1520 = vst [vmem:[%s306 + $0x58] sm:$0xf] %v1376
      %1521 = vst [vmem:[%s306 + $0x5c] sm:$0xf] %v1377
      %1522 = vst [vmem:[%s306 + $0x60] sm:$0xf] %v1378
      %1523 = vst [vmem:[%s306 + $0x64] sm:$0xf] %v1379
      %1524 = vst [vmem:[%s306 + $0x68] sm:$0xf] %v1380
      %1525 = vst [vmem:[%s306 + $0x6c] sm:$0xf] %v1381
      %1526 = vst [vmem:[%s306 + $0x70] sm:$0xf] %v1382
      %1527 = vst [vmem:[%s306 + $0x74] sm:$0xf] %v1383
      %1528 = vst [vmem:[%s306 + $0x78] sm:$0xf] %v1384
      %1529 = vst [vmem:[%s306 + $0x7c] sm:$0xf] %v1385
      %1530 = vst [vmem:[%s306 + $0x80] sm:$0xf] %v1386
      %1531 = vst [vmem:[%s306 + $0x84] sm:$0xf] %v1387
      %1532 = vst [vmem:[%s306 + $0x88] sm:$0xf] %v1388
      %1533 = vst [vmem:[%s306 + $0x8c] sm:$0xf] %v1389
      %1534 = vst [vmem:[%s306 + $0x90] sm:$0xf] %v1390
      %1535 = vst [vmem:[%s306 + $0x94] sm:$0xf] %v1391
      %1536 = vst [vmem:[%s306 + $0x98] sm:$0xf] %v1392
      %1537 = vst [vmem:[%s306 + $0x9c] sm:$0xf] %v1393
      %1538 = vst [vmem:[%s306 + $0xa0] sm:$0xf] %v1394
      %1539 = vst [vmem:[%s306 + $0xa4] sm:$0xf] %v1395
      %1540 = vst [vmem:[%s306 + $0xa8] sm:$0xf] %v1396
      %1541 = vst [vmem:[%s306 + $0xac] sm:$0xf] %v1397
      %1542 = vst [vmem:[%s306 + $0xb0] sm:$0xf] %v1398
      %1543 = vst [vmem:[%s306 + $0xb4] sm:$0xf] %v1399
      %1544 = vst [vmem:[%s306 + $0xb8] sm:$0xf] %v1400
      %1545 = vst [vmem:[%s306 + $0xbc] sm:$0xf] %v1401
      %1546 = vst [vmem:[%s306 + $0xc0] sm:$0xf] %v1402
      %1547 = vst [vmem:[%s306 + $0xc4] sm:$0xf] %v1403
      %1548 = vst [vmem:[%s306 + $0xc8] sm:$0xf] %v1404
      %1549 = vst [vmem:[%s306 + $0xcc] sm:$0xf] %v1405
      %1550 = vst [vmem:[%s306 + $0xd0] sm:$0xf] %v1406
      %1551 = vst [vmem:[%s306 + $0xd4] sm:$0xf] %v1407
      %1552 = vst [vmem:[%s306 + $0xd8] sm:$0xf] %v1408
      %1553 = vst [vmem:[%s306 + $0xdc] sm:$0xf] %v1409
      %1554 = vst [vmem:[%s306 + $0xe0] sm:$0xf] %v1410
      %1555 = vst [vmem:[%s306 + $0xe4] sm:$0xf] %v1411
      %1556 = vst [vmem:[%s306 + $0xe8] sm:$0xf] %v1412
      %1557 = vst [vmem:[%s306 + $0xec] sm:$0xf] %v1413
      %1558 = vst [vmem:[%s306 + $0xf0] sm:$0xf] %v1414
      %1559 = vst [vmem:[%s306 + $0xf4] sm:$0xf] %v1415
      %1560 = vst [vmem:[%s306 + $0xf8] sm:$0xf] %v1416
      %1561 = vst [vmem:[%s306 + $0xfc] sm:$0xf] %v1417
      %1562 = vst [vmem:[%s306 + $0x100] sm:$0xf] %v1418
      %1563 = vst [vmem:[%s306 + $0x104] sm:$0xf] %v1419
      %1564 = vst [vmem:[%s306 + $0x108] sm:$0xf] %v1420
      %1565 = vst [vmem:[%s306 + $0x10c] sm:$0xf] %v1421
      %1566 = vst [vmem:[%s306 + $0x110] sm:$0xf] %v1422
      %1567 = vst [vmem:[%s306 + $0x114] sm:$0xf] %v1423
      %1568 = vst [vmem:[%s306 + $0x118] sm:$0xf] %v1424
      %1569 = vst [vmem:[%s306 + $0x11c] sm:$0xf] %v1425
      %v1570 = vld [vmem:[%s297] sm:$0xff]
      %v1571 = vld [vmem:[%s297 + $0x8] sm:$0xff]
      %v1572 = vld [vmem:[%s297 + $0x10] sm:$0xff]
      %v1573 = vld [vmem:[%s297 + $0x18] sm:$0xff]
      %v1574 = vld [vmem:[%s297 + $0x20] sm:$0xff]
      %v1575 = vld [vmem:[%s297 + $0x28] sm:$0xff]
      %v1576 = vld [vmem:[%s297 + $0x30] sm:$0xff]
      %v1577 = vld [vmem:[%s297 + $0x38] sm:$0xff]
      %v1578 = vld [vmem:[%s297 + $0x40] sm:$0xff]
      %v1579 = vld [vmem:[%s297 + $0x48] sm:$0xff]
      %v1580 = vld [vmem:[%s297 + $0x50] sm:$0xff]
      %v1581 = vld [vmem:[%s297 + $0x58] sm:$0xff]
      %v1582 = vld [vmem:[%s297 + $0x60] sm:$0xff]
      %v1583 = vld [vmem:[%s297 + $0x68] sm:$0xff]
      %v1584 = vld [vmem:[%s297 + $0x70] sm:$0xff]
      %v1585 = vld [vmem:[%s297 + $0x78] sm:$0xff]
      %v1586 = vld [vmem:[%s297 + $0x80] sm:$0xff]
      %v1587 = vld [vmem:[%s297 + $0x88] sm:$0xff]
      %v1588 = vld [vmem:[%s297 + $0x90] sm:$0xff]
      %v1589 = vld [vmem:[%s297 + $0x98] sm:$0xff]
      %v1590 = vld [vmem:[%s297 + $0xa0] sm:$0xff]
      %v1591 = vld [vmem:[%s297 + $0xa8] sm:$0xff]
      %v1592 = vld [vmem:[%s297 + $0xb0] sm:$0xff]
      %v1593 = vld [vmem:[%s297 + $0xb8] sm:$0xff]
      %v1594 = vld [vmem:[%s297 + $0xc0] sm:$0xff]
      %v1595 = vld [vmem:[%s297 + $0xc8] sm:$0xff]
      %v1596 = vld [vmem:[%s297 + $0xd0] sm:$0xff]
      %v1597 = vld [vmem:[%s297 + $0xd8] sm:$0xff]
      %v1598 = vld [vmem:[%s297 + $0xe0] sm:$0xff]
      %v1599 = vld [vmem:[%s297 + $0xe8] sm:$0xff]
      %v1600 = vld [vmem:[%s297 + $0xf0] sm:$0xff]
      %v1601 = vld [vmem:[%s297 + $0xf8] sm:$0xff]
      %v1602 = vld [vmem:[%s297 + $0x100] sm:$0xff]
      %v1603 = vld [vmem:[%s297 + $0x108] sm:$0xff]
      %v1604 = vld [vmem:[%s297 + $0x110] sm:$0xff]
      %v1605 = vld [vmem:[%s297 + $0x118] sm:$0xff]
      %v1606 = vld [vmem:[%s297 + $0x120] sm:$0xff]
      %v1607 = vld [vmem:[%s297 + $0x128] sm:$0xff]
      %v1608 = vld [vmem:[%s297 + $0x130] sm:$0xff]
      %v1609 = vld [vmem:[%s297 + $0x138] sm:$0xff]
      %v1610 = vld [vmem:[%s297 + $0x140] sm:$0xff]
      %v1611 = vld [vmem:[%s297 + $0x148] sm:$0xff]
      %v1612 = vld [vmem:[%s297 + $0x150] sm:$0xff]
      %v1613 = vld [vmem:[%s297 + $0x158] sm:$0xff]
      %v1614 = vld [vmem:[%s297 + $0x160] sm:$0xff]
      %v1615 = vld [vmem:[%s297 + $0x168] sm:$0xff]
      %v1616 = vld [vmem:[%s297 + $0x170] sm:$0xff]
      %v1617 = vld [vmem:[%s297 + $0x178] sm:$0xff]
      %v1618 = vld [vmem:[%s297 + $0x180] sm:$0xff]
      %v1619 = vld [vmem:[%s297 + $0x188] sm:$0xff]
      %v1620 = vld [vmem:[%s297 + $0x190] sm:$0xff]
      %v1621 = vld [vmem:[%s297 + $0x198] sm:$0xff]
      %v1622 = vld [vmem:[%s297 + $0x1a0] sm:$0xff]
      %v1623 = vld [vmem:[%s297 + $0x1a8] sm:$0xff]
      %v1624 = vld [vmem:[%s297 + $0x1b0] sm:$0xff]
      %v1625 = vld [vmem:[%s297 + $0x1b8] sm:$0xff]
      %v1626 = vld [vmem:[%s297 + $0x1c0] sm:$0xff]
      %v1627 = vld [vmem:[%s297 + $0x1c8] sm:$0xff]
      %v1628 = vld [vmem:[%s297 + $0x1d0] sm:$0xff]
      %v1629 = vld [vmem:[%s297 + $0x1d8] sm:$0xff]
      %v1630 = vld [vmem:[%s297 + $0x1e0] sm:$0xff]
      %v1631 = vld [vmem:[%s297 + $0x1e8] sm:$0xff]
      %v1632 = vld [vmem:[%s297 + $0x1f0] sm:$0xff]
      %v1633 = vld [vmem:[%s297 + $0x1f8] sm:$0xff]
      %v1634 = vld [vmem:[%s297 + $0x200] sm:$0xff]
      %v1635 = vld [vmem:[%s297 + $0x208] sm:$0xff]
      %v1636 = vld [vmem:[%s297 + $0x210] sm:$0xff]
      %v1637 = vld [vmem:[%s297 + $0x218] sm:$0xff]
      %v1638 = vld [vmem:[%s297 + $0x220] sm:$0xff]
      %v1639 = vld [vmem:[%s297 + $0x228] sm:$0xff]
      %v1640 = vld [vmem:[%s297 + $0x230] sm:$0xff]
      %v1641 = vld [vmem:[%s297 + $0x238] sm:$0xff]
      %1643 = vset.pattern.permute.xlu0 0
      %1644 = vperm.xlu0 %1643, %v1570
      %v1645 = vpop.permute.xlu0 %1644
      %1648 = vset.pattern.permute.xlu0 0
      %1649 = vperm.xlu0 %1648, %v1571
      %v1650 = vpop.permute.xlu0 %1649
      %1653 = vset.pattern.permute.xlu0 0
      %1654 = vperm.xlu0 %1653, %v1572
      %v1655 = vpop.permute.xlu0 %1654
      %1658 = vset.pattern.permute.xlu0 0
      %1659 = vperm.xlu0 %1658, %v1573
      %v1660 = vpop.permute.xlu0 %1659
      %1663 = vset.pattern.permute.xlu0 0
      %1664 = vperm.xlu0 %1663, %v1574
      %v1665 = vpop.permute.xlu0 %1664
      %1668 = vset.pattern.permute.xlu0 0
      %1669 = vperm.xlu0 %1668, %v1575
      %v1670 = vpop.permute.xlu0 %1669
      %1673 = vset.pattern.permute.xlu0 0
      %1674 = vperm.xlu0 %1673, %v1576
      %v1675 = vpop.permute.xlu0 %1674
      %1678 = vset.pattern.permute.xlu0 0
      %1679 = vperm.xlu0 %1678, %v1577
      %v1680 = vpop.permute.xlu0 %1679
      %1683 = vset.pattern.permute.xlu0 0
      %1684 = vperm.xlu0 %1683, %v1578
      %v1685 = vpop.permute.xlu0 %1684
      %1688 = vset.pattern.permute.xlu0 0
      %1689 = vperm.xlu0 %1688, %v1579
      %v1690 = vpop.permute.xlu0 %1689
      %1693 = vset.pattern.permute.xlu0 0
      %1694 = vperm.xlu0 %1693, %v1580
      %v1695 = vpop.permute.xlu0 %1694
      %1698 = vset.pattern.permute.xlu0 0
      %1699 = vperm.xlu0 %1698, %v1581
      %v1700 = vpop.permute.xlu0 %1699
      %1703 = vset.pattern.permute.xlu0 0
      %1704 = vperm.xlu0 %1703, %v1582
      %v1705 = vpop.permute.xlu0 %1704
      %1708 = vset.pattern.permute.xlu0 0
      %1709 = vperm.xlu0 %1708, %v1583
      %v1710 = vpop.permute.xlu0 %1709
      %1713 = vset.pattern.permute.xlu0 0
      %1714 = vperm.xlu0 %1713, %v1584
      %v1715 = vpop.permute.xlu0 %1714
      %1718 = vset.pattern.permute.xlu0 0
      %1719 = vperm.xlu0 %1718, %v1585
      %v1720 = vpop.permute.xlu0 %1719
      %1723 = vset.pattern.permute.xlu0 0
      %1724 = vperm.xlu0 %1723, %v1586
      %v1725 = vpop.permute.xlu0 %1724
      %1728 = vset.pattern.permute.xlu0 0
      %1729 = vperm.xlu0 %1728, %v1587
      %v1730 = vpop.permute.xlu0 %1729
      %1733 = vset.pattern.permute.xlu0 0
      %1734 = vperm.xlu0 %1733, %v1588
      %v1735 = vpop.permute.xlu0 %1734
      %1738 = vset.pattern.permute.xlu0 0
      %1739 = vperm.xlu0 %1738, %v1589
      %v1740 = vpop.permute.xlu0 %1739
      %1743 = vset.pattern.permute.xlu0 0
      %1744 = vperm.xlu0 %1743, %v1590
      %v1745 = vpop.permute.xlu0 %1744
      %1748 = vset.pattern.permute.xlu0 0
      %1749 = vperm.xlu0 %1748, %v1591
      %v1750 = vpop.permute.xlu0 %1749
      %1753 = vset.pattern.permute.xlu0 0
      %1754 = vperm.xlu0 %1753, %v1592
      %v1755 = vpop.permute.xlu0 %1754
      %1758 = vset.pattern.permute.xlu0 0
      %1759 = vperm.xlu0 %1758, %v1593
      %v1760 = vpop.permute.xlu0 %1759
      %1763 = vset.pattern.permute.xlu0 0
      %1764 = vperm.xlu0 %1763, %v1594
      %v1765 = vpop.permute.xlu0 %1764
      %1768 = vset.pattern.permute.xlu0 0
      %1769 = vperm.xlu0 %1768, %v1595
      %v1770 = vpop.permute.xlu0 %1769
      %1773 = vset.pattern.permute.xlu0 0
      %1774 = vperm.xlu0 %1773, %v1596
      %v1775 = vpop.permute.xlu0 %1774
      %1778 = vset.pattern.permute.xlu0 0
      %1779 = vperm.xlu0 %1778, %v1597
      %v1780 = vpop.permute.xlu0 %1779
      %1783 = vset.pattern.permute.xlu0 0
      %1784 = vperm.xlu0 %1783, %v1598
      %v1785 = vpop.permute.xlu0 %1784
      %1788 = vset.pattern.permute.xlu0 0
      %1789 = vperm.xlu0 %1788, %v1599
      %v1790 = vpop.permute.xlu0 %1789
      %1793 = vset.pattern.permute.xlu0 0
      %1794 = vperm.xlu0 %1793, %v1600
      %v1795 = vpop.permute.xlu0 %1794
      %1798 = vset.pattern.permute.xlu0 0
      %1799 = vperm.xlu0 %1798, %v1601
      %v1800 = vpop.permute.xlu0 %1799
      %1803 = vset.pattern.permute.xlu0 0
      %1804 = vperm.xlu0 %1803, %v1602
      %v1805 = vpop.permute.xlu0 %1804
      %1808 = vset.pattern.permute.xlu0 0
      %1809 = vperm.xlu0 %1808, %v1603
      %v1810 = vpop.permute.xlu0 %1809
      %1813 = vset.pattern.permute.xlu0 0
      %1814 = vperm.xlu0 %1813, %v1604
      %v1815 = vpop.permute.xlu0 %1814
      %1818 = vset.pattern.permute.xlu0 0
      %1819 = vperm.xlu0 %1818, %v1605
      %v1820 = vpop.permute.xlu0 %1819
      %1823 = vset.pattern.permute.xlu0 0
      %1824 = vperm.xlu0 %1823, %v1606
      %v1825 = vpop.permute.xlu0 %1824
      %1828 = vset.pattern.permute.xlu0 0
      %1829 = vperm.xlu0 %1828, %v1607
      %v1830 = vpop.permute.xlu0 %1829
      %1833 = vset.pattern.permute.xlu0 0
      %1834 = vperm.xlu0 %1833, %v1608
      %v1835 = vpop.permute.xlu0 %1834
      %1838 = vset.pattern.permute.xlu0 0
      %1839 = vperm.xlu0 %1838, %v1609
      %v1840 = vpop.permute.xlu0 %1839
      %1843 = vset.pattern.permute.xlu0 0
      %1844 = vperm.xlu0 %1843, %v1610
      %v1845 = vpop.permute.xlu0 %1844
      %1848 = vset.pattern.permute.xlu0 0
      %1849 = vperm.xlu0 %1848, %v1611
      %v1850 = vpop.permute.xlu0 %1849
      %1853 = vset.pattern.permute.xlu0 0
      %1854 = vperm.xlu0 %1853, %v1612
      %v1855 = vpop.permute.xlu0 %1854
      %1858 = vset.pattern.permute.xlu0 0
      %1859 = vperm.xlu0 %1858, %v1613
      %v1860 = vpop.permute.xlu0 %1859
      %1863 = vset.pattern.permute.xlu0 0
      %1864 = vperm.xlu0 %1863, %v1614
      %v1865 = vpop.permute.xlu0 %1864
      %1868 = vset.pattern.permute.xlu0 0
      %1869 = vperm.xlu0 %1868, %v1615
      %v1870 = vpop.permute.xlu0 %1869
      %1873 = vset.pattern.permute.xlu0 0
      %1874 = vperm.xlu0 %1873, %v1616
      %v1875 = vpop.permute.xlu0 %1874
      %1878 = vset.pattern.permute.xlu0 0
      %1879 = vperm.xlu0 %1878, %v1617
      %v1880 = vpop.permute.xlu0 %1879
      %1883 = vset.pattern.permute.xlu0 0
      %1884 = vperm.xlu0 %1883, %v1618
      %v1885 = vpop.permute.xlu0 %1884
      %1888 = vset.pattern.permute.xlu0 0
      %1889 = vperm.xlu0 %1888, %v1619
      %v1890 = vpop.permute.xlu0 %1889
      %1893 = vset.pattern.permute.xlu0 0
      %1894 = vperm.xlu0 %1893, %v1620
      %v1895 = vpop.permute.xlu0 %1894
      %1898 = vset.pattern.permute.xlu0 0
      %1899 = vperm.xlu0 %1898, %v1621
      %v1900 = vpop.permute.xlu0 %1899
      %1903 = vset.pattern.permute.xlu0 0
      %1904 = vperm.xlu0 %1903, %v1622
      %v1905 = vpop.permute.xlu0 %1904
      %1908 = vset.pattern.permute.xlu0 0
      %1909 = vperm.xlu0 %1908, %v1623
      %v1910 = vpop.permute.xlu0 %1909
      %1913 = vset.pattern.permute.xlu0 0
      %1914 = vperm.xlu0 %1913, %v1624
      %v1915 = vpop.permute.xlu0 %1914
      %1918 = vset.pattern.permute.xlu0 0
      %1919 = vperm.xlu0 %1918, %v1625
      %v1920 = vpop.permute.xlu0 %1919
      %1923 = vset.pattern.permute.xlu0 0
      %1924 = vperm.xlu0 %1923, %v1626
      %v1925 = vpop.permute.xlu0 %1924
      %1928 = vset.pattern.permute.xlu0 0
      %1929 = vperm.xlu0 %1928, %v1627
      %v1930 = vpop.permute.xlu0 %1929
      %1933 = vset.pattern.permute.xlu0 0
      %1934 = vperm.xlu0 %1933, %v1628
      %v1935 = vpop.permute.xlu0 %1934
      %1938 = vset.pattern.permute.xlu0 0
      %1939 = vperm.xlu0 %1938, %v1629
      %v1940 = vpop.permute.xlu0 %1939
      %1943 = vset.pattern.permute.xlu0 0
      %1944 = vperm.xlu0 %1943, %v1630
      %v1945 = vpop.permute.xlu0 %1944
      %1948 = vset.pattern.permute.xlu0 0
      %1949 = vperm.xlu0 %1948, %v1631
      %v1950 = vpop.permute.xlu0 %1949
      %1953 = vset.pattern.permute.xlu0 0
      %1954 = vperm.xlu0 %1953, %v1632
      %v1955 = vpop.permute.xlu0 %1954
      %1958 = vset.pattern.permute.xlu0 0
      %1959 = vperm.xlu0 %1958, %v1633
      %v1960 = vpop.permute.xlu0 %1959
      %1963 = vset.pattern.permute.xlu0 0
      %1964 = vperm.xlu0 %1963, %v1634
      %v1965 = vpop.permute.xlu0 %1964
      %1968 = vset.pattern.permute.xlu0 0
      %1969 = vperm.xlu0 %1968, %v1635
      %v1970 = vpop.permute.xlu0 %1969
      %1973 = vset.pattern.permute.xlu0 0
      %1974 = vperm.xlu0 %1973, %v1636
      %v1975 = vpop.permute.xlu0 %1974
      %1978 = vset.pattern.permute.xlu0 0
      %1979 = vperm.xlu0 %1978, %v1637
      %v1980 = vpop.permute.xlu0 %1979
      %1983 = vset.pattern.permute.xlu0 0
      %1984 = vperm.xlu0 %1983, %v1638
      %v1985 = vpop.permute.xlu0 %1984
      %1988 = vset.pattern.permute.xlu0 0
      %1989 = vperm.xlu0 %1988, %v1639
      %v1990 = vpop.permute.xlu0 %1989
      %1993 = vset.pattern.permute.xlu0 0
      %1994 = vperm.xlu0 %1993, %v1640
      %v1995 = vpop.permute.xlu0 %1994
      %1998 = vset.pattern.permute.xlu0 0
      %1999 = vperm.xlu0 %1998, %v1641
      %v2000 = vpop.permute.xlu0 %1999
      %v2002 = vmul.f32 %v1138, %v1645
      %v2003 = vmul.f32 %v1139, %v1650
      %v2004 = vmul.f32 %v1140, %v1655
      %v2005 = vmul.f32 %v1141, %v1660
      %v2006 = vmul.f32 %v1142, %v1665
      %v2007 = vmul.f32 %v1143, %v1670
      %v2008 = vmul.f32 %v1144, %v1675
      %v2009 = vmul.f32 %v1145, %v1680
      %v2010 = vmul.f32 %v1146, %v1685
      %v2011 = vmul.f32 %v1147, %v1690
      %v2012 = vmul.f32 %v1148, %v1695
      %v2013 = vmul.f32 %v1149, %v1700
      %v2014 = vmul.f32 %v1150, %v1705
      %v2015 = vmul.f32 %v1151, %v1710
      %v2016 = vmul.f32 %v1152, %v1715
      %v2017 = vmul.f32 %v1153, %v1720
      %v2018 = vmul.f32 %v1154, %v1725
      %v2019 = vmul.f32 %v1155, %v1730
      %v2020 = vmul.f32 %v1156, %v1735
      %v2021 = vmul.f32 %v1157, %v1740
      %v2022 = vmul.f32 %v1158, %v1745
      %v2023 = vmul.f32 %v1159, %v1750
      %v2024 = vmul.f32 %v1160, %v1755
      %v2025 = vmul.f32 %v1161, %v1760
      %v2026 = vmul.f32 %v1162, %v1765
      %v2027 = vmul.f32 %v1163, %v1770
      %v2028 = vmul.f32 %v1164, %v1775
      %v2029 = vmul.f32 %v1165, %v1780
      %v2030 = vmul.f32 %v1166, %v1785
      %v2031 = vmul.f32 %v1167, %v1790
      %v2032 = vmul.f32 %v1168, %v1795
      %v2033 = vmul.f32 %v1169, %v1800
      %v2034 = vmul.f32 %v1170, %v1805
      %v2035 = vmul.f32 %v1171, %v1810
      %v2036 = vmul.f32 %v1172, %v1815
      %v2037 = vmul.f32 %v1173, %v1820
      %v2038 = vmul.f32 %v1174, %v1825
      %v2039 = vmul.f32 %v1175, %v1830
      %v2040 = vmul.f32 %v1176, %v1835
      %v2041 = vmul.f32 %v1177, %v1840
      %v2042 = vmul.f32 %v1178, %v1845
      %v2043 = vmul.f32 %v1179, %v1850
      %v2044 = vmul.f32 %v1180, %v1855
      %v2045 = vmul.f32 %v1181, %v1860
      %v2046 = vmul.f32 %v1182, %v1865
      %v2047 = vmul.f32 %v1183, %v1870
      %v2048 = vmul.f32 %v1184, %v1875
      %v2049 = vmul.f32 %v1185, %v1880
      %v2050 = vmul.f32 %v1186, %v1885
      %v2051 = vmul.f32 %v1187, %v1890
      %v2052 = vmul.f32 %v1188, %v1895
      %v2053 = vmul.f32 %v1189, %v1900
      %v2054 = vmul.f32 %v1190, %v1905
      %v2055 = vmul.f32 %v1191, %v1910
      %v2056 = vmul.f32 %v1192, %v1915
      %v2057 = vmul.f32 %v1193, %v1920
      %v2058 = vmul.f32 %v1194, %v1925
      %v2059 = vmul.f32 %v1195, %v1930
      %v2060 = vmul.f32 %v1196, %v1935
      %v2061 = vmul.f32 %v1197, %v1940
      %v2062 = vmul.f32 %v1198, %v1945
      %v2063 = vmul.f32 %v1199, %v1950
      %v2064 = vmul.f32 %v1200, %v1955
      %v2065 = vmul.f32 %v1201, %v1960
      %v2066 = vmul.f32 %v1202, %v1965
      %v2067 = vmul.f32 %v1203, %v1970
      %v2068 = vmul.f32 %v1204, %v1975
      %v2069 = vmul.f32 %v1205, %v1980
      %v2070 = vmul.f32 %v1206, %v1985
      %v2071 = vmul.f32 %v1207, %v1990
      %v2072 = vmul.f32 %v1208, %v1995
      %v2073 = vmul.f32 %v1209, %v2000
      %v2074 = vadd.f32 %v2002, %v2003
      %v2075 = vadd.f32 %v2074, %v2004
      %v2076 = vadd.f32 %v2075, %v2005
      %v2077 = vadd.f32 %v2076, %v2006
      %v2078 = vadd.f32 %v2077, %v2007
      %v2079 = vadd.f32 %v2078, %v2008
      %v2080 = vadd.f32 %v2079, %v2009
      %v2081 = vadd.f32 %v2080, %v2010
      %v2082 = vadd.f32 %v2081, %v2011
      %v2083 = vadd.f32 %v2082, %v2012
      %v2084 = vadd.f32 %v2083, %v2013
      %v2085 = vadd.f32 %v2084, %v2014
      %v2086 = vadd.f32 %v2085, %v2015
      %v2087 = vadd.f32 %v2086, %v2016
      %v2088 = vadd.f32 %v2087, %v2017
      %v2089 = vadd.f32 %v2088, %v2018
      %v2090 = vadd.f32 %v2089, %v2019
      %v2091 = vadd.f32 %v2090, %v2020
      %v2092 = vadd.f32 %v2091, %v2021
      %v2093 = vadd.f32 %v2092, %v2022
      %v2094 = vadd.f32 %v2093, %v2023
      %v2095 = vadd.f32 %v2094, %v2024
      %v2096 = vadd.f32 %v2095, %v2025
      %v2097 = vadd.f32 %v2096, %v2026
      %v2098 = vadd.f32 %v2097, %v2027
      %v2099 = vadd.f32 %v2098, %v2028
      %v2100 = vadd.f32 %v2099, %v2029
      %v2101 = vadd.f32 %v2100, %v2030
      %v2102 = vadd.f32 %v2101, %v2031
      %v2103 = vadd.f32 %v2102, %v2032
      %v2104 = vadd.f32 %v2103, %v2033
      %v2105 = vadd.f32 %v2104, %v2034
      %v2106 = vadd.f32 %v2105, %v2035
      %v2107 = vadd.f32 %v2106, %v2036
      %v2108 = vadd.f32 %v2107, %v2037
      %v2109 = vadd.f32 %v2108, %v2038
      %v2110 = vadd.f32 %v2109, %v2039
      %v2111 = vadd.f32 %v2110, %v2040
      %v2112 = vadd.f32 %v2111, %v2041
      %v2113 = vadd.f32 %v2112, %v2042
      %v2114 = vadd.f32 %v2113, %v2043
      %v2115 = vadd.f32 %v2114, %v2044
      %v2116 = vadd.f32 %v2115, %v2045
      %v2117 = vadd.f32 %v2116, %v2046
      %v2118 = vadd.f32 %v2117, %v2047
      %v2119 = vadd.f32 %v2118, %v2048
      %v2120 = vadd.f32 %v2119, %v2049
      %v2121 = vadd.f32 %v2120, %v2050
      %v2122 = vadd.f32 %v2121, %v2051
      %v2123 = vadd.f32 %v2122, %v2052
      %v2124 = vadd.f32 %v2123, %v2053
      %v2125 = vadd.f32 %v2124, %v2054
      %v2126 = vadd.f32 %v2125, %v2055
      %v2127 = vadd.f32 %v2126, %v2056
      %v2128 = vadd.f32 %v2127, %v2057
      %v2129 = vadd.f32 %v2128, %v2058
      %v2130 = vadd.f32 %v2129, %v2059
      %v2131 = vadd.f32 %v2130, %v2060
      %v2132 = vadd.f32 %v2131, %v2061
      %v2133 = vadd.f32 %v2132, %v2062
      %v2134 = vadd.f32 %v2133, %v2063
      %v2135 = vadd.f32 %v2134, %v2064
      %v2136 = vadd.f32 %v2135, %v2065
      %v2137 = vadd.f32 %v2136, %v2066
      %v2138 = vadd.f32 %v2137, %v2067
      %v2139 = vadd.f32 %v2138, %v2068
      %v2140 = vadd.f32 %v2139, %v2069
      %v2141 = vadd.f32 %v2140, %v2070
      %v2142 = vadd.f32 %v2141, %v2071
      %v2143 = vadd.f32 %v2142, %v2072
      %v2144 = vadd.f32 %v2143, %v2073
      %v2145 = vrot.slane %v2144, 4
      %v2146 = vadd.f32 %v2144, %v2145
      %v2147 = vrot.slane %v2146, 2
      %v2148 = vadd.f32 %v2146, %v2147
      %v2149 = vrot.slane %v2148, 1
      %v2150 = vadd.f32 %v2148, %v2149
      %2151 = vst [vmem:[%s313] sm:$0x1] %v2150
      %v2152 = vmul.f32 %v2002, %v1138
      %v2153 = vmul.f32 %v2003, %v1139
      %v2154 = vmul.f32 %v2004, %v1140
      %v2155 = vmul.f32 %v2005, %v1141
      %v2156 = vmul.f32 %v2006, %v1142
      %v2157 = vmul.f32 %v2007, %v1143
      %v2158 = vmul.f32 %v2008, %v1144
      %v2159 = vmul.f32 %v2009, %v1145
      %v2160 = vmul.f32 %v2010, %v1146
      %v2161 = vmul.f32 %v2011, %v1147
      %v2162 = vmul.f32 %v2012, %v1148
      %v2163 = vmul.f32 %v2013, %v1149
      %v2164 = vmul.f32 %v2014, %v1150
      %v2165 = vmul.f32 %v2015, %v1151
      %v2166 = vmul.f32 %v2016, %v1152
      %v2167 = vmul.f32 %v2017, %v1153
      %v2168 = vmul.f32 %v2018, %v1154
      %v2169 = vmul.f32 %v2019, %v1155
      %v2170 = vmul.f32 %v2020, %v1156
      %v2171 = vmul.f32 %v2021, %v1157
      %v2172 = vmul.f32 %v2022, %v1158
      %v2173 = vmul.f32 %v2023, %v1159
      %v2174 = vmul.f32 %v2024, %v1160
      %v2175 = vmul.f32 %v2025, %v1161
      %v2176 = vmul.f32 %v2026, %v1162
      %v2177 = vmul.f32 %v2027, %v1163
      %v2178 = vmul.f32 %v2028, %v1164
      %v2179 = vmul.f32 %v2029, %v1165
      %v2180 = vmul.f32 %v2030, %v1166
      %v2181 = vmul.f32 %v2031, %v1167
      %v2182 = vmul.f32 %v2032, %v1168
      %v2183 = vmul.f32 %v2033, %v1169
      %v2184 = vmul.f32 %v2034, %v1170
      %v2185 = vmul.f32 %v2035, %v1171
      %v2186 = vmul.f32 %v2036, %v1172
      %v2187 = vmul.f32 %v2037, %v1173
      %v2188 = vmul.f32 %v2038, %v1174
      %v2189 = vmul.f32 %v2039, %v1175
      %v2190 = vmul.f32 %v2040, %v1176
      %v2191 = vmul.f32 %v2041, %v1177
      %v2192 = vmul.f32 %v2042, %v1178
      %v2193 = vmul.f32 %v2043, %v1179
      %v2194 = vmul.f32 %v2044, %v1180
      %v2195 = vmul.f32 %v2045, %v1181
      %v2196 = vmul.f32 %v2046, %v1182
      %v2197 = vmul.f32 %v2047, %v1183
      %v2198 = vmul.f32 %v2048, %v1184
      %v2199 = vmul.f32 %v2049, %v1185
      %v2200 = vmul.f32 %v2050, %v1186
      %v2201 = vmul.f32 %v2051, %v1187
      %v2202 = vmul.f32 %v2052, %v1188
      %v2203 = vmul.f32 %v2053, %v1189
      %v2204 = vmul.f32 %v2054, %v1190
      %v2205 = vmul.f32 %v2055, %v1191
      %v2206 = vmul.f32 %v2056, %v1192
      %v2207 = vmul.f32 %v2057, %v1193
      %v2208 = vmul.f32 %v2058, %v1194
      %v2209 = vmul.f32 %v2059, %v1195
      %v2210 = vmul.f32 %v2060, %v1196
      %v2211 = vmul.f32 %v2061, %v1197
      %v2212 = vmul.f32 %v2062, %v1198
      %v2213 = vmul.f32 %v2063, %v1199
      %v2214 = vmul.f32 %v2064, %v1200
      %v2215 = vmul.f32 %v2065, %v1201
      %v2216 = vmul.f32 %v2066, %v1202
      %v2217 = vmul.f32 %v2067, %v1203
      %v2218 = vmul.f32 %v2068, %v1204
      %v2219 = vmul.f32 %v2069, %v1205
      %v2220 = vmul.f32 %v2070, %v1206
      %v2221 = vmul.f32 %v2071, %v1207
      %v2222 = vmul.f32 %v2072, %v1208
      %v2223 = vmul.f32 %v2073, %v1209
      %v2224 = vadd.f32 %v2152, %v2153
      %v2225 = vadd.f32 %v2224, %v2154
      %v2226 = vadd.f32 %v2225, %v2155
      %v2227 = vadd.f32 %v2226, %v2156
      %v2228 = vadd.f32 %v2227, %v2157
      %v2229 = vadd.f32 %v2228, %v2158
      %v2230 = vadd.f32 %v2229, %v2159
      %v2231 = vadd.f32 %v2230, %v2160
      %v2232 = vadd.f32 %v2231, %v2161
      %v2233 = vadd.f32 %v2232, %v2162
      %v2234 = vadd.f32 %v2233, %v2163
      %v2235 = vadd.f32 %v2234, %v2164
      %v2236 = vadd.f32 %v2235, %v2165
      %v2237 = vadd.f32 %v2236, %v2166
      %v2238 = vadd.f32 %v2237, %v2167
      %v2239 = vadd.f32 %v2238, %v2168
      %v2240 = vadd.f32 %v2239, %v2169
      %v2241 = vadd.f32 %v2240, %v2170
      %v2242 = vadd.f32 %v2241, %v2171
      %v2243 = vadd.f32 %v2242, %v2172
      %v2244 = vadd.f32 %v2243, %v2173
      %v2245 = vadd.f32 %v2244, %v2174
      %v2246 = vadd.f32 %v2245, %v2175
      %v2247 = vadd.f32 %v2246, %v2176
      %v2248 = vadd.f32 %v2247, %v2177
      %v2249 = vadd.f32 %v2248, %v2178
      %v2250 = vadd.f32 %v2249, %v2179
      %v2251 = vadd.f32 %v2250, %v2180
      %v2252 = vadd.f32 %v2251, %v2181
      %v2253 = vadd.f32 %v2252, %v2182
      %v2254 = vadd.f32 %v2253, %v2183
      %v2255 = vadd.f32 %v2254, %v2184
      %v2256 = vadd.f32 %v2255, %v2185
      %v2257 = vadd.f32 %v2256, %v2186
      %v2258 = vadd.f32 %v2257, %v2187
      %v2259 = vadd.f32 %v2258, %v2188
      %v2260 = vadd.f32 %v2259, %v2189
      %v2261 = vadd.f32 %v2260, %v2190
      %v2262 = vadd.f32 %v2261, %v2191
      %v2263 = vadd.f32 %v2262, %v2192
      %v2264 = vadd.f32 %v2263, %v2193
      %v2265 = vadd.f32 %v2264, %v2194
      %v2266 = vadd.f32 %v2265, %v2195
      %v2267 = vadd.f32 %v2266, %v2196
      %v2268 = vadd.f32 %v2267, %v2197
      %v2269 = vadd.f32 %v2268, %v2198
      %v2270 = vadd.f32 %v2269, %v2199
      %v2271 = vadd.f32 %v2270, %v2200
      %v2272 = vadd.f32 %v2271, %v2201
      %v2273 = vadd.f32 %v2272, %v2202
      %v2274 = vadd.f32 %v2273, %v2203
      %v2275 = vadd.f32 %v2274, %v2204
      %v2276 = vadd.f32 %v2275, %v2205
      %v2277 = vadd.f32 %v2276, %v2206
      %v2278 = vadd.f32 %v2277, %v2207
      %v2279 = vadd.f32 %v2278, %v2208
      %v2280 = vadd.f32 %v2279, %v2209
      %v2281 = vadd.f32 %v2280, %v2210
      %v2282 = vadd.f32 %v2281, %v2211
      %v2283 = vadd.f32 %v2282, %v2212
      %v2284 = vadd.f32 %v2283, %v2213
      %v2285 = vadd.f32 %v2284, %v2214
      %v2286 = vadd.f32 %v2285, %v2215
      %v2287 = vadd.f32 %v2286, %v2216
      %v2288 = vadd.f32 %v2287, %v2217
      %v2289 = vadd.f32 %v2288, %v2218
      %v2290 = vadd.f32 %v2289, %v2219
      %v2291 = vadd.f32 %v2290, %v2220
      %v2292 = vadd.f32 %v2291, %v2221
      %v2293 = vadd.f32 %v2292, %v2222
      %v2294 = vadd.f32 %v2293, %v2223
      %v2295 = vrot.slane %v2294, 4
      %v2296 = vadd.f32 %v2294, %v2295
      %v2297 = vrot.slane %v2296, 2
      %v2298 = vadd.f32 %v2296, %v2297
      %v2299 = vrot.slane %v2298, 1
      %v2300 = vadd.f32 %v2298, %v2299
      %2301 = vst [vmem:[%s319] sm:$0x1] %v2300
      %s2302 = smul.u32 72, %s21
      %p2303 = scmp.lt.s32.totalorder %s2302, 143
      %s2304 = scalar_select %p2303, %s2302, 143
      %p2305 = scmp.lt.s32.totalorder %s22, 0
      %s2306 = scalar_select %p2305, %s22, 0
      %s2307 = sadd.s32 %s2306, %s2304
      %s2308 = smul.addr %s2307, 4
      %s2309 = scalar_lea.vmem %s3, %s2308
      %p2310 = scmp.lt.s32.totalorder %s21, 1
      %s2311 = scalar_select %p2310, %s21, 1
      %p2312 = scmp.lt.s32.totalorder %s22, 0
      %s2313 = scalar_select %p2312, %s22, 0
      %s2314 = sadd.s32 %s2313, %s2311
      %s2315 = scalar_lea.vmem %s4, %s2314
      %p2316 = scmp.lt.s32.totalorder %s21, 1
      %s2317 = scalar_select %p2316, %s21, 1
      %p2318 = scmp.lt.s32.totalorder %s22, 0
      %s2319 = scalar_select %p2318, %s22, 0
      %s2320 = sadd.s32 %s2319, %s2317
      %s2321 = scalar_lea.vmem %s5, %s2320
      // Predicated region
      $region33: #{unet_forward.11} parent=31 // pred_check
        %p2322 = pneg %p127
      $region34: #{unet_forward.11} parent=31 // pred_check_branch
        %2324 = sbr.rel (%p2322) target = $region36
      $region35: #{unet_forward.11} parent=31 // pred_region
        %s2325 = smul.u32 72, %s21
      $region36: #{unet_forward.11} parent=31 // pred_fallthru
        _
      // Predicated region
      $region37: #{unet_forward.11} parent=31 // pred_check
        %p2326 = pneg %p155
      $region38: #{unet_forward.11} parent=31 // pred_check_branch
        %2328 = sbr.rel (%p2326) target = $region40
      $region39: #{unet_forward.11} parent=31 // pred_region
        _
      $region40: #{unet_forward.11} parent=31 // pred_fallthru
        _
      // Predicated region
      $region41: #{unet_forward.11} parent=31 // pred_check
        %p2329 = pneg %p183
      $region42: #{unet_forward.11} parent=31 // pred_check_branch
        %2331 = sbr.rel (%p2329) target = $region44
      $region43: #{unet_forward.11} parent=31 // pred_region
        _
      $region44: #{unet_forward.11} parent=31 // pred_fallthru
        _
    $region32: #{unet_forward.11} parent=5 // pred_fallthru
      _
    %p2332 = scmp.le.s32.totalorder 2, %s12
    // Predicated region
    $region45: #{unet_forward.11} parent=5 // pred_check
      %p2333 = pneg %p2332
    $region46: #{unet_forward.11} parent=5 // pred_check_branch
      %2335 = sbr.rel (%p2333) target = $region48
    $region47: #{unet_forward.11} parent=5 // pred_region
      %s2336 = ssub.s32 %s12, 2
      // Predicated region
      $region49: #{unet_forward.11} parent=47 // pred_check
        %p2337 = pneg %p133
      $region50: #{unet_forward.11} parent=47 // pred_check_branch
        %2339 = sbr.rel (%p2337) target = $region52
      $region51: #{unet_forward.11} parent=47 // pred_region
        %s2340 = smul.u32 72, %s23
        %p2341 = scmp.lt.s32.totalorder %s2340, 143
        %s2342 = scalar_select %p2341, %s2340, 143
        %p2343 = scmp.lt.s32.totalorder %s24, 0
        %s2344 = scalar_select %p2343, %s24, 0
        %s2345 = sadd.s32 %s2344, %s2342
        %s2346 = smul.addr %s2345, 4
        %s2347 = scalar_lea.vmem %s3, %s2346
      $region52: #{unet_forward.11} parent=47 // pred_fallthru
        _
      // Predicated region
      $region53: #{unet_forward.11} parent=47 // pred_check
        %p2348 = pneg %p161
      $region54: #{unet_forward.11} parent=47 // pred_check_branch
        %2350 = sbr.rel (%p2348) target = $region56
      $region55: #{unet_forward.11} parent=47 // pred_region
        %p2351 = scmp.lt.s32.totalorder %s23, 1
        %s2352 = scalar_select %p2351, %s23, 1
        %p2353 = scmp.lt.s32.totalorder %s24, 0
        %s2354 = scalar_select %p2353, %s24, 0
        %s2355 = sadd.s32 %s2354, %s2352
        %s2356 = scalar_lea.vmem %s4, %s2355
      $region56: #{unet_forward.11} parent=47 // pred_fallthru
        _
      // Predicated region
      $region57: #{unet_forward.11} parent=47 // pred_check
        %p2357 = pneg %p189
      $region58: #{unet_forward.11} parent=47 // pred_check_branch
        %2359 = sbr.rel (%p2357) target = $region60
      $region59: #{unet_forward.11} parent=47 // pred_region
        %p2360 = scmp.lt.s32.totalorder %s23, 1
        %s2361 = scalar_select %p2360, %s23, 1
        %p2362 = scmp.lt.s32.totalorder %s24, 0
        %s2363 = scalar_select %p2362, %s24, 0
        %s2364 = sadd.s32 %s2363, %s2361
        %s2365 = scalar_lea.vmem %s5, %s2364
      $region60: #{unet_forward.11} parent=47 // pred_fallthru
        _
    $region48: #{unet_forward.11} parent=5 // pred_fallthru
      _
  $region6: #{unet_forward.11} parent=0 // loop_footer
    %s16 = sadd.s32 1, %s12
  $region7: #{unet_forward.11} parent=0 // loop_footer_branch
    %11 = sbr.rel target = $region3
  $region8: #{unet_forward.11} parent=0 // loop_exit
    _

// kernel: unet_forward.18
$region0: #{unet_forward.18}
  #allocation0 [shape = 'u32[]', space=smem, size = 0x4, offset = 0x4, fixed_abs, tag = 'smem constant byte address 0x4 - core index']
  #allocation1 [shape = 'u32[144,128]{1,0:T(1,128)}', space=vmem, size = 0x12000, scoped, tag = 'internal scratch']
  %s0 = inlined_call_operand.vmem [shape: bf16[1152,512], index: 0, kind: input, shape index: {}]
  %s1 = inlined_call_operand.vmem [shape: bf16[512,128], index: 1, kind: input, shape index: {}]
  %s2 = inlined_call_operand.vmem [shape: f32[1152,1], index: 2, kind: input, shape index: {}]
  %s3 = inlined_call_operand.vmem [shape: bf16[1152,128], index: 3, kind: output, shape index: {0}]
  %s4 = inlined_call_operand.vmem [shape: f32[2,1,128], index: 4, kind: output, shape index: {1}]
  %s5 = inlined_call_operand.vmem [shape: f32[2,1,128], index: 5, kind: output, shape index: {2}]
  %6 = xla_tuple %s3, %s4, %s5
  %s7 = sld [smem:[#allocation0]]
  $region61: #{unet_forward.18} parent=0
    _
  %s9 = ssub.s32 1, %s7
  %s10 = scalar_select 0, %s9, %s7
  loop: start=0, step=1, limit=4
  $region2: #{unet_forward.18} parent=0 // loop_pre_header
    _
  $region3: #{unet_forward.18} parent=0 // loop_header
    %s12 = sphi 0, %s16
    %p13 = scmp.ge.s32.totalorder %s12, 4
    %s19 = sphi 0, %s31
    %s20 = sphi 0, %s27
    %s21 = sphi 0, %s19
    %s22 = sphi 0, %s20
    %s23 = sphi 0, %s21
    %s24 = sphi 0, %s22
    %s34 = sphi 0, %s36
    %s37 = sphi 0, %s34
    %s38 = sphi 0, %s37
    %s54 = sphi 0, %s38
    %s60 = sphi 0, %s62
    %s63 = sphi 0, %s60
    %s64 = sphi 0, %s63
    %s80 = sphi 0, %s64
    %s86 = sphi 0, %s88
    %s89 = sphi 0, %s86
    %s90 = sphi 0, %s89
    %s106 = sphi 0, %s90
    %s114 = sphi 0, %s116
    %s117 = sphi 0, %s114
    %s118 = sphi 0, %s117
    %s134 = sphi 0, %s118
    %s142 = sphi 0, %s144
    %s145 = sphi 0, %s142
    %s146 = sphi 0, %s145
    %s162 = sphi 0, %s146
    %s170 = sphi 0, %s172
    %s173 = sphi 0, %s170
    %s174 = sphi 0, %s173
    %s190 = sphi 0, %s174
  $region4: #{unet_forward.18} parent=0 // loop_header_branch
    %15 = sbr.rel (%p13) target = $region8
  $region5: #{unet_forward.18} parent=0 // loop_body
    %s17 = ssub.s32 %s12, 1
    %s18 = ssub.s32 %s12, 2
    %s25 = sadd.s32 1, %s20
    %p26 = scmp.ge.s32.totalorder %s25, 1
    %s27 = scalar_select %p26, 0, %s25
    %s28 = sadd.s32 1, %s19
    %s29 = scalar_select %p26, %s28, %s19
    %p30 = scmp.ge.s32.totalorder %s29, 2
    %s31 = scalar_select %p30, 0, %s29
    %s32 = ssub.s32 %s19, %s31
    %p33 = scmp.eq.s32.totalorder %s32, 0
    %s35 = sadd.s32 %s34, 1
    %s36 = scalar_select %p33, %s34, %s35
    %p39 = pneg %p33
    %p40 = scmp.eq.s32.totalorder %s12, 1
    %p41 = por %p39, %p40
    %p42 = scmp.ne.s32.totalorder %s34, %s37
    %p43 = scmp.eq.s32.totalorder %s12, 0
    %p44 = por %p42, %p43
    %p45 = scmp.ne.s32.totalorder %s34, %s37
    %p46 = scmp.eq.s32.totalorder %s17, 1
    %p47 = por %p45, %p46
    %p48 = scmp.ne.s32.totalorder %s37, %s38
    %p49 = scmp.eq.s32.totalorder %s17, 0
    %p50 = por %p48, %p49
    %p51 = scmp.ne.s32.totalorder %s37, %s38
    %p52 = scmp.eq.s32.totalorder %s18, 1
    %p53 = por %p51, %p52
    %p55 = scmp.ne.s32.totalorder %s38, %s54
    %p56 = scmp.eq.s32.totalorder %s18, 0
    %p57 = por %p55, %p56
    %s58 = ssub.s32 %s20, %s27
    %p59 = scmp.eq.s32.totalorder %s58, 0
    %s61 = sadd.s32 %s60, 1
    %s62 = scalar_select %p59, %s60, %s61
    %p65 = pneg %p59
    %p66 = scmp.eq.s32.totalorder %s12, 1
    %p67 = por %p65, %p66
    %p68 = scmp.ne.s32.totalorder %s60, %s63
    %p69 = scmp.eq.s32.totalorder %s12, 0
    %p70 = por %p68, %p69
    %p71 = scmp.ne.s32.totalorder %s60, %s63
    %p72 = scmp.eq.s32.totalorder %s17, 1
    %p73 = por %p71, %p72
    %p74 = scmp.ne.s32.totalorder %s63, %s64
    %p75 = scmp.eq.s32.totalorder %s17, 0
    %p76 = por %p74, %p75
    %p77 = scmp.ne.s32.totalorder %s63, %s64
    %p78 = scmp.eq.s32.totalorder %s18, 1
    %p79 = por %p77, %p78
    %p81 = scmp.ne.s32.totalorder %s64, %s80
    %p82 = scmp.eq.s32.totalorder %s18, 0
    %p83 = por %p81, %p82
    %s84 = ssub.s32 %s19, %s31
    %p85 = scmp.eq.s32.totalorder %s84, 0
    %s87 = sadd.s32 %s86, 1
    %s88 = scalar_select %p85, %s86, %s87
    %p91 = pneg %p85
    %p92 = scmp.eq.s32.totalorder %s12, 1
    %p93 = por %p91, %p92
    %p94 = scmp.ne.s32.totalorder %s86, %s89
    %p95 = scmp.eq.s32.totalorder %s12, 0
    %p96 = por %p94, %p95
    %p97 = scmp.ne.s32.totalorder %s86, %s89
    %p98 = scmp.eq.s32.totalorder %s17, 1
    %p99 = por %p97, %p98
    %p100 = scmp.ne.s32.totalorder %s89, %s90
    %p101 = scmp.eq.s32.totalorder %s17, 0
    %p102 = por %p100, %p101
    %p103 = scmp.ne.s32.totalorder %s89, %s90
    %p104 = scmp.eq.s32.totalorder %s18, 1
    %p105 = por %p103, %p104
    %p107 = scmp.ne.s32.totalorder %s90, %s106
    %p108 = scmp.eq.s32.totalorder %s18, 0
    %p109 = por %p107, %p108
    %s110 = ssub.s32 %s19, %s31
    %s111 = ssub.s32 %s20, %s27
    %s112 = sor.u32 %s110, %s111
    %p113 = scmp.eq.s32.totalorder %s112, 0
    %s115 = sadd.s32 %s114, 1
    %s116 = scalar_select %p113, %s114, %s115
    %p119 = pneg %p113
    %p120 = scmp.eq.s32.totalorder %s12, 1
    %p121 = por %p119, %p120
    %p122 = scmp.ne.s32.totalorder %s114, %s117
    %p123 = scmp.eq.s32.totalorder %s12, 0
    %p124 = por %p122, %p123
    %p125 = scmp.ne.s32.totalorder %s114, %s117
    %p126 = scmp.eq.s32.totalorder %s17, 1
    %p127 = por %p125, %p126
    %p128 = scmp.ne.s32.totalorder %s117, %s118
    %p129 = scmp.eq.s32.totalorder %s17, 0
    %p130 = por %p128, %p129
    %p131 = scmp.ne.s32.totalorder %s117, %s118
    %p132 = scmp.eq.s32.totalorder %s18, 1
    %p133 = por %p131, %p132
    %p135 = scmp.ne.s32.totalorder %s118, %s134
    %p136 = scmp.eq.s32.totalorder %s18, 0
    %p137 = por %p135, %p136
    %s138 = ssub.s32 %s19, %s31
    %s139 = ssub.s32 %s20, %s27
    %s140 = sor.u32 %s138, %s139
    %p141 = scmp.eq.s32.totalorder %s140, 0
    %s143 = sadd.s32 %s142, 1
    %s144 = scalar_select %p141, %s142, %s143
    %p147 = pneg %p141
    %p148 = scmp.eq.s32.totalorder %s12, 1
    %p149 = por %p147, %p148
    %p150 = scmp.ne.s32.totalorder %s142, %s145
    %p151 = scmp.eq.s32.totalorder %s12, 0
    %p152 = por %p150, %p151
    %p153 = scmp.ne.s32.totalorder %s142, %s145
    %p154 = scmp.eq.s32.totalorder %s17, 1
    %p155 = por %p153, %p154
    %p156 = scmp.ne.s32.totalorder %s145, %s146
    %p157 = scmp.eq.s32.totalorder %s17, 0
    %p158 = por %p156, %p157
    %p159 = scmp.ne.s32.totalorder %s145, %s146
    %p160 = scmp.eq.s32.totalorder %s18, 1
    %p161 = por %p159, %p160
    %p163 = scmp.ne.s32.totalorder %s146, %s162
    %p164 = scmp.eq.s32.totalorder %s18, 0
    %p165 = por %p163, %p164
    %s166 = ssub.s32 %s19, %s31
    %s167 = ssub.s32 %s20, %s27
    %s168 = sor.u32 %s166, %s167
    %p169 = scmp.eq.s32.totalorder %s168, 0
    %s171 = sadd.s32 %s170, 1
    %s172 = scalar_select %p169, %s170, %s171
    %p175 = pneg %p169
    %p176 = scmp.eq.s32.totalorder %s12, 1
    %p177 = por %p175, %p176
    %p178 = scmp.ne.s32.totalorder %s170, %s173
    %p179 = scmp.eq.s32.totalorder %s12, 0
    %p180 = por %p178, %p179
    %p181 = scmp.ne.s32.totalorder %s170, %s173
    %p182 = scmp.eq.s32.totalorder %s17, 1
    %p183 = por %p181, %p182
    %p184 = scmp.ne.s32.totalorder %s173, %s174
    %p185 = scmp.eq.s32.totalorder %s17, 0
    %p186 = por %p184, %p185
    %p187 = scmp.ne.s32.totalorder %s173, %s174
    %p188 = scmp.eq.s32.totalorder %s18, 1
    %p189 = por %p187, %p188
    %p191 = scmp.ne.s32.totalorder %s174, %s190
    %p192 = scmp.eq.s32.totalorder %s18, 0
    %p193 = por %p191, %p192
    %p194 = scmp.le.s32.totalorder 1, %s12
    %p195 = scmp.lt.s32.totalorder %s12, 3
    %p196 = pnand %p194, %p195
    %p197 = pneg %p196
    // Predicated region
    $region9: #{unet_forward.18} parent=5 // pred_check
      _
    $region10: #{unet_forward.18} parent=5 // pred_check_branch
      %199 = sbr.rel (%p196) target = $region12
    $region11: #{unet_forward.18} parent=5 // pred_region
      %s200 = ssub.s32 %s12, 1
      // Predicated region
      $region13: #{unet_forward.18} parent=11 // pred_check
        %p201 = pneg %p76
      $region14: #{unet_forward.18} parent=11 // pred_check_branch
        %203 = sbr.rel (%p201) target = $region16
      $region15: #{unet_forward.18} parent=11 // pred_region
        %p204 = scmp.lt.s32.totalorder %s22, 0
        %s205 = scalar_select %p204, %s22, 0
        %s206 = smul.addr %s205, 4
        %s207 = scalar_lea.vmem %s1, %s206
      $region16: #{unet_forward.18} parent=11 // pred_fallthru
        _
    $region12: #{unet_forward.18} parent=5 // pred_fallthru
      _
    %p208 = scmp.lt.s32.totalorder %s12, 2
    // Predicated region
    $region17: #{unet_forward.18} parent=5 // pred_check
      %p209 = pneg %p208
    $region18: #{unet_forward.18} parent=5 // pred_check_branch
      %211 = sbr.rel (%p209) target = $region20
    $region19: #{unet_forward.18} parent=5 // pred_region
      // Predicated region
      $region21: #{unet_forward.18} parent=19 // pred_check
        %p212 = pneg %p44
      $region22: #{unet_forward.18} parent=19 // pred_check_branch
        %214 = sbr.rel (%p212) target = $region24
      $region23: #{unet_forward.18} parent=19 // pred_region
        %s215 = smul.u32 72, %s19
        %p216 = scmp.lt.s32.totalorder %s215, 143
        %s217 = scalar_select %p216, %s215, 143
        %s218 = smul.addr %s217, 4
        %s219 = smul.addr %s218, 4
        %s220 = scalar_lea.vmem %s0, %s219
        %s221 = smul.u32 72, %s19
      $region24: #{unet_forward.18} parent=19 // pred_fallthru
        _
      // Predicated region
      $region25: #{unet_forward.18} parent=19 // pred_check
        %p222 = pneg %p96
      $region26: #{unet_forward.18} parent=19 // pred_check_branch
        %224 = sbr.rel (%p222) target = $region28
      $region27: #{unet_forward.18} parent=19 // pred_region
        %s225 = smul.u32 72, %s19
        %p226 = scmp.lt.s32.totalorder %s225, 143
        %s227 = scalar_select %p226, %s225, 143
        %s228 = smul.addr %s227, 8
        %s229 = scalar_lea.vmem %s2, %s228
        %s230 = smul.u32 72, %s19
      $region28: #{unet_forward.18} parent=19 // pred_fallthru
        _
    $region20: #{unet_forward.18} parent=5 // pred_fallthru
      _
    %p231 = scmp.le.s32.totalorder 1, %s12
    %p232 = scmp.lt.s32.totalorder %s12, 3
    %p233 = pnand %p231, %p232
    %p234 = pneg %p233
    // Predicated region
    $region29: #{unet_forward.18} parent=5 // pred_check
      _
    $region30: #{unet_forward.18} parent=5 // pred_check_branch
      %236 = sbr.rel (%p233) target = $region32
    $region31: #{unet_forward.18} parent=5 // pred_region
      %s237 = ssub.s32 %s12, 1
      %s238 = smul.u32 72, %s21
      %p239 = scmp.lt.s32.totalorder %s238, 143
      %s240 = scalar_select %p239, %s238, 143
      %s241 = smul.addr %s240, 4
      %s242 = smul.addr %s241, 4
      %s243 = scalar_lea.vmem %s0, %s242
      %p244 = pneg %p50
      %p245 = pneg %p47
      %p246 = scmp.lt.s32.totalorder %s22, 0
      %s247 = scalar_select %p246, %s22, 0
      %s248 = smul.addr %s247, 4
      %s249 = scalar_lea.vmem %s1, %s248
      %p250 = pneg %p76
      %p251 = pneg %p73
      %s252 = smul.u32 72, %s21
      %p253 = scmp.lt.s32.totalorder %s252, 143
      %s254 = scalar_select %p253, %s252, 143
      %s255 = smul.addr %s254, 8
      %s256 = scalar_lea.vmem %s2, %s255
      %p257 = pneg %p102
      %p258 = pneg %p99
      %p259 = pneg %p130
      %p260 = pneg %p127
      %s261 = smul.u32 72, %s21
      %p262 = scmp.lt.s32.totalorder %s261, 143
      %s263 = scalar_select %p262, %s261, 143
      %p264 = scmp.lt.s32.totalorder %s22, 0
      %s265 = scalar_select %p264, %s22, 0
      %s266 = sadd.s32 %s265, %s263
      %s267 = smul.addr %s266, 4
      %s268 = scalar_lea.vmem %s3, %s267
      %p269 = pneg %p158
      %p270 = pneg %p155
      %p271 = scmp.lt.s32.totalorder %s21, 1
      %s272 = scalar_select %p271, %s21, 1
      %p273 = scmp.lt.s32.totalorder %s22, 0
      %s274 = scalar_select %p273, %s22, 0
      %s275 = sadd.s32 %s274, %s272
      %s276 = scalar_lea.vmem %s4, %s275
      %p277 = pneg %p186
      %p278 = pneg %p183
      %p279 = scmp.lt.s32.totalorder %s21, 1
      %s280 = scalar_select %p279, %s21, 1
      %p281 = scmp.lt.s32.totalorder %s22, 0
      %s282 = scalar_select %p281, %s22, 0
      %s283 = sadd.s32 %s282, %s280
      %s284 = scalar_lea.vmem %s5, %s283
      %s285 = smul.u32 72, %s21
      %p286 = scmp.lt.s32.totalorder %s285, 143
      %s287 = scalar_select %p286, %s285, 143
      %s288 = smul.addr %s287, 4
      %s289 = smul.addr %s288, 4
      %s290 = scalar_lea.vmem %s0, %s289
      %s291 = smul.u32 72, %s21
      %p292 = scmp.lt.s32.totalorder %s22, 0
      %s293 = scalar_select %p292, %s22, 0
      %s294 = smul.addr %s293, 4
      %s295 = scalar_lea.vmem %s1, %s294
      %s296 = smul.u32 72, %s21
      %p297 = scmp.lt.s32.totalorder %s296, 143
      %s298 = scalar_select %p297, %s296, 143
      %s299 = smul.addr %s298, 8
      %s300 = scalar_lea.vmem %s2, %s299
      %s301 = smul.u32 72, %s21
      %s302 = smul.u32 72, %s21
      %p303 = scmp.lt.s32.totalorder %s302, 143
      %s304 = scalar_select %p303, %s302, 143
      %p305 = scmp.lt.s32.totalorder %s22, 0
      %s306 = scalar_select %p305, %s22, 0
      %s307 = sadd.s32 %s306, %s304
      %s308 = smul.addr %s307, 4
      %s309 = scalar_lea.vmem %s3, %s308
      %s310 = smul.u32 72, %s21
      %p311 = scmp.lt.s32.totalorder %s21, 1
      %s312 = scalar_select %p311, %s21, 1
      %p313 = scmp.lt.s32.totalorder %s22, 0
      %s314 = scalar_select %p313, %s22, 0
      %s315 = sadd.s32 %s314, %s312
      %s316 = scalar_lea.vmem %s4, %s315
      %p317 = scmp.lt.s32.totalorder %s21, 1
      %s318 = scalar_select %p317, %s21, 1
      %p319 = scmp.lt.s32.totalorder %s22, 0
      %s320 = scalar_select %p319, %s22, 0
      %s321 = sadd.s32 %s320, %s318
      %s322 = scalar_lea.vmem %s5, %s321
      %v324 = vld [vmem:[%s290] sm:$0xff]
      %v325 = vld [vmem:[%s290 + $0x8] sm:$0xff]
      %v326 = vld [vmem:[%s290 + $0x10] sm:$0xff]
      %v327 = vld [vmem:[%s290 + $0x18] sm:$0xff]
      %v328 = vld [vmem:[%s290 + $0x20] sm:$0xff]
      %v329 = vld [vmem:[%s290 + $0x28] sm:$0xff]
      %v330 = vld [vmem:[%s290 + $0x30] sm:$0xff]
      %v331 = vld [vmem:[%s290 + $0x38] sm:$0xff]
      %v332 = vld [vmem:[%s290 + $0x40] sm:$0xff]
      %v333 = vld [vmem:[%s290 + $0x48] sm:$0xff]
      %v334 = vld [vmem:[%s290 + $0x50] sm:$0xff]
      %v335 = vld [vmem:[%s290 + $0x58] sm:$0xff]
      %v336 = vld [vmem:[%s290 + $0x60] sm:$0xff]
      %v337 = vld [vmem:[%s290 + $0x68] sm:$0xff]
      %v338 = vld [vmem:[%s290 + $0x70] sm:$0xff]
      %v339 = vld [vmem:[%s290 + $0x78] sm:$0xff]
      %v340 = vld [vmem:[%s290 + $0x80] sm:$0xff]
      %v341 = vld [vmem:[%s290 + $0x88] sm:$0xff]
      %v342 = vld [vmem:[%s290 + $0x90] sm:$0xff]
      %v343 = vld [vmem:[%s290 + $0x98] sm:$0xff]
      %v344 = vld [vmem:[%s290 + $0xa0] sm:$0xff]
      %v345 = vld [vmem:[%s290 + $0xa8] sm:$0xff]
      %v346 = vld [vmem:[%s290 + $0xb0] sm:$0xff]
      %v347 = vld [vmem:[%s290 + $0xb8] sm:$0xff]
      %v348 = vld [vmem:[%s290 + $0xc0] sm:$0xff]
      %v349 = vld [vmem:[%s290 + $0xc8] sm:$0xff]
      %v350 = vld [vmem:[%s290 + $0xd0] sm:$0xff]
      %v351 = vld [vmem:[%s290 + $0xd8] sm:$0xff]
      %v352 = vld [vmem:[%s290 + $0xe0] sm:$0xff]
      %v353 = vld [vmem:[%s290 + $0xe8] sm:$0xff]
      %v354 = vld [vmem:[%s290 + $0xf0] sm:$0xff]
      %v355 = vld [vmem:[%s290 + $0xf8] sm:$0xff]
      %v356 = vld [vmem:[%s290 + $0x100] sm:$0xff]
      %v357 = vld [vmem:[%s290 + $0x108] sm:$0xff]
      %v358 = vld [vmem:[%s290 + $0x110] sm:$0xff]
      %v359 = vld [vmem:[%s290 + $0x118] sm:$0xff]
      %v360 = vld [vmem:[%s290 + $0x120] sm:$0xff]
      %v361 = vld [vmem:[%s290 + $0x128] sm:$0xff]
      %v362 = vld [vmem:[%s290 + $0x130] sm:$0xff]
      %v363 = vld [vmem:[%s290 + $0x138] sm:$0xff]
      %v364 = vld [vmem:[%s290 + $0x140] sm:$0xff]
      %v365 = vld [vmem:[%s290 + $0x148] sm:$0xff]
      %v366 = vld [vmem:[%s290 + $0x150] sm:$0xff]
      %v367 = vld [vmem:[%s290 + $0x158] sm:$0xff]
      %v368 = vld [vmem:[%s290 + $0x160] sm:$0xff]
      %v369 = vld [vmem:[%s290 + $0x168] sm:$0xff]
      %v370 = vld [vmem:[%s290 + $0x170] sm:$0xff]
      %v371 = vld [vmem:[%s290 + $0x178] sm:$0xff]
      %v372 = vld [vmem:[%s290 + $0x180] sm:$0xff]
      %v373 = vld [vmem:[%s290 + $0x188] sm:$0xff]
      %v374 = vld [vmem:[%s290 + $0x190] sm:$0xff]
      %v375 = vld [vmem:[%s290 + $0x198] sm:$0xff]
      %v376 = vld [vmem:[%s290 + $0x1a0] sm:$0xff]
      %v377 = vld [vmem:[%s290 + $0x1a8] sm:$0xff]
      %v378 = vld [vmem:[%s290 + $0x1b0] sm:$0xff]
      %v379 = vld [vmem:[%s290 + $0x1b8] sm:$0xff]
      %v380 = vld [vmem:[%s290 + $0x1c0] sm:$0xff]
      %v381 = vld [vmem:[%s290 + $0x1c8] sm:$0xff]
      %v382 = vld [vmem:[%s290 + $0x1d0] sm:$0xff]
      %v383 = vld [vmem:[%s290 + $0x1d8] sm:$0xff]
      %v384 = vld [vmem:[%s290 + $0x1e0] sm:$0xff]
      %v385 = vld [vmem:[%s290 + $0x1e8] sm:$0xff]
      %v386 = vld [vmem:[%s290 + $0x1f0] sm:$0xff]
      %v387 = vld [vmem:[%s290 + $0x1f8] sm:$0xff]
      %v388 = vld [vmem:[%s290 + $0x200] sm:$0xff]
      %v389 = vld [vmem:[%s290 + $0x208] sm:$0xff]
      %v390 = vld [vmem:[%s290 + $0x210] sm:$0xff]
      %v391 = vld [vmem:[%s290 + $0x218] sm:$0xff]
      %v392 = vld [vmem:[%s290 + $0x220] sm:$0xff]
      %v393 = vld [vmem:[%s290 + $0x228] sm:$0xff]
      %v394 = vld [vmem:[%s290 + $0x230] sm:$0xff]
      %v395 = vld [vmem:[%s290 + $0x238] sm:$0xff]
      %v396 = vld [vmem:[%s290 + $0x240] sm:$0xff]
      %v397 = vld [vmem:[%s290 + $0x248] sm:$0xff]
      %v398 = vld [vmem:[%s290 + $0x250] sm:$0xff]
      %v399 = vld [vmem:[%s290 + $0x258] sm:$0xff]
      %v400 = vld [vmem:[%s290 + $0x260] sm:$0xff]
      %v401 = vld [vmem:[%s290 + $0x268] sm:$0xff]
      %v402 = vld [vmem:[%s290 + $0x270] sm:$0xff]
      %v403 = vld [vmem:[%s290 + $0x278] sm:$0xff]
      %v404 = vld [vmem:[%s290 + $0x280] sm:$0xff]
      %v405 = vld [vmem:[%s290 + $0x288] sm:$0xff]
      %v406 = vld [vmem:[%s290 + $0x290] sm:$0xff]
      %v407 = vld [vmem:[%s290 + $0x298] sm:$0xff]
      %v408 = vld [vmem:[%s290 + $0x2a0] sm:$0xff]
      %v409 = vld [vmem:[%s290 + $0x2a8] sm:$0xff]
      %v410 = vld [vmem:[%s290 + $0x2b0] sm:$0xff]
      %v411 = vld [vmem:[%s290 + $0x2b8] sm:$0xff]
      %v412 = vld [vmem:[%s290 + $0x2c0] sm:$0xff]
      %v413 = vld [vmem:[%s290 + $0x2c8] sm:$0xff]
      %v414 = vld [vmem:[%s290 + $0x2d0] sm:$0xff]
      %v415 = vld [vmem:[%s290 + $0x2d8] sm:$0xff]
      %v416 = vld [vmem:[%s290 + $0x2e0] sm:$0xff]
      %v417 = vld [vmem:[%s290 + $0x2e8] sm:$0xff]
      %v418 = vld [vmem:[%s290 + $0x2f0] sm:$0xff]
      %v419 = vld [vmem:[%s290 + $0x2f8] sm:$0xff]
      %v420 = vld [vmem:[%s290 + $0x300] sm:$0xff]
      %v421 = vld [vmem:[%s290 + $0x308] sm:$0xff]
      %v422 = vld [vmem:[%s290 + $0x310] sm:$0xff]
      %v423 = vld [vmem:[%s290 + $0x318] sm:$0xff]
      %v424 = vld [vmem:[%s290 + $0x320] sm:$0xff]
      %v425 = vld [vmem:[%s290 + $0x328] sm:$0xff]
      %v426 = vld [vmem:[%s290 + $0x330] sm:$0xff]
      %v427 = vld [vmem:[%s290 + $0x338] sm:$0xff]
      %v428 = vld [vmem:[%s290 + $0x340] sm:$0xff]
      %v429 = vld [vmem:[%s290 + $0x348] sm:$0xff]
      %v430 = vld [vmem:[%s290 + $0x350] sm:$0xff]
      %v431 = vld [vmem:[%s290 + $0x358] sm:$0xff]
      %v432 = vld [vmem:[%s290 + $0x360] sm:$0xff]
      %v433 = vld [vmem:[%s290 + $0x368] sm:$0xff]
      %v434 = vld [vmem:[%s290 + $0x370] sm:$0xff]
      %v435 = vld [vmem:[%s290 + $0x378] sm:$0xff]
      %v436 = vld [vmem:[%s290 + $0x380] sm:$0xff]
      %v437 = vld [vmem:[%s290 + $0x388] sm:$0xff]
      %v438 = vld [vmem:[%s290 + $0x390] sm:$0xff]
      %v439 = vld [vmem:[%s290 + $0x398] sm:$0xff]
      %v440 = vld [vmem:[%s290 + $0x3a0] sm:$0xff]
      %v441 = vld [vmem:[%s290 + $0x3a8] sm:$0xff]
      %v442 = vld [vmem:[%s290 + $0x3b0] sm:$0xff]
      %v443 = vld [vmem:[%s290 + $0x3b8] sm:$0xff]
      %v444 = vld [vmem:[%s290 + $0x3c0] sm:$0xff]
      %v445 = vld [vmem:[%s290 + $0x3c8] sm:$0xff]
      %v446 = vld [vmem:[%s290 + $0x3d0] sm:$0xff]
      %v447 = vld [vmem:[%s290 + $0x3d8] sm:$0xff]
      %v448 = vld [vmem:[%s290 + $0x3e0] sm:$0xff]
      %v449 = vld [vmem:[%s290 + $0x3e8] sm:$0xff]
      %v450 = vld [vmem:[%s290 + $0x3f0] sm:$0xff]
      %v451 = vld [vmem:[%s290 + $0x3f8] sm:$0xff]
      %v452 = vld [vmem:[%s290 + $0x400] sm:$0xff]
      %v453 = vld [vmem:[%s290 + $0x408] sm:$0xff]
      %v454 = vld [vmem:[%s290 + $0x410] sm:$0xff]
      %v455 = vld [vmem:[%s290 + $0x418] sm:$0xff]
      %v456 = vld [vmem:[%s290 + $0x420] sm:$0xff]
      %v457 = vld [vmem:[%s290 + $0x428] sm:$0xff]
      %v458 = vld [vmem:[%s290 + $0x430] sm:$0xff]
      %v459 = vld [vmem:[%s290 + $0x438] sm:$0xff]
      %v460 = vld [vmem:[%s290 + $0x440] sm:$0xff]
      %v461 = vld [vmem:[%s290 + $0x448] sm:$0xff]
      %v462 = vld [vmem:[%s290 + $0x450] sm:$0xff]
      %v463 = vld [vmem:[%s290 + $0x458] sm:$0xff]
      %v464 = vld [vmem:[%s290 + $0x460] sm:$0xff]
      %v465 = vld [vmem:[%s290 + $0x468] sm:$0xff]
      %v466 = vld [vmem:[%s290 + $0x470] sm:$0xff]
      %v467 = vld [vmem:[%s290 + $0x478] sm:$0xff]
      %v468 = vld [vmem:[%s295] sm:$0xf]
      %v469 = vld [vmem:[%s295 + $0x4] sm:$0xf]
      %v470 = vld [vmem:[%s295 + $0x8] sm:$0xf]
      %v471 = vld [vmem:[%s295 + $0xc] sm:$0xf]
      %v472 = vld [vmem:[%s295 + $0x10] sm:$0xf]
      %v473 = vld [vmem:[%s295 + $0x14] sm:$0xf]
      %v474 = vld [vmem:[%s295 + $0x18] sm:$0xf]
      %v475 = vld [vmem:[%s295 + $0x1c] sm:$0xf]
      %v476 = vld [vmem:[%s295 + $0x20] sm:$0xf]
      %v477 = vld [vmem:[%s295 + $0x24] sm:$0xf]
      %v478 = vld [vmem:[%s295 + $0x28] sm:$0xf]
      %v479 = vld [vmem:[%s295 + $0x2c] sm:$0xf]
      %v480 = vld [vmem:[%s295 + $0x30] sm:$0xf]
      %v481 = vld [vmem:[%s295 + $0x34] sm:$0xf]
      %v482 = vld [vmem:[%s295 + $0x38] sm:$0xf]
      %v483 = vld [vmem:[%s295 + $0x3c] sm:$0xf]
      %v484 = vld [vmem:[%s295 + $0x40] sm:$0xf]
      %v485 = vld [vmem:[%s295 + $0x44] sm:$0xf]
      %v486 = vld [vmem:[%s295 + $0x48] sm:$0xf]
      %v487 = vld [vmem:[%s295 + $0x4c] sm:$0xf]
      %v488 = vld [vmem:[%s295 + $0x50] sm:$0xf]
      %v489 = vld [vmem:[%s295 + $0x54] sm:$0xf]
      %v490 = vld [vmem:[%s295 + $0x58] sm:$0xf]
      %v491 = vld [vmem:[%s295 + $0x5c] sm:$0xf]
      %v492 = vld [vmem:[%s295 + $0x60] sm:$0xf]
      %v493 = vld [vmem:[%s295 + $0x64] sm:$0xf]
      %v494 = vld [vmem:[%s295 + $0x68] sm:$0xf]
      %v495 = vld [vmem:[%s295 + $0x6c] sm:$0xf]
      %v496 = vld [vmem:[%s295 + $0x70] sm:$0xf]
      %v497 = vld [vmem:[%s295 + $0x74] sm:$0xf]
      %v498 = vld [vmem:[%s295 + $0x78] sm:$0xf]
      %v499 = vld [vmem:[%s295 + $0x7c] sm:$0xf]
      %v500 = vld [vmem:[%s295 + $0x80] sm:$0xf]
      %v501 = vld [vmem:[%s295 + $0x84] sm:$0xf]
      %v502 = vld [vmem:[%s295 + $0x88] sm:$0xf]
      %v503 = vld [vmem:[%s295 + $0x8c] sm:$0xf]
      %v504 = vld [vmem:[%s295 + $0x90] sm:$0xf]
      %v505 = vld [vmem:[%s295 + $0x94] sm:$0xf]
      %v506 = vld [vmem:[%s295 + $0x98] sm:$0xf]
      %v507 = vld [vmem:[%s295 + $0x9c] sm:$0xf]
      %v508 = vld [vmem:[%s295 + $0xa0] sm:$0xf]
      %v509 = vld [vmem:[%s295 + $0xa4] sm:$0xf]
      %v510 = vld [vmem:[%s295 + $0xa8] sm:$0xf]
      %v511 = vld [vmem:[%s295 + $0xac] sm:$0xf]
      %v512 = vld [vmem:[%s295 + $0xb0] sm:$0xf]
      %v513 = vld [vmem:[%s295 + $0xb4] sm:$0xf]
      %v514 = vld [vmem:[%s295 + $0xb8] sm:$0xf]
      %v515 = vld [vmem:[%s295 + $0xbc] sm:$0xf]
      %v516 = vld [vmem:[%s295 + $0xc0] sm:$0xf]
      %v517 = vld [vmem:[%s295 + $0xc4] sm:$0xf]
      %v518 = vld [vmem:[%s295 + $0xc8] sm:$0xf]
      %v519 = vld [vmem:[%s295 + $0xcc] sm:$0xf]
      %v520 = vld [vmem:[%s295 + $0xd0] sm:$0xf]
      %v521 = vld [vmem:[%s295 + $0xd4] sm:$0xf]
      %v522 = vld [vmem:[%s295 + $0xd8] sm:$0xf]
      %v523 = vld [vmem:[%s295 + $0xdc] sm:$0xf]
      %v524 = vld [vmem:[%s295 + $0xe0] sm:$0xf]
      %v525 = vld [vmem:[%s295 + $0xe4] sm:$0xf]
      %v526 = vld [vmem:[%s295 + $0xe8] sm:$0xf]
      %v527 = vld [vmem:[%s295 + $0xec] sm:$0xf]
      %v528 = vld [vmem:[%s295 + $0xf0] sm:$0xf]
      %v529 = vld [vmem:[%s295 + $0xf4] sm:$0xf]
      %v530 = vld [vmem:[%s295 + $0xf8] sm:$0xf]
      %v531 = vld [vmem:[%s295 + $0xfc] sm:$0xf]
      %v676 = vunpack.c.l.b16 %v324
      %v677 = vunpack.c.h.b16 %v324
      %v678 = vunpack.c.l.b16 %v325
      %v679 = vunpack.c.h.b16 %v325
      %v680 = vunpack.c.l.b16 %v326
      %v681 = vunpack.c.h.b16 %v326
      %v682 = vunpack.c.l.b16 %v327
      %v683 = vunpack.c.h.b16 %v327
      %v684 = vunpack.c.l.b16 %v328
      %v685 = vunpack.c.h.b16 %v328
      %v686 = vunpack.c.l.b16 %v329
      %v687 = vunpack.c.h.b16 %v329
      %v688 = vunpack.c.l.b16 %v330
      %v689 = vunpack.c.h.b16 %v330
      %v690 = vunpack.c.l.b16 %v331
      %v691 = vunpack.c.h.b16 %v331
      %v692 = vunpack.c.l.b16 %v332
      %v693 = vunpack.c.h.b16 %v332
      %v694 = vunpack.c.l.b16 %v333
      %v695 = vunpack.c.h.b16 %v333
      %v696 = vunpack.c.l.b16 %v334
      %v697 = vunpack.c.h.b16 %v334
      %v698 = vunpack.c.l.b16 %v335
      %v699 = vunpack.c.h.b16 %v335
      %v700 = vunpack.c.l.b16 %v336
      %v701 = vunpack.c.h.b16 %v336
      %v702 = vunpack.c.l.b16 %v337
      %v703 = vunpack.c.h.b16 %v337
      %v704 = vunpack.c.l.b16 %v338
      %v705 = vunpack.c.h.b16 %v338
      %v706 = vunpack.c.l.b16 %v339
      %v707 = vunpack.c.h.b16 %v339
      %v708 = vunpack.c.l.b16 %v340
      %v709 = vunpack.c.h.b16 %v340
      %v710 = vunpack.c.l.b16 %v341
      %v711 = vunpack.c.h.b16 %v341
      %v712 = vunpack.c.l.b16 %v342
      %v713 = vunpack.c.h.b16 %v342
      %v714 = vunpack.c.l.b16 %v343
      %v715 = vunpack.c.h.b16 %v343
      %v716 = vunpack.c.l.b16 %v344
      %v717 = vunpack.c.h.b16 %v344
      %v718 = vunpack.c.l.b16 %v345
      %v719 = vunpack.c.h.b16 %v345
      %v720 = vunpack.c.l.b16 %v346
      %v721 = vunpack.c.h.b16 %v346
      %v722 = vunpack.c.l.b16 %v347
      %v723 = vunpack.c.h.b16 %v347
      %v724 = vunpack.c.l.b16 %v348
      %v725 = vunpack.c.h.b16 %v348
      %v726 = vunpack.c.l.b16 %v349
      %v727 = vunpack.c.h.b16 %v349
      %v728 = vunpack.c.l.b16 %v350
      %v729 = vunpack.c.h.b16 %v350
      %v730 = vunpack.c.l.b16 %v351
      %v731 = vunpack.c.h.b16 %v351
      %v732 = vunpack.c.l.b16 %v352
      %v733 = vunpack.c.h.b16 %v352
      %v734 = vunpack.c.l.b16 %v353
      %v735 = vunpack.c.h.b16 %v353
      %v736 = vunpack.c.l.b16 %v354
      %v737 = vunpack.c.h.b16 %v354
      %v738 = vunpack.c.l.b16 %v355
      %v739 = vunpack.c.h.b16 %v355
      %v740 = vunpack.c.l.b16 %v356
      %v741 = vunpack.c.h.b16 %v356
      %v742 = vunpack.c.l.b16 %v357
      %v743 = vunpack.c.h.b16 %v357
      %v744 = vunpack.c.l.b16 %v358
      %v745 = vunpack.c.h.b16 %v358
      %v746 = vunpack.c.l.b16 %v359
      %v747 = vunpack.c.h.b16 %v359
      %v748 = vunpack.c.l.b16 %v360
      %v749 = vunpack.c.h.b16 %v360
      %v750 = vunpack.c.l.b16 %v361
      %v751 = vunpack.c.h.b16 %v361
      %v752 = vunpack.c.l.b16 %v362
      %v753 = vunpack.c.h.b16 %v362
      %v754 = vunpack.c.l.b16 %v363
      %v755 = vunpack.c.h.b16 %v363
      %v756 = vunpack.c.l.b16 %v364
      %v757 = vunpack.c.h.b16 %v364
      %v758 = vunpack.c.l.b16 %v365
      %v759 = vunpack.c.h.b16 %v365
      %v760 = vunpack.c.l.b16 %v366
      %v761 = vunpack.c.h.b16 %v366
      %v762 = vunpack.c.l.b16 %v367
      %v763 = vunpack.c.h.b16 %v367
      %v764 = vunpack.c.l.b16 %v368
      %v765 = vunpack.c.h.b16 %v368
      %v766 = vunpack.c.l.b16 %v369
      %v767 = vunpack.c.h.b16 %v369
      %v768 = vunpack.c.l.b16 %v370
      %v769 = vunpack.c.h.b16 %v370
      %v770 = vunpack.c.l.b16 %v371
      %v771 = vunpack.c.h.b16 %v371
      %v772 = vunpack.c.l.b16 %v372
      %v773 = vunpack.c.h.b16 %v372
      %v774 = vunpack.c.l.b16 %v373
      %v775 = vunpack.c.h.b16 %v373
      %v776 = vunpack.c.l.b16 %v374
      %v777 = vunpack.c.h.b16 %v374
      %v778 = vunpack.c.l.b16 %v375
      %v779 = vunpack.c.h.b16 %v375
      %v780 = vunpack.c.l.b16 %v376
      %v781 = vunpack.c.h.b16 %v376
      %v782 = vunpack.c.l.b16 %v377
      %v783 = vunpack.c.h.b16 %v377
      %v784 = vunpack.c.l.b16 %v378
      %v785 = vunpack.c.h.b16 %v378
      %v786 = vunpack.c.l.b16 %v379
      %v787 = vunpack.c.h.b16 %v379
      %v788 = vunpack.c.l.b16 %v380
      %v789 = vunpack.c.h.b16 %v380
      %v790 = vunpack.c.l.b16 %v381
      %v791 = vunpack.c.h.b16 %v381
      %v792 = vunpack.c.l.b16 %v382
      %v793 = vunpack.c.h.b16 %v382
      %v794 = vunpack.c.l.b16 %v383
      %v795 = vunpack.c.h.b16 %v383
      %v796 = vunpack.c.l.b16 %v384
      %v797 = vunpack.c.h.b16 %v384
      %v798 = vunpack.c.l.b16 %v385
      %v799 = vunpack.c.h.b16 %v385
      %v800 = vunpack.c.l.b16 %v386
      %v801 = vunpack.c.h.b16 %v386
      %v802 = vunpack.c.l.b16 %v387
      %v803 = vunpack.c.h.b16 %v387
      %v804 = vunpack.c.l.b16 %v388
      %v805 = vunpack.c.h.b16 %v388
      %v806 = vunpack.c.l.b16 %v389
      %v807 = vunpack.c.h.b16 %v389
      %v808 = vunpack.c.l.b16 %v390
      %v809 = vunpack.c.h.b16 %v390
      %v810 = vunpack.c.l.b16 %v391
      %v811 = vunpack.c.h.b16 %v391
      %v812 = vunpack.c.l.b16 %v392
      %v813 = vunpack.c.h.b16 %v392
      %v814 = vunpack.c.l.b16 %v393
      %v815 = vunpack.c.h.b16 %v393
      %v816 = vunpack.c.l.b16 %v394
      %v817 = vunpack.c.h.b16 %v394
      %v818 = vunpack.c.l.b16 %v395
      %v819 = vunpack.c.h.b16 %v395
      %v820 = vunpack.c.l.b16 %v396
      %v821 = vunpack.c.h.b16 %v396
      %v822 = vunpack.c.l.b16 %v397
      %v823 = vunpack.c.h.b16 %v397
      %v824 = vunpack.c.l.b16 %v398
      %v825 = vunpack.c.h.b16 %v398
      %v826 = vunpack.c.l.b16 %v399
      %v827 = vunpack.c.h.b16 %v399
      %v828 = vunpack.c.l.b16 %v400
      %v829 = vunpack.c.h.b16 %v400
      %v830 = vunpack.c.l.b16 %v401
      %v831 = vunpack.c.h.b16 %v401
      %v832 = vunpack.c.l.b16 %v402
      %v833 = vunpack.c.h.b16 %v402
      %v834 = vunpack.c.l.b16 %v403
      %v835 = vunpack.c.h.b16 %v403
      %v836 = vunpack.c.l.b16 %v404
      %v837 = vunpack.c.h.b16 %v404
      %v838 = vunpack.c.l.b16 %v405
      %v839 = vunpack.c.h.b16 %v405
      %v840 = vunpack.c.l.b16 %v406
      %v841 = vunpack.c.h.b16 %v406
      %v842 = vunpack.c.l.b16 %v407
      %v843 = vunpack.c.h.b16 %v407
      %v844 = vunpack.c.l.b16 %v408
      %v845 = vunpack.c.h.b16 %v408
      %v846 = vunpack.c.l.b16 %v409
      %v847 = vunpack.c.h.b16 %v409
      %v848 = vunpack.c.l.b16 %v410
      %v849 = vunpack.c.h.b16 %v410
      %v850 = vunpack.c.l.b16 %v411
      %v851 = vunpack.c.h.b16 %v411
      %v852 = vunpack.c.l.b16 %v412
      %v853 = vunpack.c.h.b16 %v412
      %v854 = vunpack.c.l.b16 %v413
      %v855 = vunpack.c.h.b16 %v413
      %v856 = vunpack.c.l.b16 %v414
      %v857 = vunpack.c.h.b16 %v414
      %v858 = vunpack.c.l.b16 %v415
      %v859 = vunpack.c.h.b16 %v415
      %v860 = vunpack.c.l.b16 %v416
      %v861 = vunpack.c.h.b16 %v416
      %v862 = vunpack.c.l.b16 %v417
      %v863 = vunpack.c.h.b16 %v417
      %v864 = vunpack.c.l.b16 %v418
      %v865 = vunpack.c.h.b16 %v418
      %v866 = vunpack.c.l.b16 %v419
      %v867 = vunpack.c.h.b16 %v419
      %v868 = vunpack.c.l.b16 %v420
      %v869 = vunpack.c.h.b16 %v420
      %v870 = vunpack.c.l.b16 %v421
      %v871 = vunpack.c.h.b16 %v421
      %v872 = vunpack.c.l.b16 %v422
      %v873 = vunpack.c.h.b16 %v422
      %v874 = vunpack.c.l.b16 %v423
      %v875 = vunpack.c.h.b16 %v423
      %v876 = vunpack.c.l.b16 %v424
      %v877 = vunpack.c.h.b16 %v424
      %v878 = vunpack.c.l.b16 %v425
      %v879 = vunpack.c.h.b16 %v425
      %v880 = vunpack.c.l.b16 %v426
      %v881 = vunpack.c.h.b16 %v426
      %v882 = vunpack.c.l.b16 %v427
      %v883 = vunpack.c.h.b16 %v427
      %v884 = vunpack.c.l.b16 %v428
      %v885 = vunpack.c.h.b16 %v428
      %v886 = vunpack.c.l.b16 %v429
      %v887 = vunpack.c.h.b16 %v429
      %v888 = vunpack.c.l.b16 %v430
      %v889 = vunpack.c.h.b16 %v430
      %v890 = vunpack.c.l.b16 %v431
      %v891 = vunpack.c.h.b16 %v431
      %v892 = vunpack.c.l.b16 %v432
      %v893 = vunpack.c.h.b16 %v432
      %v894 = vunpack.c.l.b16 %v433
      %v895 = vunpack.c.h.b16 %v433
      %v896 = vunpack.c.l.b16 %v434
      %v897 = vunpack.c.h.b16 %v434
      %v898 = vunpack.c.l.b16 %v435
      %v899 = vunpack.c.h.b16 %v435
      %v900 = vunpack.c.l.b16 %v436
      %v901 = vunpack.c.h.b16 %v436
      %v902 = vunpack.c.l.b16 %v437
      %v903 = vunpack.c.h.b16 %v437
      %v904 = vunpack.c.l.b16 %v438
      %v905 = vunpack.c.h.b16 %v438
      %v906 = vunpack.c.l.b16 %v439
      %v907 = vunpack.c.h.b16 %v439
      %v908 = vunpack.c.l.b16 %v440
      %v909 = vunpack.c.h.b16 %v440
      %v910 = vunpack.c.l.b16 %v441
      %v911 = vunpack.c.h.b16 %v441
      %v912 = vunpack.c.l.b16 %v442
      %v913 = vunpack.c.h.b16 %v442
      %v914 = vunpack.c.l.b16 %v443
      %v915 = vunpack.c.h.b16 %v443
      %v916 = vunpack.c.l.b16 %v444
      %v917 = vunpack.c.h.b16 %v444
      %v918 = vunpack.c.l.b16 %v445
      %v919 = vunpack.c.h.b16 %v445
      %v920 = vunpack.c.l.b16 %v446
      %v921 = vunpack.c.h.b16 %v446
      %v922 = vunpack.c.l.b16 %v447
      %v923 = vunpack.c.h.b16 %v447
      %v924 = vunpack.c.l.b16 %v448
      %v925 = vunpack.c.h.b16 %v448
      %v926 = vunpack.c.l.b16 %v449
      %v927 = vunpack.c.h.b16 %v449
      %v928 = vunpack.c.l.b16 %v450
      %v929 = vunpack.c.h.b16 %v450
      %v930 = vunpack.c.l.b16 %v451
      %v931 = vunpack.c.h.b16 %v451
      %v932 = vunpack.c.l.b16 %v452
      %v933 = vunpack.c.h.b16 %v452
      %v934 = vunpack.c.l.b16 %v453
      %v935 = vunpack.c.h.b16 %v453
      %v936 = vunpack.c.l.b16 %v454
      %v937 = vunpack.c.h.b16 %v454
      %v938 = vunpack.c.l.b16 %v455
      %v939 = vunpack.c.h.b16 %v455
      %v940 = vunpack.c.l.b16 %v456
      %v941 = vunpack.c.h.b16 %v456
      %v942 = vunpack.c.l.b16 %v457
      %v943 = vunpack.c.h.b16 %v457
      %v944 = vunpack.c.l.b16 %v458
      %v945 = vunpack.c.h.b16 %v458
      %v946 = vunpack.c.l.b16 %v459
      %v947 = vunpack.c.h.b16 %v459
      %v948 = vunpack.c.l.b16 %v460
      %v949 = vunpack.c.h.b16 %v460
      %v950 = vunpack.c.l.b16 %v461
      %v951 = vunpack.c.h.b16 %v461
      %v952 = vunpack.c.l.b16 %v462
      %v953 = vunpack.c.h.b16 %v462
      %v954 = vunpack.c.l.b16 %v463
      %v955 = vunpack.c.h.b16 %v463
      %v956 = vunpack.c.l.b16 %v464
      %v957 = vunpack.c.h.b16 %v464
      %v958 = vunpack.c.l.b16 %v465
      %v959 = vunpack.c.h.b16 %v465
      %v960 = vunpack.c.l.b16 %v466
      %v961 = vunpack.c.h.b16 %v466
      %v962 = vunpack.c.l.b16 %v467
      %v963 = vunpack.c.h.b16 %v467
      %v964 = vpack.c.b16 %v680, %v676
      %v965 = vpack.c.b16 %v681, %v677
      %v966 = vpack.c.b16 %v682, %v678
      %v967 = vpack.c.b16 %v683, %v679
      %v968 = vpack.c.b16 %v688, %v684
      %v969 = vpack.c.b16 %v689, %v685
      %v970 = vpack.c.b16 %v690, %v686
      %v971 = vpack.c.b16 %v691, %v687
      %v972 = vpack.c.b16 %v696, %v692
      %v973 = vpack.c.b16 %v697, %v693
      %v974 = vpack.c.b16 %v698, %v694
      %v975 = vpack.c.b16 %v699, %v695
      %v976 = vpack.c.b16 %v704, %v700
      %v977 = vpack.c.b16 %v705, %v701
      %v978 = vpack.c.b16 %v706, %v702
      %v979 = vpack.c.b16 %v707, %v703
      %v980 = vpack.c.b16 %v712, %v708
      %v981 = vpack.c.b16 %v713, %v709
      %v982 = vpack.c.b16 %v714, %v710
      %v983 = vpack.c.b16 %v715, %v711
      %v984 = vpack.c.b16 %v720, %v716
      %v985 = vpack.c.b16 %v721, %v717
      %v986 = vpack.c.b16 %v722, %v718
      %v987 = vpack.c.b16 %v723, %v719
      %v988 = vpack.c.b16 %v728, %v724
      %v989 = vpack.c.b16 %v729, %v725
      %v990 = vpack.c.b16 %v730, %v726
      %v991 = vpack.c.b16 %v731, %v727
      %v992 = vpack.c.b16 %v736, %v732
      %v993 = vpack.c.b16 %v737, %v733
      %v994 = vpack.c.b16 %v738, %v734
      %v995 = vpack.c.b16 %v739, %v735
      %v996 = vpack.c.b16 %v744, %v740
      %v997 = vpack.c.b16 %v745, %v741
      %v998 = vpack.c.b16 %v746, %v742
      %v999 = vpack.c.b16 %v747, %v743
      %v1000 = vpack.c.b16 %v752, %v748
      %v1001 = vpack.c.b16 %v753, %v749
      %v1002 = vpack.c.b16 %v754, %v750
      %v1003 = vpack.c.b16 %v755, %v751
      %v1004 = vpack.c.b16 %v760, %v756
      %v1005 = vpack.c.b16 %v761, %v757
      %v1006 = vpack.c.b16 %v762, %v758
      %v1007 = vpack.c.b16 %v763, %v759
      %v1008 = vpack.c.b16 %v768, %v764
      %v1009 = vpack.c.b16 %v769, %v765
      %v1010 = vpack.c.b16 %v770, %v766
      %v1011 = vpack.c.b16 %v771, %v767
      %v1012 = vpack.c.b16 %v776, %v772
      %v1013 = vpack.c.b16 %v777, %v773
      %v1014 = vpack.c.b16 %v778, %v774
      %v1015 = vpack.c.b16 %v779, %v775
      %v1016 = vpack.c.b16 %v784, %v780
      %v1017 = vpack.c.b16 %v785, %v781
      %v1018 = vpack.c.b16 %v786, %v782
      %v1019 = vpack.c.b16 %v787, %v783
      %v1020 = vpack.c.b16 %v792, %v788
      %v1021 = vpack.c.b16 %v793, %v789
      %v1022 = vpack.c.b16 %v794, %v790
      %v1023 = vpack.c.b16 %v795, %v791
      %v1024 = vpack.c.b16 %v800, %v796
      %v1025 = vpack.c.b16 %v801, %v797
      %v1026 = vpack.c.b16 %v802, %v798
      %v1027 = vpack.c.b16 %v803, %v799
      %v1028 = vpack.c.b16 %v808, %v804
      %v1029 = vpack.c.b16 %v809, %v805
      %v1030 = vpack.c.b16 %v810, %v806
      %v1031 = vpack.c.b16 %v811, %v807
      %v1032 = vpack.c.b16 %v816, %v812
      %v1033 = vpack.c.b16 %v817, %v813
      %v1034 = vpack.c.b16 %v818, %v814
      %v1035 = vpack.c.b16 %v819, %v815
      %v1036 = vpack.c.b16 %v824, %v820
      %v1037 = vpack.c.b16 %v825, %v821
      %v1038 = vpack.c.b16 %v826, %v822
      %v1039 = vpack.c.b16 %v827, %v823
      %v1040 = vpack.c.b16 %v832, %v828
      %v1041 = vpack.c.b16 %v833, %v829
      %v1042 = vpack.c.b16 %v834, %v830
      %v1043 = vpack.c.b16 %v835, %v831
      %v1044 = vpack.c.b16 %v840, %v836
      %v1045 = vpack.c.b16 %v841, %v837
      %v1046 = vpack.c.b16 %v842, %v838
      %v1047 = vpack.c.b16 %v843, %v839
      %v1048 = vpack.c.b16 %v848, %v844
      %v1049 = vpack.c.b16 %v849, %v845
      %v1050 = vpack.c.b16 %v850, %v846
      %v1051 = vpack.c.b16 %v851, %v847
      %v1052 = vpack.c.b16 %v856, %v852
      %v1053 = vpack.c.b16 %v857, %v853
      %v1054 = vpack.c.b16 %v858, %v854
      %v1055 = vpack.c.b16 %v859, %v855
      %v1056 = vpack.c.b16 %v864, %v860
      %v1057 = vpack.c.b16 %v865, %v861
      %v1058 = vpack.c.b16 %v866, %v862
      %v1059 = vpack.c.b16 %v867, %v863
      %v1060 = vpack.c.b16 %v872, %v868
      %v1061 = vpack.c.b16 %v873, %v869
      %v1062 = vpack.c.b16 %v874, %v870
      %v1063 = vpack.c.b16 %v875, %v871
      %v1064 = vpack.c.b16 %v880, %v876
      %v1065 = vpack.c.b16 %v881, %v877
      %v1066 = vpack.c.b16 %v882, %v878
      %v1067 = vpack.c.b16 %v883, %v879
      %v1068 = vpack.c.b16 %v888, %v884
      %v1069 = vpack.c.b16 %v889, %v885
      %v1070 = vpack.c.b16 %v890, %v886
      %v1071 = vpack.c.b16 %v891, %v887
      %v1072 = vpack.c.b16 %v896, %v892
      %v1073 = vpack.c.b16 %v897, %v893
      %v1074 = vpack.c.b16 %v898, %v894
      %v1075 = vpack.c.b16 %v899, %v895
      %v1076 = vpack.c.b16 %v904, %v900
      %v1077 = vpack.c.b16 %v905, %v901
      %v1078 = vpack.c.b16 %v906, %v902
      %v1079 = vpack.c.b16 %v907, %v903
      %v1080 = vpack.c.b16 %v912, %v908
      %v1081 = vpack.c.b16 %v913, %v909
      %v1082 = vpack.c.b16 %v914, %v910
      %v1083 = vpack.c.b16 %v915, %v911
      %v1084 = vpack.c.b16 %v920, %v916
      %v1085 = vpack.c.b16 %v921, %v917
      %v1086 = vpack.c.b16 %v922, %v918
      %v1087 = vpack.c.b16 %v923, %v919
      %v1088 = vpack.c.b16 %v928, %v924
      %v1089 = vpack.c.b16 %v929, %v925
      %v1090 = vpack.c.b16 %v930, %v926
      %v1091 = vpack.c.b16 %v931, %v927
      %v1092 = vpack.c.b16 %v936, %v932
      %v1093 = vpack.c.b16 %v937, %v933
      %v1094 = vpack.c.b16 %v938, %v934
      %v1095 = vpack.c.b16 %v939, %v935
      %v1096 = vpack.c.b16 %v944, %v940
      %v1097 = vpack.c.b16 %v945, %v941
      %v1098 = vpack.c.b16 %v946, %v942
      %v1099 = vpack.c.b16 %v947, %v943
      %v1100 = vpack.c.b16 %v952, %v948
      %v1101 = vpack.c.b16 %v953, %v949
      %v1102 = vpack.c.b16 %v954, %v950
      %v1103 = vpack.c.b16 %v955, %v951
      %v1104 = vpack.c.b16 %v960, %v956
      %v1105 = vpack.c.b16 %v961, %v957
      %v1106 = vpack.c.b16 %v962, %v958
      %v1107 = vpack.c.b16 %v963, %v959
      %v1316 = vunpack.c.l.b16 %v468
      %v1317 = vunpack.c.l.b16 %v469
      %v1318 = vunpack.c.l.b16 %v470
      %v1319 = vunpack.c.l.b16 %v471
      %v1320 = vunpack.c.l.b16 %v472
      %v1321 = vunpack.c.l.b16 %v473
      %v1322 = vunpack.c.l.b16 %v474
      %v1323 = vunpack.c.l.b16 %v475
      %v1324 = vunpack.c.l.b16 %v476
      %v1325 = vunpack.c.l.b16 %v477
      %v1326 = vunpack.c.l.b16 %v478
      %v1327 = vunpack.c.l.b16 %v479
      %v1328 = vunpack.c.l.b16 %v480
      %v1329 = vunpack.c.l.b16 %v481
      %v1330 = vunpack.c.l.b16 %v482
      %v1331 = vunpack.c.l.b16 %v483
      %v1332 = vunpack.c.l.b16 %v484
      %v1333 = vunpack.c.l.b16 %v485
      %v1334 = vunpack.c.l.b16 %v486
      %v1335 = vunpack.c.l.b16 %v487
      %v1336 = vunpack.c.l.b16 %v488
      %v1337 = vunpack.c.l.b16 %v489
      %v1338 = vunpack.c.l.b16 %v490
      %v1339 = vunpack.c.l.b16 %v491
      %v1340 = vunpack.c.l.b16 %v492
      %v1341 = vunpack.c.l.b16 %v493
      %v1342 = vunpack.c.l.b16 %v494
      %v1343 = vunpack.c.l.b16 %v495
      %v1344 = vunpack.c.l.b16 %v496
      %v1345 = vunpack.c.l.b16 %v497
      %v1346 = vunpack.c.l.b16 %v498
      %v1347 = vunpack.c.l.b16 %v499
      %v1348 = vunpack.c.l.b16 %v500
      %v1349 = vunpack.c.l.b16 %v501
      %v1350 = vunpack.c.l.b16 %v502
      %v1351 = vunpack.c.l.b16 %v503
      %v1352 = vunpack.c.l.b16 %v504
      %v1353 = vunpack.c.l.b16 %v505
      %v1354 = vunpack.c.l.b16 %v506
      %v1355 = vunpack.c.l.b16 %v507
      %v1356 = vunpack.c.l.b16 %v508
      %v1357 = vunpack.c.l.b16 %v509
      %v1358 = vunpack.c.l.b16 %v510
      %v1359 = vunpack.c.l.b16 %v511
      %v1360 = vunpack.c.l.b16 %v512
      %v1361 = vunpack.c.l.b16 %v513
      %v1362 = vunpack.c.l.b16 %v514
      %v1363 = vunpack.c.l.b16 %v515
      %v1364 = vunpack.c.l.b16 %v516
      %v1365 = vunpack.c.l.b16 %v517
      %v1366 = vunpack.c.l.b16 %v518
      %v1367 = vunpack.c.l.b16 %v519
      %v1368 = vunpack.c.l.b16 %v520
      %v1369 = vunpack.c.l.b16 %v521
      %v1370 = vunpack.c.l.b16 %v522
      %v1371 = vunpack.c.l.b16 %v523
      %v1372 = vunpack.c.l.b16 %v524
      %v1373 = vunpack.c.l.b16 %v525
      %v1374 = vunpack.c.l.b16 %v526
      %v1375 = vunpack.c.l.b16 %v527
      %v1376 = vunpack.c.l.b16 %v528
      %v1377 = vunpack.c.l.b16 %v529
      %v1378 = vunpack.c.l.b16 %v530
      %v1379 = vunpack.c.l.b16 %v531
      %v1380 = vpack.c.b16 %v1317, %v1316
      %v1381 = vpack.c.b16 %v1319, %v1318
      %v1382 = vpack.c.b16 %v1321, %v1320
      %v1383 = vpack.c.b16 %v1323, %v1322
      %v1384 = vpack.c.b16 %v1325, %v1324
      %v1385 = vpack.c.b16 %v1327, %v1326
      %v1386 = vpack.c.b16 %v1329, %v1328
      %v1387 = vpack.c.b16 %v1331, %v1330
      %v1388 = vpack.c.b16 %v1333, %v1332
      %v1389 = vpack.c.b16 %v1335, %v1334
      %v1390 = vpack.c.b16 %v1337, %v1336
      %v1391 = vpack.c.b16 %v1339, %v1338
      %v1392 = vpack.c.b16 %v1341, %v1340
      %v1393 = vpack.c.b16 %v1343, %v1342
      %v1394 = vpack.c.b16 %v1345, %v1344
      %v1395 = vpack.c.b16 %v1347, %v1346
      %v1396 = vpack.c.b16 %v1349, %v1348
      %v1397 = vpack.c.b16 %v1351, %v1350
      %v1398 = vpack.c.b16 %v1353, %v1352
      %v1399 = vpack.c.b16 %v1355, %v1354
      %v1400 = vpack.c.b16 %v1357, %v1356
      %v1401 = vpack.c.b16 %v1359, %v1358
      %v1402 = vpack.c.b16 %v1361, %v1360
      %v1403 = vpack.c.b16 %v1363, %v1362
      %v1404 = vpack.c.b16 %v1365, %v1364
      %v1405 = vpack.c.b16 %v1367, %v1366
      %v1406 = vpack.c.b16 %v1369, %v1368
      %v1407 = vpack.c.b16 %v1371, %v1370
      %v1408 = vpack.c.b16 %v1373, %v1372
      %v1409 = vpack.c.b16 %v1375, %v1374
      %v1410 = vpack.c.b16 %v1377, %v1376
      %v1411 = vpack.c.b16 %v1379, %v1378
      %1444 = vmatprep.subr.bf16.mxu0 0
      %1445 = vmatpush1.bf16.msra.mxu0 %v1380
      %1446 = vmatprep.subr.bf16.mxu0 0
      %1447 = vmatpush1.bf16.msra.mxu0 %v1381
      %1448 = vmatprep.subr.bf16.mxu0 0
      %1449 = vmatpush1.bf16.msra.mxu0 %v1382
      %1450 = vmatprep.subr.bf16.mxu0 0
      %1451 = vmatpush1.bf16.msra.mxu0 %v1383
      %1452 = vmatprep.subr.bf16.mxu0 0
      %1453 = vmatpush1.bf16.msra.mxu0 %v1384
      %1454 = vmatprep.subr.bf16.mxu0 0
      %1455 = vmatpush1.bf16.msra.mxu0 %v1385
      %1456 = vmatprep.subr.bf16.mxu0 0
      %1457 = vmatpush1.bf16.msra.mxu0 %v1386
      %1458 = vmatprep.subr.bf16.mxu0 0
      %1459 = vmatpush1.bf16.msra.mxu0 %v1387
      %1460 = vmatprep.subr.bf16.mxu0 0
      %1461 = vmatpush1.bf16.msra.mxu0 %v1388
      %1462 = vmatprep.subr.bf16.mxu0 0
      %1463 = vmatpush1.bf16.msra.mxu0 %v1389
      %1464 = vmatprep.subr.bf16.mxu0 0
      %1465 = vmatpush1.bf16.msra.mxu0 %v1390
      %1466 = vmatprep.subr.bf16.mxu0 0
      %1467 = vmatpush1.bf16.msra.mxu0 %v1391
      %1468 = vmatprep.subr.bf16.mxu0 0
      %1469 = vmatpush1.bf16.msra.mxu0 %v1392
      %1470 = vmatprep.subr.bf16.mxu0 0
      %1471 = vmatpush1.bf16.msra.mxu0 %v1393
      %1472 = vmatprep.subr.bf16.mxu0 0
      %1473 = vmatpush1.bf16.msra.mxu0 %v1394
      %1474 = vmatprep.subr.bf16.mxu0 0
      %1475 = vmatpush1.bf16.msra.mxu0 %v1395
      %1476 = vmatprep.mubr.bf16.mxu0 %v965
      %1477 = vmatmul.mubr.bf16.gmra.mrb[0].mxu0 %v964
      %v1478 = vpop.f32.mrb[0].mxu0
      %v1479 = vadd.f32 0.0, %v1478
      %v1480 = vpop.f32.mrb[0].mxu0
      %v1481 = vpop.f32.mrb[0].mxu0
      %v1482 = vadd.f32 0.0, %v1481
      %v1483 = vpop.f32.mrb[0].mxu0
      %1484 = vmatprep.mubr.bf16.mxu0 %v969
      %1485 = vmatmul.mubr.bf16.gmra.mrb[0].mxu0 %v968
      %v1486 = vpop.f32.mrb[0].mxu0
      %v1487 = vadd.f32 0.0, %v1486
      %v1488 = vpop.f32.mrb[0].mxu0
      %v1489 = vpop.f32.mrb[0].mxu0
      %v1490 = vadd.f32 0.0, %v1489
      %v1491 = vpop.f32.mrb[0].mxu0
      %1492 = vmatprep.mubr.bf16.mxu0 %v973
      %1493 = vmatmul.mubr.bf16.gmra.mrb[0].mxu0 %v972
      %v1494 = vpop.f32.mrb[0].mxu0
      %v1495 = vadd.f32 0.0, %v1494
      %v1496 = vpop.f32.mrb[0].mxu0
      %v1497 = vpop.f32.mrb[0].mxu0
      %v1498 = vadd.f32 0.0, %v1497
      %v1499 = vpop.f32.mrb[0].mxu0
      %1500 = vmatprep.mubr.bf16.mxu0 %v977
      %1501 = vmatmul.mubr.bf16.gmra.mrb[0].mxu0 %v976
      %v1502 = vpop.f32.mrb[0].mxu0
      %v1503 = vadd.f32 0.0, %v1502
      %v1504 = vpop.f32.mrb[0].mxu0
      %v1505 = vpop.f32.mrb[0].mxu0
      %v1506 = vadd.f32 0.0, %v1505
      %v1507 = vpop.f32.mrb[0].mxu0
      %1508 = vmatprep.mubr.bf16.mxu0 %v981
      %1509 = vmatmul.mubr.bf16.gmra.mrb[0].mxu0 %v980
      %v1510 = vpop.f32.mrb[0].mxu0
      %v1511 = vadd.f32 0.0, %v1510
      %v1512 = vpop.f32.mrb[0].mxu0
      %v1513 = vpop.f32.mrb[0].mxu0
      %v1514 = vadd.f32 0.0, %v1513
      %v1515 = vpop.f32.mrb[0].mxu0
      %1516 = vmatprep.mubr.bf16.mxu0 %v985
      %1517 = vmatmul.mubr.bf16.gmra.mrb[0].mxu0 %v984
      %v1518 = vpop.f32.mrb[0].mxu0
      %v1519 = vadd.f32 0.0, %v1518
      %v1520 = vpop.f32.mrb[0].mxu0
      %v1521 = vpop.f32.mrb[0].mxu0
      %v1522 = vadd.f32 0.0, %v1521
      %v1523 = vpop.f32.mrb[0].mxu0
      %1524 = vmatprep.mubr.bf16.mxu0 %v989
      %1525 = vmatmul.mubr.bf16.gmra.mrb[0].mxu0 %v988
      %v1526 = vpop.f32.mrb[0].mxu0
      %v1527 = vadd.f32 0.0, %v1526
      %v1528 = vpop.f32.mrb[0].mxu0
      %v1529 = vpop.f32.mrb[0].mxu0
      %v1530 = vadd.f32 0.0, %v1529
      %v1531 = vpop.f32.mrb[0].mxu0
      %1532 = vmatprep.mubr.bf16.mxu0 %v993
      %1533 = vmatmul.mubr.bf16.gmra.mrb[0].mxu0 %v992
      %v1534 = vpop.f32.mrb[0].mxu0
      %v1535 = vadd.f32 0.0, %v1534
      %v1536 = vpop.f32.mrb[0].mxu0
      %v1537 = vpop.f32.mrb[0].mxu0
      %v1538 = vadd.f32 0.0, %v1537
      %v1539 = vpop.f32.mrb[0].mxu0
      %1540 = vmatprep.mubr.bf16.mxu0 %v997
      %1541 = vmatmul.mubr.bf16.gmra.mrb[0].mxu0 %v996
      %v1542 = vpop.f32.mrb[0].mxu0
      %v1543 = vadd.f32 0.0, %v1542
      %v1544 = vpop.f32.mrb[0].mxu0
      %v1545 = vpop.f32.mrb[0].mxu0
      %v1546 = vadd.f32 0.0, %v1545
      %v1547 = vpop.f32.mrb[0].mxu0
      %1548 = vmatprep.mubr.bf16.mxu0 %v1001
      %1549 = vmatmul.mubr.bf16.gmra.mrb[0].mxu0 %v1000
      %v1550 = vpop.f32.mrb[0].mxu0
      %v1551 = vadd.f32 0.0, %v1550
      %v1552 = vpop.f32.mrb[0].mxu0
      %v1553 = vpop.f32.mrb[0].mxu0
      %v1554 = vadd.f32 0.0, %v1553
      %v1555 = vpop.f32.mrb[0].mxu0
      %1556 = vmatprep.mubr.bf16.mxu0 %v1005
      %1557 = vmatmul.mubr.bf16.gmra.mrb[0].mxu0 %v1004
      %v1558 = vpop.f32.mrb[0].mxu0
      %v1559 = vadd.f32 0.0, %v1558
      %v1560 = vpop.f32.mrb[0].mxu0
      %v1561 = vpop.f32.mrb[0].mxu0
      %v1562 = vadd.f32 0.0, %v1561
      %v1563 = vpop.f32.mrb[0].mxu0
      %1564 = vmatprep.mubr.bf16.mxu0 %v1009
      %1565 = vmatmul.mubr.bf16.gmra.mrb[0].mxu0 %v1008
      %v1566 = vpop.f32.mrb[0].mxu0
      %v1567 = vadd.f32 0.0, %v1566
      %v1568 = vpop.f32.mrb[0].mxu0
      %v1569 = vpop.f32.mrb[0].mxu0
      %v1570 = vadd.f32 0.0, %v1569
      %v1571 = vpop.f32.mrb[0].mxu0
      %1572 = vmatprep.mubr.bf16.mxu0 %v1013
      %1573 = vmatmul.mubr.bf16.gmra.mrb[0].mxu0 %v1012
      %v1574 = vpop.f32.mrb[0].mxu0
      %v1575 = vadd.f32 0.0, %v1574
      %v1576 = vpop.f32.mrb[0].mxu0
      %v1577 = vpop.f32.mrb[0].mxu0
      %v1578 = vadd.f32 0.0, %v1577
      %v1579 = vpop.f32.mrb[0].mxu0
      %1580 = vmatprep.mubr.bf16.mxu0 %v1017
      %1581 = vmatmul.mubr.bf16.gmra.mrb[0].mxu0 %v1016
      %v1582 = vpop.f32.mrb[0].mxu0
      %v1583 = vadd.f32 0.0, %v1582
      %v1584 = vpop.f32.mrb[0].mxu0
      %v1585 = vpop.f32.mrb[0].mxu0
      %v1586 = vadd.f32 0.0, %v1585
      %v1587 = vpop.f32.mrb[0].mxu0
      %1588 = vmatprep.mubr.bf16.mxu0 %v1021
      %1589 = vmatmul.mubr.bf16.gmra.mrb[0].mxu0 %v1020
      %v1590 = vpop.f32.mrb[0].mxu0
      %v1591 = vadd.f32 0.0, %v1590
      %v1592 = vpop.f32.mrb[0].mxu0
      %v1593 = vpop.f32.mrb[0].mxu0
      %v1594 = vadd.f32 0.0, %v1593
      %v1595 = vpop.f32.mrb[0].mxu0
      %1596 = vmatprep.mubr.bf16.mxu0 %v1025
      %1597 = vmatmul.mubr.bf16.gmra.mrb[0].mxu0 %v1024
      %v1598 = vpop.f32.mrb[0].mxu0
      %v1599 = vadd.f32 0.0, %v1598
      %v1600 = vpop.f32.mrb[0].mxu0
      %v1601 = vpop.f32.mrb[0].mxu0
      %v1602 = vadd.f32 0.0, %v1601
      %v1603 = vpop.f32.mrb[0].mxu0
      %1604 = vmatprep.mubr.bf16.mxu0 %v1029
      %1605 = vmatmul.mubr.bf16.gmra.mrb[0].mxu0 %v1028
      %v1606 = vpop.f32.mrb[0].mxu0
      %v1607 = vadd.f32 0.0, %v1606
      %v1608 = vpop.f32.mrb[0].mxu0
      %v1609 = vpop.f32.mrb[0].mxu0
      %v1610 = vadd.f32 0.0, %v1609
      %v1611 = vpop.f32.mrb[0].mxu0
      %1612 = vmatprep.mubr.bf16.mxu0 %v1033
      %1613 = vmatmul.mubr.bf16.gmra.mrb[0].mxu0 %v1032
      %v1614 = vpop.f32.mrb[0].mxu0
      %v1615 = vadd.f32 0.0, %v1614
      %v1616 = vpop.f32.mrb[0].mxu0
      %v1617 = vpop.f32.mrb[0].mxu0
      %v1618 = vadd.f32 0.0, %v1617
      %v1619 = vpop.f32.mrb[0].mxu0
      %1620 = vmatprep.mubr.bf16.mxu0 %v1037
      %1621 = vmatmul.mubr.bf16.gmra.mrb[0].mxu0 %v1036
      %v1622 = vpop.f32.mrb[0].mxu0
      %v1623 = vadd.f32 0.0, %v1622
      %v1624 = vpop.f32.mrb[0].mxu0
      %v1625 = vpop.f32.mrb[0].mxu0
      %v1626 = vadd.f32 0.0, %v1625
      %v1627 = vpop.f32.mrb[0].mxu0
      %1628 = vmatprep.mubr.bf16.mxu0 %v1041
      %1629 = vmatmul.mubr.bf16.gmra.mrb[0].mxu0 %v1040
      %v1630 = vpop.f32.mrb[0].mxu0
      %v1631 = vadd.f32 0.0, %v1630
      %v1632 = vpop.f32.mrb[0].mxu0
      %v1633 = vpop.f32.mrb[0].mxu0
      %v1634 = vadd.f32 0.0, %v1633
      %v1635 = vpop.f32.mrb[0].mxu0
      %1636 = vmatprep.mubr.bf16.mxu0 %v1045
      %1637 = vmatmul.mubr.bf16.gmra.mrb[0].mxu0 %v1044
      %v1638 = vpop.f32.mrb[0].mxu0
      %v1639 = vadd.f32 0.0, %v1638
      %v1640 = vpop.f32.mrb[0].mxu0
      %v1641 = vpop.f32.mrb[0].mxu0
      %v1642 = vadd.f32 0.0, %v1641
      %v1643 = vpop.f32.mrb[0].mxu0
      %1644 = vmatprep.mubr.bf16.mxu0 %v1049
      %1645 = vmatmul.mubr.bf16.gmra.mrb[0].mxu0 %v1048
      %v1646 = vpop.f32.mrb[0].mxu0
      %v1647 = vadd.f32 0.0, %v1646
      %v1648 = vpop.f32.mrb[0].mxu0
      %v1649 = vpop.f32.mrb[0].mxu0
      %v1650 = vadd.f32 0.0, %v1649
      %v1651 = vpop.f32.mrb[0].mxu0
      %1652 = vmatprep.mubr.bf16.mxu0 %v1053
      %1653 = vmatmul.mubr.bf16.gmra.mrb[0].mxu0 %v1052
      %v1654 = vpop.f32.mrb[0].mxu0
      %v1655 = vadd.f32 0.0, %v1654
      %v1656 = vpop.f32.mrb[0].mxu0
      %v1657 = vpop.f32.mrb[0].mxu0
      %v1658 = vadd.f32 0.0, %v1657
      %v1659 = vpop.f32.mrb[0].mxu0
      %1660 = vmatprep.mubr.bf16.mxu0 %v1057
      %1661 = vmatmul.mubr.bf16.gmra.mrb[0].mxu0 %v1056
      %v1662 = vpop.f32.mrb[0].mxu0
      %v1663 = vadd.f32 0.0, %v1662
      %v1664 = vpop.f32.mrb[0].mxu0
      %v1665 = vpop.f32.mrb[0].mxu0
      %v1666 = vadd.f32 0.0, %v1665
      %v1667 = vpop.f32.mrb[0].mxu0
      %1668 = vmatprep.mubr.bf16.mxu0 %v1061
      %1669 = vmatmul.mubr.bf16.gmra.mrb[0].mxu0 %v1060
      %v1670 = vpop.f32.mrb[0].mxu0
      %v1671 = vadd.f32 0.0, %v1670
      %v1672 = vpop.f32.mrb[0].mxu0
      %v1673 = vpop.f32.mrb[0].mxu0
      %v1674 = vadd.f32 0.0, %v1673
      %v1675 = vpop.f32.mrb[0].mxu0
      %1676 = vmatprep.mubr.bf16.mxu0 %v1065
      %1677 = vmatmul.mubr.bf16.gmra.mrb[0].mxu0 %v1064
      %v1678 = vpop.f32.mrb[0].mxu0
      %v1679 = vadd.f32 0.0, %v1678
      %v1680 = vpop.f32.mrb[0].mxu0
      %v1681 = vpop.f32.mrb[0].mxu0
      %v1682 = vadd.f32 0.0, %v1681
      %v1683 = vpop.f32.mrb[0].mxu0
      %1684 = vmatprep.mubr.bf16.mxu0 %v1069
      %1685 = vmatmul.mubr.bf16.gmra.mrb[0].mxu0 %v1068
      %v1686 = vpop.f32.mrb[0].mxu0
      %v1687 = vadd.f32 0.0, %v1686
      %v1688 = vpop.f32.mrb[0].mxu0
      %v1689 = vpop.f32.mrb[0].mxu0
      %v1690 = vadd.f32 0.0, %v1689
      %v1691 = vpop.f32.mrb[0].mxu0
      %1692 = vmatprep.mubr.bf16.mxu0 %v1073
      %1693 = vmatmul.mubr.bf16.gmra.mrb[0].mxu0 %v1072
      %v1694 = vpop.f32.mrb[0].mxu0
      %v1695 = vadd.f32 0.0, %v1694
      %v1696 = vpop.f32.mrb[0].mxu0
      %v1697 = vpop.f32.mrb[0].mxu0
      %v1698 = vadd.f32 0.0, %v1697
      %v1699 = vpop.f32.mrb[0].mxu0
      %1700 = vmatprep.mubr.bf16.mxu0 %v1077
      %1701 = vmatmul.mubr.bf16.gmra.mrb[0].mxu0 %v1076
      %v1702 = vpop.f32.mrb[0].mxu0
      %v1703 = vadd.f32 0.0, %v1702
      %v1704 = vpop.f32.mrb[0].mxu0
      %v1705 = vpop.f32.mrb[0].mxu0
      %v1706 = vadd.f32 0.0, %v1705
      %v1707 = vpop.f32.mrb[0].mxu0
      %1708 = vmatprep.mubr.bf16.mxu0 %v1081
      %1709 = vmatmul.mubr.bf16.gmra.mrb[0].mxu0 %v1080
      %v1710 = vpop.f32.mrb[0].mxu0
      %v1711 = vadd.f32 0.0, %v1710
      %v1712 = vpop.f32.mrb[0].mxu0
      %v1713 = vpop.f32.mrb[0].mxu0
      %v1714 = vadd.f32 0.0, %v1713
      %v1715 = vpop.f32.mrb[0].mxu0
      %1716 = vmatprep.mubr.bf16.mxu0 %v1085
      %1717 = vmatmul.mubr.bf16.gmra.mrb[0].mxu0 %v1084
      %v1718 = vpop.f32.mrb[0].mxu0
      %v1719 = vadd.f32 0.0, %v1718
      %v1720 = vpop.f32.mrb[0].mxu0
      %v1721 = vpop.f32.mrb[0].mxu0
      %v1722 = vadd.f32 0.0, %v1721
      %v1723 = vpop.f32.mrb[0].mxu0
      %1724 = vmatprep.mubr.bf16.mxu0 %v1089
      %1725 = vmatmul.mubr.bf16.gmra.mrb[0].mxu0 %v1088
      %v1726 = vpop.f32.mrb[0].mxu0
      %v1727 = vadd.f32 0.0, %v1726
      %v1728 = vpop.f32.mrb[0].mxu0
      %v1729 = vpop.f32.mrb[0].mxu0
      %v1730 = vadd.f32 0.0, %v1729
      %v1731 = vpop.f32.mrb[0].mxu0
      %1732 = vmatprep.mubr.bf16.mxu0 %v1093
      %1733 = vmatmul.mubr.bf16.gmra.mrb[0].mxu0 %v1092
      %v1734 = vpop.f32.mrb[0].mxu0
      %v1735 = vadd.f32 0.0, %v1734
      %v1736 = vpop.f32.mrb[0].mxu0
      %v1737 = vpop.f32.mrb[0].mxu0
      %v1738 = vadd.f32 0.0, %v1737
      %v1739 = vpop.f32.mrb[0].mxu0
      %1740 = vmatprep.mubr.bf16.mxu0 %v1097
      %1741 = vmatmul.mubr.bf16.gmra.mrb[0].mxu0 %v1096
      %v1742 = vpop.f32.mrb[0].mxu0
      %v1743 = vadd.f32 0.0, %v1742
      %v1744 = vpop.f32.mrb[0].mxu0
      %v1745 = vpop.f32.mrb[0].mxu0
      %v1746 = vadd.f32 0.0, %v1745
      %v1747 = vpop.f32.mrb[0].mxu0
      %1748 = vmatprep.mubr.bf16.mxu0 %v1101
      %1749 = vmatmul.mubr.bf16.gmra.mrb[0].mxu0 %v1100
      %v1750 = vpop.f32.mrb[0].mxu0
      %v1751 = vadd.f32 0.0, %v1750
      %v1752 = vpop.f32.mrb[0].mxu0
      %v1753 = vpop.f32.mrb[0].mxu0
      %v1754 = vadd.f32 0.0, %v1753
      %v1755 = vpop.f32.mrb[0].mxu0
      %1756 = vmatprep.mubr.bf16.mxu0 %v1105
      %1757 = vmatmul.mubr.bf16.gmra.mrb[0].mxu0 %v1104
      %v1758 = vpop.f32.mrb[0].mxu0
      %v1759 = vadd.f32 0.0, %v1758
      %v1760 = vpop.f32.mrb[0].mxu0
      %v1761 = vpop.f32.mrb[0].mxu0
      %v1762 = vadd.f32 0.0, %v1761
      %v1763 = vpop.f32.mrb[0].mxu0
      %1764 = vdwg.mxu0
      %1765 = vmatprep.subr.bf16.mxu0 0
      %1766 = vmatpush1.bf16.msra.mxu0 %v1396
      %1767 = vmatprep.subr.bf16.mxu0 0
      %1768 = vmatpush1.bf16.msra.mxu0 %v1397
      %1769 = vmatprep.subr.bf16.mxu0 0
      %1770 = vmatpush1.bf16.msra.mxu0 %v1398
      %1771 = vmatprep.subr.bf16.mxu0 0
      %1772 = vmatpush1.bf16.msra.mxu0 %v1399
      %1773 = vmatprep.subr.bf16.mxu0 0
      %1774 = vmatpush1.bf16.msra.mxu0 %v1400
      %1775 = vmatprep.subr.bf16.mxu0 0
      %1776 = vmatpush1.bf16.msra.mxu0 %v1401
      %1777 = vmatprep.subr.bf16.mxu0 0
      %1778 = vmatpush1.bf16.msra.mxu0 %v1402
      %1779 = vmatprep.subr.bf16.mxu0 0
      %1780 = vmatpush1.bf16.msra.mxu0 %v1403
      %1781 = vmatprep.subr.bf16.mxu0 0
      %1782 = vmatpush1.bf16.msra.mxu0 %v1404
      %1783 = vmatprep.subr.bf16.mxu0 0
      %1784 = vmatpush1.bf16.msra.mxu0 %v1405
      %1785 = vmatprep.subr.bf16.mxu0 0
      %1786 = vmatpush1.bf16.msra.mxu0 %v1406
      %1787 = vmatprep.subr.bf16.mxu0 0
      %1788 = vmatpush1.bf16.msra.mxu0 %v1407
      %1789 = vmatprep.subr.bf16.mxu0 0
      %1790 = vmatpush1.bf16.msra.mxu0 %v1408
      %1791 = vmatprep.subr.bf16.mxu0 0
      %1792 = vmatpush1.bf16.msra.mxu0 %v1409
      %1793 = vmatprep.subr.bf16.mxu0 0
      %1794 = vmatpush1.bf16.msra.mxu0 %v1410
      %1795 = vmatprep.subr.bf16.mxu0 0
      %1796 = vmatpush1.bf16.msra.mxu0 %v1411
      %1797 = vmatprep.mubr.bf16.mxu0 %v967
      %1798 = vmatmul.mubr.bf16.gmra.mrb[0].mxu0 %v966
      %v1799 = vpop.f32.mrb[0].mxu0
      %v1800 = vadd.f32 %v1479, %v1799
      %v1801 = vpop.f32.mrb[0].mxu0
      %v1802 = vpop.f32.mrb[0].mxu0
      %v1803 = vadd.f32 %v1482, %v1802
      %v1804 = vpop.f32.mrb[0].mxu0
      %1805 = vmatprep.mubr.bf16.mxu0 %v971
      %1806 = vmatmul.mubr.bf16.gmra.mrb[0].mxu0 %v970
      %v1807 = vpop.f32.mrb[0].mxu0
      %v1808 = vadd.f32 %v1487, %v1807
      %v1809 = vpop.f32.mrb[0].mxu0
      %v1810 = vpop.f32.mrb[0].mxu0
      %v1811 = vadd.f32 %v1490, %v1810
      %v1812 = vpop.f32.mrb[0].mxu0
      %1813 = vmatprep.mubr.bf16.mxu0 %v975
      %1814 = vmatmul.mubr.bf16.gmra.mrb[0].mxu0 %v974
      %v1815 = vpop.f32.mrb[0].mxu0
      %v1816 = vadd.f32 %v1495, %v1815
      %v1817 = vpop.f32.mrb[0].mxu0
      %v1818 = vpop.f32.mrb[0].mxu0
      %v1819 = vadd.f32 %v1498, %v1818
      %v1820 = vpop.f32.mrb[0].mxu0
      %1821 = vmatprep.mubr.bf16.mxu0 %v979
      %1822 = vmatmul.mubr.bf16.gmra.mrb[0].mxu0 %v978
      %v1823 = vpop.f32.mrb[0].mxu0
      %v1824 = vadd.f32 %v1503, %v1823
      %v1825 = vpop.f32.mrb[0].mxu0
      %v1826 = vpop.f32.mrb[0].mxu0
      %v1827 = vadd.f32 %v1506, %v1826
      %v1828 = vpop.f32.mrb[0].mxu0
      %1829 = vmatprep.mubr.bf16.mxu0 %v983
      %1830 = vmatmul.mubr.bf16.gmra.mrb[0].mxu0 %v982
      %v1831 = vpop.f32.mrb[0].mxu0
      %v1832 = vadd.f32 %v1511, %v1831
      %v1833 = vpop.f32.mrb[0].mxu0
      %v1834 = vpop.f32.mrb[0].mxu0
      %v1835 = vadd.f32 %v1514, %v1834
      %v1836 = vpop.f32.mrb[0].mxu0
      %1837 = vmatprep.mubr.bf16.mxu0 %v987
      %1838 = vmatmul.mubr.bf16.gmra.mrb[0].mxu0 %v986
      %v1839 = vpop.f32.mrb[0].mxu0
      %v1840 = vadd.f32 %v1519, %v1839
      %v1841 = vpop.f32.mrb[0].mxu0
      %v1842 = vpop.f32.mrb[0].mxu0
      %v1843 = vadd.f32 %v1522, %v1842
      %v1844 = vpop.f32.mrb[0].mxu0
      %1845 = vmatprep.mubr.bf16.mxu0 %v991
      %1846 = vmatmul.mubr.bf16.gmra.mrb[0].mxu0 %v990
      %v1847 = vpop.f32.mrb[0].mxu0
      %v1848 = vadd.f32 %v1527, %v1847
      %v1849 = vpop.f32.mrb[0].mxu0
      %v1850 = vpop.f32.mrb[0].mxu0
      %v1851 = vadd.f32 %v1530, %v1850
      %v1852 = vpop.f32.mrb[0].mxu0
      %1853 = vmatprep.mubr.bf16.mxu0 %v995
      %1854 = vmatmul.mubr.bf16.gmra.mrb[0].mxu0 %v994
      %v1855 = vpop.f32.mrb[0].mxu0
      %v1856 = vadd.f32 %v1535, %v1855
      %v1857 = vpop.f32.mrb[0].mxu0
      %v1858 = vpop.f32.mrb[0].mxu0
      %v1859 = vadd.f32 %v1538, %v1858
      %v1860 = vpop.f32.mrb[0].mxu0
      %1861 = vmatprep.mubr.bf16.mxu0 %v999
      %1862 = vmatmul.mubr.bf16.gmra.mrb[0].mxu0 %v998
      %v1863 = vpop.f32.mrb[0].mxu0
      %v1864 = vadd.f32 %v1543, %v1863
      %v1865 = vpop.f32.mrb[0].mxu0
      %v1866 = vpop.f32.mrb[0].mxu0
      %v1867 = vadd.f32 %v1546, %v1866
      %v1868 = vpop.f32.mrb[0].mxu0
      %1869 = vmatprep.mubr.bf16.mxu0 %v1003
      %1870 = vmatmul.mubr.bf16.gmra.mrb[0].mxu0 %v1002
      %v1871 = vpop.f32.mrb[0].mxu0
      %v1872 = vadd.f32 %v1551, %v1871
      %v1873 = vpop.f32.mrb[0].mxu0
      %v1874 = vpop.f32.mrb[0].mxu0
      %v1875 = vadd.f32 %v1554, %v1874
      %v1876 = vpop.f32.mrb[0].mxu0
      %1877 = vmatprep.mubr.bf16.mxu0 %v1007
      %1878 = vmatmul.mubr.bf16.gmra.mrb[0].mxu0 %v1006
      %v1879 = vpop.f32.mrb[0].mxu0
      %v1880 = vadd.f32 %v1559, %v1879
      %v1881 = vpop.f32.mrb[0].mxu0
      %v1882 = vpop.f32.mrb[0].mxu0
      %v1883 = vadd.f32 %v1562, %v1882
      %v1884 = vpop.f32.mrb[0].mxu0
      %1885 = vmatprep.mubr.bf16.mxu0 %v1011
      %1886 = vmatmul.mubr.bf16.gmra.mrb[0].mxu0 %v1010
      %v1887 = vpop.f32.mrb[0].mxu0
      %v1888 = vadd.f32 %v1567, %v1887
      %v1889 = vpop.f32.mrb[0].mxu0
      %v1890 = vpop.f32.mrb[0].mxu0
      %v1891 = vadd.f32 %v1570, %v1890
      %v1892 = vpop.f32.mrb[0].mxu0
      %1893 = vmatprep.mubr.bf16.mxu0 %v1015
      %1894 = vmatmul.mubr.bf16.gmra.mrb[0].mxu0 %v1014
      %v1895 = vpop.f32.mrb[0].mxu0
      %v1896 = vadd.f32 %v1575, %v1895
      %v1897 = vpop.f32.mrb[0].mxu0
      %v1898 = vpop.f32.mrb[0].mxu0
      %v1899 = vadd.f32 %v1578, %v1898
      %v1900 = vpop.f32.mrb[0].mxu0
      %1901 = vmatprep.mubr.bf16.mxu0 %v1019
      %1902 = vmatmul.mubr.bf16.gmra.mrb[0].mxu0 %v1018
      %v1903 = vpop.f32.mrb[0].mxu0
      %v1904 = vadd.f32 %v1583, %v1903
      %v1905 = vpop.f32.mrb[0].mxu0
      %v1906 = vpop.f32.mrb[0].mxu0
      %v1907 = vadd.f32 %v1586, %v1906
      %v1908 = vpop.f32.mrb[0].mxu0
      %1909 = vmatprep.mubr.bf16.mxu0 %v1023
      %1910 = vmatmul.mubr.bf16.gmra.mrb[0].mxu0 %v1022
      %v1911 = vpop.f32.mrb[0].mxu0
      %v1912 = vadd.f32 %v1591, %v1911
      %v1913 = vpop.f32.mrb[0].mxu0
      %v1914 = vpop.f32.mrb[0].mxu0
      %v1915 = vadd.f32 %v1594, %v1914
      %v1916 = vpop.f32.mrb[0].mxu0
      %1917 = vmatprep.mubr.bf16.mxu0 %v1027
      %1918 = vmatmul.mubr.bf16.gmra.mrb[0].mxu0 %v1026
      %v1919 = vpop.f32.mrb[0].mxu0
      %v1920 = vadd.f32 %v1599, %v1919
      %v1921 = vpop.f32.mrb[0].mxu0
      %v1922 = vpop.f32.mrb[0].mxu0
      %v1923 = vadd.f32 %v1602, %v1922
      %v1924 = vpop.f32.mrb[0].mxu0
      %1925 = vmatprep.mubr.bf16.mxu0 %v1031
      %1926 = vmatmul.mubr.bf16.gmra.mrb[0].mxu0 %v1030
      %v1927 = vpop.f32.mrb[0].mxu0
      %v1928 = vadd.f32 %v1607, %v1927
      %v1929 = vpop.f32.mrb[0].mxu0
      %v1930 = vpop.f32.mrb[0].mxu0
      %v1931 = vadd.f32 %v1610, %v1930
      %v1932 = vpop.f32.mrb[0].mxu0
      %1933 = vmatprep.mubr.bf16.mxu0 %v1035
      %1934 = vmatmul.mubr.bf16.gmra.mrb[0].mxu0 %v1034
      %v1935 = vpop.f32.mrb[0].mxu0
      %v1936 = vadd.f32 %v1615, %v1935
      %v1937 = vpop.f32.mrb[0].mxu0
      %v1938 = vpop.f32.mrb[0].mxu0
      %v1939 = vadd.f32 %v1618, %v1938
      %v1940 = vpop.f32.mrb[0].mxu0
      %1941 = vmatprep.mubr.bf16.mxu0 %v1039
      %1942 = vmatmul.mubr.bf16.gmra.mrb[0].mxu0 %v1038
      %v1943 = vpop.f32.mrb[0].mxu0
      %v1944 = vadd.f32 %v1623, %v1943
      %v1945 = vpop.f32.mrb[0].mxu0
      %v1946 = vpop.f32.mrb[0].mxu0
      %v1947 = vadd.f32 %v1626, %v1946
      %v1948 = vpop.f32.mrb[0].mxu0
      %1949 = vmatprep.mubr.bf16.mxu0 %v1043
      %1950 = vmatmul.mubr.bf16.gmra.mrb[0].mxu0 %v1042
      %v1951 = vpop.f32.mrb[0].mxu0
      %v1952 = vadd.f32 %v1631, %v1951
      %v1953 = vpop.f32.mrb[0].mxu0
      %v1954 = vpop.f32.mrb[0].mxu0
      %v1955 = vadd.f32 %v1634, %v1954
      %v1956 = vpop.f32.mrb[0].mxu0
      %1957 = vmatprep.mubr.bf16.mxu0 %v1047
      %1958 = vmatmul.mubr.bf16.gmra.mrb[0].mxu0 %v1046
      %v1959 = vpop.f32.mrb[0].mxu0
      %v1960 = vadd.f32 %v1639, %v1959
      %v1961 = vpop.f32.mrb[0].mxu0
      %v1962 = vpop.f32.mrb[0].mxu0
      %v1963 = vadd.f32 %v1642, %v1962
      %v1964 = vpop.f32.mrb[0].mxu0
      %1965 = vmatprep.mubr.bf16.mxu0 %v1051
      %1966 = vmatmul.mubr.bf16.gmra.mrb[0].mxu0 %v1050
      %v1967 = vpop.f32.mrb[0].mxu0
      %v1968 = vadd.f32 %v1647, %v1967
      %v1969 = vpop.f32.mrb[0].mxu0
      %v1970 = vpop.f32.mrb[0].mxu0
      %v1971 = vadd.f32 %v1650, %v1970
      %v1972 = vpop.f32.mrb[0].mxu0
      %1973 = vmatprep.mubr.bf16.mxu0 %v1055
      %1974 = vmatmul.mubr.bf16.gmra.mrb[0].mxu0 %v1054
      %v1975 = vpop.f32.mrb[0].mxu0
      %v1976 = vadd.f32 %v1655, %v1975
      %v1977 = vpop.f32.mrb[0].mxu0
      %v1978 = vpop.f32.mrb[0].mxu0
      %v1979 = vadd.f32 %v1658, %v1978
      %v1980 = vpop.f32.mrb[0].mxu0
      %1981 = vmatprep.mubr.bf16.mxu0 %v1059
      %1982 = vmatmul.mubr.bf16.gmra.mrb[0].mxu0 %v1058
      %v1983 = vpop.f32.mrb[0].mxu0
      %v1984 = vadd.f32 %v1663, %v1983
      %v1985 = vpop.f32.mrb[0].mxu0
      %v1986 = vpop.f32.mrb[0].mxu0
      %v1987 = vadd.f32 %v1666, %v1986
      %v1988 = vpop.f32.mrb[0].mxu0
      %1989 = vmatprep.mubr.bf16.mxu0 %v1063
      %1990 = vmatmul.mubr.bf16.gmra.mrb[0].mxu0 %v1062
      %v1991 = vpop.f32.mrb[0].mxu0
      %v1992 = vadd.f32 %v1671, %v1991
      %v1993 = vpop.f32.mrb[0].mxu0
      %v1994 = vpop.f32.mrb[0].mxu0
      %v1995 = vadd.f32 %v1674, %v1994
      %v1996 = vpop.f32.mrb[0].mxu0
      %1997 = vmatprep.mubr.bf16.mxu0 %v1067
      %1998 = vmatmul.mubr.bf16.gmra.mrb[0].mxu0 %v1066
      %v1999 = vpop.f32.mrb[0].mxu0
      %v2000 = vadd.f32 %v1679, %v1999
      %v2001 = vpop.f32.mrb[0].mxu0
      %v2002 = vpop.f32.mrb[0].mxu0
      %v2003 = vadd.f32 %v1682, %v2002
      %v2004 = vpop.f32.mrb[0].mxu0
      %2005 = vmatprep.mubr.bf16.mxu0 %v1071
      %2006 = vmatmul.mubr.bf16.gmra.mrb[0].mxu0 %v1070
      %v2007 = vpop.f32.mrb[0].mxu0
      %v2008 = vadd.f32 %v1687, %v2007
      %v2009 = vpop.f32.mrb[0].mxu0
      %v2010 = vpop.f32.mrb[0].mxu0
      %v2011 = vadd.f32 %v1690, %v2010
      %v2012 = vpop.f32.mrb[0].mxu0
      %2013 = vmatprep.mubr.bf16.mxu0 %v1075
      %2014 = vmatmul.mubr.bf16.gmra.mrb[0].mxu0 %v1074
      %v2015 = vpop.f32.mrb[0].mxu0
      %v2016 = vadd.f32 %v1695, %v2015
      %v2017 = vpop.f32.mrb[0].mxu0
      %v2018 = vpop.f32.mrb[0].mxu0
      %v2019 = vadd.f32 %v1698, %v2018
      %v2020 = vpop.f32.mrb[0].mxu0
      %2021 = vmatprep.mubr.bf16.mxu0 %v1079
      %2022 = vmatmul.mubr.bf16.gmra.mrb[0].mxu0 %v1078
      %v2023 = vpop.f32.mrb[0].mxu0
      %v2024 = vadd.f32 %v1703, %v2023
      %v2025 = vpop.f32.mrb[0].mxu0
      %v2026 = vpop.f32.mrb[0].mxu0
      %v2027 = vadd.f32 %v1706, %v2026
      %v2028 = vpop.f32.mrb[0].mxu0
      %2029 = vmatprep.mubr.bf16.mxu0 %v1083
      %2030 = vmatmul.mubr.bf16.gmra.mrb[0].mxu0 %v1082
      %v2031 = vpop.f32.mrb[0].mxu0
      %v2032 = vadd.f32 %v1711, %v2031
      %v2033 = vpop.f32.mrb[0].mxu0
      %v2034 = vpop.f32.mrb[0].mxu0
      %v2035 = vadd.f32 %v1714, %v2034
      %v2036 = vpop.f32.mrb[0].mxu0
      %2037 = vmatprep.mubr.bf16.mxu0 %v1087
      %2038 = vmatmul.mubr.bf16.gmra.mrb[0].mxu0 %v1086
      %v2039 = vpop.f32.mrb[0].mxu0
      %v2040 = vadd.f32 %v1719, %v2039
      %v2041 = vpop.f32.mrb[0].mxu0
      %v2042 = vpop.f32.mrb[0].mxu0
      %v2043 = vadd.f32 %v1722, %v2042
      %v2044 = vpop.f32.mrb[0].mxu0
      %2045 = vmatprep.mubr.bf16.mxu0 %v1091
      %2046 = vmatmul.mubr.bf16.gmra.mrb[0].mxu0 %v1090
      %v2047 = vpop.f32.mrb[0].mxu0
      %v2048 = vadd.f32 %v1727, %v2047
      %v2049 = vpop.f32.mrb[0].mxu0
      %v2050 = vpop.f32.mrb[0].mxu0
      %v2051 = vadd.f32 %v1730, %v2050
      %v2052 = vpop.f32.mrb[0].mxu0
      %2053 = vmatprep.mubr.bf16.mxu0 %v1095
      %2054 = vmatmul.mubr.bf16.gmra.mrb[0].mxu0 %v1094
      %v2055 = vpop.f32.mrb[0].mxu0
      %v2056 = vadd.f32 %v1735, %v2055
      %v2057 = vpop.f32.mrb[0].mxu0
      %v2058 = vpop.f32.mrb[0].mxu0
      %v2059 = vadd.f32 %v1738, %v2058
      %v2060 = vpop.f32.mrb[0].mxu0
      %2061 = vmatprep.mubr.bf16.mxu0 %v1099
      %2062 = vmatmul.mubr.bf16.gmra.mrb[0].mxu0 %v1098
      %v2063 = vpop.f32.mrb[0].mxu0
      %v2064 = vadd.f32 %v1743, %v2063
      %v2065 = vpop.f32.mrb[0].mxu0
      %v2066 = vpop.f32.mrb[0].mxu0
      %v2067 = vadd.f32 %v1746, %v2066
      %v2068 = vpop.f32.mrb[0].mxu0
      %2069 = vmatprep.mubr.bf16.mxu0 %v1103
      %2070 = vmatmul.mubr.bf16.gmra.mrb[0].mxu0 %v1102
      %v2071 = vpop.f32.mrb[0].mxu0
      %v2072 = vadd.f32 %v1751, %v2071
      %v2073 = vpop.f32.mrb[0].mxu0
      %v2074 = vpop.f32.mrb[0].mxu0
      %v2075 = vadd.f32 %v1754, %v2074
      %v2076 = vpop.f32.mrb[0].mxu0
      %2077 = vmatprep.mubr.bf16.mxu0 %v1107
      %2078 = vmatmul.mubr.bf16.gmra.mrb[0].mxu0 %v1106
      %v2079 = vpop.f32.mrb[0].mxu0
      %v2080 = vadd.f32 %v1759, %v2079
      %v2081 = vpop.f32.mrb[0].mxu0
      %v2082 = vpop.f32.mrb[0].mxu0
      %v2083 = vadd.f32 %v1762, %v2082
      %v2084 = vpop.f32.mrb[0].mxu0
      %2085 = vdwg.mxu0
      %vm2086 = vcmp.gt.f32.partialorder %v1800, 0.0
      %vm2087 = vcmp.gt.f32.partialorder %v1803, 0.0
      %vm2088 = vcmp.gt.f32.partialorder %v1808, 0.0
      %vm2089 = vcmp.gt.f32.partialorder %v1811, 0.0
      %vm2090 = vcmp.gt.f32.partialorder %v1816, 0.0
      %vm2091 = vcmp.gt.f32.partialorder %v1819, 0.0
      %vm2092 = vcmp.gt.f32.partialorder %v1824, 0.0
      %vm2093 = vcmp.gt.f32.partialorder %v1827, 0.0
      %vm2094 = vcmp.gt.f32.partialorder %v1832, 0.0
      %vm2095 = vcmp.gt.f32.partialorder %v1835, 0.0
      %vm2096 = vcmp.gt.f32.partialorder %v1840, 0.0
      %vm2097 = vcmp.gt.f32.partialorder %v1843, 0.0
      %vm2098 = vcmp.gt.f32.partialorder %v1848, 0.0
      %vm2099 = vcmp.gt.f32.partialorder %v1851, 0.0
      %vm2100 = vcmp.gt.f32.partialorder %v1856, 0.0
      %vm2101 = vcmp.gt.f32.partialorder %v1859, 0.0
      %vm2102 = vcmp.gt.f32.partialorder %v1864, 0.0
      %vm2103 = vcmp.gt.f32.partialorder %v1867, 0.0
      %vm2104 = vcmp.gt.f32.partialorder %v1872, 0.0
      %vm2105 = vcmp.gt.f32.partialorder %v1875, 0.0
      %vm2106 = vcmp.gt.f32.partialorder %v1880, 0.0
      %vm2107 = vcmp.gt.f32.partialorder %v1883, 0.0
      %vm2108 = vcmp.gt.f32.partialorder %v1888, 0.0
      %vm2109 = vcmp.gt.f32.partialorder %v1891, 0.0
      %vm2110 = vcmp.gt.f32.partialorder %v1896, 0.0
      %vm2111 = vcmp.gt.f32.partialorder %v1899, 0.0
      %vm2112 = vcmp.gt.f32.partialorder %v1904, 0.0
      %vm2113 = vcmp.gt.f32.partialorder %v1907, 0.0
      %vm2114 = vcmp.gt.f32.partialorder %v1912, 0.0
      %vm2115 = vcmp.gt.f32.partialorder %v1915, 0.0
      %vm2116 = vcmp.gt.f32.partialorder %v1920, 0.0
      %vm2117 = vcmp.gt.f32.partialorder %v1923, 0.0
      %vm2118 = vcmp.gt.f32.partialorder %v1928, 0.0
      %vm2119 = vcmp.gt.f32.partialorder %v1931, 0.0
      %vm2120 = vcmp.gt.f32.partialorder %v1936, 0.0
      %vm2121 = vcmp.gt.f32.partialorder %v1939, 0.0
      %vm2122 = vcmp.gt.f32.partialorder %v1944, 0.0
      %vm2123 = vcmp.gt.f32.partialorder %v1947, 0.0
      %vm2124 = vcmp.gt.f32.partialorder %v1952, 0.0
      %vm2125 = vcmp.gt.f32.partialorder %v1955, 0.0
      %vm2126 = vcmp.gt.f32.partialorder %v1960, 0.0
      %vm2127 = vcmp.gt.f32.partialorder %v1963, 0.0
      %vm2128 = vcmp.gt.f32.partialorder %v1968, 0.0
      %vm2129 = vcmp.gt.f32.partialorder %v1971, 0.0
      %vm2130 = vcmp.gt.f32.partialorder %v1976, 0.0
      %vm2131 = vcmp.gt.f32.partialorder %v1979, 0.0
      %vm2132 = vcmp.gt.f32.partialorder %v1984, 0.0
      %vm2133 = vcmp.gt.f32.partialorder %v1987, 0.0
      %vm2134 = vcmp.gt.f32.partialorder %v1992, 0.0
      %vm2135 = vcmp.gt.f32.partialorder %v1995, 0.0
      %vm2136 = vcmp.gt.f32.partialorder %v2000, 0.0
      %vm2137 = vcmp.gt.f32.partialorder %v2003, 0.0
      %vm2138 = vcmp.gt.f32.partialorder %v2008, 0.0
      %vm2139 = vcmp.gt.f32.partialorder %v2011, 0.0
      %vm2140 = vcmp.gt.f32.partialorder %v2016, 0.0
      %vm2141 = vcmp.gt.f32.partialorder %v2019, 0.0
      %vm2142 = vcmp.gt.f32.partialorder %v2024, 0.0
      %vm2143 = vcmp.gt.f32.partialorder %v2027, 0.0
      %vm2144 = vcmp.gt.f32.partialorder %v2032, 0.0
      %vm2145 = vcmp.gt.f32.partialorder %v2035, 0.0
      %vm2146 = vcmp.gt.f32.partialorder %v2040, 0.0
      %vm2147 = vcmp.gt.f32.partialorder %v2043, 0.0
      %vm2148 = vcmp.gt.f32.partialorder %v2048, 0.0
      %vm2149 = vcmp.gt.f32.partialorder %v2051, 0.0
      %vm2150 = vcmp.gt.f32.partialorder %v2056, 0.0
      %vm2151 = vcmp.gt.f32.partialorder %v2059, 0.0
      %vm2152 = vcmp.gt.f32.partialorder %v2064, 0.0
      %vm2153 = vcmp.gt.f32.partialorder %v2067, 0.0
      %vm2154 = vcmp.gt.f32.partialorder %v2072, 0.0
      %vm2155 = vcmp.gt.f32.partialorder %v2075, 0.0
      %vm2156 = vcmp.gt.f32.partialorder %v2080, 0.0
      %vm2157 = vcmp.gt.f32.partialorder %v2083, 0.0
      %v2158 = vmul.f32 %v1800, 0.01
      %v2159 = vmul.f32 %v1803, 0.01
      %v2160 = vmul.f32 %v1808, 0.01
      %v2161 = vmul.f32 %v1811, 0.01
      %v2162 = vmul.f32 %v1816, 0.01
      %v2163 = vmul.f32 %v1819, 0.01
      %v2164 = vmul.f32 %v1824, 0.01
      %v2165 = vmul.f32 %v1827, 0.01
      %v2166 = vmul.f32 %v1832, 0.01
      %v2167 = vmul.f32 %v1835, 0.01
      %v2168 = vmul.f32 %v1840, 0.01
      %v2169 = vmul.f32 %v1843, 0.01
      %v2170 = vmul.f32 %v1848, 0.01
      %v2171 = vmul.f32 %v1851, 0.01
      %v2172 = vmul.f32 %v1856, 0.01
      %v2173 = vmul.f32 %v1859, 0.01
      %v2174 = vmul.f32 %v1864, 0.01
      %v2175 = vmul.f32 %v1867, 0.01
      %v2176 = vmul.f32 %v1872, 0.01
      %v2177 = vmul.f32 %v1875, 0.01
      %v2178 = vmul.f32 %v1880, 0.01
      %v2179 = vmul.f32 %v1883, 0.01
      %v2180 = vmul.f32 %v1888, 0.01
      %v2181 = vmul.f32 %v1891, 0.01
      %v2182 = vmul.f32 %v1896, 0.01
      %v2183 = vmul.f32 %v1899, 0.01
      %v2184 = vmul.f32 %v1904, 0.01
      %v2185 = vmul.f32 %v1907, 0.01
      %v2186 = vmul.f32 %v1912, 0.01
      %v2187 = vmul.f32 %v1915, 0.01
      %v2188 = vmul.f32 %v1920, 0.01
      %v2189 = vmul.f32 %v1923, 0.01
      %v2190 = vmul.f32 %v1928, 0.01
      %v2191 = vmul.f32 %v1931, 0.01
      %v2192 = vmul.f32 %v1936, 0.01
      %v2193 = vmul.f32 %v1939, 0.01
      %v2194 = vmul.f32 %v1944, 0.01
      %v2195 = vmul.f32 %v1947, 0.01
      %v2196 = vmul.f32 %v1952, 0.01
      %v2197 = vmul.f32 %v1955, 0.01
      %v2198 = vmul.f32 %v1960, 0.01
      %v2199 = vmul.f32 %v1963, 0.01
      %v2200 = vmul.f32 %v1968, 0.01
      %v2201 = vmul.f32 %v1971, 0.01
      %v2202 = vmul.f32 %v1976, 0.01
      %v2203 = vmul.f32 %v1979, 0.01
      %v2204 = vmul.f32 %v1984, 0.01
      %v2205 = vmul.f32 %v1987, 0.01
      %v2206 = vmul.f32 %v1992, 0.01
      %v2207 = vmul.f32 %v1995, 0.01
      %v2208 = vmul.f32 %v2000, 0.01
      %v2209 = vmul.f32 %v2003, 0.01
      %v2210 = vmul.f32 %v2008, 0.01
      %v2211 = vmul.f32 %v2011, 0.01
      %v2212 = vmul.f32 %v2016, 0.01
      %v2213 = vmul.f32 %v2019, 0.01
      %v2214 = vmul.f32 %v2024, 0.01
      %v2215 = vmul.f32 %v2027, 0.01
      %v2216 = vmul.f32 %v2032, 0.01
      %v2217 = vmul.f32 %v2035, 0.01
      %v2218 = vmul.f32 %v2040, 0.01
      %v2219 = vmul.f32 %v2043, 0.01
      %v2220 = vmul.f32 %v2048, 0.01
      %v2221 = vmul.f32 %v2051, 0.01
      %v2222 = vmul.f32 %v2056, 0.01
      %v2223 = vmul.f32 %v2059, 0.01
      %v2224 = vmul.f32 %v2064, 0.01
      %v2225 = vmul.f32 %v2067, 0.01
      %v2226 = vmul.f32 %v2072, 0.01
      %v2227 = vmul.f32 %v2075, 0.01
      %v2228 = vmul.f32 %v2080, 0.01
      %v2229 = vmul.f32 %v2083, 0.01
      %v2230 = vsel %vm2086, %v1800, %v2158
      %v2231 = vsel %vm2087, %v1803, %v2159
      %v2232 = vsel %vm2088, %v1808, %v2160
      %v2233 = vsel %vm2089, %v1811, %v2161
      %v2234 = vsel %vm2090, %v1816, %v2162
      %v2235 = vsel %vm2091, %v1819, %v2163
      %v2236 = vsel %vm2092, %v1824, %v2164
      %v2237 = vsel %vm2093, %v1827, %v2165
      %v2238 = vsel %vm2094, %v1832, %v2166
      %v2239 = vsel %vm2095, %v1835, %v2167
      %v2240 = vsel %vm2096, %v1840, %v2168
      %v2241 = vsel %vm2097, %v1843, %v2169
      %v2242 = vsel %vm2098, %v1848, %v2170
      %v2243 = vsel %vm2099, %v1851, %v2171
      %v2244 = vsel %vm2100, %v1856, %v2172
      %v2245 = vsel %vm2101, %v1859, %v2173
      %v2246 = vsel %vm2102, %v1864, %v2174
      %v2247 = vsel %vm2103, %v1867, %v2175
      %v2248 = vsel %vm2104, %v1872, %v2176
      %v2249 = vsel %vm2105, %v1875, %v2177
      %v2250 = vsel %vm2106, %v1880, %v2178
      %v2251 = vsel %vm2107, %v1883, %v2179
      %v2252 = vsel %vm2108, %v1888, %v2180
      %v2253 = vsel %vm2109, %v1891, %v2181
      %v2254 = vsel %vm2110, %v1896, %v2182
      %v2255 = vsel %vm2111, %v1899, %v2183
      %v2256 = vsel %vm2112, %v1904, %v2184
      %v2257 = vsel %vm2113, %v1907, %v2185
      %v2258 = vsel %vm2114, %v1912, %v2186
      %v2259 = vsel %vm2115, %v1915, %v2187
      %v2260 = vsel %vm2116, %v1920, %v2188
      %v2261 = vsel %vm2117, %v1923, %v2189
      %v2262 = vsel %vm2118, %v1928, %v2190
      %v2263 = vsel %vm2119, %v1931, %v2191
      %v2264 = vsel %vm2120, %v1936, %v2192
      %v2265 = vsel %vm2121, %v1939, %v2193
      %v2266 = vsel %vm2122, %v1944, %v2194
      %v2267 = vsel %vm2123, %v1947, %v2195
      %v2268 = vsel %vm2124, %v1952, %v2196
      %v2269 = vsel %vm2125, %v1955, %v2197
      %v2270 = vsel %vm2126, %v1960, %v2198
      %v2271 = vsel %vm2127, %v1963, %v2199
      %v2272 = vsel %vm2128, %v1968, %v2200
      %v2273 = vsel %vm2129, %v1971, %v2201
      %v2274 = vsel %vm2130, %v1976, %v2202
      %v2275 = vsel %vm2131, %v1979, %v2203
      %v2276 = vsel %vm2132, %v1984, %v2204
      %v2277 = vsel %vm2133, %v1987, %v2205
      %v2278 = vsel %vm2134, %v1992, %v2206
      %v2279 = vsel %vm2135, %v1995, %v2207
      %v2280 = vsel %vm2136, %v2000, %v2208
      %v2281 = vsel %vm2137, %v2003, %v2209
      %v2282 = vsel %vm2138, %v2008, %v2210
      %v2283 = vsel %vm2139, %v2011, %v2211
      %v2284 = vsel %vm2140, %v2016, %v2212
      %v2285 = vsel %vm2141, %v2019, %v2213
      %v2286 = vsel %vm2142, %v2024, %v2214
      %v2287 = vsel %vm2143, %v2027, %v2215
      %v2288 = vsel %vm2144, %v2032, %v2216
      %v2289 = vsel %vm2145, %v2035, %v2217
      %v2290 = vsel %vm2146, %v2040, %v2218
      %v2291 = vsel %vm2147, %v2043, %v2219
      %v2292 = vsel %vm2148, %v2048, %v2220
      %v2293 = vsel %vm2149, %v2051, %v2221
      %v2294 = vsel %vm2150, %v2056, %v2222
      %v2295 = vsel %vm2151, %v2059, %v2223
      %v2296 = vsel %vm2152, %v2064, %v2224
      %v2297 = vsel %vm2153, %v2067, %v2225
      %v2298 = vsel %vm2154, %v2072, %v2226
      %v2299 = vsel %vm2155, %v2075, %v2227
      %v2300 = vsel %vm2156, %v2080, %v2228
      %v2301 = vsel %vm2157, %v2083, %v2229
      %v2302 = vpack.c.bf16 %v2231, %v2230
      %v2303 = vpack.c.bf16 %v2233, %v2232
      %v2304 = vpack.c.bf16 %v2235, %v2234
      %v2305 = vpack.c.bf16 %v2237, %v2236
      %v2306 = vpack.c.bf16 %v2239, %v2238
      %v2307 = vpack.c.bf16 %v2241, %v2240
      %v2308 = vpack.c.bf16 %v2243, %v2242
      %v2309 = vpack.c.bf16 %v2245, %v2244
      %v2310 = vpack.c.bf16 %v2247, %v2246
      %v2311 = vpack.c.bf16 %v2249, %v2248
      %v2312 = vpack.c.bf16 %v2251, %v2250
      %v2313 = vpack.c.bf16 %v2253, %v2252
      %v2314 = vpack.c.bf16 %v2255, %v2254
      %v2315 = vpack.c.bf16 %v2257, %v2256
      %v2316 = vpack.c.bf16 %v2259, %v2258
      %v2317 = vpack.c.bf16 %v2261, %v2260
      %v2318 = vpack.c.bf16 %v2263, %v2262
      %v2319 = vpack.c.bf16 %v2265, %v2264
      %v2320 = vpack.c.bf16 %v2267, %v2266
      %v2321 = vpack.c.bf16 %v2269, %v2268
      %v2322 = vpack.c.bf16 %v2271, %v2270
      %v2323 = vpack.c.bf16 %v2273, %v2272
      %v2324 = vpack.c.bf16 %v2275, %v2274
      %v2325 = vpack.c.bf16 %v2277, %v2276
      %v2326 = vpack.c.bf16 %v2279, %v2278
      %v2327 = vpack.c.bf16 %v2281, %v2280
      %v2328 = vpack.c.bf16 %v2283, %v2282
      %v2329 = vpack.c.bf16 %v2285, %v2284
      %v2330 = vpack.c.bf16 %v2287, %v2286
      %v2331 = vpack.c.bf16 %v2289, %v2288
      %v2332 = vpack.c.bf16 %v2291, %v2290
      %v2333 = vpack.c.bf16 %v2293, %v2292
      %v2334 = vpack.c.bf16 %v2295, %v2294
      %v2335 = vpack.c.bf16 %v2297, %v2296
      %v2336 = vpack.c.bf16 %v2299, %v2298
      %v2337 = vpack.c.bf16 %v2301, %v2300
      %v2374 = vunpack.c.l.b16 %v2302
      %v2375 = vunpack.c.h.b16 %v2302
      %v2376 = vunpack.c.l.b16 %v2303
      %v2377 = vunpack.c.h.b16 %v2303
      %v2378 = vunpack.c.l.b16 %v2304
      %v2379 = vunpack.c.h.b16 %v2304
      %v2380 = vunpack.c.l.b16 %v2305
      %v2381 = vunpack.c.h.b16 %v2305
      %v2382 = vunpack.c.l.b16 %v2306
      %v2383 = vunpack.c.h.b16 %v2306
      %v2384 = vunpack.c.l.b16 %v2307
      %v2385 = vunpack.c.h.b16 %v2307
      %v2386 = vunpack.c.l.b16 %v2308
      %v2387 = vunpack.c.h.b16 %v2308
      %v2388 = vunpack.c.l.b16 %v2309
      %v2389 = vunpack.c.h.b16 %v2309
      %v2390 = vunpack.c.l.b16 %v2310
      %v2391 = vunpack.c.h.b16 %v2310
      %v2392 = vunpack.c.l.b16 %v2311
      %v2393 = vunpack.c.h.b16 %v2311
      %v2394 = vunpack.c.l.b16 %v2312
      %v2395 = vunpack.c.h.b16 %v2312
      %v2396 = vunpack.c.l.b16 %v2313
      %v2397 = vunpack.c.h.b16 %v2313
      %v2398 = vunpack.c.l.b16 %v2314
      %v2399 = vunpack.c.h.b16 %v2314
      %v2400 = vunpack.c.l.b16 %v2315
      %v2401 = vunpack.c.h.b16 %v2315
      %v2402 = vunpack.c.l.b16 %v2316
      %v2403 = vunpack.c.h.b16 %v2316
      %v2404 = vunpack.c.l.b16 %v2317
      %v2405 = vunpack.c.h.b16 %v2317
      %v2406 = vunpack.c.l.b16 %v2318
      %v2407 = vunpack.c.h.b16 %v2318
      %v2408 = vunpack.c.l.b16 %v2319
      %v2409 = vunpack.c.h.b16 %v2319
      %v2410 = vunpack.c.l.b16 %v2320
      %v2411 = vunpack.c.h.b16 %v2320
      %v2412 = vunpack.c.l.b16 %v2321
      %v2413 = vunpack.c.h.b16 %v2321
      %v2414 = vunpack.c.l.b16 %v2322
      %v2415 = vunpack.c.h.b16 %v2322
      %v2416 = vunpack.c.l.b16 %v2323
      %v2417 = vunpack.c.h.b16 %v2323
      %v2418 = vunpack.c.l.b16 %v2324
      %v2419 = vunpack.c.h.b16 %v2324
      %v2420 = vunpack.c.l.b16 %v2325
      %v2421 = vunpack.c.h.b16 %v2325
      %v2422 = vunpack.c.l.b16 %v2326
      %v2423 = vunpack.c.h.b16 %v2326
      %v2424 = vunpack.c.l.b16 %v2327
      %v2425 = vunpack.c.h.b16 %v2327
      %v2426 = vunpack.c.l.b16 %v2328
      %v2427 = vunpack.c.h.b16 %v2328
      %v2428 = vunpack.c.l.b16 %v2329
      %v2429 = vunpack.c.h.b16 %v2329
      %v2430 = vunpack.c.l.b16 %v2330
      %v2431 = vunpack.c.h.b16 %v2330
      %v2432 = vunpack.c.l.b16 %v2331
      %v2433 = vunpack.c.h.b16 %v2331
      %v2434 = vunpack.c.l.b16 %v2332
      %v2435 = vunpack.c.h.b16 %v2332
      %v2436 = vunpack.c.l.b16 %v2333
      %v2437 = vunpack.c.h.b16 %v2333
      %v2438 = vunpack.c.l.b16 %v2334
      %v2439 = vunpack.c.h.b16 %v2334
      %v2440 = vunpack.c.l.b16 %v2335
      %v2441 = vunpack.c.h.b16 %v2335
      %v2442 = vunpack.c.l.b16 %v2336
      %v2443 = vunpack.c.h.b16 %v2336
      %v2444 = vunpack.c.l.b16 %v2337
      %v2445 = vunpack.c.h.b16 %v2337
      %v2446 = vpack.c.b16 %v2374, %v2374
      %v2447 = vpack.c.b16 %v2375, %v2375
      %v2448 = vpack.c.b16 %v2376, %v2376
      %v2449 = vpack.c.b16 %v2377, %v2377
      %v2450 = vpack.c.b16 %v2378, %v2378
      %v2451 = vpack.c.b16 %v2379, %v2379
      %v2452 = vpack.c.b16 %v2380, %v2380
      %v2453 = vpack.c.b16 %v2381, %v2381
      %v2454 = vpack.c.b16 %v2382, %v2382
      %v2455 = vpack.c.b16 %v2383, %v2383
      %v2456 = vpack.c.b16 %v2384, %v2384
      %v2457 = vpack.c.b16 %v2385, %v2385
      %v2458 = vpack.c.b16 %v2386, %v2386
      %v2459 = vpack.c.b16 %v2387, %v2387
      %v2460 = vpack.c.b16 %v2388, %v2388
      %v2461 = vpack.c.b16 %v2389, %v2389
      %v2462 = vpack.c.b16 %v2390, %v2390
      %v2463 = vpack.c.b16 %v2391, %v2391
      %v2464 = vpack.c.b16 %v2392, %v2392
      %v2465 = vpack.c.b16 %v2393, %v2393
      %v2466 = vpack.c.b16 %v2394, %v2394
      %v2467 = vpack.c.b16 %v2395, %v2395
      %v2468 = vpack.c.b16 %v2396, %v2396
      %v2469 = vpack.c.b16 %v2397, %v2397
      %v2470 = vpack.c.b16 %v2398, %v2398
      %v2471 = vpack.c.b16 %v2399, %v2399
      %v2472 = vpack.c.b16 %v2400, %v2400
      %v2473 = vpack.c.b16 %v2401, %v2401
      %v2474 = vpack.c.b16 %v2402, %v2402
      %v2475 = vpack.c.b16 %v2403, %v2403
      %v2476 = vpack.c.b16 %v2404, %v2404
      %v2477 = vpack.c.b16 %v2405, %v2405
      %v2478 = vpack.c.b16 %v2406, %v2406
      %v2479 = vpack.c.b16 %v2407, %v2407
      %v2480 = vpack.c.b16 %v2408, %v2408
      %v2481 = vpack.c.b16 %v2409, %v2409
      %v2482 = vpack.c.b16 %v2410, %v2410
      %v2483 = vpack.c.b16 %v2411, %v2411
      %v2484 = vpack.c.b16 %v2412, %v2412
      %v2485 = vpack.c.b16 %v2413, %v2413
      %v2486 = vpack.c.b16 %v2414, %v2414
      %v2487 = vpack.c.b16 %v2415, %v2415
      %v2488 = vpack.c.b16 %v2416, %v2416
      %v2489 = vpack.c.b16 %v2417, %v2417
      %v2490 = vpack.c.b16 %v2418, %v2418
      %v2491 = vpack.c.b16 %v2419, %v2419
      %v2492 = vpack.c.b16 %v2420, %v2420
      %v2493 = vpack.c.b16 %v2421, %v2421
      %v2494 = vpack.c.b16 %v2422, %v2422
      %v2495 = vpack.c.b16 %v2423, %v2423
      %v2496 = vpack.c.b16 %v2424, %v2424
      %v2497 = vpack.c.b16 %v2425, %v2425
      %v2498 = vpack.c.b16 %v2426, %v2426
      %v2499 = vpack.c.b16 %v2427, %v2427
      %v2500 = vpack.c.b16 %v2428, %v2428
      %v2501 = vpack.c.b16 %v2429, %v2429
      %v2502 = vpack.c.b16 %v2430, %v2430
      %v2503 = vpack.c.b16 %v2431, %v2431
      %v2504 = vpack.c.b16 %v2432, %v2432
      %v2505 = vpack.c.b16 %v2433, %v2433
      %v2506 = vpack.c.b16 %v2434, %v2434
      %v2507 = vpack.c.b16 %v2435, %v2435
      %v2508 = vpack.c.b16 %v2436, %v2436
      %v2509 = vpack.c.b16 %v2437, %v2437
      %v2510 = vpack.c.b16 %v2438, %v2438
      %v2511 = vpack.c.b16 %v2439, %v2439
      %v2512 = vpack.c.b16 %v2440, %v2440
      %v2513 = vpack.c.b16 %v2441, %v2441
      %v2514 = vpack.c.b16 %v2442, %v2442
      %v2515 = vpack.c.b16 %v2443, %v2443
      %v2516 = vpack.c.b16 %v2444, %v2444
      %v2517 = vpack.c.b16 %v2445, %v2445
      %2590 = vst [vmem:[%s309] sm:$0xf] %v2446
      %2591 = vst [vmem:[%s309 + $0x4] sm:$0xf] %v2447
      %2592 = vst [vmem:[%s309 + $0x8] sm:$0xf] %v2448
      %2593 = vst [vmem:[%s309 + $0xc] sm:$0xf] %v2449
      %2594 = vst [vmem:[%s309 + $0x10] sm:$0xf] %v2450
      %2595 = vst [vmem:[%s309 + $0x14] sm:$0xf] %v2451
      %2596 = vst [vmem:[%s309 + $0x18] sm:$0xf] %v2452
      %2597 = vst [vmem:[%s309 + $0x1c] sm:$0xf] %v2453
      %2598 = vst [vmem:[%s309 + $0x20] sm:$0xf] %v2454
      %2599 = vst [vmem:[%s309 + $0x24] sm:$0xf] %v2455
      %2600 = vst [vmem:[%s309 + $0x28] sm:$0xf] %v2456
      %2601 = vst [vmem:[%s309 + $0x2c] sm:$0xf] %v2457
      %2602 = vst [vmem:[%s309 + $0x30] sm:$0xf] %v2458
      %2603 = vst [vmem:[%s309 + $0x34] sm:$0xf] %v2459
      %2604 = vst [vmem:[%s309 + $0x38] sm:$0xf] %v2460
      %2605 = vst [vmem:[%s309 + $0x3c] sm:$0xf] %v2461
      %2606 = vst [vmem:[%s309 + $0x40] sm:$0xf] %v2462
      %2607 = vst [vmem:[%s309 + $0x44] sm:$0xf] %v2463
      %2608 = vst [vmem:[%s309 + $0x48] sm:$0xf] %v2464
      %2609 = vst [vmem:[%s309 + $0x4c] sm:$0xf] %v2465
      %2610 = vst [vmem:[%s309 + $0x50] sm:$0xf] %v2466
      %2611 = vst [vmem:[%s309 + $0x54] sm:$0xf] %v2467
      %2612 = vst [vmem:[%s309 + $0x58] sm:$0xf] %v2468
      %2613 = vst [vmem:[%s309 + $0x5c] sm:$0xf] %v2469
      %2614 = vst [vmem:[%s309 + $0x60] sm:$0xf] %v2470
      %2615 = vst [vmem:[%s309 + $0x64] sm:$0xf] %v2471
      %2616 = vst [vmem:[%s309 + $0x68] sm:$0xf] %v2472
      %2617 = vst [vmem:[%s309 + $0x6c] sm:$0xf] %v2473
      %2618 = vst [vmem:[%s309 + $0x70] sm:$0xf] %v2474
      %2619 = vst [vmem:[%s309 + $0x74] sm:$0xf] %v2475
      %2620 = vst [vmem:[%s309 + $0x78] sm:$0xf] %v2476
      %2621 = vst [vmem:[%s309 + $0x7c] sm:$0xf] %v2477
      %2622 = vst [vmem:[%s309 + $0x80] sm:$0xf] %v2478
      %2623 = vst [vmem:[%s309 + $0x84] sm:$0xf] %v2479
      %2624 = vst [vmem:[%s309 + $0x88] sm:$0xf] %v2480
      %2625 = vst [vmem:[%s309 + $0x8c] sm:$0xf] %v2481
      %2626 = vst [vmem:[%s309 + $0x90] sm:$0xf] %v2482
      %2627 = vst [vmem:[%s309 + $0x94] sm:$0xf] %v2483
      %2628 = vst [vmem:[%s309 + $0x98] sm:$0xf] %v2484
      %2629 = vst [vmem:[%s309 + $0x9c] sm:$0xf] %v2485
      %2630 = vst [vmem:[%s309 + $0xa0] sm:$0xf] %v2486
      %2631 = vst [vmem:[%s309 + $0xa4] sm:$0xf] %v2487
      %2632 = vst [vmem:[%s309 + $0xa8] sm:$0xf] %v2488
      %2633 = vst [vmem:[%s309 + $0xac] sm:$0xf] %v2489
      %2634 = vst [vmem:[%s309 + $0xb0] sm:$0xf] %v2490
      %2635 = vst [vmem:[%s309 + $0xb4] sm:$0xf] %v2491
      %2636 = vst [vmem:[%s309 + $0xb8] sm:$0xf] %v2492
      %2637 = vst [vmem:[%s309 + $0xbc] sm:$0xf] %v2493
      %2638 = vst [vmem:[%s309 + $0xc0] sm:$0xf] %v2494
      %2639 = vst [vmem:[%s309 + $0xc4] sm:$0xf] %v2495
      %2640 = vst [vmem:[%s309 + $0xc8] sm:$0xf] %v2496
      %2641 = vst [vmem:[%s309 + $0xcc] sm:$0xf] %v2497
      %2642 = vst [vmem:[%s309 + $0xd0] sm:$0xf] %v2498
      %2643 = vst [vmem:[%s309 + $0xd4] sm:$0xf] %v2499
      %2644 = vst [vmem:[%s309 + $0xd8] sm:$0xf] %v2500
      %2645 = vst [vmem:[%s309 + $0xdc] sm:$0xf] %v2501
      %2646 = vst [vmem:[%s309 + $0xe0] sm:$0xf] %v2502
      %2647 = vst [vmem:[%s309 + $0xe4] sm:$0xf] %v2503
      %2648 = vst [vmem:[%s309 + $0xe8] sm:$0xf] %v2504
      %2649 = vst [vmem:[%s309 + $0xec] sm:$0xf] %v2505
      %2650 = vst [vmem:[%s309 + $0xf0] sm:$0xf] %v2506
      %2651 = vst [vmem:[%s309 + $0xf4] sm:$0xf] %v2507
      %2652 = vst [vmem:[%s309 + $0xf8] sm:$0xf] %v2508
      %2653 = vst [vmem:[%s309 + $0xfc] sm:$0xf] %v2509
      %2654 = vst [vmem:[%s309 + $0x100] sm:$0xf] %v2510
      %2655 = vst [vmem:[%s309 + $0x104] sm:$0xf] %v2511
      %2656 = vst [vmem:[%s309 + $0x108] sm:$0xf] %v2512
      %2657 = vst [vmem:[%s309 + $0x10c] sm:$0xf] %v2513
      %2658 = vst [vmem:[%s309 + $0x110] sm:$0xf] %v2514
      %2659 = vst [vmem:[%s309 + $0x114] sm:$0xf] %v2515
      %2660 = vst [vmem:[%s309 + $0x118] sm:$0xf] %v2516
      %2661 = vst [vmem:[%s309 + $0x11c] sm:$0xf] %v2517
      %v2662 = vld [vmem:[%s300] sm:$0xff]
      %v2663 = vld [vmem:[%s300 + $0x8] sm:$0xff]
      %v2664 = vld [vmem:[%s300 + $0x10] sm:$0xff]
      %v2665 = vld [vmem:[%s300 + $0x18] sm:$0xff]
      %v2666 = vld [vmem:[%s300 + $0x20] sm:$0xff]
      %v2667 = vld [vmem:[%s300 + $0x28] sm:$0xff]
      %v2668 = vld [vmem:[%s300 + $0x30] sm:$0xff]
      %v2669 = vld [vmem:[%s300 + $0x38] sm:$0xff]
      %v2670 = vld [vmem:[%s300 + $0x40] sm:$0xff]
      %v2671 = vld [vmem:[%s300 + $0x48] sm:$0xff]
      %v2672 = vld [vmem:[%s300 + $0x50] sm:$0xff]
      %v2673 = vld [vmem:[%s300 + $0x58] sm:$0xff]
      %v2674 = vld [vmem:[%s300 + $0x60] sm:$0xff]
      %v2675 = vld [vmem:[%s300 + $0x68] sm:$0xff]
      %v2676 = vld [vmem:[%s300 + $0x70] sm:$0xff]
      %v2677 = vld [vmem:[%s300 + $0x78] sm:$0xff]
      %v2678 = vld [vmem:[%s300 + $0x80] sm:$0xff]
      %v2679 = vld [vmem:[%s300 + $0x88] sm:$0xff]
      %v2680 = vld [vmem:[%s300 + $0x90] sm:$0xff]
      %v2681 = vld [vmem:[%s300 + $0x98] sm:$0xff]
      %v2682 = vld [vmem:[%s300 + $0xa0] sm:$0xff]
      %v2683 = vld [vmem:[%s300 + $0xa8] sm:$0xff]
      %v2684 = vld [vmem:[%s300 + $0xb0] sm:$0xff]
      %v2685 = vld [vmem:[%s300 + $0xb8] sm:$0xff]
      %v2686 = vld [vmem:[%s300 + $0xc0] sm:$0xff]
      %v2687 = vld [vmem:[%s300 + $0xc8] sm:$0xff]
      %v2688 = vld [vmem:[%s300 + $0xd0] sm:$0xff]
      %v2689 = vld [vmem:[%s300 + $0xd8] sm:$0xff]
      %v2690 = vld [vmem:[%s300 + $0xe0] sm:$0xff]
      %v2691 = vld [vmem:[%s300 + $0xe8] sm:$0xff]
      %v2692 = vld [vmem:[%s300 + $0xf0] sm:$0xff]
      %v2693 = vld [vmem:[%s300 + $0xf8] sm:$0xff]
      %v2694 = vld [vmem:[%s300 + $0x100] sm:$0xff]
      %v2695 = vld [vmem:[%s300 + $0x108] sm:$0xff]
      %v2696 = vld [vmem:[%s300 + $0x110] sm:$0xff]
      %v2697 = vld [vmem:[%s300 + $0x118] sm:$0xff]
      %v2698 = vld [vmem:[%s300 + $0x120] sm:$0xff]
      %v2699 = vld [vmem:[%s300 + $0x128] sm:$0xff]
      %v2700 = vld [vmem:[%s300 + $0x130] sm:$0xff]
      %v2701 = vld [vmem:[%s300 + $0x138] sm:$0xff]
      %v2702 = vld [vmem:[%s300 + $0x140] sm:$0xff]
      %v2703 = vld [vmem:[%s300 + $0x148] sm:$0xff]
      %v2704 = vld [vmem:[%s300 + $0x150] sm:$0xff]
      %v2705 = vld [vmem:[%s300 + $0x158] sm:$0xff]
      %v2706 = vld [vmem:[%s300 + $0x160] sm:$0xff]
      %v2707 = vld [vmem:[%s300 + $0x168] sm:$0xff]
      %v2708 = vld [vmem:[%s300 + $0x170] sm:$0xff]
      %v2709 = vld [vmem:[%s300 + $0x178] sm:$0xff]
      %v2710 = vld [vmem:[%s300 + $0x180] sm:$0xff]
      %v2711 = vld [vmem:[%s300 + $0x188] sm:$0xff]
      %v2712 = vld [vmem:[%s300 + $0x190] sm:$0xff]
      %v2713 = vld [vmem:[%s300 + $0x198] sm:$0xff]
      %v2714 = vld [vmem:[%s300 + $0x1a0] sm:$0xff]
      %v2715 = vld [vmem:[%s300 + $0x1a8] sm:$0xff]
      %v2716 = vld [vmem:[%s300 + $0x1b0] sm:$0xff]
      %v2717 = vld [vmem:[%s300 + $0x1b8] sm:$0xff]
      %v2718 = vld [vmem:[%s300 + $0x1c0] sm:$0xff]
      %v2719 = vld [vmem:[%s300 + $0x1c8] sm:$0xff]
      %v2720 = vld [vmem:[%s300 + $0x1d0] sm:$0xff]
      %v2721 = vld [vmem:[%s300 + $0x1d8] sm:$0xff]
      %v2722 = vld [vmem:[%s300 + $0x1e0] sm:$0xff]
      %v2723 = vld [vmem:[%s300 + $0x1e8] sm:$0xff]
      %v2724 = vld [vmem:[%s300 + $0x1f0] sm:$0xff]
      %v2725 = vld [vmem:[%s300 + $0x1f8] sm:$0xff]
      %v2726 = vld [vmem:[%s300 + $0x200] sm:$0xff]
      %v2727 = vld [vmem:[%s300 + $0x208] sm:$0xff]
      %v2728 = vld [vmem:[%s300 + $0x210] sm:$0xff]
      %v2729 = vld [vmem:[%s300 + $0x218] sm:$0xff]
      %v2730 = vld [vmem:[%s300 + $0x220] sm:$0xff]
      %v2731 = vld [vmem:[%s300 + $0x228] sm:$0xff]
      %v2732 = vld [vmem:[%s300 + $0x230] sm:$0xff]
      %v2733 = vld [vmem:[%s300 + $0x238] sm:$0xff]
      %2735 = vset.pattern.permute.xlu0 0
      %2736 = vperm.xlu0 %2735, %v2662
      %v2737 = vpop.permute.xlu0 %2736
      %2740 = vset.pattern.permute.xlu0 0
      %2741 = vperm.xlu0 %2740, %v2663
      %v2742 = vpop.permute.xlu0 %2741
      %2745 = vset.pattern.permute.xlu0 0
      %2746 = vperm.xlu0 %2745, %v2664
      %v2747 = vpop.permute.xlu0 %2746
      %2750 = vset.pattern.permute.xlu0 0
      %2751 = vperm.xlu0 %2750, %v2665
      %v2752 = vpop.permute.xlu0 %2751
      %2755 = vset.pattern.permute.xlu0 0
      %2756 = vperm.xlu0 %2755, %v2666
      %v2757 = vpop.permute.xlu0 %2756
      %2760 = vset.pattern.permute.xlu0 0
      %2761 = vperm.xlu0 %2760, %v2667
      %v2762 = vpop.permute.xlu0 %2761
      %2765 = vset.pattern.permute.xlu0 0
      %2766 = vperm.xlu0 %2765, %v2668
      %v2767 = vpop.permute.xlu0 %2766
      %2770 = vset.pattern.permute.xlu0 0
      %2771 = vperm.xlu0 %2770, %v2669
      %v2772 = vpop.permute.xlu0 %2771
      %2775 = vset.pattern.permute.xlu0 0
      %2776 = vperm.xlu0 %2775, %v2670
      %v2777 = vpop.permute.xlu0 %2776
      %2780 = vset.pattern.permute.xlu0 0
      %2781 = vperm.xlu0 %2780, %v2671
      %v2782 = vpop.permute.xlu0 %2781
      %2785 = vset.pattern.permute.xlu0 0
      %2786 = vperm.xlu0 %2785, %v2672
      %v2787 = vpop.permute.xlu0 %2786
      %2790 = vset.pattern.permute.xlu0 0
      %2791 = vperm.xlu0 %2790, %v2673
      %v2792 = vpop.permute.xlu0 %2791
      %2795 = vset.pattern.permute.xlu0 0
      %2796 = vperm.xlu0 %2795, %v2674
      %v2797 = vpop.permute.xlu0 %2796
      %2800 = vset.pattern.permute.xlu0 0
      %2801 = vperm.xlu0 %2800, %v2675
      %v2802 = vpop.permute.xlu0 %2801
      %2805 = vset.pattern.permute.xlu0 0
      %2806 = vperm.xlu0 %2805, %v2676
      %v2807 = vpop.permute.xlu0 %2806
      %2810 = vset.pattern.permute.xlu0 0
      %2811 = vperm.xlu0 %2810, %v2677
      %v2812 = vpop.permute.xlu0 %2811
      %2815 = vset.pattern.permute.xlu0 0
      %2816 = vperm.xlu0 %2815, %v2678
      %v2817 = vpop.permute.xlu0 %2816
      %2820 = vset.pattern.permute.xlu0 0
      %2821 = vperm.xlu0 %2820, %v2679
      %v2822 = vpop.permute.xlu0 %2821
      %2825 = vset.pattern.permute.xlu0 0
      %2826 = vperm.xlu0 %2825, %v2680
      %v2827 = vpop.permute.xlu0 %2826
      %2830 = vset.pattern.permute.xlu0 0
      %2831 = vperm.xlu0 %2830, %v2681
      %v2832 = vpop.permute.xlu0 %2831
      %2835 = vset.pattern.permute.xlu0 0
      %2836 = vperm.xlu0 %2835, %v2682
      %v2837 = vpop.permute.xlu0 %2836
      %2840 = vset.pattern.permute.xlu0 0
      %2841 = vperm.xlu0 %2840, %v2683
      %v2842 = vpop.permute.xlu0 %2841
      %2845 = vset.pattern.permute.xlu0 0
      %2846 = vperm.xlu0 %2845, %v2684
      %v2847 = vpop.permute.xlu0 %2846
      %2850 = vset.pattern.permute.xlu0 0
      %2851 = vperm.xlu0 %2850, %v2685
      %v2852 = vpop.permute.xlu0 %2851
      %2855 = vset.pattern.permute.xlu0 0
      %2856 = vperm.xlu0 %2855, %v2686
      %v2857 = vpop.permute.xlu0 %2856
      %2860 = vset.pattern.permute.xlu0 0
      %2861 = vperm.xlu0 %2860, %v2687
      %v2862 = vpop.permute.xlu0 %2861
      %2865 = vset.pattern.permute.xlu0 0
      %2866 = vperm.xlu0 %2865, %v2688
      %v2867 = vpop.permute.xlu0 %2866
      %2870 = vset.pattern.permute.xlu0 0
      %2871 = vperm.xlu0 %2870, %v2689
      %v2872 = vpop.permute.xlu0 %2871
      %2875 = vset.pattern.permute.xlu0 0
      %2876 = vperm.xlu0 %2875, %v2690
      %v2877 = vpop.permute.xlu0 %2876
      %2880 = vset.pattern.permute.xlu0 0
      %2881 = vperm.xlu0 %2880, %v2691
      %v2882 = vpop.permute.xlu0 %2881
      %2885 = vset.pattern.permute.xlu0 0
      %2886 = vperm.xlu0 %2885, %v2692
      %v2887 = vpop.permute.xlu0 %2886
      %2890 = vset.pattern.permute.xlu0 0
      %2891 = vperm.xlu0 %2890, %v2693
      %v2892 = vpop.permute.xlu0 %2891
      %2895 = vset.pattern.permute.xlu0 0
      %2896 = vperm.xlu0 %2895, %v2694
      %v2897 = vpop.permute.xlu0 %2896
      %2900 = vset.pattern.permute.xlu0 0
      %2901 = vperm.xlu0 %2900, %v2695
      %v2902 = vpop.permute.xlu0 %2901
      %2905 = vset.pattern.permute.xlu0 0
      %2906 = vperm.xlu0 %2905, %v2696
      %v2907 = vpop.permute.xlu0 %2906
      %2910 = vset.pattern.permute.xlu0 0
      %2911 = vperm.xlu0 %2910, %v2697
      %v2912 = vpop.permute.xlu0 %2911
      %2915 = vset.pattern.permute.xlu0 0
      %2916 = vperm.xlu0 %2915, %v2698
      %v2917 = vpop.permute.xlu0 %2916
      %2920 = vset.pattern.permute.xlu0 0
      %2921 = vperm.xlu0 %2920, %v2699
      %v2922 = vpop.permute.xlu0 %2921
      %2925 = vset.pattern.permute.xlu0 0
      %2926 = vperm.xlu0 %2925, %v2700
      %v2927 = vpop.permute.xlu0 %2926
      %2930 = vset.pattern.permute.xlu0 0
      %2931 = vperm.xlu0 %2930, %v2701
      %v2932 = vpop.permute.xlu0 %2931
      %2935 = vset.pattern.permute.xlu0 0
      %2936 = vperm.xlu0 %2935, %v2702
      %v2937 = vpop.permute.xlu0 %2936
      %2940 = vset.pattern.permute.xlu0 0
      %2941 = vperm.xlu0 %2940, %v2703
      %v2942 = vpop.permute.xlu0 %2941
      %2945 = vset.pattern.permute.xlu0 0
      %2946 = vperm.xlu0 %2945, %v2704
      %v2947 = vpop.permute.xlu0 %2946
      %2950 = vset.pattern.permute.xlu0 0
      %2951 = vperm.xlu0 %2950, %v2705
      %v2952 = vpop.permute.xlu0 %2951
      %2955 = vset.pattern.permute.xlu0 0
      %2956 = vperm.xlu0 %2955, %v2706
      %v2957 = vpop.permute.xlu0 %2956
      %2960 = vset.pattern.permute.xlu0 0
      %2961 = vperm.xlu0 %2960, %v2707
      %v2962 = vpop.permute.xlu0 %2961
      %2965 = vset.pattern.permute.xlu0 0
      %2966 = vperm.xlu0 %2965, %v2708
      %v2967 = vpop.permute.xlu0 %2966
      %2970 = vset.pattern.permute.xlu0 0
      %2971 = vperm.xlu0 %2970, %v2709
      %v2972 = vpop.permute.xlu0 %2971
      %2975 = vset.pattern.permute.xlu0 0
      %2976 = vperm.xlu0 %2975, %v2710
      %v2977 = vpop.permute.xlu0 %2976
      %2980 = vset.pattern.permute.xlu0 0
      %2981 = vperm.xlu0 %2980, %v2711
      %v2982 = vpop.permute.xlu0 %2981
      %2985 = vset.pattern.permute.xlu0 0
      %2986 = vperm.xlu0 %2985, %v2712
      %v2987 = vpop.permute.xlu0 %2986
      %2990 = vset.pattern.permute.xlu0 0
      %2991 = vperm.xlu0 %2990, %v2713
      %v2992 = vpop.permute.xlu0 %2991
      %2995 = vset.pattern.permute.xlu0 0
      %2996 = vperm.xlu0 %2995, %v2714
      %v2997 = vpop.permute.xlu0 %2996
      %3000 = vset.pattern.permute.xlu0 0
      %3001 = vperm.xlu0 %3000, %v2715
      %v3002 = vpop.permute.xlu0 %3001
      %3005 = vset.pattern.permute.xlu0 0
      %3006 = vperm.xlu0 %3005, %v2716
      %v3007 = vpop.permute.xlu0 %3006
      %3010 = vset.pattern.permute.xlu0 0
      %3011 = vperm.xlu0 %3010, %v2717
      %v3012 = vpop.permute.xlu0 %3011
      %3015 = vset.pattern.permute.xlu0 0
      %3016 = vperm.xlu0 %3015, %v2718
      %v3017 = vpop.permute.xlu0 %3016
      %3020 = vset.pattern.permute.xlu0 0
      %3021 = vperm.xlu0 %3020, %v2719
      %v3022 = vpop.permute.xlu0 %3021
      %3025 = vset.pattern.permute.xlu0 0
      %3026 = vperm.xlu0 %3025, %v2720
      %v3027 = vpop.permute.xlu0 %3026
      %3030 = vset.pattern.permute.xlu0 0
      %3031 = vperm.xlu0 %3030, %v2721
      %v3032 = vpop.permute.xlu0 %3031
      %3035 = vset.pattern.permute.xlu0 0
      %3036 = vperm.xlu0 %3035, %v2722
      %v3037 = vpop.permute.xlu0 %3036
      %3040 = vset.pattern.permute.xlu0 0
      %3041 = vperm.xlu0 %3040, %v2723
      %v3042 = vpop.permute.xlu0 %3041
      %3045 = vset.pattern.permute.xlu0 0
      %3046 = vperm.xlu0 %3045, %v2724
      %v3047 = vpop.permute.xlu0 %3046
      %3050 = vset.pattern.permute.xlu0 0
      %3051 = vperm.xlu0 %3050, %v2725
      %v3052 = vpop.permute.xlu0 %3051
      %3055 = vset.pattern.permute.xlu0 0
      %3056 = vperm.xlu0 %3055, %v2726
      %v3057 = vpop.permute.xlu0 %3056
      %3060 = vset.pattern.permute.xlu0 0
      %3061 = vperm.xlu0 %3060, %v2727
      %v3062 = vpop.permute.xlu0 %3061
      %3065 = vset.pattern.permute.xlu0 0
      %3066 = vperm.xlu0 %3065, %v2728
      %v3067 = vpop.permute.xlu0 %3066
      %3070 = vset.pattern.permute.xlu0 0
      %3071 = vperm.xlu0 %3070, %v2729
      %v3072 = vpop.permute.xlu0 %3071
      %3075 = vset.pattern.permute.xlu0 0
      %3076 = vperm.xlu0 %3075, %v2730
      %v3077 = vpop.permute.xlu0 %3076
      %3080 = vset.pattern.permute.xlu0 0
      %3081 = vperm.xlu0 %3080, %v2731
      %v3082 = vpop.permute.xlu0 %3081
      %3085 = vset.pattern.permute.xlu0 0
      %3086 = vperm.xlu0 %3085, %v2732
      %v3087 = vpop.permute.xlu0 %3086
      %3090 = vset.pattern.permute.xlu0 0
      %3091 = vperm.xlu0 %3090, %v2733
      %v3092 = vpop.permute.xlu0 %3091
      %v3094 = vmul.f32 %v2230, %v2737
      %v3095 = vmul.f32 %v2231, %v2742
      %v3096 = vmul.f32 %v2232, %v2747
      %v3097 = vmul.f32 %v2233, %v2752
      %v3098 = vmul.f32 %v2234, %v2757
      %v3099 = vmul.f32 %v2235, %v2762
      %v3100 = vmul.f32 %v2236, %v2767
      %v3101 = vmul.f32 %v2237, %v2772
      %v3102 = vmul.f32 %v2238, %v2777
      %v3103 = vmul.f32 %v2239, %v2782
      %v3104 = vmul.f32 %v2240, %v2787
      %v3105 = vmul.f32 %v2241, %v2792
      %v3106 = vmul.f32 %v2242, %v2797
      %v3107 = vmul.f32 %v2243, %v2802
      %v3108 = vmul.f32 %v2244, %v2807
      %v3109 = vmul.f32 %v2245, %v2812
      %v3110 = vmul.f32 %v2246, %v2817
      %v3111 = vmul.f32 %v2247, %v2822
      %v3112 = vmul.f32 %v2248, %v2827
      %v3113 = vmul.f32 %v2249, %v2832
      %v3114 = vmul.f32 %v2250, %v2837
      %v3115 = vmul.f32 %v2251, %v2842
      %v3116 = vmul.f32 %v2252, %v2847
      %v3117 = vmul.f32 %v2253, %v2852
      %v3118 = vmul.f32 %v2254, %v2857
      %v3119 = vmul.f32 %v2255, %v2862
      %v3120 = vmul.f32 %v2256, %v2867
      %v3121 = vmul.f32 %v2257, %v2872
      %v3122 = vmul.f32 %v2258, %v2877
      %v3123 = vmul.f32 %v2259, %v2882
      %v3124 = vmul.f32 %v2260, %v2887
      %v3125 = vmul.f32 %v2261, %v2892
      %v3126 = vmul.f32 %v2262, %v2897
      %v3127 = vmul.f32 %v2263, %v2902
      %v3128 = vmul.f32 %v2264, %v2907
      %v3129 = vmul.f32 %v2265, %v2912
      %v3130 = vmul.f32 %v2266, %v2917
      %v3131 = vmul.f32 %v2267, %v2922
      %v3132 = vmul.f32 %v2268, %v2927
      %v3133 = vmul.f32 %v2269, %v2932
      %v3134 = vmul.f32 %v2270, %v2937
      %v3135 = vmul.f32 %v2271, %v2942
      %v3136 = vmul.f32 %v2272, %v2947
      %v3137 = vmul.f32 %v2273, %v2952
      %v3138 = vmul.f32 %v2274, %v2957
      %v3139 = vmul.f32 %v2275, %v2962
      %v3140 = vmul.f32 %v2276, %v2967
      %v3141 = vmul.f32 %v2277, %v2972
      %v3142 = vmul.f32 %v2278, %v2977
      %v3143 = vmul.f32 %v2279, %v2982
      %v3144 = vmul.f32 %v2280, %v2987
      %v3145 = vmul.f32 %v2281, %v2992
      %v3146 = vmul.f32 %v2282, %v2997
      %v3147 = vmul.f32 %v2283, %v3002
      %v3148 = vmul.f32 %v2284, %v3007
      %v3149 = vmul.f32 %v2285, %v3012
      %v3150 = vmul.f32 %v2286, %v3017
      %v3151 = vmul.f32 %v2287, %v3022
      %v3152 = vmul.f32 %v2288, %v3027
      %v3153 = vmul.f32 %v2289, %v3032
      %v3154 = vmul.f32 %v2290, %v3037
      %v3155 = vmul.f32 %v2291, %v3042
      %v3156 = vmul.f32 %v2292, %v3047
      %v3157 = vmul.f32 %v2293, %v3052
      %v3158 = vmul.f32 %v2294, %v3057
      %v3159 = vmul.f32 %v2295, %v3062
      %v3160 = vmul.f32 %v2296, %v3067
      %v3161 = vmul.f32 %v2297, %v3072
      %v3162 = vmul.f32 %v2298, %v3077
      %v3163 = vmul.f32 %v2299, %v3082
      %v3164 = vmul.f32 %v2300, %v3087
      %v3165 = vmul.f32 %v2301, %v3092
      %v3166 = vadd.f32 %v3094, %v3095
      %v3167 = vadd.f32 %v3166, %v3096
      %v3168 = vadd.f32 %v3167, %v3097
      %v3169 = vadd.f32 %v3168, %v3098
      %v3170 = vadd.f32 %v3169, %v3099
      %v3171 = vadd.f32 %v3170, %v3100
      %v3172 = vadd.f32 %v3171, %v3101
      %v3173 = vadd.f32 %v3172, %v3102
      %v3174 = vadd.f32 %v3173, %v3103
      %v3175 = vadd.f32 %v3174, %v3104
      %v3176 = vadd.f32 %v3175, %v3105
      %v3177 = vadd.f32 %v3176, %v3106
      %v3178 = vadd.f32 %v3177, %v3107
      %v3179 = vadd.f32 %v3178, %v3108
      %v3180 = vadd.f32 %v3179, %v3109
      %v3181 = vadd.f32 %v3180, %v3110
      %v3182 = vadd.f32 %v3181, %v3111
      %v3183 = vadd.f32 %v3182, %v3112
      %v3184 = vadd.f32 %v3183, %v3113
      %v3185 = vadd.f32 %v3184, %v3114
      %v3186 = vadd.f32 %v3185, %v3115
      %v3187 = vadd.f32 %v3186, %v3116
      %v3188 = vadd.f32 %v3187, %v3117
      %v3189 = vadd.f32 %v3188, %v3118
      %v3190 = vadd.f32 %v3189, %v3119
      %v3191 = vadd.f32 %v3190, %v3120
      %v3192 = vadd.f32 %v3191, %v3121
      %v3193 = vadd.f32 %v3192, %v3122
      %v3194 = vadd.f32 %v3193, %v3123
      %v3195 = vadd.f32 %v3194, %v3124
      %v3196 = vadd.f32 %v3195, %v3125
      %v3197 = vadd.f32 %v3196, %v3126
      %v3198 = vadd.f32 %v3197, %v3127
      %v3199 = vadd.f32 %v3198, %v3128
      %v3200 = vadd.f32 %v3199, %v3129
      %v3201 = vadd.f32 %v3200, %v3130
      %v3202 = vadd.f32 %v3201, %v3131
      %v3203 = vadd.f32 %v3202, %v3132
      %v3204 = vadd.f32 %v3203, %v3133
      %v3205 = vadd.f32 %v3204, %v3134
      %v3206 = vadd.f32 %v3205, %v3135
      %v3207 = vadd.f32 %v3206, %v3136
      %v3208 = vadd.f32 %v3207, %v3137
      %v3209 = vadd.f32 %v3208, %v3138
      %v3210 = vadd.f32 %v3209, %v3139
      %v3211 = vadd.f32 %v3210, %v3140
      %v3212 = vadd.f32 %v3211, %v3141
      %v3213 = vadd.f32 %v3212, %v3142
      %v3214 = vadd.f32 %v3213, %v3143
      %v3215 = vadd.f32 %v3214, %v3144
      %v3216 = vadd.f32 %v3215, %v3145
      %v3217 = vadd.f32 %v3216, %v3146
      %v3218 = vadd.f32 %v3217, %v3147
      %v3219 = vadd.f32 %v3218, %v3148
      %v3220 = vadd.f32 %v3219, %v3149
      %v3221 = vadd.f32 %v3220, %v3150
      %v3222 = vadd.f32 %v3221, %v3151
      %v3223 = vadd.f32 %v3222, %v3152
      %v3224 = vadd.f32 %v3223, %v3153
      %v3225 = vadd.f32 %v3224, %v3154
      %v3226 = vadd.f32 %v3225, %v3155
      %v3227 = vadd.f32 %v3226, %v3156
      %v3228 = vadd.f32 %v3227, %v3157
      %v3229 = vadd.f32 %v3228, %v3158
      %v3230 = vadd.f32 %v3229, %v3159
      %v3231 = vadd.f32 %v3230, %v3160
      %v3232 = vadd.f32 %v3231, %v3161
      %v3233 = vadd.f32 %v3232, %v3162
      %v3234 = vadd.f32 %v3233, %v3163
      %v3235 = vadd.f32 %v3234, %v3164
      %v3236 = vadd.f32 %v3235, %v3165
      %v3237 = vrot.slane %v3236, 4
      %v3238 = vadd.f32 %v3236, %v3237
      %v3239 = vrot.slane %v3238, 2
      %v3240 = vadd.f32 %v3238, %v3239
      %v3241 = vrot.slane %v3240, 1
      %v3242 = vadd.f32 %v3240, %v3241
      %3243 = vst [vmem:[%s316] sm:$0x1] %v3242
      %v3244 = vmul.f32 %v3094, %v2230
      %v3245 = vmul.f32 %v3095, %v2231
      %v3246 = vmul.f32 %v3096, %v2232
      %v3247 = vmul.f32 %v3097, %v2233
      %v3248 = vmul.f32 %v3098, %v2234
      %v3249 = vmul.f32 %v3099, %v2235
      %v3250 = vmul.f32 %v3100, %v2236
      %v3251 = vmul.f32 %v3101, %v2237
      %v3252 = vmul.f32 %v3102, %v2238
      %v3253 = vmul.f32 %v3103, %v2239
      %v3254 = vmul.f32 %v3104, %v2240
      %v3255 = vmul.f32 %v3105, %v2241
      %v3256 = vmul.f32 %v3106, %v2242
      %v3257 = vmul.f32 %v3107, %v2243
      %v3258 = vmul.f32 %v3108, %v2244
      %v3259 = vmul.f32 %v3109, %v2245
      %v3260 = vmul.f32 %v3110, %v2246
      %v3261 = vmul.f32 %v3111, %v2247
      %v3262 = vmul.f32 %v3112, %v2248
      %v3263 = vmul.f32 %v3113, %v2249
      %v3264 = vmul.f32 %v3114, %v2250
      %v3265 = vmul.f32 %v3115, %v2251
      %v3266 = vmul.f32 %v3116, %v2252
      %v3267 = vmul.f32 %v3117, %v2253
      %v3268 = vmul.f32 %v3118, %v2254
      %v3269 = vmul.f32 %v3119, %v2255
      %v3270 = vmul.f32 %v3120, %v2256
      %v3271 = vmul.f32 %v3121, %v2257
      %v3272 = vmul.f32 %v3122, %v2258
      %v3273 = vmul.f32 %v3123, %v2259
      %v3274 = vmul.f32 %v3124, %v2260
      %v3275 = vmul.f32 %v3125, %v2261
      %v3276 = vmul.f32 %v3126, %v2262
      %v3277 = vmul.f32 %v3127, %v2263
      %v3278 = vmul.f32 %v3128, %v2264
      %v3279 = vmul.f32 %v3129, %v2265
      %v3280 = vmul.f32 %v3130, %v2266
      %v3281 = vmul.f32 %v3131, %v2267
      %v3282 = vmul.f32 %v3132, %v2268
      %v3283 = vmul.f32 %v3133, %v2269
      %v3284 = vmul.f32 %v3134, %v2270
      %v3285 = vmul.f32 %v3135, %v2271
      %v3286 = vmul.f32 %v3136, %v2272
      %v3287 = vmul.f32 %v3137, %v2273
      %v3288 = vmul.f32 %v3138, %v2274
      %v3289 = vmul.f32 %v3139, %v2275
      %v3290 = vmul.f32 %v3140, %v2276
      %v3291 = vmul.f32 %v3141, %v2277
      %v3292 = vmul.f32 %v3142, %v2278
      %v3293 = vmul.f32 %v3143, %v2279
      %v3294 = vmul.f32 %v3144, %v2280
      %v3295 = vmul.f32 %v3145, %v2281
      %v3296 = vmul.f32 %v3146, %v2282
      %v3297 = vmul.f32 %v3147, %v2283
      %v3298 = vmul.f32 %v3148, %v2284
      %v3299 = vmul.f32 %v3149, %v2285
      %v3300 = vmul.f32 %v3150, %v2286
      %v3301 = vmul.f32 %v3151, %v2287
      %v3302 = vmul.f32 %v3152, %v2288
      %v3303 = vmul.f32 %v3153, %v2289
      %v3304 = vmul.f32 %v3154, %v2290
      %v3305 = vmul.f32 %v3155, %v2291
      %v3306 = vmul.f32 %v3156, %v2292
      %v3307 = vmul.f32 %v3157, %v2293
      %v3308 = vmul.f32 %v3158, %v2294
      %v3309 = vmul.f32 %v3159, %v2295
      %v3310 = vmul.f32 %v3160, %v2296
      %v3311 = vmul.f32 %v3161, %v2297
      %v3312 = vmul.f32 %v3162, %v2298
      %v3313 = vmul.f32 %v3163, %v2299
      %v3314 = vmul.f32 %v3164, %v2300
      %v3315 = vmul.f32 %v3165, %v2301
      %v3316 = vadd.f32 %v3244, %v3245
      %v3317 = vadd.f32 %v3316, %v3246
      %v3318 = vadd.f32 %v3317, %v3247
      %v3319 = vadd.f32 %v3318, %v3248
      %v3320 = vadd.f32 %v3319, %v3249
      %v3321 = vadd.f32 %v3320, %v3250
      %v3322 = vadd.f32 %v3321, %v3251
      %v3323 = vadd.f32 %v3322, %v3252
      %v3324 = vadd.f32 %v3323, %v3253
      %v3325 = vadd.f32 %v3324, %v3254
      %v3326 = vadd.f32 %v3325, %v3255
      %v3327 = vadd.f32 %v3326, %v3256
      %v3328 = vadd.f32 %v3327, %v3257
      %v3329 = vadd.f32 %v3328, %v3258
      %v3330 = vadd.f32 %v3329, %v3259
      %v3331 = vadd.f32 %v3330, %v3260
      %v3332 = vadd.f32 %v3331, %v3261
      %v3333 = vadd.f32 %v3332, %v3262
      %v3334 = vadd.f32 %v3333, %v3263
      %v3335 = vadd.f32 %v3334, %v3264
      %v3336 = vadd.f32 %v3335, %v3265
      %v3337 = vadd.f32 %v3336, %v3266
      %v3338 = vadd.f32 %v3337, %v3267
      %v3339 = vadd.f32 %v3338, %v3268
      %v3340 = vadd.f32 %v3339, %v3269
      %v3341 = vadd.f32 %v3340, %v3270
      %v3342 = vadd.f32 %v3341, %v3271
      %v3343 = vadd.f32 %v3342, %v3272
      %v3344 = vadd.f32 %v3343, %v3273
      %v3345 = vadd.f32 %v3344, %v3274
      %v3346 = vadd.f32 %v3345, %v3275
      %v3347 = vadd.f32 %v3346, %v3276
      %v3348 = vadd.f32 %v3347, %v3277
      %v3349 = vadd.f32 %v3348, %v3278
      %v3350 = vadd.f32 %v3349, %v3279
      %v3351 = vadd.f32 %v3350, %v3280
      %v3352 = vadd.f32 %v3351, %v3281
      %v3353 = vadd.f32 %v3352, %v3282
      %v3354 = vadd.f32 %v3353, %v3283
      %v3355 = vadd.f32 %v3354, %v3284
      %v3356 = vadd.f32 %v3355, %v3285
      %v3357 = vadd.f32 %v3356, %v3286
      %v3358 = vadd.f32 %v3357, %v3287
      %v3359 = vadd.f32 %v3358, %v3288
      %v3360 = vadd.f32 %v3359, %v3289
      %v3361 = vadd.f32 %v3360, %v3290
      %v3362 = vadd.f32 %v3361, %v3291
      %v3363 = vadd.f32 %v3362, %v3292
      %v3364 = vadd.f32 %v3363, %v3293
      %v3365 = vadd.f32 %v3364, %v3294
      %v3366 = vadd.f32 %v3365, %v3295
      %v3367 = vadd.f32 %v3366, %v3296
      %v3368 = vadd.f32 %v3367, %v3297
      %v3369 = vadd.f32 %v3368, %v3298
      %v3370 = vadd.f32 %v3369, %v3299
      %v3371 = vadd.f32 %v3370, %v3300
      %v3372 = vadd.f32 %v3371, %v3301
      %v3373 = vadd.f32 %v3372, %v3302
      %v3374 = vadd.f32 %v3373, %v3303
      %v3375 = vadd.f32 %v3374, %v3304
      %v3376 = vadd.f32 %v3375, %v3305
      %v3377 = vadd.f32 %v3376, %v3306
      %v3378 = vadd.f32 %v3377, %v3307
      %v3379 = vadd.f32 %v3378, %v3308
      %v3380 = vadd.f32 %v3379, %v3309
      %v3381 = vadd.f32 %v3380, %v3310
      %v3382 = vadd.f32 %v3381, %v3311
      %v3383 = vadd.f32 %v3382, %v3312
      %v3384 = vadd.f32 %v3383, %v3313
      %v3385 = vadd.f32 %v3384, %v3314
      %v3386 = vadd.f32 %v3385, %v3315
      %v3387 = vrot.slane %v3386, 4
      %v3388 = vadd.f32 %v3386, %v3387
      %v3389 = vrot.slane %v3388, 2
      %v3390 = vadd.f32 %v3388, %v3389
      %v3391 = vrot.slane %v3390, 1
      %v3392 = vadd.f32 %v3390, %v3391
      %3393 = vst [vmem:[%s322] sm:$0x1] %v3392
      %s3394 = smul.u32 72, %s21
      %p3395 = scmp.lt.s32.totalorder %s3394, 143
      %s3396 = scalar_select %p3395, %s3394, 143
      %p3397 = scmp.lt.s32.totalorder %s22, 0
      %s3398 = scalar_select %p3397, %s22, 0
      %s3399 = sadd.s32 %s3398, %s3396
      %s3400 = smul.addr %s3399, 4
      %s3401 = scalar_lea.vmem %s3, %s3400
      %p3402 = scmp.lt.s32.totalorder %s21, 1
      %s3403 = scalar_select %p3402, %s21, 1
      %p3404 = scmp.lt.s32.totalorder %s22, 0
      %s3405 = scalar_select %p3404, %s22, 0
      %s3406 = sadd.s32 %s3405, %s3403
      %s3407 = scalar_lea.vmem %s4, %s3406
      %p3408 = scmp.lt.s32.totalorder %s21, 1
      %s3409 = scalar_select %p3408, %s21, 1
      %p3410 = scmp.lt.s32.totalorder %s22, 0
      %s3411 = scalar_select %p3410, %s22, 0
      %s3412 = sadd.s32 %s3411, %s3409
      %s3413 = scalar_lea.vmem %s5, %s3412
      // Predicated region
      $region33: #{unet_forward.18} parent=31 // pred_check
        %p3414 = pneg %p127
      $region34: #{unet_forward.18} parent=31 // pred_check_branch
        %3416 = sbr.rel (%p3414) target = $region36
      $region35: #{unet_forward.18} parent=31 // pred_region
        %s3417 = smul.u32 72, %s21
      $region36: #{unet_forward.18} parent=31 // pred_fallthru
        _
      // Predicated region
      $region37: #{unet_forward.18} parent=31 // pred_check
        %p3418 = pneg %p155
      $region38: #{unet_forward.18} parent=31 // pred_check_branch
        %3420 = sbr.rel (%p3418) target = $region40
      $region39: #{unet_forward.18} parent=31 // pred_region
        _
      $region40: #{unet_forward.18} parent=31 // pred_fallthru
        _
      // Predicated region
      $region41: #{unet_forward.18} parent=31 // pred_check
        %p3421 = pneg %p183
      $region42: #{unet_forward.18} parent=31 // pred_check_branch
        %3423 = sbr.rel (%p3421) target = $region44
      $region43: #{unet_forward.18} parent=31 // pred_region
        _
      $region44: #{unet_forward.18} parent=31 // pred_fallthru
        _
    $region32: #{unet_forward.18} parent=5 // pred_fallthru
      _
    %p3424 = scmp.le.s32.totalorder 2, %s12
    // Predicated region
    $region45: #{unet_forward.18} parent=5 // pred_check
      %p3425 = pneg %p3424
    $region46: #{unet_forward.18} parent=5 // pred_check_branch
      %3427 = sbr.rel (%p3425) target = $region48
    $region47: #{unet_forward.18} parent=5 // pred_region
      %s3428 = ssub.s32 %s12, 2
      // Predicated region
      $region49: #{unet_forward.18} parent=47 // pred_check
        %p3429 = pneg %p133
      $region50: #{unet_forward.18} parent=47 // pred_check_branch
        %3431 = sbr.rel (%p3429) target = $region52
      $region51: #{unet_forward.18} parent=47 // pred_region
        %s3432 = smul.u32 72, %s23
        %p3433 = scmp.lt.s32.totalorder %s3432, 143
        %s3434 = scalar_select %p3433, %s3432, 143
        %p3435 = scmp.lt.s32.totalorder %s24, 0
        %s3436 = scalar_select %p3435, %s24, 0
        %s3437 = sadd.s32 %s3436, %s3434
        %s3438 = smul.addr %s3437, 4
        %s3439 = scalar_lea.vmem %s3, %s3438
      $region52: #{unet_forward.18} parent=47 // pred_fallthru
        _
      // Predicated region
      $region53: #{unet_forward.18} parent=47 // pred_check
        %p3440 = pneg %p161
      $region54: #{unet_forward.18} parent=47 // pred_check_branch
        %3442 = sbr.rel (%p3440) target = $region56
      $region55: #{unet_forward.18} parent=47 // pred_region
        %p3443 = scmp.lt.s32.totalorder %s23, 1
        %s3444 = scalar_select %p3443, %s23, 1
        %p3445 = scmp.lt.s32.totalorder %s24, 0
        %s3446 = scalar_select %p3445, %s24, 0
        %s3447 = sadd.s32 %s3446, %s3444
        %s3448 = scalar_lea.vmem %s4, %s3447
      $region56: #{unet_forward.18} parent=47 // pred_fallthru
        _
      // Predicated region
      $region57: #{unet_forward.18} parent=47 // pred_check
        %p3449 = pneg %p189
      $region58: #{unet_forward.18} parent=47 // pred_check_branch
        %3451 = sbr.rel (%p3449) target = $region60
      $region59: #{unet_forward.18} parent=47 // pred_region
        %p3452 = scmp.lt.s32.totalorder %s23, 1
        %s3453 = scalar_select %p3452, %s23, 1
        %p3454 = scmp.lt.s32.totalorder %s24, 0
        %s3455 = scalar_select %p3454, %s24, 0
        %s3456 = sadd.s32 %s3455, %s3453
        %s3457 = scalar_lea.vmem %s5, %s3456
      $region60: #{unet_forward.18} parent=47 // pred_fallthru
        _
    $region48: #{unet_forward.18} parent=5 // pred_fallthru
      _
  $region6: #{unet_forward.18} parent=0 // loop_footer
    %s16 = sadd.s32 1, %s12
  $region7: #{unet_forward.18} parent=0 // loop_footer_branch
    %11 = sbr.rel target = $region3
  $region8: #{unet_forward.18} parent=0 // loop_exit
    _

// kernel: unet_forward.19
$region0: #{unet_forward.19}
  #allocation0 [shape = 'u32[]', space=smem, size = 0x4, offset = 0x4, fixed_abs, tag = 'smem constant byte address 0x4 - core index']
  #allocation1 [shape = 'u32[144,128]{1,0:T(1,128)}', space=vmem, size = 0x12000, scoped, tag = 'internal scratch']
  %s0 = inlined_call_operand.vmem [shape: bf16[1152,128], index: 0, kind: input, shape index: {}]
  %s1 = inlined_call_operand.vmem [shape: bf16[128,128], index: 1, kind: input, shape index: {}]
  %s2 = inlined_call_operand.vmem [shape: f32[1152,1], index: 2, kind: input, shape index: {}]
  %s3 = inlined_call_operand.vmem [shape: bf16[1152,128], index: 3, kind: output, shape index: {0}]
  %s4 = inlined_call_operand.vmem [shape: f32[2,1,128], index: 4, kind: output, shape index: {1}]
  %s5 = inlined_call_operand.vmem [shape: f32[2,1,128], index: 5, kind: output, shape index: {2}]
  %6 = xla_tuple %s3, %s4, %s5
  %s7 = sld [smem:[#allocation0]]
  $region61: #{unet_forward.19} parent=0
    _
  %s9 = ssub.s32 1, %s7
  %s10 = scalar_select 0, %s9, %s7
  loop: start=0, step=1, limit=4
  $region2: #{unet_forward.19} parent=0 // loop_pre_header
    _
  $region3: #{unet_forward.19} parent=0 // loop_header
    %s12 = sphi 0, %s16
    %p13 = scmp.ge.s32.totalorder %s12, 4
    %s19 = sphi 0, %s31
    %s20 = sphi 0, %s27
    %s21 = sphi 0, %s19
    %s22 = sphi 0, %s20
    %s23 = sphi 0, %s21
    %s24 = sphi 0, %s22
    %s34 = sphi 0, %s36
    %s37 = sphi 0, %s34
    %s38 = sphi 0, %s37
    %s54 = sphi 0, %s38
    %s60 = sphi 0, %s62
    %s63 = sphi 0, %s60
    %s64 = sphi 0, %s63
    %s80 = sphi 0, %s64
    %s86 = sphi 0, %s88
    %s89 = sphi 0, %s86
    %s90 = sphi 0, %s89
    %s106 = sphi 0, %s90
    %s114 = sphi 0, %s116
    %s117 = sphi 0, %s114
    %s118 = sphi 0, %s117
    %s134 = sphi 0, %s118
    %s142 = sphi 0, %s144
    %s145 = sphi 0, %s142
    %s146 = sphi 0, %s145
    %s162 = sphi 0, %s146
    %s170 = sphi 0, %s172
    %s173 = sphi 0, %s170
    %s174 = sphi 0, %s173
    %s190 = sphi 0, %s174
  $region4: #{unet_forward.19} parent=0 // loop_header_branch
    %15 = sbr.rel (%p13) target = $region8
  $region5: #{unet_forward.19} parent=0 // loop_body
    %s17 = ssub.s32 %s12, 1
    %s18 = ssub.s32 %s12, 2
    %s25 = sadd.s32 1, %s20
    %p26 = scmp.ge.s32.totalorder %s25, 1
    %s27 = scalar_select %p26, 0, %s25
    %s28 = sadd.s32 1, %s19
    %s29 = scalar_select %p26, %s28, %s19
    %p30 = scmp.ge.s32.totalorder %s29, 2
    %s31 = scalar_select %p30, 0, %s29
    %s32 = ssub.s32 %s19, %s31
    %p33 = scmp.eq.s32.totalorder %s32, 0
    %s35 = sadd.s32 %s34, 1
    %s36 = scalar_select %p33, %s34, %s35
    %p39 = pneg %p33
    %p40 = scmp.eq.s32.totalorder %s12, 1
    %p41 = por %p39, %p40
    %p42 = scmp.ne.s32.totalorder %s34, %s37
    %p43 = scmp.eq.s32.totalorder %s12, 0
    %p44 = por %p42, %p43
    %p45 = scmp.ne.s32.totalorder %s34, %s37
    %p46 = scmp.eq.s32.totalorder %s17, 1
    %p47 = por %p45, %p46
    %p48 = scmp.ne.s32.totalorder %s37, %s38
    %p49 = scmp.eq.s32.totalorder %s17, 0
    %p50 = por %p48, %p49
    %p51 = scmp.ne.s32.totalorder %s37, %s38
    %p52 = scmp.eq.s32.totalorder %s18, 1
    %p53 = por %p51, %p52
    %p55 = scmp.ne.s32.totalorder %s38, %s54
    %p56 = scmp.eq.s32.totalorder %s18, 0
    %p57 = por %p55, %p56
    %s58 = ssub.s32 %s20, %s27
    %p59 = scmp.eq.s32.totalorder %s58, 0
    %s61 = sadd.s32 %s60, 1
    %s62 = scalar_select %p59, %s60, %s61
    %p65 = pneg %p59
    %p66 = scmp.eq.s32.totalorder %s12, 1
    %p67 = por %p65, %p66
    %p68 = scmp.ne.s32.totalorder %s60, %s63
    %p69 = scmp.eq.s32.totalorder %s12, 0
    %p70 = por %p68, %p69
    %p71 = scmp.ne.s32.totalorder %s60, %s63
    %p72 = scmp.eq.s32.totalorder %s17, 1
    %p73 = por %p71, %p72
    %p74 = scmp.ne.s32.totalorder %s63, %s64
    %p75 = scmp.eq.s32.totalorder %s17, 0
    %p76 = por %p74, %p75
    %p77 = scmp.ne.s32.totalorder %s63, %s64
    %p78 = scmp.eq.s32.totalorder %s18, 1
    %p79 = por %p77, %p78
    %p81 = scmp.ne.s32.totalorder %s64, %s80
    %p82 = scmp.eq.s32.totalorder %s18, 0
    %p83 = por %p81, %p82
    %s84 = ssub.s32 %s19, %s31
    %p85 = scmp.eq.s32.totalorder %s84, 0
    %s87 = sadd.s32 %s86, 1
    %s88 = scalar_select %p85, %s86, %s87
    %p91 = pneg %p85
    %p92 = scmp.eq.s32.totalorder %s12, 1
    %p93 = por %p91, %p92
    %p94 = scmp.ne.s32.totalorder %s86, %s89
    %p95 = scmp.eq.s32.totalorder %s12, 0
    %p96 = por %p94, %p95
    %p97 = scmp.ne.s32.totalorder %s86, %s89
    %p98 = scmp.eq.s32.totalorder %s17, 1
    %p99 = por %p97, %p98
    %p100 = scmp.ne.s32.totalorder %s89, %s90
    %p101 = scmp.eq.s32.totalorder %s17, 0
    %p102 = por %p100, %p101
    %p103 = scmp.ne.s32.totalorder %s89, %s90
    %p104 = scmp.eq.s32.totalorder %s18, 1
    %p105 = por %p103, %p104
    %p107 = scmp.ne.s32.totalorder %s90, %s106
    %p108 = scmp.eq.s32.totalorder %s18, 0
    %p109 = por %p107, %p108
    %s110 = ssub.s32 %s19, %s31
    %s111 = ssub.s32 %s20, %s27
    %s112 = sor.u32 %s110, %s111
    %p113 = scmp.eq.s32.totalorder %s112, 0
    %s115 = sadd.s32 %s114, 1
    %s116 = scalar_select %p113, %s114, %s115
    %p119 = pneg %p113
    %p120 = scmp.eq.s32.totalorder %s12, 1
    %p121 = por %p119, %p120
    %p122 = scmp.ne.s32.totalorder %s114, %s117
    %p123 = scmp.eq.s32.totalorder %s12, 0
    %p124 = por %p122, %p123
    %p125 = scmp.ne.s32.totalorder %s114, %s117
    %p126 = scmp.eq.s32.totalorder %s17, 1
    %p127 = por %p125, %p126
    %p128 = scmp.ne.s32.totalorder %s117, %s118
    %p129 = scmp.eq.s32.totalorder %s17, 0
    %p130 = por %p128, %p129
    %p131 = scmp.ne.s32.totalorder %s117, %s118
    %p132 = scmp.eq.s32.totalorder %s18, 1
    %p133 = por %p131, %p132
    %p135 = scmp.ne.s32.totalorder %s118, %s134
    %p136 = scmp.eq.s32.totalorder %s18, 0
    %p137 = por %p135, %p136
    %s138 = ssub.s32 %s19, %s31
    %s139 = ssub.s32 %s20, %s27
    %s140 = sor.u32 %s138, %s139
    %p141 = scmp.eq.s32.totalorder %s140, 0
    %s143 = sadd.s32 %s142, 1
    %s144 = scalar_select %p141, %s142, %s143
    %p147 = pneg %p141
    %p148 = scmp.eq.s32.totalorder %s12, 1
    %p149 = por %p147, %p148
    %p150 = scmp.ne.s32.totalorder %s142, %s145
    %p151 = scmp.eq.s32.totalorder %s12, 0
    %p152 = por %p150, %p151
    %p153 = scmp.ne.s32.totalorder %s142, %s145
    %p154 = scmp.eq.s32.totalorder %s17, 1
    %p155 = por %p153, %p154
    %p156 = scmp.ne.s32.totalorder %s145, %s146
    %p157 = scmp.eq.s32.totalorder %s17, 0
    %p158 = por %p156, %p157
    %p159 = scmp.ne.s32.totalorder %s145, %s146
    %p160 = scmp.eq.s32.totalorder %s18, 1
    %p161 = por %p159, %p160
    %p163 = scmp.ne.s32.totalorder %s146, %s162
    %p164 = scmp.eq.s32.totalorder %s18, 0
    %p165 = por %p163, %p164
    %s166 = ssub.s32 %s19, %s31
    %s167 = ssub.s32 %s20, %s27
    %s168 = sor.u32 %s166, %s167
    %p169 = scmp.eq.s32.totalorder %s168, 0
    %s171 = sadd.s32 %s170, 1
    %s172 = scalar_select %p169, %s170, %s171
    %p175 = pneg %p169
    %p176 = scmp.eq.s32.totalorder %s12, 1
    %p177 = por %p175, %p176
    %p178 = scmp.ne.s32.totalorder %s170, %s173
    %p179 = scmp.eq.s32.totalorder %s12, 0
    %p180 = por %p178, %p179
    %p181 = scmp.ne.s32.totalorder %s170, %s173
    %p182 = scmp.eq.s32.totalorder %s17, 1
    %p183 = por %p181, %p182
    %p184 = scmp.ne.s32.totalorder %s173, %s174
    %p185 = scmp.eq.s32.totalorder %s17, 0
    %p186 = por %p184, %p185
    %p187 = scmp.ne.s32.totalorder %s173, %s174
    %p188 = scmp.eq.s32.totalorder %s18, 1
    %p189 = por %p187, %p188
    %p191 = scmp.ne.s32.totalorder %s174, %s190
    %p192 = scmp.eq.s32.totalorder %s18, 0
    %p193 = por %p191, %p192
    %p194 = scmp.le.s32.totalorder 1, %s12
    %p195 = scmp.lt.s32.totalorder %s12, 3
    %p196 = pnand %p194, %p195
    %p197 = pneg %p196
    // Predicated region
    $region9: #{unet_forward.19} parent=5 // pred_check
      _
    $region10: #{unet_forward.19} parent=5 // pred_check_branch
      %199 = sbr.rel (%p196) target = $region12
    $region11: #{unet_forward.19} parent=5 // pred_region
      %s200 = ssub.s32 %s12, 1
      // Predicated region
      $region13: #{unet_forward.19} parent=11 // pred_check
        %p201 = pneg %p76
      $region14: #{unet_forward.19} parent=11 // pred_check_branch
        %203 = sbr.rel (%p201) target = $region16
      $region15: #{unet_forward.19} parent=11 // pred_region
        %p204 = scmp.lt.s32.totalorder %s22, 0
        %s205 = scalar_select %p204, %s22, 0
        %s206 = smul.addr %s205, 4
        %s207 = scalar_lea.vmem %s1, %s206
      $region16: #{unet_forward.19} parent=11 // pred_fallthru
        _
    $region12: #{unet_forward.19} parent=5 // pred_fallthru
      _
    %p208 = scmp.lt.s32.totalorder %s12, 2
    // Predicated region
    $region17: #{unet_forward.19} parent=5 // pred_check
      %p209 = pneg %p208
    $region18: #{unet_forward.19} parent=5 // pred_check_branch
      %211 = sbr.rel (%p209) target = $region20
    $region19: #{unet_forward.19} parent=5 // pred_region
      // Predicated region
      $region21: #{unet_forward.19} parent=19 // pred_check
        %p212 = pneg %p44
      $region22: #{unet_forward.19} parent=19 // pred_check_branch
        %214 = sbr.rel (%p212) target = $region24
      $region23: #{unet_forward.19} parent=19 // pred_region
        %s215 = smul.u32 72, %s19
        %p216 = scmp.lt.s32.totalorder %s215, 143
        %s217 = scalar_select %p216, %s215, 143
        %s218 = smul.addr %s217, 4
        %s219 = scalar_lea.vmem %s0, %s218
        %s220 = smul.u32 72, %s19
      $region24: #{unet_forward.19} parent=19 // pred_fallthru
        _
      // Predicated region
      $region25: #{unet_forward.19} parent=19 // pred_check
        %p221 = pneg %p96
      $region26: #{unet_forward.19} parent=19 // pred_check_branch
        %223 = sbr.rel (%p221) target = $region28
      $region27: #{unet_forward.19} parent=19 // pred_region
        %s224 = smul.u32 72, %s19
        %p225 = scmp.lt.s32.totalorder %s224, 143
        %s226 = scalar_select %p225, %s224, 143
        %s227 = smul.addr %s226, 8
        %s228 = scalar_lea.vmem %s2, %s227
        %s229 = smul.u32 72, %s19
      $region28: #{unet_forward.19} parent=19 // pred_fallthru
        _
    $region20: #{unet_forward.19} parent=5 // pred_fallthru
      _
    %p230 = scmp.le.s32.totalorder 1, %s12
    %p231 = scmp.lt.s32.totalorder %s12, 3
    %p232 = pnand %p230, %p231
    %p233 = pneg %p232
    // Predicated region
    $region29: #{unet_forward.19} parent=5 // pred_check
      _
    $region30: #{unet_forward.19} parent=5 // pred_check_branch
      %235 = sbr.rel (%p232) target = $region32
    $region31: #{unet_forward.19} parent=5 // pred_region
      %s236 = ssub.s32 %s12, 1
      %s237 = smul.u32 72, %s21
      %p238 = scmp.lt.s32.totalorder %s237, 143
      %s239 = scalar_select %p238, %s237, 143
      %s240 = smul.addr %s239, 4
      %s241 = scalar_lea.vmem %s0, %s240
      %p242 = pneg %p50
      %p243 = pneg %p47
      %p244 = scmp.lt.s32.totalorder %s22, 0
      %s245 = scalar_select %p244, %s22, 0
      %s246 = smul.addr %s245, 4
      %s247 = scalar_lea.vmem %s1, %s246
      %p248 = pneg %p76
      %p249 = pneg %p73
      %s250 = smul.u32 72, %s21
      %p251 = scmp.lt.s32.totalorder %s250, 143
      %s252 = scalar_select %p251, %s250, 143
      %s253 = smul.addr %s252, 8
      %s254 = scalar_lea.vmem %s2, %s253
      %p255 = pneg %p102
      %p256 = pneg %p99
      %p257 = pneg %p130
      %p258 = pneg %p127
      %s259 = smul.u32 72, %s21
      %p260 = scmp.lt.s32.totalorder %s259, 143
      %s261 = scalar_select %p260, %s259, 143
      %p262 = scmp.lt.s32.totalorder %s22, 0
      %s263 = scalar_select %p262, %s22, 0
      %s264 = sadd.s32 %s263, %s261
      %s265 = smul.addr %s264, 4
      %s266 = scalar_lea.vmem %s3, %s265
      %p267 = pneg %p158
      %p268 = pneg %p155
      %p269 = scmp.lt.s32.totalorder %s21, 1
      %s270 = scalar_select %p269, %s21, 1
      %p271 = scmp.lt.s32.totalorder %s22, 0
      %s272 = scalar_select %p271, %s22, 0
      %s273 = sadd.s32 %s272, %s270
      %s274 = scalar_lea.vmem %s4, %s273
      %p275 = pneg %p186
      %p276 = pneg %p183
      %p277 = scmp.lt.s32.totalorder %s21, 1
      %s278 = scalar_select %p277, %s21, 1
      %p279 = scmp.lt.s32.totalorder %s22, 0
      %s280 = scalar_select %p279, %s22, 0
      %s281 = sadd.s32 %s280, %s278
      %s282 = scalar_lea.vmem %s5, %s281
      %s283 = smul.u32 72, %s21
      %p284 = scmp.lt.s32.totalorder %s283, 143
      %s285 = scalar_select %p284, %s283, 143
      %s286 = smul.addr %s285, 4
      %s287 = scalar_lea.vmem %s0, %s286
      %s288 = smul.u32 72, %s21
      %p289 = scmp.lt.s32.totalorder %s22, 0
      %s290 = scalar_select %p289, %s22, 0
      %s291 = smul.addr %s290, 4
      %s292 = scalar_lea.vmem %s1, %s291
      %s293 = smul.u32 72, %s21
      %p294 = scmp.lt.s32.totalorder %s293, 143
      %s295 = scalar_select %p294, %s293, 143
      %s296 = smul.addr %s295, 8
      %s297 = scalar_lea.vmem %s2, %s296
      %s298 = smul.u32 72, %s21
      %s299 = smul.u32 72, %s21
      %p300 = scmp.lt.s32.totalorder %s299, 143
      %s301 = scalar_select %p300, %s299, 143
      %p302 = scmp.lt.s32.totalorder %s22, 0
      %s303 = scalar_select %p302, %s22, 0
      %s304 = sadd.s32 %s303, %s301
      %s305 = smul.addr %s304, 4
      %s306 = scalar_lea.vmem %s3, %s305
      %s307 = smul.u32 72, %s21
      %p308 = scmp.lt.s32.totalorder %s21, 1
      %s309 = scalar_select %p308, %s21, 1
      %p310 = scmp.lt.s32.totalorder %s22, 0
      %s311 = scalar_select %p310, %s22, 0
      %s312 = sadd.s32 %s311, %s309
      %s313 = scalar_lea.vmem %s4, %s312
      %p314 = scmp.lt.s32.totalorder %s21, 1
      %s315 = scalar_select %p314, %s21, 1
      %p316 = scmp.lt.s32.totalorder %s22, 0
      %s317 = scalar_select %p316, %s22, 0
      %s318 = sadd.s32 %s317, %s315
      %s319 = scalar_lea.vmem %s5, %s318
      %v321 = vld [vmem:[%s287] sm:$0xf]
      %v322 = vld [vmem:[%s287 + $0x4] sm:$0xf]
      %v323 = vld [vmem:[%s287 + $0x8] sm:$0xf]
      %v324 = vld [vmem:[%s287 + $0xc] sm:$0xf]
      %v325 = vld [vmem:[%s287 + $0x10] sm:$0xf]
      %v326 = vld [vmem:[%s287 + $0x14] sm:$0xf]
      %v327 = vld [vmem:[%s287 + $0x18] sm:$0xf]
      %v328 = vld [vmem:[%s287 + $0x1c] sm:$0xf]
      %v329 = vld [vmem:[%s287 + $0x20] sm:$0xf]
      %v330 = vld [vmem:[%s287 + $0x24] sm:$0xf]
      %v331 = vld [vmem:[%s287 + $0x28] sm:$0xf]
      %v332 = vld [vmem:[%s287 + $0x2c] sm:$0xf]
      %v333 = vld [vmem:[%s287 + $0x30] sm:$0xf]
      %v334 = vld [vmem:[%s287 + $0x34] sm:$0xf]
      %v335 = vld [vmem:[%s287 + $0x38] sm:$0xf]
      %v336 = vld [vmem:[%s287 + $0x3c] sm:$0xf]
      %v337 = vld [vmem:[%s287 + $0x40] sm:$0xf]
      %v338 = vld [vmem:[%s287 + $0x44] sm:$0xf]
      %v339 = vld [vmem:[%s287 + $0x48] sm:$0xf]
      %v340 = vld [vmem:[%s287 + $0x4c] sm:$0xf]
      %v341 = vld [vmem:[%s287 + $0x50] sm:$0xf]
      %v342 = vld [vmem:[%s287 + $0x54] sm:$0xf]
      %v343 = vld [vmem:[%s287 + $0x58] sm:$0xf]
      %v344 = vld [vmem:[%s287 + $0x5c] sm:$0xf]
      %v345 = vld [vmem:[%s287 + $0x60] sm:$0xf]
      %v346 = vld [vmem:[%s287 + $0x64] sm:$0xf]
      %v347 = vld [vmem:[%s287 + $0x68] sm:$0xf]
      %v348 = vld [vmem:[%s287 + $0x6c] sm:$0xf]
      %v349 = vld [vmem:[%s287 + $0x70] sm:$0xf]
      %v350 = vld [vmem:[%s287 + $0x74] sm:$0xf]
      %v351 = vld [vmem:[%s287 + $0x78] sm:$0xf]
      %v352 = vld [vmem:[%s287 + $0x7c] sm:$0xf]
      %v353 = vld [vmem:[%s287 + $0x80] sm:$0xf]
      %v354 = vld [vmem:[%s287 + $0x84] sm:$0xf]
      %v355 = vld [vmem:[%s287 + $0x88] sm:$0xf]
      %v356 = vld [vmem:[%s287 + $0x8c] sm:$0xf]
      %v357 = vld [vmem:[%s287 + $0x90] sm:$0xf]
      %v358 = vld [vmem:[%s287 + $0x94] sm:$0xf]
      %v359 = vld [vmem:[%s287 + $0x98] sm:$0xf]
      %v360 = vld [vmem:[%s287 + $0x9c] sm:$0xf]
      %v361 = vld [vmem:[%s287 + $0xa0] sm:$0xf]
      %v362 = vld [vmem:[%s287 + $0xa4] sm:$0xf]
      %v363 = vld [vmem:[%s287 + $0xa8] sm:$0xf]
      %v364 = vld [vmem:[%s287 + $0xac] sm:$0xf]
      %v365 = vld [vmem:[%s287 + $0xb0] sm:$0xf]
      %v366 = vld [vmem:[%s287 + $0xb4] sm:$0xf]
      %v367 = vld [vmem:[%s287 + $0xb8] sm:$0xf]
      %v368 = vld [vmem:[%s287 + $0xbc] sm:$0xf]
      %v369 = vld [vmem:[%s287 + $0xc0] sm:$0xf]
      %v370 = vld [vmem:[%s287 + $0xc4] sm:$0xf]
      %v371 = vld [vmem:[%s287 + $0xc8] sm:$0xf]
      %v372 = vld [vmem:[%s287 + $0xcc] sm:$0xf]
      %v373 = vld [vmem:[%s287 + $0xd0] sm:$0xf]
      %v374 = vld [vmem:[%s287 + $0xd4] sm:$0xf]
      %v375 = vld [vmem:[%s287 + $0xd8] sm:$0xf]
      %v376 = vld [vmem:[%s287 + $0xdc] sm:$0xf]
      %v377 = vld [vmem:[%s287 + $0xe0] sm:$0xf]
      %v378 = vld [vmem:[%s287 + $0xe4] sm:$0xf]
      %v379 = vld [vmem:[%s287 + $0xe8] sm:$0xf]
      %v380 = vld [vmem:[%s287 + $0xec] sm:$0xf]
      %v381 = vld [vmem:[%s287 + $0xf0] sm:$0xf]
      %v382 = vld [vmem:[%s287 + $0xf4] sm:$0xf]
      %v383 = vld [vmem:[%s287 + $0xf8] sm:$0xf]
      %v384 = vld [vmem:[%s287 + $0xfc] sm:$0xf]
      %v385 = vld [vmem:[%s287 + $0x100] sm:$0xf]
      %v386 = vld [vmem:[%s287 + $0x104] sm:$0xf]
      %v387 = vld [vmem:[%s287 + $0x108] sm:$0xf]
      %v388 = vld [vmem:[%s287 + $0x10c] sm:$0xf]
      %v389 = vld [vmem:[%s287 + $0x110] sm:$0xf]
      %v390 = vld [vmem:[%s287 + $0x114] sm:$0xf]
      %v391 = vld [vmem:[%s287 + $0x118] sm:$0xf]
      %v392 = vld [vmem:[%s287 + $0x11c] sm:$0xf]
      %v393 = vld [vmem:[%s292] sm:$0xf]
      %v394 = vld [vmem:[%s292 + $0x4] sm:$0xf]
      %v395 = vld [vmem:[%s292 + $0x8] sm:$0xf]
      %v396 = vld [vmem:[%s292 + $0xc] sm:$0xf]
      %v397 = vld [vmem:[%s292 + $0x10] sm:$0xf]
      %v398 = vld [vmem:[%s292 + $0x14] sm:$0xf]
      %v399 = vld [vmem:[%s292 + $0x18] sm:$0xf]
      %v400 = vld [vmem:[%s292 + $0x1c] sm:$0xf]
      %v401 = vld [vmem:[%s292 + $0x20] sm:$0xf]
      %v402 = vld [vmem:[%s292 + $0x24] sm:$0xf]
      %v403 = vld [vmem:[%s292 + $0x28] sm:$0xf]
      %v404 = vld [vmem:[%s292 + $0x2c] sm:$0xf]
      %v405 = vld [vmem:[%s292 + $0x30] sm:$0xf]
      %v406 = vld [vmem:[%s292 + $0x34] sm:$0xf]
      %v407 = vld [vmem:[%s292 + $0x38] sm:$0xf]
      %v408 = vld [vmem:[%s292 + $0x3c] sm:$0xf]
      %v481 = vunpack.c.l.b16 %v321
      %v482 = vunpack.c.l.b16 %v322
      %v483 = vunpack.c.l.b16 %v323
      %v484 = vunpack.c.l.b16 %v324
      %v485 = vunpack.c.l.b16 %v325
      %v486 = vunpack.c.l.b16 %v326
      %v487 = vunpack.c.l.b16 %v327
      %v488 = vunpack.c.l.b16 %v328
      %v489 = vunpack.c.l.b16 %v329
      %v490 = vunpack.c.l.b16 %v330
      %v491 = vunpack.c.l.b16 %v331
      %v492 = vunpack.c.l.b16 %v332
      %v493 = vunpack.c.l.b16 %v333
      %v494 = vunpack.c.l.b16 %v334
      %v495 = vunpack.c.l.b16 %v335
      %v496 = vunpack.c.l.b16 %v336
      %v497 = vunpack.c.l.b16 %v337
      %v498 = vunpack.c.l.b16 %v338
      %v499 = vunpack.c.l.b16 %v339
      %v500 = vunpack.c.l.b16 %v340
      %v501 = vunpack.c.l.b16 %v341
      %v502 = vunpack.c.l.b16 %v342
      %v503 = vunpack.c.l.b16 %v343
      %v504 = vunpack.c.l.b16 %v344
      %v505 = vunpack.c.l.b16 %v345
      %v506 = vunpack.c.l.b16 %v346
      %v507 = vunpack.c.l.b16 %v347
      %v508 = vunpack.c.l.b16 %v348
      %v509 = vunpack.c.l.b16 %v349
      %v510 = vunpack.c.l.b16 %v350
      %v511 = vunpack.c.l.b16 %v351
      %v512 = vunpack.c.l.b16 %v352
      %v513 = vunpack.c.l.b16 %v353
      %v514 = vunpack.c.l.b16 %v354
      %v515 = vunpack.c.l.b16 %v355
      %v516 = vunpack.c.l.b16 %v356
      %v517 = vunpack.c.l.b16 %v357
      %v518 = vunpack.c.l.b16 %v358
      %v519 = vunpack.c.l.b16 %v359
      %v520 = vunpack.c.l.b16 %v360
      %v521 = vunpack.c.l.b16 %v361
      %v522 = vunpack.c.l.b16 %v362
      %v523 = vunpack.c.l.b16 %v363
      %v524 = vunpack.c.l.b16 %v364
      %v525 = vunpack.c.l.b16 %v365
      %v526 = vunpack.c.l.b16 %v366
      %v527 = vunpack.c.l.b16 %v367
      %v528 = vunpack.c.l.b16 %v368
      %v529 = vunpack.c.l.b16 %v369
      %v530 = vunpack.c.l.b16 %v370
      %v531 = vunpack.c.l.b16 %v371
      %v532 = vunpack.c.l.b16 %v372
      %v533 = vunpack.c.l.b16 %v373
      %v534 = vunpack.c.l.b16 %v374
      %v535 = vunpack.c.l.b16 %v375
      %v536 = vunpack.c.l.b16 %v376
      %v537 = vunpack.c.l.b16 %v377
      %v538 = vunpack.c.l.b16 %v378
      %v539 = vunpack.c.l.b16 %v379
      %v540 = vunpack.c.l.b16 %v380
      %v541 = vunpack.c.l.b16 %v381
      %v542 = vunpack.c.l.b16 %v382
      %v543 = vunpack.c.l.b16 %v383
      %v544 = vunpack.c.l.b16 %v384
      %v545 = vunpack.c.l.b16 %v385
      %v546 = vunpack.c.l.b16 %v386
      %v547 = vunpack.c.l.b16 %v387
      %v548 = vunpack.c.l.b16 %v388
      %v549 = vunpack.c.l.b16 %v389
      %v550 = vunpack.c.l.b16 %v390
      %v551 = vunpack.c.l.b16 %v391
      %v552 = vunpack.c.l.b16 %v392
      %v553 = vpack.c.b16 %v482, %v481
      %v554 = vpack.c.b16 %v484, %v483
      %v555 = vpack.c.b16 %v486, %v485
      %v556 = vpack.c.b16 %v488, %v487
      %v557 = vpack.c.b16 %v490, %v489
      %v558 = vpack.c.b16 %v492, %v491
      %v559 = vpack.c.b16 %v494, %v493
      %v560 = vpack.c.b16 %v496, %v495
      %v561 = vpack.c.b16 %v498, %v497
      %v562 = vpack.c.b16 %v500, %v499
      %v563 = vpack.c.b16 %v502, %v501
      %v564 = vpack.c.b16 %v504, %v503
      %v565 = vpack.c.b16 %v506, %v505
      %v566 = vpack.c.b16 %v508, %v507
      %v567 = vpack.c.b16 %v510, %v509
      %v568 = vpack.c.b16 %v512, %v511
      %v569 = vpack.c.b16 %v514, %v513
      %v570 = vpack.c.b16 %v516, %v515
      %v571 = vpack.c.b16 %v518, %v517
      %v572 = vpack.c.b16 %v520, %v519
      %v573 = vpack.c.b16 %v522, %v521
      %v574 = vpack.c.b16 %v524, %v523
      %v575 = vpack.c.b16 %v526, %v525
      %v576 = vpack.c.b16 %v528, %v527
      %v577 = vpack.c.b16 %v530, %v529
      %v578 = vpack.c.b16 %v532, %v531
      %v579 = vpack.c.b16 %v534, %v533
      %v580 = vpack.c.b16 %v536, %v535
      %v581 = vpack.c.b16 %v538, %v537
      %v582 = vpack.c.b16 %v540, %v539
      %v583 = vpack.c.b16 %v542, %v541
      %v584 = vpack.c.b16 %v544, %v543
      %v585 = vpack.c.b16 %v546, %v545
      %v586 = vpack.c.b16 %v548, %v547
      %v587 = vpack.c.b16 %v550, %v549
      %v588 = vpack.c.b16 %v552, %v551
      %v641 = vunpack.c.l.b16 %v393
      %v642 = vunpack.c.l.b16 %v394
      %v643 = vunpack.c.l.b16 %v395
      %v644 = vunpack.c.l.b16 %v396
      %v645 = vunpack.c.l.b16 %v397
      %v646 = vunpack.c.l.b16 %v398
      %v647 = vunpack.c.l.b16 %v399
      %v648 = vunpack.c.l.b16 %v400
      %v649 = vunpack.c.l.b16 %v401
      %v650 = vunpack.c.l.b16 %v402
      %v651 = vunpack.c.l.b16 %v403
      %v652 = vunpack.c.l.b16 %v404
      %v653 = vunpack.c.l.b16 %v405
      %v654 = vunpack.c.l.b16 %v406
      %v655 = vunpack.c.l.b16 %v407
      %v656 = vunpack.c.l.b16 %v408
      %v657 = vpack.c.b16 %v642, %v641
      %v658 = vpack.c.b16 %v644, %v643
      %v659 = vpack.c.b16 %v646, %v645
      %v660 = vpack.c.b16 %v648, %v647
      %v661 = vpack.c.b16 %v650, %v649
      %v662 = vpack.c.b16 %v652, %v651
      %v663 = vpack.c.b16 %v654, %v653
      %v664 = vpack.c.b16 %v656, %v655
      %673 = vmatprep.subr.bf16.mxu0 0
      %674 = vmatpush1.bf16.msra.mxu0 %v657
      %675 = vmatprep.subr.bf16.mxu0 0
      %676 = vmatpush1.bf16.msra.mxu0 %v658
      %677 = vmatprep.subr.bf16.mxu0 0
      %678 = vmatpush1.bf16.msra.mxu0 %v659
      %679 = vmatprep.subr.bf16.mxu0 0
      %680 = vmatpush1.bf16.msra.mxu0 %v660
      %681 = vmatprep.subr.bf16.mxu0 0
      %682 = vmatpush1.bf16.msra.mxu0 %v661
      %683 = vmatprep.subr.bf16.mxu0 0
      %684 = vmatpush1.bf16.msra.mxu0 %v662
      %685 = vmatprep.subr.bf16.mxu0 0
      %686 = vmatpush1.bf16.msra.mxu0 %v663
      %687 = vmatprep.subr.bf16.mxu0 0
      %688 = vmatpush1.bf16.msra.mxu0 %v664
      %689 = vmatprep.subr.bf16.mxu0 0
      %690 = vmatpush1.bf16.msra.mxu0 0
      %691 = vmatprep.subr.bf16.mxu0 0
      %692 = vmatpush1.bf16.msra.mxu0 0
      %693 = vmatprep.subr.bf16.mxu0 0
      %694 = vmatpush1.bf16.msra.mxu0 0
      %695 = vmatprep.subr.bf16.mxu0 0
      %696 = vmatpush1.bf16.msra.mxu0 0
      %697 = vmatprep.subr.bf16.mxu0 0
      %698 = vmatpush1.bf16.msra.mxu0 0
      %699 = vmatprep.subr.bf16.mxu0 0
      %700 = vmatpush1.bf16.msra.mxu0 0
      %701 = vmatprep.subr.bf16.mxu0 0
      %702 = vmatpush1.bf16.msra.mxu0 0
      %703 = vmatprep.subr.bf16.mxu0 0
      %704 = vmatpush1.bf16.msra.mxu0 0
      %705 = vmatprep.mubr.bf16.mxu0 0
      %706 = vmatmul.mubr.bf16.gmra.mrb[0].mxu0 %v553
      %v707 = vpop.f32.mrb[0].mxu0
      %v708 = vadd.f32 0.0, %v707
      %v709 = vpop.f32.mrb[0].mxu0
      %v710 = vpop.f32.mrb[0].mxu0
      %v711 = vadd.f32 0.0, %v710
      %v712 = vpop.f32.mrb[0].mxu0
      %713 = vmatprep.mubr.bf16.mxu0 0
      %714 = vmatmul.mubr.bf16.gmra.mrb[0].mxu0 %v554
      %v715 = vpop.f32.mrb[0].mxu0
      %v716 = vadd.f32 0.0, %v715
      %v717 = vpop.f32.mrb[0].mxu0
      %v718 = vpop.f32.mrb[0].mxu0
      %v719 = vadd.f32 0.0, %v718
      %v720 = vpop.f32.mrb[0].mxu0
      %721 = vmatprep.mubr.bf16.mxu0 0
      %722 = vmatmul.mubr.bf16.gmra.mrb[0].mxu0 %v555
      %v723 = vpop.f32.mrb[0].mxu0
      %v724 = vadd.f32 0.0, %v723
      %v725 = vpop.f32.mrb[0].mxu0
      %v726 = vpop.f32.mrb[0].mxu0
      %v727 = vadd.f32 0.0, %v726
      %v728 = vpop.f32.mrb[0].mxu0
      %729 = vmatprep.mubr.bf16.mxu0 0
      %730 = vmatmul.mubr.bf16.gmra.mrb[0].mxu0 %v556
      %v731 = vpop.f32.mrb[0].mxu0
      %v732 = vadd.f32 0.0, %v731
      %v733 = vpop.f32.mrb[0].mxu0
      %v734 = vpop.f32.mrb[0].mxu0
      %v735 = vadd.f32 0.0, %v734
      %v736 = vpop.f32.mrb[0].mxu0
      %737 = vmatprep.mubr.bf16.mxu0 0
      %738 = vmatmul.mubr.bf16.gmra.mrb[0].mxu0 %v557
      %v739 = vpop.f32.mrb[0].mxu0
      %v740 = vadd.f32 0.0, %v739
      %v741 = vpop.f32.mrb[0].mxu0
      %v742 = vpop.f32.mrb[0].mxu0
      %v743 = vadd.f32 0.0, %v742
      %v744 = vpop.f32.mrb[0].mxu0
      %745 = vmatprep.mubr.bf16.mxu0 0
      %746 = vmatmul.mubr.bf16.gmra.mrb[0].mxu0 %v558
      %v747 = vpop.f32.mrb[0].mxu0
      %v748 = vadd.f32 0.0, %v747
      %v749 = vpop.f32.mrb[0].mxu0
      %v750 = vpop.f32.mrb[0].mxu0
      %v751 = vadd.f32 0.0, %v750
      %v752 = vpop.f32.mrb[0].mxu0
      %753 = vmatprep.mubr.bf16.mxu0 0
      %754 = vmatmul.mubr.bf16.gmra.mrb[0].mxu0 %v559
      %v755 = vpop.f32.mrb[0].mxu0
      %v756 = vadd.f32 0.0, %v755
      %v757 = vpop.f32.mrb[0].mxu0
      %v758 = vpop.f32.mrb[0].mxu0
      %v759 = vadd.f32 0.0, %v758
      %v760 = vpop.f32.mrb[0].mxu0
      %761 = vmatprep.mubr.bf16.mxu0 0
      %762 = vmatmul.mubr.bf16.gmra.mrb[0].mxu0 %v560
      %v763 = vpop.f32.mrb[0].mxu0
      %v764 = vadd.f32 0.0, %v763
      %v765 = vpop.f32.mrb[0].mxu0
      %v766 = vpop.f32.mrb[0].mxu0
      %v767 = vadd.f32 0.0, %v766
      %v768 = vpop.f32.mrb[0].mxu0
      %769 = vmatprep.mubr.bf16.mxu0 0
      %770 = vmatmul.mubr.bf16.gmra.mrb[0].mxu0 %v561
      %v771 = vpop.f32.mrb[0].mxu0
      %v772 = vadd.f32 0.0, %v771
      %v773 = vpop.f32.mrb[0].mxu0
      %v774 = vpop.f32.mrb[0].mxu0
      %v775 = vadd.f32 0.0, %v774
      %v776 = vpop.f32.mrb[0].mxu0
      %777 = vmatprep.mubr.bf16.mxu0 0
      %778 = vmatmul.mubr.bf16.gmra.mrb[0].mxu0 %v562
      %v779 = vpop.f32.mrb[0].mxu0
      %v780 = vadd.f32 0.0, %v779
      %v781 = vpop.f32.mrb[0].mxu0
      %v782 = vpop.f32.mrb[0].mxu0
      %v783 = vadd.f32 0.0, %v782
      %v784 = vpop.f32.mrb[0].mxu0
      %785 = vmatprep.mubr.bf16.mxu0 0
      %786 = vmatmul.mubr.bf16.gmra.mrb[0].mxu0 %v563
      %v787 = vpop.f32.mrb[0].mxu0
      %v788 = vadd.f32 0.0, %v787
      %v789 = vpop.f32.mrb[0].mxu0
      %v790 = vpop.f32.mrb[0].mxu0
      %v791 = vadd.f32 0.0, %v790
      %v792 = vpop.f32.mrb[0].mxu0
      %793 = vmatprep.mubr.bf16.mxu0 0
      %794 = vmatmul.mubr.bf16.gmra.mrb[0].mxu0 %v564
      %v795 = vpop.f32.mrb[0].mxu0
      %v796 = vadd.f32 0.0, %v795
      %v797 = vpop.f32.mrb[0].mxu0
      %v798 = vpop.f32.mrb[0].mxu0
      %v799 = vadd.f32 0.0, %v798
      %v800 = vpop.f32.mrb[0].mxu0
      %801 = vmatprep.mubr.bf16.mxu0 0
      %802 = vmatmul.mubr.bf16.gmra.mrb[0].mxu0 %v565
      %v803 = vpop.f32.mrb[0].mxu0
      %v804 = vadd.f32 0.0, %v803
      %v805 = vpop.f32.mrb[0].mxu0
      %v806 = vpop.f32.mrb[0].mxu0
      %v807 = vadd.f32 0.0, %v806
      %v808 = vpop.f32.mrb[0].mxu0
      %809 = vmatprep.mubr.bf16.mxu0 0
      %810 = vmatmul.mubr.bf16.gmra.mrb[0].mxu0 %v566
      %v811 = vpop.f32.mrb[0].mxu0
      %v812 = vadd.f32 0.0, %v811
      %v813 = vpop.f32.mrb[0].mxu0
      %v814 = vpop.f32.mrb[0].mxu0
      %v815 = vadd.f32 0.0, %v814
      %v816 = vpop.f32.mrb[0].mxu0
      %817 = vmatprep.mubr.bf16.mxu0 0
      %818 = vmatmul.mubr.bf16.gmra.mrb[0].mxu0 %v567
      %v819 = vpop.f32.mrb[0].mxu0
      %v820 = vadd.f32 0.0, %v819
      %v821 = vpop.f32.mrb[0].mxu0
      %v822 = vpop.f32.mrb[0].mxu0
      %v823 = vadd.f32 0.0, %v822
      %v824 = vpop.f32.mrb[0].mxu0
      %825 = vmatprep.mubr.bf16.mxu0 0
      %826 = vmatmul.mubr.bf16.gmra.mrb[0].mxu0 %v568
      %v827 = vpop.f32.mrb[0].mxu0
      %v828 = vadd.f32 0.0, %v827
      %v829 = vpop.f32.mrb[0].mxu0
      %v830 = vpop.f32.mrb[0].mxu0
      %v831 = vadd.f32 0.0, %v830
      %v832 = vpop.f32.mrb[0].mxu0
      %833 = vmatprep.mubr.bf16.mxu0 0
      %834 = vmatmul.mubr.bf16.gmra.mrb[0].mxu0 %v569
      %v835 = vpop.f32.mrb[0].mxu0
      %v836 = vadd.f32 0.0, %v835
      %v837 = vpop.f32.mrb[0].mxu0
      %v838 = vpop.f32.mrb[0].mxu0
      %v839 = vadd.f32 0.0, %v838
      %v840 = vpop.f32.mrb[0].mxu0
      %841 = vmatprep.mubr.bf16.mxu0 0
      %842 = vmatmul.mubr.bf16.gmra.mrb[0].mxu0 %v570
      %v843 = vpop.f32.mrb[0].mxu0
      %v844 = vadd.f32 0.0, %v843
      %v845 = vpop.f32.mrb[0].mxu0
      %v846 = vpop.f32.mrb[0].mxu0
      %v847 = vadd.f32 0.0, %v846
      %v848 = vpop.f32.mrb[0].mxu0
      %849 = vmatprep.mubr.bf16.mxu0 0
      %850 = vmatmul.mubr.bf16.gmra.mrb[0].mxu0 %v571
      %v851 = vpop.f32.mrb[0].mxu0
      %v852 = vadd.f32 0.0, %v851
      %v853 = vpop.f32.mrb[0].mxu0
      %v854 = vpop.f32.mrb[0].mxu0
      %v855 = vadd.f32 0.0, %v854
      %v856 = vpop.f32.mrb[0].mxu0
      %857 = vmatprep.mubr.bf16.mxu0 0
      %858 = vmatmul.mubr.bf16.gmra.mrb[0].mxu0 %v572
      %v859 = vpop.f32.mrb[0].mxu0
      %v860 = vadd.f32 0.0, %v859
      %v861 = vpop.f32.mrb[0].mxu0
      %v862 = vpop.f32.mrb[0].mxu0
      %v863 = vadd.f32 0.0, %v862
      %v864 = vpop.f32.mrb[0].mxu0
      %865 = vmatprep.mubr.bf16.mxu0 0
      %866 = vmatmul.mubr.bf16.gmra.mrb[0].mxu0 %v573
      %v867 = vpop.f32.mrb[0].mxu0
      %v868 = vadd.f32 0.0, %v867
      %v869 = vpop.f32.mrb[0].mxu0
      %v870 = vpop.f32.mrb[0].mxu0
      %v871 = vadd.f32 0.0, %v870
      %v872 = vpop.f32.mrb[0].mxu0
      %873 = vmatprep.mubr.bf16.mxu0 0
      %874 = vmatmul.mubr.bf16.gmra.mrb[0].mxu0 %v574
      %v875 = vpop.f32.mrb[0].mxu0
      %v876 = vadd.f32 0.0, %v875
      %v877 = vpop.f32.mrb[0].mxu0
      %v878 = vpop.f32.mrb[0].mxu0
      %v879 = vadd.f32 0.0, %v878
      %v880 = vpop.f32.mrb[0].mxu0
      %881 = vmatprep.mubr.bf16.mxu0 0
      %882 = vmatmul.mubr.bf16.gmra.mrb[0].mxu0 %v575
      %v883 = vpop.f32.mrb[0].mxu0
      %v884 = vadd.f32 0.0, %v883
      %v885 = vpop.f32.mrb[0].mxu0
      %v886 = vpop.f32.mrb[0].mxu0
      %v887 = vadd.f32 0.0, %v886
      %v888 = vpop.f32.mrb[0].mxu0
      %889 = vmatprep.mubr.bf16.mxu0 0
      %890 = vmatmul.mubr.bf16.gmra.mrb[0].mxu0 %v576
      %v891 = vpop.f32.mrb[0].mxu0
      %v892 = vadd.f32 0.0, %v891
      %v893 = vpop.f32.mrb[0].mxu0
      %v894 = vpop.f32.mrb[0].mxu0
      %v895 = vadd.f32 0.0, %v894
      %v896 = vpop.f32.mrb[0].mxu0
      %897 = vmatprep.mubr.bf16.mxu0 0
      %898 = vmatmul.mubr.bf16.gmra.mrb[0].mxu0 %v577
      %v899 = vpop.f32.mrb[0].mxu0
      %v900 = vadd.f32 0.0, %v899
      %v901 = vpop.f32.mrb[0].mxu0
      %v902 = vpop.f32.mrb[0].mxu0
      %v903 = vadd.f32 0.0, %v902
      %v904 = vpop.f32.mrb[0].mxu0
      %905 = vmatprep.mubr.bf16.mxu0 0
      %906 = vmatmul.mubr.bf16.gmra.mrb[0].mxu0 %v578
      %v907 = vpop.f32.mrb[0].mxu0
      %v908 = vadd.f32 0.0, %v907
      %v909 = vpop.f32.mrb[0].mxu0
      %v910 = vpop.f32.mrb[0].mxu0
      %v911 = vadd.f32 0.0, %v910
      %v912 = vpop.f32.mrb[0].mxu0
      %913 = vmatprep.mubr.bf16.mxu0 0
      %914 = vmatmul.mubr.bf16.gmra.mrb[0].mxu0 %v579
      %v915 = vpop.f32.mrb[0].mxu0
      %v916 = vadd.f32 0.0, %v915
      %v917 = vpop.f32.mrb[0].mxu0
      %v918 = vpop.f32.mrb[0].mxu0
      %v919 = vadd.f32 0.0, %v918
      %v920 = vpop.f32.mrb[0].mxu0
      %921 = vmatprep.mubr.bf16.mxu0 0
      %922 = vmatmul.mubr.bf16.gmra.mrb[0].mxu0 %v580
      %v923 = vpop.f32.mrb[0].mxu0
      %v924 = vadd.f32 0.0, %v923
      %v925 = vpop.f32.mrb[0].mxu0
      %v926 = vpop.f32.mrb[0].mxu0
      %v927 = vadd.f32 0.0, %v926
      %v928 = vpop.f32.mrb[0].mxu0
      %929 = vmatprep.mubr.bf16.mxu0 0
      %930 = vmatmul.mubr.bf16.gmra.mrb[0].mxu0 %v581
      %v931 = vpop.f32.mrb[0].mxu0
      %v932 = vadd.f32 0.0, %v931
      %v933 = vpop.f32.mrb[0].mxu0
      %v934 = vpop.f32.mrb[0].mxu0
      %v935 = vadd.f32 0.0, %v934
      %v936 = vpop.f32.mrb[0].mxu0
      %937 = vmatprep.mubr.bf16.mxu0 0
      %938 = vmatmul.mubr.bf16.gmra.mrb[0].mxu0 %v582
      %v939 = vpop.f32.mrb[0].mxu0
      %v940 = vadd.f32 0.0, %v939
      %v941 = vpop.f32.mrb[0].mxu0
      %v942 = vpop.f32.mrb[0].mxu0
      %v943 = vadd.f32 0.0, %v942
      %v944 = vpop.f32.mrb[0].mxu0
      %945 = vmatprep.mubr.bf16.mxu0 0
      %946 = vmatmul.mubr.bf16.gmra.mrb[0].mxu0 %v583
      %v947 = vpop.f32.mrb[0].mxu0
      %v948 = vadd.f32 0.0, %v947
      %v949 = vpop.f32.mrb[0].mxu0
      %v950 = vpop.f32.mrb[0].mxu0
      %v951 = vadd.f32 0.0, %v950
      %v952 = vpop.f32.mrb[0].mxu0
      %953 = vmatprep.mubr.bf16.mxu0 0
      %954 = vmatmul.mubr.bf16.gmra.mrb[0].mxu0 %v584
      %v955 = vpop.f32.mrb[0].mxu0
      %v956 = vadd.f32 0.0, %v955
      %v957 = vpop.f32.mrb[0].mxu0
      %v958 = vpop.f32.mrb[0].mxu0
      %v959 = vadd.f32 0.0, %v958
      %v960 = vpop.f32.mrb[0].mxu0
      %961 = vmatprep.mubr.bf16.mxu0 0
      %962 = vmatmul.mubr.bf16.gmra.mrb[0].mxu0 %v585
      %v963 = vpop.f32.mrb[0].mxu0
      %v964 = vadd.f32 0.0, %v963
      %v965 = vpop.f32.mrb[0].mxu0
      %v966 = vpop.f32.mrb[0].mxu0
      %v967 = vadd.f32 0.0, %v966
      %v968 = vpop.f32.mrb[0].mxu0
      %969 = vmatprep.mubr.bf16.mxu0 0
      %970 = vmatmul.mubr.bf16.gmra.mrb[0].mxu0 %v586
      %v971 = vpop.f32.mrb[0].mxu0
      %v972 = vadd.f32 0.0, %v971
      %v973 = vpop.f32.mrb[0].mxu0
      %v974 = vpop.f32.mrb[0].mxu0
      %v975 = vadd.f32 0.0, %v974
      %v976 = vpop.f32.mrb[0].mxu0
      %977 = vmatprep.mubr.bf16.mxu0 0
      %978 = vmatmul.mubr.bf16.gmra.mrb[0].mxu0 %v587
      %v979 = vpop.f32.mrb[0].mxu0
      %v980 = vadd.f32 0.0, %v979
      %v981 = vpop.f32.mrb[0].mxu0
      %v982 = vpop.f32.mrb[0].mxu0
      %v983 = vadd.f32 0.0, %v982
      %v984 = vpop.f32.mrb[0].mxu0
      %985 = vmatprep.mubr.bf16.mxu0 0
      %986 = vmatmul.mubr.bf16.gmra.mrb[0].mxu0 %v588
      %v987 = vpop.f32.mrb[0].mxu0
      %v988 = vadd.f32 0.0, %v987
      %v989 = vpop.f32.mrb[0].mxu0
      %v990 = vpop.f32.mrb[0].mxu0
      %v991 = vadd.f32 0.0, %v990
      %v992 = vpop.f32.mrb[0].mxu0
      %993 = vdwg.mxu0
      %v994 = vpack.c.bf16 %v711, %v708
      %v995 = vpack.c.bf16 %v719, %v716
      %v996 = vpack.c.bf16 %v727, %v724
      %v997 = vpack.c.bf16 %v735, %v732
      %v998 = vpack.c.bf16 %v743, %v740
      %v999 = vpack.c.bf16 %v751, %v748
      %v1000 = vpack.c.bf16 %v759, %v756
      %v1001 = vpack.c.bf16 %v767, %v764
      %v1002 = vpack.c.bf16 %v775, %v772
      %v1003 = vpack.c.bf16 %v783, %v780
      %v1004 = vpack.c.bf16 %v791, %v788
      %v1005 = vpack.c.bf16 %v799, %v796
      %v1006 = vpack.c.bf16 %v807, %v804
      %v1007 = vpack.c.bf16 %v815, %v812
      %v1008 = vpack.c.bf16 %v823, %v820
      %v1009 = vpack.c.bf16 %v831, %v828
      %v1010 = vpack.c.bf16 %v839, %v836
      %v1011 = vpack.c.bf16 %v847, %v844
      %v1012 = vpack.c.bf16 %v855, %v852
      %v1013 = vpack.c.bf16 %v863, %v860
      %v1014 = vpack.c.bf16 %v871, %v868
      %v1015 = vpack.c.bf16 %v879, %v876
      %v1016 = vpack.c.bf16 %v887, %v884
      %v1017 = vpack.c.bf16 %v895, %v892
      %v1018 = vpack.c.bf16 %v903, %v900
      %v1019 = vpack.c.bf16 %v911, %v908
      %v1020 = vpack.c.bf16 %v919, %v916
      %v1021 = vpack.c.bf16 %v927, %v924
      %v1022 = vpack.c.bf16 %v935, %v932
      %v1023 = vpack.c.bf16 %v943, %v940
      %v1024 = vpack.c.bf16 %v951, %v948
      %v1025 = vpack.c.bf16 %v959, %v956
      %v1026 = vpack.c.bf16 %v967, %v964
      %v1027 = vpack.c.bf16 %v975, %v972
      %v1028 = vpack.c.bf16 %v983, %v980
      %v1029 = vpack.c.bf16 %v991, %v988
      %v1066 = vunpack.c.l.b16 %v994
      %v1067 = vunpack.c.h.b16 %v994
      %v1068 = vunpack.c.l.b16 %v995
      %v1069 = vunpack.c.h.b16 %v995
      %v1070 = vunpack.c.l.b16 %v996
      %v1071 = vunpack.c.h.b16 %v996
      %v1072 = vunpack.c.l.b16 %v997
      %v1073 = vunpack.c.h.b16 %v997
      %v1074 = vunpack.c.l.b16 %v998
      %v1075 = vunpack.c.h.b16 %v998
      %v1076 = vunpack.c.l.b16 %v999
      %v1077 = vunpack.c.h.b16 %v999
      %v1078 = vunpack.c.l.b16 %v1000
      %v1079 = vunpack.c.h.b16 %v1000
      %v1080 = vunpack.c.l.b16 %v1001
      %v1081 = vunpack.c.h.b16 %v1001
      %v1082 = vunpack.c.l.b16 %v1002
      %v1083 = vunpack.c.h.b16 %v1002
      %v1084 = vunpack.c.l.b16 %v1003
      %v1085 = vunpack.c.h.b16 %v1003
      %v1086 = vunpack.c.l.b16 %v1004
      %v1087 = vunpack.c.h.b16 %v1004
      %v1088 = vunpack.c.l.b16 %v1005
      %v1089 = vunpack.c.h.b16 %v1005
      %v1090 = vunpack.c.l.b16 %v1006
      %v1091 = vunpack.c.h.b16 %v1006
      %v1092 = vunpack.c.l.b16 %v1007
      %v1093 = vunpack.c.h.b16 %v1007
      %v1094 = vunpack.c.l.b16 %v1008
      %v1095 = vunpack.c.h.b16 %v1008
      %v1096 = vunpack.c.l.b16 %v1009
      %v1097 = vunpack.c.h.b16 %v1009
      %v1098 = vunpack.c.l.b16 %v1010
      %v1099 = vunpack.c.h.b16 %v1010
      %v1100 = vunpack.c.l.b16 %v1011
      %v1101 = vunpack.c.h.b16 %v1011
      %v1102 = vunpack.c.l.b16 %v1012
      %v1103 = vunpack.c.h.b16 %v1012
      %v1104 = vunpack.c.l.b16 %v1013
      %v1105 = vunpack.c.h.b16 %v1013
      %v1106 = vunpack.c.l.b16 %v1014
      %v1107 = vunpack.c.h.b16 %v1014
      %v1108 = vunpack.c.l.b16 %v1015
      %v1109 = vunpack.c.h.b16 %v1015
      %v1110 = vunpack.c.l.b16 %v1016
      %v1111 = vunpack.c.h.b16 %v1016
      %v1112 = vunpack.c.l.b16 %v1017
      %v1113 = vunpack.c.h.b16 %v1017
      %v1114 = vunpack.c.l.b16 %v1018
      %v1115 = vunpack.c.h.b16 %v1018
      %v1116 = vunpack.c.l.b16 %v1019
      %v1117 = vunpack.c.h.b16 %v1019
      %v1118 = vunpack.c.l.b16 %v1020
      %v1119 = vunpack.c.h.b16 %v1020
      %v1120 = vunpack.c.l.b16 %v1021
      %v1121 = vunpack.c.h.b16 %v1021
      %v1122 = vunpack.c.l.b16 %v1022
      %v1123 = vunpack.c.h.b16 %v1022
      %v1124 = vunpack.c.l.b16 %v1023
      %v1125 = vunpack.c.h.b16 %v1023
      %v1126 = vunpack.c.l.b16 %v1024
      %v1127 = vunpack.c.h.b16 %v1024
      %v1128 = vunpack.c.l.b16 %v1025
      %v1129 = vunpack.c.h.b16 %v1025
      %v1130 = vunpack.c.l.b16 %v1026
      %v1131 = vunpack.c.h.b16 %v1026
      %v1132 = vunpack.c.l.b16 %v1027
      %v1133 = vunpack.c.h.b16 %v1027
      %v1134 = vunpack.c.l.b16 %v1028
      %v1135 = vunpack.c.h.b16 %v1028
      %v1136 = vunpack.c.l.b16 %v1029
      %v1137 = vunpack.c.h.b16 %v1029
      %v1138 = vpack.c.b16 %v1066, %v1066
      %v1139 = vpack.c.b16 %v1067, %v1067
      %v1140 = vpack.c.b16 %v1068, %v1068
      %v1141 = vpack.c.b16 %v1069, %v1069
      %v1142 = vpack.c.b16 %v1070, %v1070
      %v1143 = vpack.c.b16 %v1071, %v1071
      %v1144 = vpack.c.b16 %v1072, %v1072
      %v1145 = vpack.c.b16 %v1073, %v1073
      %v1146 = vpack.c.b16 %v1074, %v1074
      %v1147 = vpack.c.b16 %v1075, %v1075
      %v1148 = vpack.c.b16 %v1076, %v1076
      %v1149 = vpack.c.b16 %v1077, %v1077
      %v1150 = vpack.c.b16 %v1078, %v1078
      %v1151 = vpack.c.b16 %v1079, %v1079
      %v1152 = vpack.c.b16 %v1080, %v1080
      %v1153 = vpack.c.b16 %v1081, %v1081
      %v1154 = vpack.c.b16 %v1082, %v1082
      %v1155 = vpack.c.b16 %v1083, %v1083
      %v1156 = vpack.c.b16 %v1084, %v1084
      %v1157 = vpack.c.b16 %v1085, %v1085
      %v1158 = vpack.c.b16 %v1086, %v1086
      %v1159 = vpack.c.b16 %v1087, %v1087
      %v1160 = vpack.c.b16 %v1088, %v1088
      %v1161 = vpack.c.b16 %v1089, %v1089
      %v1162 = vpack.c.b16 %v1090, %v1090
      %v1163 = vpack.c.b16 %v1091, %v1091
      %v1164 = vpack.c.b16 %v1092, %v1092
      %v1165 = vpack.c.b16 %v1093, %v1093
      %v1166 = vpack.c.b16 %v1094, %v1094
      %v1167 = vpack.c.b16 %v1095, %v1095
      %v1168 = vpack.c.b16 %v1096, %v1096
      %v1169 = vpack.c.b16 %v1097, %v1097
      %v1170 = vpack.c.b16 %v1098, %v1098
      %v1171 = vpack.c.b16 %v1099, %v1099
      %v1172 = vpack.c.b16 %v1100, %v1100
      %v1173 = vpack.c.b16 %v1101, %v1101
      %v1174 = vpack.c.b16 %v1102, %v1102
      %v1175 = vpack.c.b16 %v1103, %v1103
      %v1176 = vpack.c.b16 %v1104, %v1104
      %v1177 = vpack.c.b16 %v1105, %v1105
      %v1178 = vpack.c.b16 %v1106, %v1106
      %v1179 = vpack.c.b16 %v1107, %v1107
      %v1180 = vpack.c.b16 %v1108, %v1108
      %v1181 = vpack.c.b16 %v1109, %v1109
      %v1182 = vpack.c.b16 %v1110, %v1110
      %v1183 = vpack.c.b16 %v1111, %v1111
      %v1184 = vpack.c.b16 %v1112, %v1112
      %v1185 = vpack.c.b16 %v1113, %v1113
      %v1186 = vpack.c.b16 %v1114, %v1114
      %v1187 = vpack.c.b16 %v1115, %v1115
      %v1188 = vpack.c.b16 %v1116, %v1116
      %v1189 = vpack.c.b16 %v1117, %v1117
      %v1190 = vpack.c.b16 %v1118, %v1118
      %v1191 = vpack.c.b16 %v1119, %v1119
      %v1192 = vpack.c.b16 %v1120, %v1120
      %v1193 = vpack.c.b16 %v1121, %v1121
      %v1194 = vpack.c.b16 %v1122, %v1122
      %v1195 = vpack.c.b16 %v1123, %v1123
      %v1196 = vpack.c.b16 %v1124, %v1124
      %v1197 = vpack.c.b16 %v1125, %v1125
      %v1198 = vpack.c.b16 %v1126, %v1126
      %v1199 = vpack.c.b16 %v1127, %v1127
      %v1200 = vpack.c.b16 %v1128, %v1128
      %v1201 = vpack.c.b16 %v1129, %v1129
      %v1202 = vpack.c.b16 %v1130, %v1130
      %v1203 = vpack.c.b16 %v1131, %v1131
      %v1204 = vpack.c.b16 %v1132, %v1132
      %v1205 = vpack.c.b16 %v1133, %v1133
      %v1206 = vpack.c.b16 %v1134, %v1134
      %v1207 = vpack.c.b16 %v1135, %v1135
      %v1208 = vpack.c.b16 %v1136, %v1136
      %v1209 = vpack.c.b16 %v1137, %v1137
      %1282 = vst [vmem:[%s306] sm:$0xf] %v1138
      %1283 = vst [vmem:[%s306 + $0x4] sm:$0xf] %v1139
      %1284 = vst [vmem:[%s306 + $0x8] sm:$0xf] %v1140
      %1285 = vst [vmem:[%s306 + $0xc] sm:$0xf] %v1141
      %1286 = vst [vmem:[%s306 + $0x10] sm:$0xf] %v1142
      %1287 = vst [vmem:[%s306 + $0x14] sm:$0xf] %v1143
      %1288 = vst [vmem:[%s306 + $0x18] sm:$0xf] %v1144
      %1289 = vst [vmem:[%s306 + $0x1c] sm:$0xf] %v1145
      %1290 = vst [vmem:[%s306 + $0x20] sm:$0xf] %v1146
      %1291 = vst [vmem:[%s306 + $0x24] sm:$0xf] %v1147
      %1292 = vst [vmem:[%s306 + $0x28] sm:$0xf] %v1148
      %1293 = vst [vmem:[%s306 + $0x2c] sm:$0xf] %v1149
      %1294 = vst [vmem:[%s306 + $0x30] sm:$0xf] %v1150
      %1295 = vst [vmem:[%s306 + $0x34] sm:$0xf] %v1151
      %1296 = vst [vmem:[%s306 + $0x38] sm:$0xf] %v1152
      %1297 = vst [vmem:[%s306 + $0x3c] sm:$0xf] %v1153
      %1298 = vst [vmem:[%s306 + $0x40] sm:$0xf] %v1154
      %1299 = vst [vmem:[%s306 + $0x44] sm:$0xf] %v1155
      %1300 = vst [vmem:[%s306 + $0x48] sm:$0xf] %v1156
      %1301 = vst [vmem:[%s306 + $0x4c] sm:$0xf] %v1157
      %1302 = vst [vmem:[%s306 + $0x50] sm:$0xf] %v1158
      %1303 = vst [vmem:[%s306 + $0x54] sm:$0xf] %v1159
      %1304 = vst [vmem:[%s306 + $0x58] sm:$0xf] %v1160
      %1305 = vst [vmem:[%s306 + $0x5c] sm:$0xf] %v1161
      %1306 = vst [vmem:[%s306 + $0x60] sm:$0xf] %v1162
      %1307 = vst [vmem:[%s306 + $0x64] sm:$0xf] %v1163
      %1308 = vst [vmem:[%s306 + $0x68] sm:$0xf] %v1164
      %1309 = vst [vmem:[%s306 + $0x6c] sm:$0xf] %v1165
      %1310 = vst [vmem:[%s306 + $0x70] sm:$0xf] %v1166
      %1311 = vst [vmem:[%s306 + $0x74] sm:$0xf] %v1167
      %1312 = vst [vmem:[%s306 + $0x78] sm:$0xf] %v1168
      %1313 = vst [vmem:[%s306 + $0x7c] sm:$0xf] %v1169
      %1314 = vst [vmem:[%s306 + $0x80] sm:$0xf] %v1170
      %1315 = vst [vmem:[%s306 + $0x84] sm:$0xf] %v1171
      %1316 = vst [vmem:[%s306 + $0x88] sm:$0xf] %v1172
      %1317 = vst [vmem:[%s306 + $0x8c] sm:$0xf] %v1173
      %1318 = vst [vmem:[%s306 + $0x90] sm:$0xf] %v1174
      %1319 = vst [vmem:[%s306 + $0x94] sm:$0xf] %v1175
      %1320 = vst [vmem:[%s306 + $0x98] sm:$0xf] %v1176
      %1321 = vst [vmem:[%s306 + $0x9c] sm:$0xf] %v1177
      %1322 = vst [vmem:[%s306 + $0xa0] sm:$0xf] %v1178
      %1323 = vst [vmem:[%s306 + $0xa4] sm:$0xf] %v1179
      %1324 = vst [vmem:[%s306 + $0xa8] sm:$0xf] %v1180
      %1325 = vst [vmem:[%s306 + $0xac] sm:$0xf] %v1181
      %1326 = vst [vmem:[%s306 + $0xb0] sm:$0xf] %v1182
      %1327 = vst [vmem:[%s306 + $0xb4] sm:$0xf] %v1183
      %1328 = vst [vmem:[%s306 + $0xb8] sm:$0xf] %v1184
      %1329 = vst [vmem:[%s306 + $0xbc] sm:$0xf] %v1185
      %1330 = vst [vmem:[%s306 + $0xc0] sm:$0xf] %v1186
      %1331 = vst [vmem:[%s306 + $0xc4] sm:$0xf] %v1187
      %1332 = vst [vmem:[%s306 + $0xc8] sm:$0xf] %v1188
      %1333 = vst [vmem:[%s306 + $0xcc] sm:$0xf] %v1189
      %1334 = vst [vmem:[%s306 + $0xd0] sm:$0xf] %v1190
      %1335 = vst [vmem:[%s306 + $0xd4] sm:$0xf] %v1191
      %1336 = vst [vmem:[%s306 + $0xd8] sm:$0xf] %v1192
      %1337 = vst [vmem:[%s306 + $0xdc] sm:$0xf] %v1193
      %1338 = vst [vmem:[%s306 + $0xe0] sm:$0xf] %v1194
      %1339 = vst [vmem:[%s306 + $0xe4] sm:$0xf] %v1195
      %1340 = vst [vmem:[%s306 + $0xe8] sm:$0xf] %v1196
      %1341 = vst [vmem:[%s306 + $0xec] sm:$0xf] %v1197
      %1342 = vst [vmem:[%s306 + $0xf0] sm:$0xf] %v1198
      %1343 = vst [vmem:[%s306 + $0xf4] sm:$0xf] %v1199
      %1344 = vst [vmem:[%s306 + $0xf8] sm:$0xf] %v1200
      %1345 = vst [vmem:[%s306 + $0xfc] sm:$0xf] %v1201
      %1346 = vst [vmem:[%s306 + $0x100] sm:$0xf] %v1202
      %1347 = vst [vmem:[%s306 + $0x104] sm:$0xf] %v1203
      %1348 = vst [vmem:[%s306 + $0x108] sm:$0xf] %v1204
      %1349 = vst [vmem:[%s306 + $0x10c] sm:$0xf] %v1205
      %1350 = vst [vmem:[%s306 + $0x110] sm:$0xf] %v1206
      %1351 = vst [vmem:[%s306 + $0x114] sm:$0xf] %v1207
      %1352 = vst [vmem:[%s306 + $0x118] sm:$0xf] %v1208
      %1353 = vst [vmem:[%s306 + $0x11c] sm:$0xf] %v1209
      %v1354 = vld [vmem:[%s297] sm:$0xff]
      %v1355 = vld [vmem:[%s297 + $0x8] sm:$0xff]
      %v1356 = vld [vmem:[%s297 + $0x10] sm:$0xff]
      %v1357 = vld [vmem:[%s297 + $0x18] sm:$0xff]
      %v1358 = vld [vmem:[%s297 + $0x20] sm:$0xff]
      %v1359 = vld [vmem:[%s297 + $0x28] sm:$0xff]
      %v1360 = vld [vmem:[%s297 + $0x30] sm:$0xff]
      %v1361 = vld [vmem:[%s297 + $0x38] sm:$0xff]
      %v1362 = vld [vmem:[%s297 + $0x40] sm:$0xff]
      %v1363 = vld [vmem:[%s297 + $0x48] sm:$0xff]
      %v1364 = vld [vmem:[%s297 + $0x50] sm:$0xff]
      %v1365 = vld [vmem:[%s297 + $0x58] sm:$0xff]
      %v1366 = vld [vmem:[%s297 + $0x60] sm:$0xff]
      %v1367 = vld [vmem:[%s297 + $0x68] sm:$0xff]
      %v1368 = vld [vmem:[%s297 + $0x70] sm:$0xff]
      %v1369 = vld [vmem:[%s297 + $0x78] sm:$0xff]
      %v1370 = vld [vmem:[%s297 + $0x80] sm:$0xff]
      %v1371 = vld [vmem:[%s297 + $0x88] sm:$0xff]
      %v1372 = vld [vmem:[%s297 + $0x90] sm:$0xff]
      %v1373 = vld [vmem:[%s297 + $0x98] sm:$0xff]
      %v1374 = vld [vmem:[%s297 + $0xa0] sm:$0xff]
      %v1375 = vld [vmem:[%s297 + $0xa8] sm:$0xff]
      %v1376 = vld [vmem:[%s297 + $0xb0] sm:$0xff]
      %v1377 = vld [vmem:[%s297 + $0xb8] sm:$0xff]
      %v1378 = vld [vmem:[%s297 + $0xc0] sm:$0xff]
      %v1379 = vld [vmem:[%s297 + $0xc8] sm:$0xff]
      %v1380 = vld [vmem:[%s297 + $0xd0] sm:$0xff]
      %v1381 = vld [vmem:[%s297 + $0xd8] sm:$0xff]
      %v1382 = vld [vmem:[%s297 + $0xe0] sm:$0xff]
      %v1383 = vld [vmem:[%s297 + $0xe8] sm:$0xff]
      %v1384 = vld [vmem:[%s297 + $0xf0] sm:$0xff]
      %v1385 = vld [vmem:[%s297 + $0xf8] sm:$0xff]
      %v1386 = vld [vmem:[%s297 + $0x100] sm:$0xff]
      %v1387 = vld [vmem:[%s297 + $0x108] sm:$0xff]
      %v1388 = vld [vmem:[%s297 + $0x110] sm:$0xff]
      %v1389 = vld [vmem:[%s297 + $0x118] sm:$0xff]
      %v1390 = vld [vmem:[%s297 + $0x120] sm:$0xff]
      %v1391 = vld [vmem:[%s297 + $0x128] sm:$0xff]
      %v1392 = vld [vmem:[%s297 + $0x130] sm:$0xff]
      %v1393 = vld [vmem:[%s297 + $0x138] sm:$0xff]
      %v1394 = vld [vmem:[%s297 + $0x140] sm:$0xff]
      %v1395 = vld [vmem:[%s297 + $0x148] sm:$0xff]
      %v1396 = vld [vmem:[%s297 + $0x150] sm:$0xff]
      %v1397 = vld [vmem:[%s297 + $0x158] sm:$0xff]
      %v1398 = vld [vmem:[%s297 + $0x160] sm:$0xff]
      %v1399 = vld [vmem:[%s297 + $0x168] sm:$0xff]
      %v1400 = vld [vmem:[%s297 + $0x170] sm:$0xff]
      %v1401 = vld [vmem:[%s297 + $0x178] sm:$0xff]
      %v1402 = vld [vmem:[%s297 + $0x180] sm:$0xff]
      %v1403 = vld [vmem:[%s297 + $0x188] sm:$0xff]
      %v1404 = vld [vmem:[%s297 + $0x190] sm:$0xff]
      %v1405 = vld [vmem:[%s297 + $0x198] sm:$0xff]
      %v1406 = vld [vmem:[%s297 + $0x1a0] sm:$0xff]
      %v1407 = vld [vmem:[%s297 + $0x1a8] sm:$0xff]
      %v1408 = vld [vmem:[%s297 + $0x1b0] sm:$0xff]
      %v1409 = vld [vmem:[%s297 + $0x1b8] sm:$0xff]
      %v1410 = vld [vmem:[%s297 + $0x1c0] sm:$0xff]
      %v1411 = vld [vmem:[%s297 + $0x1c8] sm:$0xff]
      %v1412 = vld [vmem:[%s297 + $0x1d0] sm:$0xff]
      %v1413 = vld [vmem:[%s297 + $0x1d8] sm:$0xff]
      %v1414 = vld [vmem:[%s297 + $0x1e0] sm:$0xff]
      %v1415 = vld [vmem:[%s297 + $0x1e8] sm:$0xff]
      %v1416 = vld [vmem:[%s297 + $0x1f0] sm:$0xff]
      %v1417 = vld [vmem:[%s297 + $0x1f8] sm:$0xff]
      %v1418 = vld [vmem:[%s297 + $0x200] sm:$0xff]
      %v1419 = vld [vmem:[%s297 + $0x208] sm:$0xff]
      %v1420 = vld [vmem:[%s297 + $0x210] sm:$0xff]
      %v1421 = vld [vmem:[%s297 + $0x218] sm:$0xff]
      %v1422 = vld [vmem:[%s297 + $0x220] sm:$0xff]
      %v1423 = vld [vmem:[%s297 + $0x228] sm:$0xff]
      %v1424 = vld [vmem:[%s297 + $0x230] sm:$0xff]
      %v1425 = vld [vmem:[%s297 + $0x238] sm:$0xff]
      %1427 = vset.pattern.permute.xlu0 0
      %1428 = vperm.xlu0 %1427, %v1354
      %v1429 = vpop.permute.xlu0 %1428
      %1432 = vset.pattern.permute.xlu0 0
      %1433 = vperm.xlu0 %1432, %v1355
      %v1434 = vpop.permute.xlu0 %1433
      %1437 = vset.pattern.permute.xlu0 0
      %1438 = vperm.xlu0 %1437, %v1356
      %v1439 = vpop.permute.xlu0 %1438
      %1442 = vset.pattern.permute.xlu0 0
      %1443 = vperm.xlu0 %1442, %v1357
      %v1444 = vpop.permute.xlu0 %1443
      %1447 = vset.pattern.permute.xlu0 0
      %1448 = vperm.xlu0 %1447, %v1358
      %v1449 = vpop.permute.xlu0 %1448
      %1452 = vset.pattern.permute.xlu0 0
      %1453 = vperm.xlu0 %1452, %v1359
      %v1454 = vpop.permute.xlu0 %1453
      %1457 = vset.pattern.permute.xlu0 0
      %1458 = vperm.xlu0 %1457, %v1360
      %v1459 = vpop.permute.xlu0 %1458
      %1462 = vset.pattern.permute.xlu0 0
      %1463 = vperm.xlu0 %1462, %v1361
      %v1464 = vpop.permute.xlu0 %1463
      %1467 = vset.pattern.permute.xlu0 0
      %1468 = vperm.xlu0 %1467, %v1362
      %v1469 = vpop.permute.xlu0 %1468
      %1472 = vset.pattern.permute.xlu0 0
      %1473 = vperm.xlu0 %1472, %v1363
      %v1474 = vpop.permute.xlu0 %1473
      %1477 = vset.pattern.permute.xlu0 0
      %1478 = vperm.xlu0 %1477, %v1364
      %v1479 = vpop.permute.xlu0 %1478
      %1482 = vset.pattern.permute.xlu0 0
      %1483 = vperm.xlu0 %1482, %v1365
      %v1484 = vpop.permute.xlu0 %1483
      %1487 = vset.pattern.permute.xlu0 0
      %1488 = vperm.xlu0 %1487, %v1366
      %v1489 = vpop.permute.xlu0 %1488
      %1492 = vset.pattern.permute.xlu0 0
      %1493 = vperm.xlu0 %1492, %v1367
      %v1494 = vpop.permute.xlu0 %1493
      %1497 = vset.pattern.permute.xlu0 0
      %1498 = vperm.xlu0 %1497, %v1368
      %v1499 = vpop.permute.xlu0 %1498
      %1502 = vset.pattern.permute.xlu0 0
      %1503 = vperm.xlu0 %1502, %v1369
      %v1504 = vpop.permute.xlu0 %1503
      %1507 = vset.pattern.permute.xlu0 0
      %1508 = vperm.xlu0 %1507, %v1370
      %v1509 = vpop.permute.xlu0 %1508
      %1512 = vset.pattern.permute.xlu0 0
      %1513 = vperm.xlu0 %1512, %v1371
      %v1514 = vpop.permute.xlu0 %1513
      %1517 = vset.pattern.permute.xlu0 0
      %1518 = vperm.xlu0 %1517, %v1372
      %v1519 = vpop.permute.xlu0 %1518
      %1522 = vset.pattern.permute.xlu0 0
      %1523 = vperm.xlu0 %1522, %v1373
      %v1524 = vpop.permute.xlu0 %1523
      %1527 = vset.pattern.permute.xlu0 0
      %1528 = vperm.xlu0 %1527, %v1374
      %v1529 = vpop.permute.xlu0 %1528
      %1532 = vset.pattern.permute.xlu0 0
      %1533 = vperm.xlu0 %1532, %v1375
      %v1534 = vpop.permute.xlu0 %1533
      %1537 = vset.pattern.permute.xlu0 0
      %1538 = vperm.xlu0 %1537, %v1376
      %v1539 = vpop.permute.xlu0 %1538
      %1542 = vset.pattern.permute.xlu0 0
      %1543 = vperm.xlu0 %1542, %v1377
      %v1544 = vpop.permute.xlu0 %1543
      %1547 = vset.pattern.permute.xlu0 0
      %1548 = vperm.xlu0 %1547, %v1378
      %v1549 = vpop.permute.xlu0 %1548
      %1552 = vset.pattern.permute.xlu0 0
      %1553 = vperm.xlu0 %1552, %v1379
      %v1554 = vpop.permute.xlu0 %1553
      %1557 = vset.pattern.permute.xlu0 0
      %1558 = vperm.xlu0 %1557, %v1380
      %v1559 = vpop.permute.xlu0 %1558
      %1562 = vset.pattern.permute.xlu0 0
      %1563 = vperm.xlu0 %1562, %v1381
      %v1564 = vpop.permute.xlu0 %1563
      %1567 = vset.pattern.permute.xlu0 0
      %1568 = vperm.xlu0 %1567, %v1382
      %v1569 = vpop.permute.xlu0 %1568
      %1572 = vset.pattern.permute.xlu0 0
      %1573 = vperm.xlu0 %1572, %v1383
      %v1574 = vpop.permute.xlu0 %1573
      %1577 = vset.pattern.permute.xlu0 0
      %1578 = vperm.xlu0 %1577, %v1384
      %v1579 = vpop.permute.xlu0 %1578
      %1582 = vset.pattern.permute.xlu0 0
      %1583 = vperm.xlu0 %1582, %v1385
      %v1584 = vpop.permute.xlu0 %1583
      %1587 = vset.pattern.permute.xlu0 0
      %1588 = vperm.xlu0 %1587, %v1386
      %v1589 = vpop.permute.xlu0 %1588
      %1592 = vset.pattern.permute.xlu0 0
      %1593 = vperm.xlu0 %1592, %v1387
      %v1594 = vpop.permute.xlu0 %1593
      %1597 = vset.pattern.permute.xlu0 0
      %1598 = vperm.xlu0 %1597, %v1388
      %v1599 = vpop.permute.xlu0 %1598
      %1602 = vset.pattern.permute.xlu0 0
      %1603 = vperm.xlu0 %1602, %v1389
      %v1604 = vpop.permute.xlu0 %1603
      %1607 = vset.pattern.permute.xlu0 0
      %1608 = vperm.xlu0 %1607, %v1390
      %v1609 = vpop.permute.xlu0 %1608
      %1612 = vset.pattern.permute.xlu0 0
      %1613 = vperm.xlu0 %1612, %v1391
      %v1614 = vpop.permute.xlu0 %1613
      %1617 = vset.pattern.permute.xlu0 0
      %1618 = vperm.xlu0 %1617, %v1392
      %v1619 = vpop.permute.xlu0 %1618
      %1622 = vset.pattern.permute.xlu0 0
      %1623 = vperm.xlu0 %1622, %v1393
      %v1624 = vpop.permute.xlu0 %1623
      %1627 = vset.pattern.permute.xlu0 0
      %1628 = vperm.xlu0 %1627, %v1394
      %v1629 = vpop.permute.xlu0 %1628
      %1632 = vset.pattern.permute.xlu0 0
      %1633 = vperm.xlu0 %1632, %v1395
      %v1634 = vpop.permute.xlu0 %1633
      %1637 = vset.pattern.permute.xlu0 0
      %1638 = vperm.xlu0 %1637, %v1396
      %v1639 = vpop.permute.xlu0 %1638
      %1642 = vset.pattern.permute.xlu0 0
      %1643 = vperm.xlu0 %1642, %v1397
      %v1644 = vpop.permute.xlu0 %1643
      %1647 = vset.pattern.permute.xlu0 0
      %1648 = vperm.xlu0 %1647, %v1398
      %v1649 = vpop.permute.xlu0 %1648
      %1652 = vset.pattern.permute.xlu0 0
      %1653 = vperm.xlu0 %1652, %v1399
      %v1654 = vpop.permute.xlu0 %1653
      %1657 = vset.pattern.permute.xlu0 0
      %1658 = vperm.xlu0 %1657, %v1400
      %v1659 = vpop.permute.xlu0 %1658
      %1662 = vset.pattern.permute.xlu0 0
      %1663 = vperm.xlu0 %1662, %v1401
      %v1664 = vpop.permute.xlu0 %1663
      %1667 = vset.pattern.permute.xlu0 0
      %1668 = vperm.xlu0 %1667, %v1402
      %v1669 = vpop.permute.xlu0 %1668
      %1672 = vset.pattern.permute.xlu0 0
      %1673 = vperm.xlu0 %1672, %v1403
      %v1674 = vpop.permute.xlu0 %1673
      %1677 = vset.pattern.permute.xlu0 0
      %1678 = vperm.xlu0 %1677, %v1404
      %v1679 = vpop.permute.xlu0 %1678
      %1682 = vset.pattern.permute.xlu0 0
      %1683 = vperm.xlu0 %1682, %v1405
      %v1684 = vpop.permute.xlu0 %1683
      %1687 = vset.pattern.permute.xlu0 0
      %1688 = vperm.xlu0 %1687, %v1406
      %v1689 = vpop.permute.xlu0 %1688
      %1692 = vset.pattern.permute.xlu0 0
      %1693 = vperm.xlu0 %1692, %v1407
      %v1694 = vpop.permute.xlu0 %1693
      %1697 = vset.pattern.permute.xlu0 0
      %1698 = vperm.xlu0 %1697, %v1408
      %v1699 = vpop.permute.xlu0 %1698
      %1702 = vset.pattern.permute.xlu0 0
      %1703 = vperm.xlu0 %1702, %v1409
      %v1704 = vpop.permute.xlu0 %1703
      %1707 = vset.pattern.permute.xlu0 0
      %1708 = vperm.xlu0 %1707, %v1410
      %v1709 = vpop.permute.xlu0 %1708
      %1712 = vset.pattern.permute.xlu0 0
      %1713 = vperm.xlu0 %1712, %v1411
      %v1714 = vpop.permute.xlu0 %1713
      %1717 = vset.pattern.permute.xlu0 0
      %1718 = vperm.xlu0 %1717, %v1412
      %v1719 = vpop.permute.xlu0 %1718
      %1722 = vset.pattern.permute.xlu0 0
      %1723 = vperm.xlu0 %1722, %v1413
      %v1724 = vpop.permute.xlu0 %1723
      %1727 = vset.pattern.permute.xlu0 0
      %1728 = vperm.xlu0 %1727, %v1414
      %v1729 = vpop.permute.xlu0 %1728
      %1732 = vset.pattern.permute.xlu0 0
      %1733 = vperm.xlu0 %1732, %v1415
      %v1734 = vpop.permute.xlu0 %1733
      %1737 = vset.pattern.permute.xlu0 0
      %1738 = vperm.xlu0 %1737, %v1416
      %v1739 = vpop.permute.xlu0 %1738
      %1742 = vset.pattern.permute.xlu0 0
      %1743 = vperm.xlu0 %1742, %v1417
      %v1744 = vpop.permute.xlu0 %1743
      %1747 = vset.pattern.permute.xlu0 0
      %1748 = vperm.xlu0 %1747, %v1418
      %v1749 = vpop.permute.xlu0 %1748
      %1752 = vset.pattern.permute.xlu0 0
      %1753 = vperm.xlu0 %1752, %v1419
      %v1754 = vpop.permute.xlu0 %1753
      %1757 = vset.pattern.permute.xlu0 0
      %1758 = vperm.xlu0 %1757, %v1420
      %v1759 = vpop.permute.xlu0 %1758
      %1762 = vset.pattern.permute.xlu0 0
      %1763 = vperm.xlu0 %1762, %v1421
      %v1764 = vpop.permute.xlu0 %1763
      %1767 = vset.pattern.permute.xlu0 0
      %1768 = vperm.xlu0 %1767, %v1422
      %v1769 = vpop.permute.xlu0 %1768
      %1772 = vset.pattern.permute.xlu0 0
      %1773 = vperm.xlu0 %1772, %v1423
      %v1774 = vpop.permute.xlu0 %1773
      %1777 = vset.pattern.permute.xlu0 0
      %1778 = vperm.xlu0 %1777, %v1424
      %v1779 = vpop.permute.xlu0 %1778
      %1782 = vset.pattern.permute.xlu0 0
      %1783 = vperm.xlu0 %1782, %v1425
      %v1784 = vpop.permute.xlu0 %1783
      %v1786 = vmul.f32 %v708, %v1429
      %v1787 = vmul.f32 %v711, %v1434
      %v1788 = vmul.f32 %v716, %v1439
      %v1789 = vmul.f32 %v719, %v1444
      %v1790 = vmul.f32 %v724, %v1449
      %v1791 = vmul.f32 %v727, %v1454
      %v1792 = vmul.f32 %v732, %v1459
      %v1793 = vmul.f32 %v735, %v1464
      %v1794 = vmul.f32 %v740, %v1469
      %v1795 = vmul.f32 %v743, %v1474
      %v1796 = vmul.f32 %v748, %v1479
      %v1797 = vmul.f32 %v751, %v1484
      %v1798 = vmul.f32 %v756, %v1489
      %v1799 = vmul.f32 %v759, %v1494
      %v1800 = vmul.f32 %v764, %v1499
      %v1801 = vmul.f32 %v767, %v1504
      %v1802 = vmul.f32 %v772, %v1509
      %v1803 = vmul.f32 %v775, %v1514
      %v1804 = vmul.f32 %v780, %v1519
      %v1805 = vmul.f32 %v783, %v1524
      %v1806 = vmul.f32 %v788, %v1529
      %v1807 = vmul.f32 %v791, %v1534
      %v1808 = vmul.f32 %v796, %v1539
      %v1809 = vmul.f32 %v799, %v1544
      %v1810 = vmul.f32 %v804, %v1549
      %v1811 = vmul.f32 %v807, %v1554
      %v1812 = vmul.f32 %v812, %v1559
      %v1813 = vmul.f32 %v815, %v1564
      %v1814 = vmul.f32 %v820, %v1569
      %v1815 = vmul.f32 %v823, %v1574
      %v1816 = vmul.f32 %v828, %v1579
      %v1817 = vmul.f32 %v831, %v1584
      %v1818 = vmul.f32 %v836, %v1589
      %v1819 = vmul.f32 %v839, %v1594
      %v1820 = vmul.f32 %v844, %v1599
      %v1821 = vmul.f32 %v847, %v1604
      %v1822 = vmul.f32 %v852, %v1609
      %v1823 = vmul.f32 %v855, %v1614
      %v1824 = vmul.f32 %v860, %v1619
      %v1825 = vmul.f32 %v863, %v1624
      %v1826 = vmul.f32 %v868, %v1629
      %v1827 = vmul.f32 %v871, %v1634
      %v1828 = vmul.f32 %v876, %v1639
      %v1829 = vmul.f32 %v879, %v1644
      %v1830 = vmul.f32 %v884, %v1649
      %v1831 = vmul.f32 %v887, %v1654
      %v1832 = vmul.f32 %v892, %v1659
      %v1833 = vmul.f32 %v895, %v1664
      %v1834 = vmul.f32 %v900, %v1669
      %v1835 = vmul.f32 %v903, %v1674
      %v1836 = vmul.f32 %v908, %v1679
      %v1837 = vmul.f32 %v911, %v1684
      %v1838 = vmul.f32 %v916, %v1689
      %v1839 = vmul.f32 %v919, %v1694
      %v1840 = vmul.f32 %v924, %v1699
      %v1841 = vmul.f32 %v927, %v1704
      %v1842 = vmul.f32 %v932, %v1709
      %v1843 = vmul.f32 %v935, %v1714
      %v1844 = vmul.f32 %v940, %v1719
      %v1845 = vmul.f32 %v943, %v1724
      %v1846 = vmul.f32 %v948, %v1729
      %v1847 = vmul.f32 %v951, %v1734
      %v1848 = vmul.f32 %v956, %v1739
      %v1849 = vmul.f32 %v959, %v1744
      %v1850 = vmul.f32 %v964, %v1749
      %v1851 = vmul.f32 %v967, %v1754
      %v1852 = vmul.f32 %v972, %v1759
      %v1853 = vmul.f32 %v975, %v1764
      %v1854 = vmul.f32 %v980, %v1769
      %v1855 = vmul.f32 %v983, %v1774
      %v1856 = vmul.f32 %v988, %v1779
      %v1857 = vmul.f32 %v991, %v1784
      %v1858 = vadd.f32 %v1786, %v1787
      %v1859 = vadd.f32 %v1858, %v1788
      %v1860 = vadd.f32 %v1859, %v1789
      %v1861 = vadd.f32 %v1860, %v1790
      %v1862 = vadd.f32 %v1861, %v1791
      %v1863 = vadd.f32 %v1862, %v1792
      %v1864 = vadd.f32 %v1863, %v1793
      %v1865 = vadd.f32 %v1864, %v1794
      %v1866 = vadd.f32 %v1865, %v1795
      %v1867 = vadd.f32 %v1866, %v1796
      %v1868 = vadd.f32 %v1867, %v1797
      %v1869 = vadd.f32 %v1868, %v1798
      %v1870 = vadd.f32 %v1869, %v1799
      %v1871 = vadd.f32 %v1870, %v1800
      %v1872 = vadd.f32 %v1871, %v1801
      %v1873 = vadd.f32 %v1872, %v1802
      %v1874 = vadd.f32 %v1873, %v1803
      %v1875 = vadd.f32 %v1874, %v1804
      %v1876 = vadd.f32 %v1875, %v1805
      %v1877 = vadd.f32 %v1876, %v1806
      %v1878 = vadd.f32 %v1877, %v1807
      %v1879 = vadd.f32 %v1878, %v1808
      %v1880 = vadd.f32 %v1879, %v1809
      %v1881 = vadd.f32 %v1880, %v1810
      %v1882 = vadd.f32 %v1881, %v1811
      %v1883 = vadd.f32 %v1882, %v1812
      %v1884 = vadd.f32 %v1883, %v1813
      %v1885 = vadd.f32 %v1884, %v1814
      %v1886 = vadd.f32 %v1885, %v1815
      %v1887 = vadd.f32 %v1886, %v1816
      %v1888 = vadd.f32 %v1887, %v1817
      %v1889 = vadd.f32 %v1888, %v1818
      %v1890 = vadd.f32 %v1889, %v1819
      %v1891 = vadd.f32 %v1890, %v1820
      %v1892 = vadd.f32 %v1891, %v1821
      %v1893 = vadd.f32 %v1892, %v1822
      %v1894 = vadd.f32 %v1893, %v1823
      %v1895 = vadd.f32 %v1894, %v1824
      %v1896 = vadd.f32 %v1895, %v1825
      %v1897 = vadd.f32 %v1896, %v1826
      %v1898 = vadd.f32 %v1897, %v1827
      %v1899 = vadd.f32 %v1898, %v1828
      %v1900 = vadd.f32 %v1899, %v1829
      %v1901 = vadd.f32 %v1900, %v1830
      %v1902 = vadd.f32 %v1901, %v1831
      %v1903 = vadd.f32 %v1902, %v1832
      %v1904 = vadd.f32 %v1903, %v1833
      %v1905 = vadd.f32 %v1904, %v1834
      %v1906 = vadd.f32 %v1905, %v1835
      %v1907 = vadd.f32 %v1906, %v1836
      %v1908 = vadd.f32 %v1907, %v1837
      %v1909 = vadd.f32 %v1908, %v1838
      %v1910 = vadd.f32 %v1909, %v1839
      %v1911 = vadd.f32 %v1910, %v1840
      %v1912 = vadd.f32 %v1911, %v1841
      %v1913 = vadd.f32 %v1912, %v1842
      %v1914 = vadd.f32 %v1913, %v1843
      %v1915 = vadd.f32 %v1914, %v1844
      %v1916 = vadd.f32 %v1915, %v1845
      %v1917 = vadd.f32 %v1916, %v1846
      %v1918 = vadd.f32 %v1917, %v1847
      %v1919 = vadd.f32 %v1918, %v1848
      %v1920 = vadd.f32 %v1919, %v1849
      %v1921 = vadd.f32 %v1920, %v1850
      %v1922 = vadd.f32 %v1921, %v1851
      %v1923 = vadd.f32 %v1922, %v1852
      %v1924 = vadd.f32 %v1923, %v1853
      %v1925 = vadd.f32 %v1924, %v1854
      %v1926 = vadd.f32 %v1925, %v1855
      %v1927 = vadd.f32 %v1926, %v1856
      %v1928 = vadd.f32 %v1927, %v1857
      %v1929 = vrot.slane %v1928, 4
      %v1930 = vadd.f32 %v1928, %v1929
      %v1931 = vrot.slane %v1930, 2
      %v1932 = vadd.f32 %v1930, %v1931
      %v1933 = vrot.slane %v1932, 1
      %v1934 = vadd.f32 %v1932, %v1933
      %1935 = vst [vmem:[%s313] sm:$0x1] %v1934
      %v1936 = vmul.f32 %v1786, %v708
      %v1937 = vmul.f32 %v1787, %v711
      %v1938 = vmul.f32 %v1788, %v716
      %v1939 = vmul.f32 %v1789, %v719
      %v1940 = vmul.f32 %v1790, %v724
      %v1941 = vmul.f32 %v1791, %v727
      %v1942 = vmul.f32 %v1792, %v732
      %v1943 = vmul.f32 %v1793, %v735
      %v1944 = vmul.f32 %v1794, %v740
      %v1945 = vmul.f32 %v1795, %v743
      %v1946 = vmul.f32 %v1796, %v748
      %v1947 = vmul.f32 %v1797, %v751
      %v1948 = vmul.f32 %v1798, %v756
      %v1949 = vmul.f32 %v1799, %v759
      %v1950 = vmul.f32 %v1800, %v764
      %v1951 = vmul.f32 %v1801, %v767
      %v1952 = vmul.f32 %v1802, %v772
      %v1953 = vmul.f32 %v1803, %v775
      %v1954 = vmul.f32 %v1804, %v780
      %v1955 = vmul.f32 %v1805, %v783
      %v1956 = vmul.f32 %v1806, %v788
      %v1957 = vmul.f32 %v1807, %v791
      %v1958 = vmul.f32 %v1808, %v796
      %v1959 = vmul.f32 %v1809, %v799
      %v1960 = vmul.f32 %v1810, %v804
      %v1961 = vmul.f32 %v1811, %v807
      %v1962 = vmul.f32 %v1812, %v812
      %v1963 = vmul.f32 %v1813, %v815
      %v1964 = vmul.f32 %v1814, %v820
      %v1965 = vmul.f32 %v1815, %v823
      %v1966 = vmul.f32 %v1816, %v828
      %v1967 = vmul.f32 %v1817, %v831
      %v1968 = vmul.f32 %v1818, %v836
      %v1969 = vmul.f32 %v1819, %v839
      %v1970 = vmul.f32 %v1820, %v844
      %v1971 = vmul.f32 %v1821, %v847
      %v1972 = vmul.f32 %v1822, %v852
      %v1973 = vmul.f32 %v1823, %v855
      %v1974 = vmul.f32 %v1824, %v860
      %v1975 = vmul.f32 %v1825, %v863
      %v1976 = vmul.f32 %v1826, %v868
      %v1977 = vmul.f32 %v1827, %v871
      %v1978 = vmul.f32 %v1828, %v876
      %v1979 = vmul.f32 %v1829, %v879
      %v1980 = vmul.f32 %v1830, %v884
      %v1981 = vmul.f32 %v1831, %v887
      %v1982 = vmul.f32 %v1832, %v892
      %v1983 = vmul.f32 %v1833, %v895
      %v1984 = vmul.f32 %v1834, %v900
      %v1985 = vmul.f32 %v1835, %v903
      %v1986 = vmul.f32 %v1836, %v908
      %v1987 = vmul.f32 %v1837, %v911
      %v1988 = vmul.f32 %v1838, %v916
      %v1989 = vmul.f32 %v1839, %v919
      %v1990 = vmul.f32 %v1840, %v924
      %v1991 = vmul.f32 %v1841, %v927
      %v1992 = vmul.f32 %v1842, %v932
      %v1993 = vmul.f32 %v1843, %v935
      %v1994 = vmul.f32 %v1844, %v940
      %v1995 = vmul.f32 %v1845, %v943
      %v1996 = vmul.f32 %v1846, %v948
      %v1997 = vmul.f32 %v1847, %v951
      %v1998 = vmul.f32 %v1848, %v956
      %v1999 = vmul.f32 %v1849, %v959
      %v2000 = vmul.f32 %v1850, %v964
      %v2001 = vmul.f32 %v1851, %v967
      %v2002 = vmul.f32 %v1852, %v972
      %v2003 = vmul.f32 %v1853, %v975
      %v2004 = vmul.f32 %v1854, %v980
      %v2005 = vmul.f32 %v1855, %v983
      %v2006 = vmul.f32 %v1856, %v988
      %v2007 = vmul.f32 %v1857, %v991
      %v2008 = vadd.f32 %v1936, %v1937
      %v2009 = vadd.f32 %v2008, %v1938
      %v2010 = vadd.f32 %v2009, %v1939
      %v2011 = vadd.f32 %v2010, %v1940
      %v2012 = vadd.f32 %v2011, %v1941
      %v2013 = vadd.f32 %v2012, %v1942
      %v2014 = vadd.f32 %v2013, %v1943
      %v2015 = vadd.f32 %v2014, %v1944
      %v2016 = vadd.f32 %v2015, %v1945
      %v2017 = vadd.f32 %v2016, %v1946
      %v2018 = vadd.f32 %v2017, %v1947
      %v2019 = vadd.f32 %v2018, %v1948
      %v2020 = vadd.f32 %v2019, %v1949
      %v2021 = vadd.f32 %v2020, %v1950
      %v2022 = vadd.f32 %v2021, %v1951
      %v2023 = vadd.f32 %v2022, %v1952
      %v2024 = vadd.f32 %v2023, %v1953
      %v2025 = vadd.f32 %v2024, %v1954
      %v2026 = vadd.f32 %v2025, %v1955
      %v2027 = vadd.f32 %v2026, %v1956
      %v2028 = vadd.f32 %v2027, %v1957
      %v2029 = vadd.f32 %v2028, %v1958
      %v2030 = vadd.f32 %v2029, %v1959
      %v2031 = vadd.f32 %v2030, %v1960
      %v2032 = vadd.f32 %v2031, %v1961
      %v2033 = vadd.f32 %v2032, %v1962
      %v2034 = vadd.f32 %v2033, %v1963
      %v2035 = vadd.f32 %v2034, %v1964
      %v2036 = vadd.f32 %v2035, %v1965
      %v2037 = vadd.f32 %v2036, %v1966
      %v2038 = vadd.f32 %v2037, %v1967
      %v2039 = vadd.f32 %v2038, %v1968
      %v2040 = vadd.f32 %v2039, %v1969
      %v2041 = vadd.f32 %v2040, %v1970
      %v2042 = vadd.f32 %v2041, %v1971
      %v2043 = vadd.f32 %v2042, %v1972
      %v2044 = vadd.f32 %v2043, %v1973
      %v2045 = vadd.f32 %v2044, %v1974
      %v2046 = vadd.f32 %v2045, %v1975
      %v2047 = vadd.f32 %v2046, %v1976
      %v2048 = vadd.f32 %v2047, %v1977
      %v2049 = vadd.f32 %v2048, %v1978
      %v2050 = vadd.f32 %v2049, %v1979
      %v2051 = vadd.f32 %v2050, %v1980
      %v2052 = vadd.f32 %v2051, %v1981
      %v2053 = vadd.f32 %v2052, %v1982
      %v2054 = vadd.f32 %v2053, %v1983
      %v2055 = vadd.f32 %v2054, %v1984
      %v2056 = vadd.f32 %v2055, %v1985
      %v2057 = vadd.f32 %v2056, %v1986
      %v2058 = vadd.f32 %v2057, %v1987
      %v2059 = vadd.f32 %v2058, %v1988
      %v2060 = vadd.f32 %v2059, %v1989
      %v2061 = vadd.f32 %v2060, %v1990
      %v2062 = vadd.f32 %v2061, %v1991
      %v2063 = vadd.f32 %v2062, %v1992
      %v2064 = vadd.f32 %v2063, %v1993
      %v2065 = vadd.f32 %v2064, %v1994
      %v2066 = vadd.f32 %v2065, %v1995
      %v2067 = vadd.f32 %v2066, %v1996
      %v2068 = vadd.f32 %v2067, %v1997
      %v2069 = vadd.f32 %v2068, %v1998
      %v2070 = vadd.f32 %v2069, %v1999
      %v2071 = vadd.f32 %v2070, %v2000
      %v2072 = vadd.f32 %v2071, %v2001
      %v2073 = vadd.f32 %v2072, %v2002
      %v2074 = vadd.f32 %v2073, %v2003
      %v2075 = vadd.f32 %v2074, %v2004
      %v2076 = vadd.f32 %v2075, %v2005
      %v2077 = vadd.f32 %v2076, %v2006
      %v2078 = vadd.f32 %v2077, %v2007
      %v2079 = vrot.slane %v2078, 4
      %v2080 = vadd.f32 %v2078, %v2079
      %v2081 = vrot.slane %v2080, 2
      %v2082 = vadd.f32 %v2080, %v2081
      %v2083 = vrot.slane %v2082, 1
      %v2084 = vadd.f32 %v2082, %v2083
      %2085 = vst [vmem:[%s319] sm:$0x1] %v2084
      %s2086 = smul.u32 72, %s21
      %p2087 = scmp.lt.s32.totalorder %s2086, 143
      %s2088 = scalar_select %p2087, %s2086, 143
      %p2089 = scmp.lt.s32.totalorder %s22, 0
      %s2090 = scalar_select %p2089, %s22, 0
      %s2091 = sadd.s32 %s2090, %s2088
      %s2092 = smul.addr %s2091, 4
      %s2093 = scalar_lea.vmem %s3, %s2092
      %p2094 = scmp.lt.s32.totalorder %s21, 1
      %s2095 = scalar_select %p2094, %s21, 1
      %p2096 = scmp.lt.s32.totalorder %s22, 0
      %s2097 = scalar_select %p2096, %s22, 0
      %s2098 = sadd.s32 %s2097, %s2095
      %s2099 = scalar_lea.vmem %s4, %s2098
      %p2100 = scmp.lt.s32.totalorder %s21, 1
      %s2101 = scalar_select %p2100, %s21, 1
      %p2102 = scmp.lt.s32.totalorder %s22, 0
      %s2103 = scalar_select %p2102, %s22, 0
      %s2104 = sadd.s32 %s2103, %s2101
      %s2105 = scalar_lea.vmem %s5, %s2104
      // Predicated region
      $region33: #{unet_forward.19} parent=31 // pred_check
        %p2106 = pneg %p127
      $region34: #{unet_forward.19} parent=31 // pred_check_branch
        %2108 = sbr.rel (%p2106) target = $region36
      $region35: #{unet_forward.19} parent=31 // pred_region
        %s2109 = smul.u32 72, %s21
      $region36: #{unet_forward.19} parent=31 // pred_fallthru
        _
      // Predicated region
      $region37: #{unet_forward.19} parent=31 // pred_check
        %p2110 = pneg %p155
      $region38: #{unet_forward.19} parent=31 // pred_check_branch
        %2112 = sbr.rel (%p2110) target = $region40
      $region39: #{unet_forward.19} parent=31 // pred_region
        _
      $region40: #{unet_forward.19} parent=31 // pred_fallthru
        _
      // Predicated region
      $region41: #{unet_forward.19} parent=31 // pred_check
        %p2113 = pneg %p183
      $region42: #{unet_forward.19} parent=31 // pred_check_branch
        %2115 = sbr.rel (%p2113) target = $region44
      $region43: #{unet_forward.19} parent=31 // pred_region
        _
      $region44: #{unet_forward.19} parent=31 // pred_fallthru
        _
    $region32: #{unet_forward.19} parent=5 // pred_fallthru
      _
    %p2116 = scmp.le.s32.totalorder 2, %s12
    // Predicated region
    $region45: #{unet_forward.19} parent=5 // pred_check
      %p2117 = pneg %p2116
    $region46: #{unet_forward.19} parent=5 // pred_check_branch
      %2119 = sbr.rel (%p2117) target = $region48
    $region47: #{unet_forward.19} parent=5 // pred_region
      %s2120 = ssub.s32 %s12, 2
      // Predicated region
      $region49: #{unet_forward.19} parent=47 // pred_check
        %p2121 = pneg %p133
      $region50: #{unet_forward.19} parent=47 // pred_check_branch
        %2123 = sbr.rel (%p2121) target = $region52
      $region51: #{unet_forward.19} parent=47 // pred_region
        %s2124 = smul.u32 72, %s23
        %p2125 = scmp.lt.s32.totalorder %s2124, 143
        %s2126 = scalar_select %p2125, %s2124, 143
        %p2127 = scmp.lt.s32.totalorder %s24, 0
        %s2128 = scalar_select %p2127, %s24, 0
        %s2129 = sadd.s32 %s2128, %s2126
        %s2130 = smul.addr %s2129, 4
        %s2131 = scalar_lea.vmem %s3, %s2130
      $region52: #{unet_forward.19} parent=47 // pred_fallthru
        _
      // Predicated region
      $region53: #{unet_forward.19} parent=47 // pred_check
        %p2132 = pneg %p161
      $region54: #{unet_forward.19} parent=47 // pred_check_branch
        %2134 = sbr.rel (%p2132) target = $region56
      $region55: #{unet_forward.19} parent=47 // pred_region
        %p2135 = scmp.lt.s32.totalorder %s23, 1
        %s2136 = scalar_select %p2135, %s23, 1
        %p2137 = scmp.lt.s32.totalorder %s24, 0
        %s2138 = scalar_select %p2137, %s24, 0
        %s2139 = sadd.s32 %s2138, %s2136
        %s2140 = scalar_lea.vmem %s4, %s2139
      $region56: #{unet_forward.19} parent=47 // pred_fallthru
        _
      // Predicated region
      $region57: #{unet_forward.19} parent=47 // pred_check
        %p2141 = pneg %p189
      $region58: #{unet_forward.19} parent=47 // pred_check_branch
        %2143 = sbr.rel (%p2141) target = $region60
      $region59: #{unet_forward.19} parent=47 // pred_region
        %p2144 = scmp.lt.s32.totalorder %s23, 1
        %s2145 = scalar_select %p2144, %s23, 1
        %p2146 = scmp.lt.s32.totalorder %s24, 0
        %s2147 = scalar_select %p2146, %s24, 0
        %s2148 = sadd.s32 %s2147, %s2145
        %s2149 = scalar_lea.vmem %s5, %s2148
      $region60: #{unet_forward.19} parent=47 // pred_fallthru
        _
    $region48: #{unet_forward.19} parent=5 // pred_fallthru
      _
  $region6: #{unet_forward.19} parent=0 // loop_footer
    %s16 = sadd.s32 1, %s12
  $region7: #{unet_forward.19} parent=0 // loop_footer_branch
    %11 = sbr.rel target = $region3
  $region8: #{unet_forward.19} parent=0 // loop_exit
    _

</llo_original>
